<compile_context>
chip_gen: v6e
topology: v6e:2x2x1
jax: 0.10.0
libtpu: 0.0.40
codegen_flags: <defaults>
</compile_context>

<pallas_src>
import functools

import jax
import jax.numpy as jnp
from jax.experimental import pallas as pl
from jax.experimental.pallas import tpu as pltpu

LN_EPS = 1e-5
VMEM_LIMIT = 32 * 1024 * 1024  # explicit budget; safe on v5e/v6e/v7x


# ----------------------------------------------------------------------------
# small in-kernel helpers
# ----------------------------------------------------------------------------
def _bf16(x):
    return x.astype(jnp.bfloat16)


def _dot(a, b):
    # bf16 MXU inputs, f32 accumulation (perf-review item).
    return jnp.dot(_bf16(a), _bf16(b), preferred_element_type=jnp.float32)


def _layer_norm(x, g, b):
    mu = jnp.mean(x, axis=-1, keepdims=True)
    d = x - mu
    var = jnp.mean(d * d, axis=-1, keepdims=True)
    return d * jax.lax.rsqrt(var + LN_EPS) * g + b


def _mha(q, k, v, num_heads):
    """Multi-head attention on 2-D (seq, E) operands.

    Per-head Q/V are selected with lane masks (Q*m_h) so every matmul stays
    full lane width; summing the per-head contexts reproduces the
    concatenated-heads layout exactly (V*m_h is zero outside head h's lanes).
    """
    _, E = q.shape
    hd = E // num_heads
    scale = 1.0 / (hd ** 0.5)
    lane = jax.lax.broadcasted_iota(jnp.int32, (1, E), 1)
    k_t = _bf16(k.T)                                   # (E, Sk), hoisted
    ctx = jnp.zeros_like(q)
    for h in range(num_heads):
        m = ((lane >= h * hd) & (lane < (h + 1) * hd)).astype(jnp.float32)
        s = _dot(q * m, k_t) * scale                   # == Q_h @ K_h^T
        s = s - jnp.max(s, axis=-1, keepdims=True)
        p = jnp.exp(s)
        p = p * pl.reciprocal(jnp.sum(p, axis=-1, keepdims=True), approx=True)
        ctx = ctx + _dot(p, v * m)                     # fills head-h lanes only
    return ctx


# ----------------------------------------------------------------------------
# kernels
# ----------------------------------------------------------------------------
def _temporal_kernel(cols_ref, w_ref, b_ref, pos_ref, o_ref, acc_ref, *, inv_t):
    """Conv1d(2, E, k=3, pad=1) as GEMM over im2col windows, ReLU, mean over
    time (grid axis t = 'arbitrary' reduction, accumulator in VMEM scratch),
    fused with the positional-encoding add."""
    t = pl.program_id(1)

    @pl.when(t == 0)
    def _init():
        acc_ref[...] = jnp.zeros_like(acc_ref)

    x = cols_ref[0, 0]                                       # (F, 6)
    h = jnp.dot(x, w_ref[...], preferred_element_type=jnp.float32) + b_ref[...]
    acc_ref[...] += jnp.maximum(h, 0.0)

    @pl.when(t == pl.num_programs(1) - 1)
    def _finalize():
        o_ref[0] = acc_ref[...] * inv_t + pos_ref[...]


def _encoder_layer_kernel(x_ref, wq, wk, wv, bq, bk, bv, wo, bo, g1, be1,
                          w1, b1, w2, b2, g2, be2, o_ref, *, num_heads):
    """Post-norm nn.TransformerEncoderLayer (self-attn -> LN -> FFN -> LN)."""
    x = x_ref[0]                                             # (S, E) f32
    q = _dot(x, wq[...]) + bq[...]
    k = _dot(x, wk[...]) + bk[...]
    v = _dot(x, wv[...]) + bv[...]
    attn = _dot(_mha(q, k, v, num_heads), wo[...]) + bo[...]
    x = _layer_norm(x + attn, g1[...], be1[...])
    h = jnp.maximum(_dot(x, w1[...]) + b1[...], 0.0)
    x = _layer_norm(x + _dot(h, w2[...]) + b2[...], g2[...], be2[...])
    o_ref[0] = x


def _decoder_layer_kernel(x_ref, m_ref,
                          wq1, wk1, wv1, bq1, bk1, bv1, wo1, bo1, g1, be1,
                          wq2, wk2, wv2, bq2, bk2, bv2, wo2, bo2, g2, be2,
                          w1, b1, w2, b2, g3, be3, o_ref, *, num_heads):
    """Post-norm nn.TransformerDecoderLayer (self-attn, cross-attn, FFN)."""
    x = x_ref[0]                                             # (P, E)
    mem = m_ref[0]                                           # (S, E)
    # self-attention on the point queries
    q = _dot(x, wq1[...]) + bq1[...]
    k = _dot(x, wk1[...]) + bk1[...]
    v = _dot(x, wv1[...]) + bv1[...]
    sa = _dot(_mha(q, k, v, num_heads), wo1[...]) + bo1[...]
    x = _layer_norm(x + sa, g1[...], be1[...])
    # cross-attention over the encoder memory
    q = _dot(x, wq2[...]) + bq2[...]
    k = _dot(mem, wk2[...]) + bk2[...]
    v = _dot(mem, wv2[...]) + bv2[...]
    ca = _dot(_mha(q, k, v, num_heads), wo2[...]) + bo2[...]
    x = _layer_norm(x + ca, g2[...], be2[...])
    # feed-forward
    h = jnp.maximum(_dot(x, w1[...]) + b1[...], 0.0)
    x = _layer_norm(x + _dot(h, w2[...]) + b2[...], g3[...], be3[...])
    o_ref[0] = x


def _output_proj_kernel(x_ref, w1, b1, w2, b2, o_ref):
    """Linear(E,E) -> ReLU -> Linear(E,3), with the 3-wide output zero-padded
    to 128 lanes inside the kernel (lane-dense store; sliced in the wrapper)."""
    x = x_ref[0]                                             # (P, E)
    h = jnp.maximum(_dot(x, w1[...]) + b1[...], 0.0)
    o_ref[0] = _dot(h, w2[...]) + b2[...]                    # (P, 128)


# ----------------------------------------------------------------------------
# pallas_call wrappers
# ----------------------------------------------------------------------------
def _bcast_spec(a):
    nd = a.ndim
    return pl.BlockSpec(a.shape, lambda b, nd=nd: (0,) * nd)


def _batch_spec(shape):
    nd = len(shape)
    return pl.BlockSpec((1,) + tuple(shape), lambda b, nd=nd: (b,) + (0,) * nd)


def _temporal_encode(cols, conv_w, conv_b, pos):
    B, T, F, K = cols.shape
    E = conv_w.shape[1]
    kernel = functools.partial(_temporal_kernel, inv_t=1.0 / T)
    return pl.pallas_call(
        kernel,
        out_shape=jax.ShapeDtypeStruct((B, F, E), jnp.float32),
        grid=(B, T),
        in_specs=[
            pl.BlockSpec((1, 1, F, K), lambda b, t: (b, t, 0, 0)),
            pl.BlockSpec((K, E), lambda b, t: (0, 0)),
            pl.BlockSpec((1, E), lambda b, t: (0, 0)),
            pl.BlockSpec((F, E), lambda b, t: (0, 0)),
        ],
        out_specs=pl.BlockSpec((1, F, E), lambda b, t: (b, 0, 0)),
        scratch_shapes=[pltpu.VMEM((F, E), jnp.float32)],
        compiler_params=pltpu.CompilerParams(
            dimension_semantics=("parallel", "arbitrary"),
            vmem_limit_bytes=VMEM_LIMIT),
    )(cols, conv_w, conv_b, pos)


_ENC_WEIGHTS = ("wq", "wk", "wv", "wo", "w1", "w2")
_ENC_ORDER = ("wq", "wk", "wv", "bq", "bk", "bv", "wo", "bo", "g1", "be1",
              "w1", "b1", "w2", "b2", "g2", "be2")
_DEC_WEIGHTS = ("wq1", "wk1", "wv1", "wo1", "wq2", "wk2", "wv2", "wo2",
                "w1", "w2")
_DEC_ORDER = ("wq1", "wk1", "wv1", "bq1", "bk1", "bv1", "wo1", "bo1", "g1", "be1",
              "wq2", "wk2", "wv2", "bq2", "bk2", "bv2", "wo2", "bo2", "g2", "be2",
              "w1", "b1", "w2", "b2", "g3", "be3")


def _layer_args(p, order, weight_names):
    # Weights are shipped to the kernel in bf16 (halves HBM/VMEM footprint and
    # feeds the MXU its native dtype); biases / LN params stay f32.
    return [_bf16(p[n]) if n in weight_names else p[n] for n in order]


def _encoder_layer(x, p, num_heads):
    B, S, E = x.shape
    args = [x] + _layer_args(p, _ENC_ORDER, _ENC_WEIGHTS)
    kernel = functools.partial(_encoder_layer_kernel, num_heads=num_heads)
    return pl.pallas_call(
        kernel,
        out_shape=jax.ShapeDtypeStruct((B, S, E), jnp.float32),
        grid=(B,),
        in_specs=[_batch_spec((S, E))] + [_bcast_spec(a) for a in args[1:]],
        out_specs=_batch_spec((S, E)),
        compiler_params=pltpu.CompilerParams(
            dimension_semantics=("parallel",),
            vmem_limit_bytes=VMEM_LIMIT),
    )(*args)


def _decoder_layer(x, memory, p, num_heads):
    B, P, E = x.shape
    S = memory.shape[1]
    args = [x, memory] + _layer_args(p, _DEC_ORDER, _DEC_WEIGHTS)
    kernel = functools.partial(_decoder_layer_kernel, num_heads=num_heads)
    return pl.pallas_call(
        kernel,
        out_shape=jax.ShapeDtypeStruct((B, P, E), jnp.float32),
        grid=(B,),
        in_specs=[_batch_spec((P, E)), _batch_spec((S, E))]
                 + [_bcast_spec(a) for a in args[2:]],
        out_specs=_batch_spec((P, E)),
        compiler_params=pltpu.CompilerParams(
            dimension_semantics=("parallel",),
            vmem_limit_bytes=VMEM_LIMIT),
    )(*args)


def _output_projection(x, params, pad_to=128):
    B, P, E = x.shape
    # zero-pad the 3-wide head to a full 128-lane slab (lane-dense stores)
    w2 = jnp.zeros((E, pad_to), jnp.float32).at[:, :3].set(params["proj_w2"])
    b2 = jnp.zeros((1, pad_to), jnp.float32).at[:, :3].set(params["proj_b2"])
    args = [x, _bf16(params["proj_w1"]), params["proj_b1"], _bf16(w2), b2]
    out = pl.pallas_call(
        _output_proj_kernel,
        out_shape=jax.ShapeDtypeStruct((B, P, pad_to), jnp.float32),
        grid=(B,),
        in_specs=[_batch_spec((P, E))] + [_bcast_spec(a) for a in args[1:]],
        out_specs=_batch_spec((P, pad_to)),
        compiler_params=pltpu.CompilerParams(
            dimension_semantics=("parallel",),
            vmem_limit_bytes=VMEM_LIMIT),
    )(*args)
    return out[..., :3]


# ----------------------------------------------------------------------------
# full forward (matches CSI2PointCloudModel.forward, eval mode)
# ----------------------------------------------------------------------------
def csi2pointcloud_forward(wifi_csi_frame, params, *, cfg):
    B, A, Sc, _, T = wifi_csi_frame.shape
    E = cfg["embedding_dim"]
    nh = cfg["num_heads"]
    P = cfg["num_points"]
    F = A * Sc

    # layout plumbing identical to the PyTorch permutes/reshapes
    csi = jnp.transpose(wifi_csi_frame, (0, 1, 2, 4, 3)).reshape(B, F, T, 2)
    csi = jnp.transpose(csi, (0, 1, 3, 2))                     # (B, F, 2, T)

    # im2col windows for Conv1d(2, E, kernel=3, padding=1); ordering c*3 + k
    xpad = jnp.pad(csi, ((0, 0), (0, 0), (0, 0), (1, 1)))
    cols = jnp.stack([xpad[..., t:t + 3].reshape(B, F, 6) for t in range(T)],
                     axis=1)                                   # (B, T, F, 6)

    # antenna / subcarrier embedding lookup (tiny gather -> JAX glue)
    ant_idx = jnp.repeat(jnp.arange(A), Sc)
    sub_idx = jnp.tile(jnp.arange(Sc), A)
    pos = params["ant_emb"][ant_idx] + params["sub_emb"][sub_idx]  # (F, E)

    emb = _temporal_encode(cols, params["conv_w"], params["conv_b"], pos)

    enc = emb
    for lp in params["enc_layers"]:
        enc = _encoder_layer(enc, lp, nh)
    memory = enc

    tgt = jnp.broadcast_to(params["query_emb"][None], (B, P, E))
    dec = tgt
    for lp in params["dec_layers"]:
        dec = _decoder_layer(dec, memory, lp, nh)

    points = _output_projection(dec, params)
    return points, memory


# ----------------------------------------------------------------------------
# parameters
# ----------------------------------------------------------------------------
def _uniform(key, fan_in, shape):
    bound = 1.0 / (fan_in ** 0.5)
    return jax.random.uniform(key, shape, jnp.float32, -bound, bound)


def init_params(key, cfg):
    E, H = cfg["embedding_dim"], cfg["dim_feedforward"]
    A, Sc, P = cfg["num_antennas"], cfg["num_subcarriers"], cfg["num_points"]
    keys = iter(jax.random.split(key, 128))
    nk = lambda: next(keys)

    def ln():
        return jnp.ones((1, E), jnp.float32), jnp.zeros((1, E), jnp.float32)

    def attn(suffix=""):
        d = {}
        for n in ("wq", "wk", "wv", "wo"):
            d[n + suffix] = _uniform(nk(), E, (E, E))
        for n in ("bq", "bk", "bv", "bo"):
            d[n + suffix] = _uniform(nk(), E, (1, E))
        return d

    def ffn():
        return {"w1": _uniform(nk(), E, (E, H)), "b1": _uniform(nk(), E, (1, H)),
                "w2": _uniform(nk(), H, (H, E)), "b2": _uniform(nk(), H, (1, E))}

    p = {
        "conv_w": _uniform(nk(), 6, (6, E)),   # Conv1d(2, E, k=3): fan_in = 2*3
        "conv_b": _uniform(nk(), 6, (1, E)),
        "ant_emb": jax.random.normal(nk(), (A, E), jnp.float32),
        "sub_emb": jax.random.normal(nk(), (Sc, E), jnp.float32),
        "query_emb": jax.random.normal(nk(), (P, E), jnp.float32),
        "proj_w1": _uniform(nk(), E, (E, E)),
        "proj_b1": _uniform(nk(), E, (1, E)),
        "proj_w2": _uniform(nk(), E, (E, 3)),
        "proj_b2": _uniform(nk(), E, (1, 3)),
    }

    enc_layers = []
    for _ in range(cfg["num_encoder_layers"]):
        lp = attn()
        lp.update(ffn())
        lp["g1"], lp["be1"] = ln()
        lp["g2"], lp["be2"] = ln()
        enc_layers.append(lp)
    p["enc_layers"] = enc_layers

    dec_layers = []
    for _ in range(cfg["num_decoder_layers"]):
        lp = attn("1")
        lp.update(attn("2"))
        lp.update(ffn())
        lp["g1"], lp["be1"] = ln()
        lp["g2"], lp["be2"] = ln()
        lp["g3"], lp["be3"] = ln()
        dec_layers.append(lp)
    p["dec_layers"] = dec_layers
    return p


# ----------------------------------------------------------------------------
# pure-JAX f32 reference (for validation)
# ----------------------------------------------------------------------------
def _ref_ln(x, g, b):
    mu = jnp.mean(x, axis=-1, keepdims=True)
    var = jnp.mean((x - mu) ** 2, axis=-1, keepdims=True)
    return (x - mu) / jnp.sqrt(var + LN_EPS) * g + b


def _ref_attn(q, k, v, nh):
    B, Sq, E = q.shape
    Sk = k.shape[1]
    hd = E // nh
    qh = q.reshape(B, Sq, nh, hd).transpose(0, 2, 1, 3)
    kh = k.reshape(B, Sk, nh, hd).transpose(0, 2, 1, 3)
    vh = v.reshape(B, Sk, nh, hd).transpose(0, 2, 1, 3)
    s = jnp.einsum("bhqd,bhkd->bhqk", qh, kh) / (hd ** 0.5)
    p = jax.nn.softmax(s, axis=-1)
    o = jnp.einsum("bhqk,bhkd->bhqd", p, vh)
    return o.transpose(0, 2, 1, 3).reshape(B, Sq, E)


def _ref_encoder_layer(x, p, nh):
    q = x @ p["wq"] + p["bq"]
    k = x @ p["wk"] + p["bk"]
    v = x @ p["wv"] + p["bv"]
    x = _ref_ln(x + _ref_attn(q, k, v, nh) @ p["wo"] + p["bo"], p["g1"], p["be1"])
    h = jax.nn.relu(x @ p["w1"] + p["b1"])
    return _ref_ln(x + h @ p["w2"] + p["b2"], p["g2"], p["be2"])


def _ref_decoder_layer(x, mem, p, nh):
    q = x @ p["wq1"] + p["bq1"]
    k = x @ p["wk1"] + p["bk1"]
    v = x @ p["wv1"] + p["bv1"]
    x = _ref_ln(x + _ref_attn(q, k, v, nh) @ p["wo1"] + p["bo1"], p["g1"], p["be1"])
    q = x @ p["wq2"] + p["bq2"]
    k = mem @ p["wk2"] + p["bk2"]
    v = mem @ p["wv2"] + p["bv2"]
    x = _ref_ln(x + _ref_attn(q, k, v, nh) @ p["wo2"] + p["bo2"], p["g2"], p["be2"])
    h = jax.nn.relu(x @ p["w1"] + p["b1"])
    return _ref_ln(x + h @ p["w2"] + p["b2"], p["g3"], p["be3"])


def reference_forward(wifi_csi_frame, params, cfg):
    B, A, Sc, _, T = wifi_csi_frame.shape
    E, nh, P = cfg["embedding_dim"], cfg["num_heads"], cfg["num_points"]
    F = A * Sc
    csi = jnp.transpose(wifi_csi_frame, (0, 1, 2, 4, 3)).reshape(B, F, T, 2)
    csi = jnp.transpose(csi, (0, 1, 3, 2))
    xpad = jnp.pad(csi, ((0, 0), (0, 0), (0, 0), (1, 1)))
    conv_out = [jax.nn.relu(xpad[..., t:t + 3].reshape(B, F, 6) @ params["conv_w"]
                            + params["conv_b"]) for t in range(T)]
    emb = jnp.mean(jnp.stack(conv_out, axis=0), axis=0)
    ant_idx = jnp.repeat(jnp.arange(A), Sc)
    sub_idx = jnp.tile(jnp.arange(Sc), A)
    pos = params["ant_emb"][ant_idx] + params["sub_emb"][sub_idx]
    x = emb + pos[None]
    for lp in params["enc_layers"]:
        x = _ref_encoder_layer(x, lp, nh)
    memory = x
    y = jnp.broadcast_to(params["query_emb"][None], (B, P, E))
    for lp in params["dec_layers"]:
        y = _ref_decoder_layer(y, memory, lp, nh)
    h = jax.nn.relu(y @ params["proj_w1"] + params["proj_b1"])
    points = h @ params["proj_w2"] + params["proj_b2"]
    return points, memory


# ----------------------------------------------------------------------------
if __name__ == "__main__":
    cfg = dict(
        embedding_dim=32, num_heads=4, num_encoder_layers=1,
        num_decoder_layers=1, num_points=16, num_antennas=3,
        num_subcarriers=8, num_time_slices=8,
        dim_feedforward=2048,  # nn.TransformerEncoderLayer default
    )
    batch = 2
    key = jax.random.PRNGKey(0)
    k_x, k_p = jax.random.split(key)
    wifi_csi_frame = jax.random.normal(
        k_x, (batch, cfg["num_antennas"], cfg["num_subcarriers"], 2,
              cfg["num_time_slices"]), jnp.float32)
    params = init_params(k_p, cfg)

    fwd = jax.jit(functools.partial(csi2pointcloud_forward, cfg=cfg))
    points, encoder_output = fwd(wifi_csi_frame, params)
    points, encoder_output = jax.block_until_ready((points, encoder_output))

    ref_points, ref_memory = reference_forward(wifi_csi_frame, params, cfg)
    F = cfg["num_antennas"] * cfg["num_subcarriers"]
    assert points.shape == (batch, cfg["num_points"], 3)
    assert encoder_output.shape == (batch, F, cfg["embedding_dim"])
    # Kernels run bf16 MXU inputs vs an f32 reference -> bf16-sized tolerances.
    assert jnp.allclose(encoder_output, ref_memory, atol=5e-2, rtol=5e-2), \
        float(jnp.max(jnp.abs(encoder_output - ref_memory)))
    assert jnp.allclose(points, ref_points, atol=1e-1, rtol=1e-1), \
        float(jnp.max(jnp.abs(points - ref_points)))
    print("KERNEL_OK")
</pallas_src>

<mosaic_0001>
module attributes {stable_mosaic.version = 11 : i64} {
  func.func @_temporal_kernel(%arg0: i32, %arg1: i32, %arg2: memref<1x1x24x6xf32, #tpu.memory_space<vmem>>, %arg3: memref<6x32xf32, #tpu.memory_space<vmem>>, %arg4: memref<1x32xf32, #tpu.memory_space<vmem>>, %arg5: memref<24x32xf32, #tpu.memory_space<vmem>>, %arg6: memref<1x24x32xf32, #tpu.memory_space<vmem>>, %arg7: memref<24x32xf32, #tpu.memory_space<vmem>>) attributes {dimension_semantics = [#tpu.dimension_semantics<parallel>, #tpu.dimension_semantics<arbitrary>], iteration_bounds = array<i64: 2, 8>, scalar_prefetch = 0 : i64, scratch_operands = 1 : i64, tpu.core_type = #tpu.core_type<tc>, window_params = [{transform_indices = @transform_0, window_bounds = array<i64: 1, 1, 24, 6>}, {pipeline_mode = #tpu.pipeline_mode<synchronous>, transform_indices = @transform_1, window_bounds = array<i64: 6, 32>}, {pipeline_mode = #tpu.pipeline_mode<synchronous>, transform_indices = @transform_2, window_bounds = array<i64: 1, 32>}, {pipeline_mode = #tpu.pipeline_mode<synchronous>, transform_indices = @transform_3, window_bounds = array<i64: 24, 32>}, {transform_indices = @transform_4, window_bounds = array<i64: 1, 24, 32>}]} {
    %c0_i32 = arith.constant 0 : i32
    %0 = arith.cmpi eq, %arg1, %c0_i32 : i32
    %1 = arith.extui %0 : i1 to i32
    %c0_i32_0 = arith.constant 0 : i32
    %2 = arith.cmpi ne, %1, %c0_i32_0 : i32
    scf.if %2 {
      %cst_14 = arith.constant 0.000000e+00 : f32
      %18 = vector.broadcast %cst_14 : f32 to vector<24x32xf32>
      %c0_15 = arith.constant 0 : index
      %c0_16 = arith.constant 0 : index
      %19 = vector.load %arg7[%c0_15, %c0_16] : memref<24x32xf32, #tpu.memory_space<vmem>>, vector<24x32xf32>
      tpu.vector_store %arg7[%c0_15, %c0_16], %18 {strides = array<i32>} : memref<24x32xf32, #tpu.memory_space<vmem>>, vector<24x32xf32>,
    } else {
    }
    %c0 = arith.constant 0 : index
    %c0_1 = arith.constant 0 : index
    %c0_2 = arith.constant 0 : index
    %c0_3 = arith.constant 0 : index
    %3 = vector.load %arg2[%c0, %c0_1, %c0_2, %c0_3] : memref<1x1x24x6xf32, #tpu.memory_space<vmem>>, vector<1x1x24x6xf32>
    %4 = vector.shape_cast %3 : vector<1x1x24x6xf32> to vector<24x6xf32>
    %c0_4 = arith.constant 0 : index
    %c0_5 = arith.constant 0 : index
    %5 = vector.load %arg3[%c0_4, %c0_5] : memref<6x32xf32, #tpu.memory_space<vmem>>, vector<6x32xf32>
    %cst = arith.constant dense<0.000000e+00> : vector<24x32xf32>
    %6 = tpu.matmul %4, %5, %cst {dimension_numbers = #tpu.dot_dimension_numbers<[1], [0], [0], [1], [0, 0, 1, 1], [], []>} : vector<24x6xf32>, vector<6x32xf32>, vector<24x32xf32> -> vector<24x32xf32>
    %c0_6 = arith.constant 0 : index
    %c0_7 = arith.constant 0 : index
    %7 = vector.load %arg4[%c0_6, %c0_7] : memref<1x32xf32, #tpu.memory_space<vmem>>, vector<1x32xf32>
    %8 = vector.broadcast %7 : vector<1x32xf32> to vector<24x32xf32>
    %9 = arith.addf %6, %8 : vector<24x32xf32>
    %c0_8 = arith.constant 0 : index
    %c0_9 = arith.constant 0 : index
    %10 = vector.load %arg7[%c0_8, %c0_9] : memref<24x32xf32, #tpu.memory_space<vmem>>, vector<24x32xf32>
    %cst_10 = arith.constant 0.000000e+00 : f32
    %11 = vector.broadcast %cst_10 : f32 to vector<24x32xf32>
    %12 = arith.maximumf %9, %11 : vector<24x32xf32>
    %13 = arith.addf %10, %12 : vector<24x32xf32>
    %c0_11 = arith.constant 0 : index
    %c0_12 = arith.constant 0 : index
    %14 = vector.load %arg7[%c0_11, %c0_12] : memref<24x32xf32, #tpu.memory_space<vmem>>, vector<24x32xf32>
    tpu.vector_store %arg7[%c0_11, %c0_12], %13 {strides = array<i32>} : memref<24x32xf32, #tpu.memory_space<vmem>>, vector<24x32xf32>,
    %c7_i32 = arith.constant 7 : i32
    %15 = arith.cmpi eq, %arg1, %c7_i32 : i32
    %16 = arith.extui %15 : i1 to i32
    %c0_i32_13 = arith.constant 0 : i32
    %17 = arith.cmpi ne, %16, %c0_i32_13 : i32
    scf.if %17 {
      %c0_14 = arith.constant 0 : index
      %c0_15 = arith.constant 0 : index
      %18 = vector.load %arg7[%c0_14, %c0_15] : memref<24x32xf32, #tpu.memory_space<vmem>>, vector<24x32xf32>
      %cst_16 = arith.constant 1.250000e-01 : f32
      %19 = vector.broadcast %cst_16 : f32 to vector<24x32xf32>
      %20 = arith.mulf %18, %19 : vector<24x32xf32>
      %c0_17 = arith.constant 0 : index
      %c0_18 = arith.constant 0 : index
      %21 = vector.load %arg5[%c0_17, %c0_18] : memref<24x32xf32, #tpu.memory_space<vmem>>, vector<24x32xf32>
      %22 = arith.addf %20, %21 : vector<24x32xf32>
      %c0_19 = arith.constant 0 : index
      %c0_20 = arith.constant 0 : index
      %c0_21 = arith.constant 0 : index
      %23 = vector.load %arg6[%c0_19, %c0_20, %c0_21] : memref<1x24x32xf32, #tpu.memory_space<vmem>>, vector<1x24x32xf32>
      %24 = vector.shape_cast %23 : vector<1x24x32xf32> to vector<24x32xf32>
      %25 = vector.shape_cast %22 : vector<24x32xf32> to vector<1x24x32xf32>
      tpu.vector_store %arg6[%c0_19, %c0_20, %c0_21], %25 {strides = array<i32>} : memref<1x24x32xf32, #tpu.memory_space<vmem>>, vector<1x24x32xf32>,
    } else {
    }
    return
  }
  func.func @transform_0(%arg0: i32, %arg1: i32) -> (i32, i32, i32, i32) {
    %c0_i32 = arith.constant 0 : i32
    %c0_i32_0 = arith.constant 0 : i32
    %c0_i32_1 = arith.constant 0 : i32
    return %arg0, %arg1, %c0_i32, %c0_i32_0 : i32, i32, i32, i32
  }
  func.func @transform_1(%arg0: i32, %arg1: i32) -> (i32, i32) {
    %c0_i32 = arith.constant 0 : i32
    %c0_i32_0 = arith.constant 0 : i32
    %c0_i32_1 = arith.constant 0 : i32
    return %c0_i32, %c0_i32_0 : i32, i32
  }
  func.func @transform_2(%arg0: i32, %arg1: i32) -> (i32, i32) {
    %c0_i32 = arith.constant 0 : i32
    %c0_i32_0 = arith.constant 0 : i32
    %c0_i32_1 = arith.constant 0 : i32
    return %c0_i32, %c0_i32_0 : i32, i32
  }
  func.func @transform_3(%arg0: i32, %arg1: i32) -> (i32, i32) {
    %c0_i32 = arith.constant 0 : i32
    %c0_i32_0 = arith.constant 0 : i32
    %c0_i32_1 = arith.constant 0 : i32
    return %c0_i32, %c0_i32_0 : i32, i32
  }
  func.func @transform_4(%arg0: i32, %arg1: i32) -> (i32, i32, i32) {
    %c0_i32 = arith.constant 0 : i32
    %c0_i32_0 = arith.constant 0 : i32
    %c0_i32_1 = arith.constant 0 : i32
    return %arg0, %c0_i32, %c0_i32_0 : i32, i32, i32
  }
}

module attributes {stable_mosaic.version = 11 : i64} {
  func.func @_encoder_layer_kernel(%arg0: i32, %arg1: memref<1x24x32xf32, #tpu.memory_space<vmem>>, %arg2: memref<32x32xbf16, #tpu.memory_space<vmem>>, %arg3: memref<32x32xbf16, #tpu.memory_space<vmem>>, %arg4: memref<32x32xbf16, #tpu.memory_space<vmem>>, %arg5: memref<1x32xf32, #tpu.memory_space<vmem>>, %arg6: memref<1x32xf32, #tpu.memory_space<vmem>>, %arg7: memref<1x32xf32, #tpu.memory_space<vmem>>, %arg8: memref<32x32xbf16, #tpu.memory_space<vmem>>, %arg9: memref<1x32xf32, #tpu.memory_space<vmem>>, %arg10: memref<1x32xf32, #tpu.memory_space<vmem>>, %arg11: memref<1x32xf32, #tpu.memory_space<vmem>>, %arg12: memref<32x2048xbf16, #tpu.memory_space<vmem>>, %arg13: memref<1x2048xf32, #tpu.memory_space<vmem>>, %arg14: memref<2048x32xbf16, #tpu.memory_space<vmem>>, %arg15: memref<1x32xf32, #tpu.memory_space<vmem>>, %arg16: memref<1x32xf32, #tpu.memory_space<vmem>>, %arg17: memref<1x32xf32, #tpu.memory_space<vmem>>, %arg18: memref<1x24x32xf32, #tpu.memory_space<vmem>>) attributes {dimension_semantics = [#tpu.dimension_semantics<parallel>], iteration_bounds = array<i64: 2>, scalar_prefetch = 0 : i64, scratch_operands = 0 : i64, tpu.core_type = #tpu.core_type<tc>, window_params = [{transform_indices = @transform_0, window_bounds = array<i64: 1, 24, 32>}, {pipeline_mode = #tpu.pipeline_mode<synchronous>, transform_indices = @transform_1, window_bounds = array<i64: 32, 32>}, {pipeline_mode = #tpu.pipeline_mode<synchronous>, transform_indices = @transform_2, window_bounds = array<i64: 32, 32>}, {pipeline_mode = #tpu.pipeline_mode<synchronous>, transform_indices = @transform_3, window_bounds = array<i64: 32, 32>}, {pipeline_mode = #tpu.pipeline_mode<synchronous>, transform_indices = @transform_4, window_bounds = array<i64: 1, 32>}, {pipeline_mode = #tpu.pipeline_mode<synchronous>, transform_indices = @transform_5, window_bounds = array<i64: 1, 32>}, {pipeline_mode = #tpu.pipeline_mode<synchronous>, transform_indices = @transform_6, window_bounds = array<i64: 1, 32>}, {pipeline_mode = #tpu.pipeline_mode<synchronous>, transform_indices = @transform_7, window_bounds = array<i64: 32, 32>}, {pipeline_mode = #tpu.pipeline_mode<synchronous>, transform_indices = @transform_8, window_bounds = array<i64: 1, 32>}, {pipeline_mode = #tpu.pipeline_mode<synchronous>, transform_indices = @transform_9, window_bounds = array<i64: 1, 32>}, {pipeline_mode = #tpu.pipeline_mode<synchronous>, transform_indices = @transform_10, window_bounds = array<i64: 1, 32>}, {pipeline_mode = #tpu.pipeline_mode<synchronous>, transform_indices = @transform_11, window_bounds = array<i64: 32, 2048>}, {pipeline_mode = #tpu.pipeline_mode<synchronous>, transform_indices = @transform_12, window_bounds = array<i64: 1, 2048>}, {pipeline_mode = #tpu.pipeline_mode<synchronous>, transform_indices = @transform_13, window_bounds = array<i64: 2048, 32>}, {pipeline_mode = #tpu.pipeline_mode<synchronous>, transform_indices = @transform_14, window_bounds = array<i64: 1, 32>}, {pipeline_mode = #tpu.pipeline_mode<synchronous>, transform_indices = @transform_15, window_bounds = array<i64: 1, 32>}, {pipeline_mode = #tpu.pipeline_mode<synchronous>, transform_indices = @transform_16, window_bounds = array<i64: 1, 32>}, {transform_indices = @transform_17, window_bounds = array<i64: 1, 24, 32>}]} {
    %c0 = arith.constant 0 : index
    %c0_0 = arith.constant 0 : index
    %c0_1 = arith.constant 0 : index
    %0 = vector.load %arg1[%c0, %c0_0, %c0_1] : memref<1x24x32xf32, #tpu.memory_space<vmem>>, vector<1x24x32xf32>
    %1 = vector.shape_cast %0 : vector<1x24x32xf32> to vector<24x32xf32>
    %c0_2 = arith.constant 0 : index
    %c0_3 = arith.constant 0 : index
    %2 = vector.load %arg2[%c0_2, %c0_3] : memref<32x32xbf16, #tpu.memory_space<vmem>>, vector<32x32xbf16>
    %3 = arith.truncf %1 : vector<24x32xf32> to vector<24x32xbf16>
    %cst = arith.constant dense<0.000000e+00> : vector<24x32xf32>
    %4 = tpu.matmul %3, %2, %cst {dimension_numbers = #tpu.dot_dimension_numbers<[1], [0], [0], [1], [0, 0, 1, 1], [], []>} : vector<24x32xbf16>, vector<32x32xbf16>, vector<24x32xf32> -> vector<24x32xf32>
    %c0_4 = arith.constant 0 : index
    %c0_5 = arith.constant 0 : index
    %5 = vector.load %arg5[%c0_4, %c0_5] : memref<1x32xf32, #tpu.memory_space<vmem>>, vector<1x32xf32>
    %6 = vector.broadcast %5 : vector<1x32xf32> to vector<24x32xf32>
    %7 = arith.addf %4, %6 : vector<24x32xf32>
    %c0_6 = arith.constant 0 : index
    %c0_7 = arith.constant 0 : index
    %8 = vector.load %arg3[%c0_6, %c0_7] : memref<32x32xbf16, #tpu.memory_space<vmem>>, vector<32x32xbf16>
    %9 = arith.truncf %1 : vector<24x32xf32> to vector<24x32xbf16>
    %cst_8 = arith.constant dense<0.000000e+00> : vector<24x32xf32>
    %10 = tpu.matmul %9, %8, %cst_8 {dimension_numbers = #tpu.dot_dimension_numbers<[1], [0], [0], [1], [0, 0, 1, 1], [], []>} : vector<24x32xbf16>, vector<32x32xbf16>, vector<24x32xf32> -> vector<24x32xf32>
    %c0_9 = arith.constant 0 : index
    %c0_10 = arith.constant 0 : index
    %11 = vector.load %arg6[%c0_9, %c0_10] : memref<1x32xf32, #tpu.memory_space<vmem>>, vector<1x32xf32>
    %12 = vector.broadcast %11 : vector<1x32xf32> to vector<24x32xf32>
    %13 = arith.addf %10, %12 : vector<24x32xf32>
    %c0_11 = arith.constant 0 : index
    %c0_12 = arith.constant 0 : index
    %14 = vector.load %arg4[%c0_11, %c0_12] : memref<32x32xbf16, #tpu.memory_space<vmem>>, vector<32x32xbf16>
    %15 = arith.truncf %1 : vector<24x32xf32> to vector<24x32xbf16>
    %cst_13 = arith.constant dense<0.000000e+00> : vector<24x32xf32>
    %16 = tpu.matmul %15, %14, %cst_13 {dimension_numbers = #tpu.dot_dimension_numbers<[1], [0], [0], [1], [0, 0, 1, 1], [], []>} : vector<24x32xbf16>, vector<32x32xbf16>, vector<24x32xf32> -> vector<24x32xf32>
    %c0_14 = arith.constant 0 : index
    %c0_15 = arith.constant 0 : index
    %17 = vector.load %arg7[%c0_14, %c0_15] : memref<1x32xf32, #tpu.memory_space<vmem>>, vector<1x32xf32>
    %18 = vector.broadcast %17 : vector<1x32xf32> to vector<24x32xf32>
    %19 = arith.addf %16, %18 : vector<24x32xf32>
    %20 = tpu.iota {dimensions = array<i32: 1>} : vector<1x32xi32>
    %21 = tpu.transpose %13, [1, 0] : vector<24x32xf32> -> vector<32x24xf32>
    %22 = arith.truncf %21 : vector<32x24xf32> to vector<32x24xbf16>
    %cst_16 = arith.constant 0.000000e+00 : f32
    %23 = vector.broadcast %cst_16 : f32 to vector<24x32xf32>
    %c0_i32 = arith.constant 0 : i32
    %24 = vector.broadcast %c0_i32 : i32 to vector<1x32xi32>
    %25 = arith.cmpi sge, %20, %24 : vector<1x32xi32>
    %c8_i32 = arith.constant 8 : i32
    %26 = vector.broadcast %c8_i32 : i32 to vector<1x32xi32>
    %27 = arith.cmpi slt, %20, %26 : vector<1x32xi32>
    %28 = arith.andi %25, %27 : vector<1x32xi1>
    %29 = arith.extui %28 : vector<1x32xi1> to vector<1x32xi32>
    %30 = arith.sitofp %29 : vector<1x32xi32> to vector<1x32xf32>
    %31 = vector.broadcast %30 : vector<1x32xf32> to vector<24x32xf32>
    %32 = arith.mulf %7, %31 : vector<24x32xf32>
    %33 = arith.truncf %32 : vector<24x32xf32> to vector<24x32xbf16>
    %cst_17 = arith.constant dense<0.000000e+00> : vector<24x24xf32>
    %34 = tpu.matmul %33, %22, %cst_17 {dimension_numbers = #tpu.dot_dimension_numbers<[1], [0], [0], [1], [0, 0, 1, 1], [], []>} : vector<24x32xbf16>, vector<32x24xbf16>, vector<24x24xf32> -> vector<24x24xf32>
    %cst_18 = arith.constant 0.353553385 : f32
    %35 = vector.broadcast %cst_18 : f32 to vector<24x24xf32>
    %36 = arith.mulf %34, %35 : vector<24x24xf32>
    %cst_19 = arith.constant dense<0xFF800000> : vector<24xf32>
    %37 = vector.multi_reduction <maximumf>, %36, %cst_19 [1] : vector<24x24xf32> to vector<24xf32>
    %38 = vector.shape_cast %37 : vector<24xf32> to vector<24x1xf32>
    %39 = vector.broadcast %38 : vector<24x1xf32> to vector<24x24xf32>
    %40 = arith.subf %36, %39 : vector<24x24xf32>
    %41 = math.exp %40 : vector<24x24xf32>
    %cst_20 = arith.constant dense<0.000000e+00> : vector<24xf32>
    %42 = vector.multi_reduction <add>, %41, %cst_20 [1] : vector<24x24xf32> to vector<24xf32>
    %43 = vector.shape_cast %42 : vector<24xf32> to vector<24x1xf32>
    %44 = tpu.reciprocal %43 {approx = true} : vector<24x1xf32> -> vector<24x1xf32>
    %45 = vector.broadcast %44 : vector<24x1xf32> to vector<24x24xf32>
    %46 = arith.mulf %41, %45 : vector<24x24xf32>
    %47 = vector.broadcast %30 : vector<1x32xf32> to vector<24x32xf32>
    %48 = arith.mulf %19, %47 : vector<24x32xf32>
    %49 = arith.truncf %46 : vector<24x24xf32> to vector<24x24xbf16>
    %50 = arith.truncf %48 : vector<24x32xf32> to vector<24x32xbf16>
    %cst_21 = arith.constant dense<0.000000e+00> : vector<24x32xf32>
    %51 = tpu.matmul %49, %50, %cst_21 {dimension_numbers = #tpu.dot_dimension_numbers<[1], [0], [0], [1], [0, 0, 1, 1], [], []>} : vector<24x24xbf16>, vector<24x32xbf16>, vector<24x32xf32> -> vector<24x32xf32>
    %52 = arith.addf %23, %51 : vector<24x32xf32>
    %c8_i32_22 = arith.constant 8 : i32
    %53 = vector.broadcast %c8_i32_22 : i32 to vector<1x32xi32>
    %54 = arith.cmpi sge, %20, %53 : vector<1x32xi32>
    %c16_i32 = arith.constant 16 : i32
    %55 = vector.broadcast %c16_i32 : i32 to vector<1x32xi32>
    %56 = arith.cmpi slt, %20, %55 : vector<1x32xi32>
    %57 = arith.andi %54, %56 : vector<1x32xi1>
    %58 = arith.extui %57 : vector<1x32xi1> to vector<1x32xi32>
    %59 = arith.sitofp %58 : vector<1x32xi32> to vector<1x32xf32>
    %60 = vector.broadcast %59 : vector<1x32xf32> to vector<24x32xf32>
    %61 = arith.mulf %7, %60 : vector<24x32xf32>
    %62 = arith.truncf %61 : vector<24x32xf32> to vector<24x32xbf16>
    %cst_23 = arith.constant dense<0.000000e+00> : vector<24x24xf32>
    %63 = tpu.matmul %62, %22, %cst_23 {dimension_numbers = #tpu.dot_dimension_numbers<[1], [0], [0], [1], [0, 0, 1, 1], [], []>} : vector<24x32xbf16>, vector<32x24xbf16>, vector<24x24xf32> -> vector<24x24xf32>
    %cst_24 = arith.constant 0.353553385 : f32
    %64 = vector.broadcast %cst_24 : f32 to vector<24x24xf32>
    %65 = arith.mulf %63, %64 : vector<24x24xf32>
    %cst_25 = arith.constant dense<0xFF800000> : vector<24xf32>
    %66 = vector.multi_reduction <maximumf>, %65, %cst_25 [1] : vector<24x24xf32> to vector<24xf32>
    %67 = vector.shape_cast %66 : vector<24xf32> to vector<24x1xf32>
    %68 = vector.broadcast %67 : vector<24x1xf32> to vector<24x24xf32>
    %69 = arith.subf %65, %68 : vector<24x24xf32>
    %70 = math.exp %69 : vector<24x24xf32>
    %cst_26 = arith.constant dense<0.000000e+00> : vector<24xf32>
    %71 = vector.multi_reduction <add>, %70, %cst_26 [1] : vector<24x24xf32> to vector<24xf32>
    %72 = vector.shape_cast %71 : vector<24xf32> to vector<24x1xf32>
    %73 = tpu.reciprocal %72 {approx = true} : vector<24x1xf32> -> vector<24x1xf32>
    %74 = vector.broadcast %73 : vector<24x1xf32> to vector<24x24xf32>
    %75 = arith.mulf %70, %74 : vector<24x24xf32>
    %76 = vector.broadcast %59 : vector<1x32xf32> to vector<24x32xf32>
    %77 = arith.mulf %19, %76 : vector<24x32xf32>
    %78 = arith.truncf %75 : vector<24x24xf32> to vector<24x24xbf16>
    %79 = arith.truncf %77 : vector<24x32xf32> to vector<24x32xbf16>
    %cst_27 = arith.constant dense<0.000000e+00> : vector<24x32xf32>
    %80 = tpu.matmul %78, %79, %cst_27 {dimension_numbers = #tpu.dot_dimension_numbers<[1], [0], [0], [1], [0, 0, 1, 1], [], []>} : vector<24x24xbf16>, vector<24x32xbf16>, vector<24x32xf32> -> vector<24x32xf32>
    %81 = arith.addf %52, %80 : vector<24x32xf32>
    %c16_i32_28 = arith.constant 16 : i32
    %82 = vector.broadcast %c16_i32_28 : i32 to vector<1x32xi32>
    %83 = arith.cmpi sge, %20, %82 : vector<1x32xi32>
    %c24_i32 = arith.constant 24 : i32
    %84 = vector.broadcast %c24_i32 : i32 to vector<1x32xi32>
    %85 = arith.cmpi slt, %20, %84 : vector<1x32xi32>
    %86 = arith.andi %83, %85 : vector<1x32xi1>
    %87 = arith.extui %86 : vector<1x32xi1> to vector<1x32xi32>
    %88 = arith.sitofp %87 : vector<1x32xi32> to vector<1x32xf32>
    %89 = vector.broadcast %88 : vector<1x32xf32> to vector<24x32xf32>
    %90 = arith.mulf %7, %89 : vector<24x32xf32>
    %91 = arith.truncf %90 : vector<24x32xf32> to vector<24x32xbf16>
    %cst_29 = arith.constant dense<0.000000e+00> : vector<24x24xf32>
    %92 = tpu.matmul %91, %22, %cst_29 {dimension_numbers = #tpu.dot_dimension_numbers<[1], [0], [0], [1], [0, 0, 1, 1], [], []>} : vector<24x32xbf16>, vector<32x24xbf16>, vector<24x24xf32> -> vector<24x24xf32>
    %cst_30 = arith.constant 0.353553385 : f32
    %93 = vector.broadcast %cst_30 : f32 to vector<24x24xf32>
    %94 = arith.mulf %92, %93 : vector<24x24xf32>
    %cst_31 = arith.constant dense<0xFF800000> : vector<24xf32>
    %95 = vector.multi_reduction <maximumf>, %94, %cst_31 [1] : vector<24x24xf32> to vector<24xf32>
    %96 = vector.shape_cast %95 : vector<24xf32> to vector<24x1xf32>
    %97 = vector.broadcast %96 : vector<24x1xf32> to vector<24x24xf32>
    %98 = arith.subf %94, %97 : vector<24x24xf32>
    %99 = math.exp %98 : vector<24x24xf32>
    %cst_32 = arith.constant dense<0.000000e+00> : vector<24xf32>
    %100 = vector.multi_reduction <add>, %99, %cst_32 [1] : vector<24x24xf32> to vector<24xf32>
    %101 = vector.shape_cast %100 : vector<24xf32> to vector<24x1xf32>
    %102 = tpu.reciprocal %101 {approx = true} : vector<24x1xf32> -> vector<24x1xf32>
    %103 = vector.broadcast %102 : vector<24x1xf32> to vector<24x24xf32>
    %104 = arith.mulf %99, %103 : vector<24x24xf32>
    %105 = vector.broadcast %88 : vector<1x32xf32> to vector<24x32xf32>
    %106 = arith.mulf %19, %105 : vector<24x32xf32>
    %107 = arith.truncf %104 : vector<24x24xf32> to vector<24x24xbf16>
    %108 = arith.truncf %106 : vector<24x32xf32> to vector<24x32xbf16>
    %cst_33 = arith.constant dense<0.000000e+00> : vector<24x32xf32>
    %109 = tpu.matmul %107, %108, %cst_33 {dimension_numbers = #tpu.dot_dimension_numbers<[1], [0], [0], [1], [0, 0, 1, 1], [], []>} : vector<24x24xbf16>, vector<24x32xbf16>, vector<24x32xf32> -> vector<24x32xf32>
    %110 = arith.addf %81, %109 : vector<24x32xf32>
    %c24_i32_34 = arith.constant 24 : i32
    %111 = vector.broadcast %c24_i32_34 : i32 to vector<1x32xi32>
    %112 = arith.cmpi sge, %20, %111 : vector<1x32xi32>
    %c32_i32 = arith.constant 32 : i32
    %113 = vector.broadcast %c32_i32 : i32 to vector<1x32xi32>
    %114 = arith.cmpi slt, %20, %113 : vector<1x32xi32>
    %115 = arith.andi %112, %114 : vector<1x32xi1>
    %116 = arith.extui %115 : vector<1x32xi1> to vector<1x32xi32>
    %117 = arith.sitofp %116 : vector<1x32xi32> to vector<1x32xf32>
    %118 = vector.broadcast %117 : vector<1x32xf32> to vector<24x32xf32>
    %119 = arith.mulf %7, %118 : vector<24x32xf32>
    %120 = arith.truncf %119 : vector<24x32xf32> to vector<24x32xbf16>
    %cst_35 = arith.constant dense<0.000000e+00> : vector<24x24xf32>
    %121 = tpu.matmul %120, %22, %cst_35 {dimension_numbers = #tpu.dot_dimension_numbers<[1], [0], [0], [1], [0, 0, 1, 1], [], []>} : vector<24x32xbf16>, vector<32x24xbf16>, vector<24x24xf32> -> vector<24x24xf32>
    %cst_36 = arith.constant 0.353553385 : f32
    %122 = vector.broadcast %cst_36 : f32 to vector<24x24xf32>
    %123 = arith.mulf %121, %122 : vector<24x24xf32>
    %cst_37 = arith.constant dense<0xFF800000> : vector<24xf32>
    %124 = vector.multi_reduction <maximumf>, %123, %cst_37 [1] : vector<24x24xf32> to vector<24xf32>
    %125 = vector.shape_cast %124 : vector<24xf32> to vector<24x1xf32>
    %126 = vector.broadcast %125 : vector<24x1xf32> to vector<24x24xf32>
    %127 = arith.subf %123, %126 : vector<24x24xf32>
    %128 = math.exp %127 : vector<24x24xf32>
    %cst_38 = arith.constant dense<0.000000e+00> : vector<24xf32>
    %129 = vector.multi_reduction <add>, %128, %cst_38 [1] : vector<24x24xf32> to vector<24xf32>
    %130 = vector.shape_cast %129 : vector<24xf32> to vector<24x1xf32>
    %131 = tpu.reciprocal %130 {approx = true} : vector<24x1xf32> -> vector<24x1xf32>
    %132 = vector.broadcast %131 : vector<24x1xf32> to vector<24x24xf32>
    %133 = arith.mulf %128, %132 : vector<24x24xf32>
    %134 = vector.broadcast %117 : vector<1x32xf32> to vector<24x32xf32>
    %135 = arith.mulf %19, %134 : vector<24x32xf32>
    %136 = arith.truncf %133 : vector<24x24xf32> to vector<24x24xbf16>
    %137 = arith.truncf %135 : vector<24x32xf32> to vector<24x32xbf16>
    %cst_39 = arith.constant dense<0.000000e+00> : vector<24x32xf32>
    %138 = tpu.matmul %136, %137, %cst_39 {dimension_numbers = #tpu.dot_dimension_numbers<[1], [0], [0], [1], [0, 0, 1, 1], [], []>} : vector<24x24xbf16>, vector<24x32xbf16>, vector<24x32xf32> -> vector<24x32xf32>
    %139 = arith.addf %110, %138 : vector<24x32xf32>
    %c0_40 = arith.constant 0 : index
    %c0_41 = arith.constant 0 : index
    %140 = vector.load %arg8[%c0_40, %c0_41] : memref<32x32xbf16, #tpu.memory_space<vmem>>, vector<32x32xbf16>
    %141 = arith.truncf %139 : vector<24x32xf32> to vector<24x32xbf16>
    %cst_42 = arith.constant dense<0.000000e+00> : vector<24x32xf32>
    %142 = tpu.matmul %141, %140, %cst_42 {dimension_numbers = #tpu.dot_dimension_numbers<[1], [0], [0], [1], [0, 0, 1, 1], [], []>} : vector<24x32xbf16>, vector<32x32xbf16>, vector<24x32xf32> -> vector<24x32xf32>
    %c0_43 = arith.constant 0 : index
    %c0_44 = arith.constant 0 : index
    %143 = vector.load %arg9[%c0_43, %c0_44] : memref<1x32xf32, #tpu.memory_space<vmem>>, vector<1x32xf32>
    %144 = vector.broadcast %143 : vector<1x32xf32> to vector<24x32xf32>
    %145 = arith.addf %142, %144 : vector<24x32xf32>
    %146 = arith.addf %1, %145 : vector<24x32xf32>
    %c0_45 = arith.constant 0 : index
    %c0_46 = arith.constant 0 : index
    %147 = vector.load %arg10[%c0_45, %c0_46] : memref<1x32xf32, #tpu.memory_space<vmem>>, vector<1x32xf32>
    %c0_47 = arith.constant 0 : index
    %c0_48 = arith.constant 0 : index
    %148 = vector.load %arg11[%c0_47, %c0_48] : memref<1x32xf32, #tpu.memory_space<vmem>>, vector<1x32xf32>
    %cst_49 = arith.constant dense<0.000000e+00> : vector<24xf32>
    %149 = vector.multi_reduction <add>, %146, %cst_49 [1] : vector<24x32xf32> to vector<24xf32>
    %150 = vector.shape_cast %149 : vector<24xf32> to vector<24x1xf32>
    %cst_50 = arith.constant 3.200000e+01 : f32
    %151 = vector.broadcast %cst_50 : f32 to vector<24x1xf32>
    %152 = arith.divf %150, %151 : vector<24x1xf32>
    %153 = vector.broadcast %152 : vector<24x1xf32> to vector<24x32xf32>
    %154 = arith.subf %146, %153 : vector<24x32xf32>
    %155 = arith.mulf %154, %154 : vector<24x32xf32>
    %cst_51 = arith.constant dense<0.000000e+00> : vector<24xf32>
    %156 = vector.multi_reduction <add>, %155, %cst_51 [1] : vector<24x32xf32> to vector<24xf32>
    %157 = vector.shape_cast %156 : vector<24xf32> to vector<24x1xf32>
    %cst_52 = arith.constant 3.200000e+01 : f32
    %158 = vector.broadcast %cst_52 : f32 to vector<24x1xf32>
    %159 = arith.divf %157, %158 : vector<24x1xf32>
    %cst_53 = arith.constant 9.99999974E-6 : f32
    %160 = vector.broadcast %cst_53 : f32 to vector<24x1xf32>
    %161 = arith.addf %159, %160 : vector<24x1xf32>
    %162 = math.rsqrt %161 : vector<24x1xf32>
    %163 = vector.broadcast %162 : vector<24x1xf32> to vector<24x32xf32>
    %164 = arith.mulf %154, %163 : vector<24x32xf32>
    %165 = vector.broadcast %147 : vector<1x32xf32> to vector<24x32xf32>
    %166 = arith.mulf %164, %165 : vector<24x32xf32>
    %167 = vector.broadcast %148 : vector<1x32xf32> to vector<24x32xf32>
    %168 = arith.addf %166, %167 : vector<24x32xf32>
    %c0_54 = arith.constant 0 : index
    %c0_55 = arith.constant 0 : index
    %169 = vector.load %arg12[%c0_54, %c0_55] : memref<32x2048xbf16, #tpu.memory_space<vmem>>, vector<32x2048xbf16>
    %170 = arith.truncf %168 : vector<24x32xf32> to vector<24x32xbf16>
    %cst_56 = arith.constant dense<0.000000e+00> : vector<24x2048xf32>
    %171 = tpu.matmul %170, %169, %cst_56 {dimension_numbers = #tpu.dot_dimension_numbers<[1], [0], [0], [1], [0, 0, 1, 1], [], []>} : vector<24x32xbf16>, vector<32x2048xbf16>, vector<24x2048xf32> -> vector<24x2048xf32>
    %c0_57 = arith.constant 0 : index
    %c0_58 = arith.constant 0 : index
    %172 = vector.load %arg13[%c0_57, %c0_58] : memref<1x2048xf32, #tpu.memory_space<vmem>>, vector<1x2048xf32>
    %173 = vector.broadcast %172 : vector<1x2048xf32> to vector<24x2048xf32>
    %174 = arith.addf %171, %173 : vector<24x2048xf32>
    %cst_59 = arith.constant 0.000000e+00 : f32
    %175 = vector.broadcast %cst_59 : f32 to vector<24x2048xf32>
    %176 = arith.maximumf %174, %175 : vector<24x2048xf32>
    %c0_60 = arith.constant 0 : index
    %c0_61 = arith.constant 0 : index
    %177 = vector.load %arg14[%c0_60, %c0_61] : memref<2048x32xbf16, #tpu.memory_space<vmem>>, vector<2048x32xbf16>
    %178 = arith.truncf %176 : vector<24x2048xf32> to vector<24x2048xbf16>
    %cst_62 = arith.constant dense<0.000000e+00> : vector<24x32xf32>
    %179 = tpu.matmul %178, %177, %cst_62 {dimension_numbers = #tpu.dot_dimension_numbers<[1], [0], [0], [1], [0, 0, 1, 1], [], []>} : vector<24x2048xbf16>, vector<2048x32xbf16>, vector<24x32xf32> -> vector<24x32xf32>
    %180 = arith.addf %168, %179 : vector<24x32xf32>
    %c0_63 = arith.constant 0 : index
    %c0_64 = arith.constant 0 : index
    %181 = vector.load %arg15[%c0_63, %c0_64] : memref<1x32xf32, #tpu.memory_space<vmem>>, vector<1x32xf32>
    %182 = vector.broadcast %181 : vector<1x32xf32> to vector<24x32xf32>
    %183 = arith.addf %180, %182 : vector<24x32xf32>
    %c0_65 = arith.constant 0 : index
    %c0_66 = arith.constant 0 : index
    %184 = vector.load %arg16[%c0_65, %c0_66] : memref<1x32xf32, #tpu.memory_space<vmem>>, vector<1x32xf32>
    %c0_67 = arith.constant 0 : index
    %c0_68 = arith.constant 0 : index
    %185 = vector.load %arg17[%c0_67, %c0_68] : memref<1x32xf32, #tpu.memory_space<vmem>>, vector<1x32xf32>
    %cst_69 = arith.constant dense<0.000000e+00> : vector<24xf32>
    %186 = vector.multi_reduction <add>, %183, %cst_69 [1] : vector<24x32xf32> to vector<24xf32>
    %187 = vector.shape_cast %186 : vector<24xf32> to vector<24x1xf32>
    %cst_70 = arith.constant 3.200000e+01 : f32
    %188 = vector.broadcast %cst_70 : f32 to vector<24x1xf32>
    %189 = arith.divf %187, %188 : vector<24x1xf32>
    %190 = vector.broadcast %189 : vector<24x1xf32> to vector<24x32xf32>
    %191 = arith.subf %183, %190 : vector<24x32xf32>
    %192 = arith.mulf %191, %191 : vector<24x32xf32>
    %cst_71 = arith.constant dense<0.000000e+00> : vector<24xf32>
    %193 = vector.multi_reduction <add>, %192, %cst_71 [1] : vector<24x32xf32> to vector<24xf32>
    %194 = vector.shape_cast %193 : vector<24xf32> to vector<24x1xf32>
    %cst_72 = arith.constant 3.200000e+01 : f32
    %195 = vector.broadcast %cst_72 : f32 to vector<24x1xf32>
    %196 = arith.divf %194, %195 : vector<24x1xf32>
    %cst_73 = arith.constant 9.99999974E-6 : f32
    %197 = vector.broadcast %cst_73 : f32 to vector<24x1xf32>
    %198 = arith.addf %196, %197 : vector<24x1xf32>
    %199 = math.rsqrt %198 : vector<24x1xf32>
    %200 = vector.broadcast %199 : vector<24x1xf32> to vector<24x32xf32>
    %201 = arith.mulf %191, %200 : vector<24x32xf32>
    %202 = vector.broadcast %184 : vector<1x32xf32> to vector<24x32xf32>
    %203 = arith.mulf %201, %202 : vector<24x32xf32>
    %204 = vector.broadcast %185 : vector<1x32xf32> to vector<24x32xf32>
    %205 = arith.addf %203, %204 : vector<24x32xf32>
    %c0_74 = arith.constant 0 : index
    %c0_75 = arith.constant 0 : index
    %c0_76 = arith.constant 0 : index
    %206 = vector.load %arg18[%c0_74, %c0_75, %c0_76] : memref<1x24x32xf32, #tpu.memory_space<vmem>>, vector<1x24x32xf32>
    %207 = vector.shape_cast %206 : vector<1x24x32xf32> to vector<24x32xf32>
    %208 = vector.shape_cast %205 : vector<24x32xf32> to vector<1x24x32xf32>
    tpu.vector_store %arg18[%c0_74, %c0_75, %c0_76], %208 {strides = array<i32>} : memref<1x24x32xf32, #tpu.memory_space<vmem>>, vector<1x24x32xf32>,
    return
  }
  func.func @transform_0(%arg0: i32) -> (i32, i32, i32) {
    %c0_i32 = arith.constant 0 : i32
    %c0_i32_0 = arith.constant 0 : i32
    %c0_i32_1 = arith.constant 0 : i32
    return %arg0, %c0_i32, %c0_i32_0 : i32, i32, i32
  }
  func.func @transform_1(%arg0: i32) -> (i32, i32) {
    %c0_i32 = arith.constant 0 : i32
    %c0_i32_0 = arith.constant 0 : i32
    %c0_i32_1 = arith.constant 0 : i32
    return %c0_i32, %c0_i32_0 : i32, i32
  }
  func.func @transform_2(%arg0: i32) -> (i32, i32) {
    %c0_i32 = arith.constant 0 : i32
    %c0_i32_0 = arith.constant 0 : i32
    %c0_i32_1 = arith.constant 0 : i32
    return %c0_i32, %c0_i32_0 : i32, i32
  }
  func.func @transform_3(%arg0: i32) -> (i32, i32) {
    %c0_i32 = arith.constant 0 : i32
    %c0_i32_0 = arith.constant 0 : i32
    %c0_i32_1 = arith.constant 0 : i32
    return %c0_i32, %c0_i32_0 : i32, i32
  }
  func.func @transform_4(%arg0: i32) -> (i32, i32) {
    %c0_i32 = arith.constant 0 : i32
    %c0_i32_0 = arith.constant 0 : i32
    %c0_i32_1 = arith.constant 0 : i32
    return %c0_i32, %c0_i32_0 : i32, i32
  }
  func.func @transform_5(%arg0: i32) -> (i32, i32) {
    %c0_i32 = arith.constant 0 : i32
    %c0_i32_0 = arith.constant 0 : i32
    %c0_i32_1 = arith.constant 0 : i32
    return %c0_i32, %c0_i32_0 : i32, i32
  }
  func.func @transform_6(%arg0: i32) -> (i32, i32) {
    %c0_i32 = arith.constant 0 : i32
    %c0_i32_0 = arith.constant 0 : i32
    %c0_i32_1 = arith.constant 0 : i32
    return %c0_i32, %c0_i32_0 : i32, i32
  }
  func.func @transform_7(%arg0: i32) -> (i32, i32) {
    %c0_i32 = arith.constant 0 : i32
    %c0_i32_0 = arith.constant 0 : i32
    %c0_i32_1 = arith.constant 0 : i32
    return %c0_i32, %c0_i32_0 : i32, i32
  }
  func.func @transform_8(%arg0: i32) -> (i32, i32) {
    %c0_i32 = arith.constant 0 : i32
    %c0_i32_0 = arith.constant 0 : i32
    %c0_i32_1 = arith.constant 0 : i32
    return %c0_i32, %c0_i32_0 : i32, i32
  }
  func.func @transform_9(%arg0: i32) -> (i32, i32) {
    %c0_i32 = arith.constant 0 : i32
    %c0_i32_0 = arith.constant 0 : i32
    %c0_i32_1 = arith.constant 0 : i32
    return %c0_i32, %c0_i32_0 : i32, i32
  }
  func.func @transform_10(%arg0: i32) -> (i32, i32) {
    %c0_i32 = arith.constant 0 : i32
    %c0_i32_0 = arith.constant 0 : i32
    %c0_i32_1 = arith.constant 0 : i32
    return %c0_i32, %c0_i32_0 : i32, i32
  }
  func.func @transform_11(%arg0: i32) -> (i32, i32) {
    %c0_i32 = arith.constant 0 : i32
    %c0_i32_0 = arith.constant 0 : i32
    %c0_i32_1 = arith.constant 0 : i32
    return %c0_i32, %c0_i32_0 : i32, i32
  }
  func.func @transform_12(%arg0: i32) -> (i32, i32) {
    %c0_i32 = arith.constant 0 : i32
    %c0_i32_0 = arith.constant 0 : i32
    %c0_i32_1 = arith.constant 0 : i32
    return %c0_i32, %c0_i32_0 : i32, i32
  }
  func.func @transform_13(%arg0: i32) -> (i32, i32) {
    %c0_i32 = arith.constant 0 : i32
    %c0_i32_0 = arith.constant 0 : i32
    %c0_i32_1 = arith.constant 0 : i32
    return %c0_i32, %c0_i32_0 : i32, i32
  }
  func.func @transform_14(%arg0: i32) -> (i32, i32) {
    %c0_i32 = arith.constant 0 : i32
    %c0_i32_0 = arith.constant 0 : i32
    %c0_i32_1 = arith.constant 0 : i32
    return %c0_i32, %c0_i32_0 : i32, i32
  }
  func.func @transform_15(%arg0: i32) -> (i32, i32) {
    %c0_i32 = arith.constant 0 : i32
    %c0_i32_0 = arith.constant 0 : i32
    %c0_i32_1 = arith.constant 0 : i32
    return %c0_i32, %c0_i32_0 : i32, i32
  }
  func.func @transform_16(%arg0: i32) -> (i32, i32) {
    %c0_i32 = arith.constant 0 : i32
    %c0_i32_0 = arith.constant 0 : i32
    %c0_i32_1 = arith.constant 0 : i32
    return %c0_i32, %c0_i32_0 : i32, i32
  }
  func.func @transform_17(%arg0: i32) -> (i32, i32, i32) {
    %c0_i32 = arith.constant 0 : i32
    %c0_i32_0 = arith.constant 0 : i32
    %c0_i32_1 = arith.constant 0 : i32
    return %arg0, %c0_i32, %c0_i32_0 : i32, i32, i32
  }
}

module attributes {stable_mosaic.version = 11 : i64} {
  func.func @_decoder_layer_kernel(%arg0: i32, %arg1: memref<1x16x32xf32, #tpu.memory_space<vmem>>, %arg2: memref<1x24x32xf32, #tpu.memory_space<vmem>>, %arg3: memref<32x32xbf16, #tpu.memory_space<vmem>>, %arg4: memref<32x32xbf16, #tpu.memory_space<vmem>>, %arg5: memref<32x32xbf16, #tpu.memory_space<vmem>>, %arg6: memref<1x32xf32, #tpu.memory_space<vmem>>, %arg7: memref<1x32xf32, #tpu.memory_space<vmem>>, %arg8: memref<1x32xf32, #tpu.memory_space<vmem>>, %arg9: memref<32x32xbf16, #tpu.memory_space<vmem>>, %arg10: memref<1x32xf32, #tpu.memory_space<vmem>>, %arg11: memref<1x32xf32, #tpu.memory_space<vmem>>, %arg12: memref<1x32xf32, #tpu.memory_space<vmem>>, %arg13: memref<32x32xbf16, #tpu.memory_space<vmem>>, %arg14: memref<32x32xbf16, #tpu.memory_space<vmem>>, %arg15: memref<32x32xbf16, #tpu.memory_space<vmem>>, %arg16: memref<1x32xf32, #tpu.memory_space<vmem>>, %arg17: memref<1x32xf32, #tpu.memory_space<vmem>>, %arg18: memref<1x32xf32, #tpu.memory_space<vmem>>, %arg19: memref<32x32xbf16, #tpu.memory_space<vmem>>, %arg20: memref<1x32xf32, #tpu.memory_space<vmem>>, %arg21: memref<1x32xf32, #tpu.memory_space<vmem>>, %arg22: memref<1x32xf32, #tpu.memory_space<vmem>>, %arg23: memref<32x2048xbf16, #tpu.memory_space<vmem>>, %arg24: memref<1x2048xf32, #tpu.memory_space<vmem>>, %arg25: memref<2048x32xbf16, #tpu.memory_space<vmem>>, %arg26: memref<1x32xf32, #tpu.memory_space<vmem>>, %arg27: memref<1x32xf32, #tpu.memory_space<vmem>>, %arg28: memref<1x32xf32, #tpu.memory_space<vmem>>, %arg29: memref<1x16x32xf32, #tpu.memory_space<vmem>>) attributes {dimension_semantics = [#tpu.dimension_semantics<parallel>], iteration_bounds = array<i64: 2>, scalar_prefetch = 0 : i64, scratch_operands = 0 : i64, tpu.core_type = #tpu.core_type<tc>, window_params = [{transform_indices = @transform_0, window_bounds = array<i64: 1, 16, 32>}, {transform_indices = @transform_1, window_bounds = array<i64: 1, 24, 32>}, {pipeline_mode = #tpu.pipeline_mode<synchronous>, transform_indices = @transform_2, window_bounds = array<i64: 32, 32>}, {pipeline_mode = #tpu.pipeline_mode<synchronous>, transform_indices = @transform_3, window_bounds = array<i64: 32, 32>}, {pipeline_mode = #tpu.pipeline_mode<synchronous>, transform_indices = @transform_4, window_bounds = array<i64: 32, 32>}, {pipeline_mode = #tpu.pipeline_mode<synchronous>, transform_indices = @transform_5, window_bounds = array<i64: 1, 32>}, {pipeline_mode = #tpu.pipeline_mode<synchronous>, transform_indices = @transform_6, window_bounds = array<i64: 1, 32>}, {pipeline_mode = #tpu.pipeline_mode<synchronous>, transform_indices = @transform_7, window_bounds = array<i64: 1, 32>}, {pipeline_mode = #tpu.pipeline_mode<synchronous>, transform_indices = @transform_8, window_bounds = array<i64: 32, 32>}, {pipeline_mode = #tpu.pipeline_mode<synchronous>, transform_indices = @transform_9, window_bounds = array<i64: 1, 32>}, {pipeline_mode = #tpu.pipeline_mode<synchronous>, transform_indices = @transform_10, window_bounds = array<i64: 1, 32>}, {pipeline_mode = #tpu.pipeline_mode<synchronous>, transform_indices = @transform_11, window_bounds = array<i64: 1, 32>}, {pipeline_mode = #tpu.pipeline_mode<synchronous>, transform_indices = @transform_12, window_bounds = array<i64: 32, 32>}, {pipeline_mode = #tpu.pipeline_mode<synchronous>, transform_indices = @transform_13, window_bounds = array<i64: 32, 32>}, {pipeline_mode = #tpu.pipeline_mode<synchronous>, transform_indices = @transform_14, window_bounds = array<i64: 32, 32>}, {pipeline_mode = #tpu.pipeline_mode<synchronous>, transform_indices = @transform_15, window_bounds = array<i64: 1, 32>}, {pipeline_mode = #tpu.pipeline_mode<synchronous>, transform_indices = @transform_16, window_bounds = array<i64: 1, 32>}, {pipeline_mode = #tpu.pipeline_mode<synchronous>, transform_indices = @transform_17, window_bounds = array<i64: 1, 32>}, {pipeline_mode = #tpu.pipeline_mode<synchronous>, transform_indices = @transform_18, window_bounds = array<i64: 32, 32>}, {pipeline_mode = #tpu.pipeline_mode<synchronous>, transform_indices = @transform_19, window_bounds = array<i64: 1, 32>}, {pipeline_mode = #tpu.pipeline_mode<synchronous>, transform_indices = @transform_20, window_bounds = array<i64: 1, 32>}, {pipeline_mode = #tpu.pipeline_mode<synchronous>, transform_indices = @transform_21, window_bounds = array<i64: 1, 32>}, {pipeline_mode = #tpu.pipeline_mode<synchronous>, transform_indices = @transform_22, window_bounds = array<i64: 32, 2048>}, {pipeline_mode = #tpu.pipeline_mode<synchronous>, transform_indices = @transform_23, window_bounds = array<i64: 1, 2048>}, {pipeline_mode = #tpu.pipeline_mode<synchronous>, transform_indices = @transform_24, window_bounds = array<i64: 2048, 32>}, {pipeline_mode = #tpu.pipeline_mode<synchronous>, transform_indices = @transform_25, window_bounds = array<i64: 1, 32>}, {pipeline_mode = #tpu.pipeline_mode<synchronous>, transform_indices = @transform_26, window_bounds = array<i64: 1, 32>}, {pipeline_mode = #tpu.pipeline_mode<synchronous>, transform_indices = @transform_27, window_bounds = array<i64: 1, 32>}, {transform_indices = @transform_28, window_bounds = array<i64: 1, 16, 32>}]} {
    %c0 = arith.constant 0 : index
    %c0_0 = arith.constant 0 : index
    %c0_1 = arith.constant 0 : index
    %0 = vector.load %arg1[%c0, %c0_0, %c0_1] : memref<1x16x32xf32, #tpu.memory_space<vmem>>, vector<1x16x32xf32>
    %1 = vector.shape_cast %0 : vector<1x16x32xf32> to vector<16x32xf32>
    %c0_2 = arith.constant 0 : index
    %c0_3 = arith.constant 0 : index
    %c0_4 = arith.constant 0 : index
    %2 = vector.load %arg2[%c0_2, %c0_3, %c0_4] : memref<1x24x32xf32, #tpu.memory_space<vmem>>, vector<1x24x32xf32>
    %3 = vector.shape_cast %2 : vector<1x24x32xf32> to vector<24x32xf32>
    %c0_5 = arith.constant 0 : index
    %c0_6 = arith.constant 0 : index
    %4 = vector.load %arg3[%c0_5, %c0_6] : memref<32x32xbf16, #tpu.memory_space<vmem>>, vector<32x32xbf16>
    %5 = arith.truncf %1 : vector<16x32xf32> to vector<16x32xbf16>
    %cst = arith.constant dense<0.000000e+00> : vector<16x32xf32>
    %6 = tpu.matmul %5, %4, %cst {dimension_numbers = #tpu.dot_dimension_numbers<[1], [0], [0], [1], [0, 0, 1, 1], [], []>} : vector<16x32xbf16>, vector<32x32xbf16>, vector<16x32xf32> -> vector<16x32xf32>
    %c0_7 = arith.constant 0 : index
    %c0_8 = arith.constant 0 : index
    %7 = vector.load %arg6[%c0_7, %c0_8] : memref<1x32xf32, #tpu.memory_space<vmem>>, vector<1x32xf32>
    %8 = vector.broadcast %7 : vector<1x32xf32> to vector<16x32xf32>
    %9 = arith.addf %6, %8 : vector<16x32xf32>
    %c0_9 = arith.constant 0 : index
    %c0_10 = arith.constant 0 : index
    %10 = vector.load %arg4[%c0_9, %c0_10] : memref<32x32xbf16, #tpu.memory_space<vmem>>, vector<32x32xbf16>
    %11 = arith.truncf %1 : vector<16x32xf32> to vector<16x32xbf16>
    %cst_11 = arith.constant dense<0.000000e+00> : vector<16x32xf32>
    %12 = tpu.matmul %11, %10, %cst_11 {dimension_numbers = #tpu.dot_dimension_numbers<[1], [0], [0], [1], [0, 0, 1, 1], [], []>} : vector<16x32xbf16>, vector<32x32xbf16>, vector<16x32xf32> -> vector<16x32xf32>
    %c0_12 = arith.constant 0 : index
    %c0_13 = arith.constant 0 : index
    %13 = vector.load %arg7[%c0_12, %c0_13] : memref<1x32xf32, #tpu.memory_space<vmem>>, vector<1x32xf32>
    %14 = vector.broadcast %13 : vector<1x32xf32> to vector<16x32xf32>
    %15 = arith.addf %12, %14 : vector<16x32xf32>
    %c0_14 = arith.constant 0 : index
    %c0_15 = arith.constant 0 : index
    %16 = vector.load %arg5[%c0_14, %c0_15] : memref<32x32xbf16, #tpu.memory_space<vmem>>, vector<32x32xbf16>
    %17 = arith.truncf %1 : vector<16x32xf32> to vector<16x32xbf16>
    %cst_16 = arith.constant dense<0.000000e+00> : vector<16x32xf32>
    %18 = tpu.matmul %17, %16, %cst_16 {dimension_numbers = #tpu.dot_dimension_numbers<[1], [0], [0], [1], [0, 0, 1, 1], [], []>} : vector<16x32xbf16>, vector<32x32xbf16>, vector<16x32xf32> -> vector<16x32xf32>
    %c0_17 = arith.constant 0 : index
    %c0_18 = arith.constant 0 : index
    %19 = vector.load %arg8[%c0_17, %c0_18] : memref<1x32xf32, #tpu.memory_space<vmem>>, vector<1x32xf32>
    %20 = vector.broadcast %19 : vector<1x32xf32> to vector<16x32xf32>
    %21 = arith.addf %18, %20 : vector<16x32xf32>
    %22 = tpu.iota {dimensions = array<i32: 1>} : vector<1x32xi32>
    %23 = tpu.transpose %15, [1, 0] : vector<16x32xf32> -> vector<32x16xf32>
    %24 = arith.truncf %23 : vector<32x16xf32> to vector<32x16xbf16>
    %cst_19 = arith.constant 0.000000e+00 : f32
    %25 = vector.broadcast %cst_19 : f32 to vector<16x32xf32>
    %c0_i32 = arith.constant 0 : i32
    %26 = vector.broadcast %c0_i32 : i32 to vector<1x32xi32>
    %27 = arith.cmpi sge, %22, %26 : vector<1x32xi32>
    %c8_i32 = arith.constant 8 : i32
    %28 = vector.broadcast %c8_i32 : i32 to vector<1x32xi32>
    %29 = arith.cmpi slt, %22, %28 : vector<1x32xi32>
    %30 = arith.andi %27, %29 : vector<1x32xi1>
    %31 = arith.extui %30 : vector<1x32xi1> to vector<1x32xi32>
    %32 = arith.sitofp %31 : vector<1x32xi32> to vector<1x32xf32>
    %33 = vector.broadcast %32 : vector<1x32xf32> to vector<16x32xf32>
    %34 = arith.mulf %9, %33 : vector<16x32xf32>
    %35 = arith.truncf %34 : vector<16x32xf32> to vector<16x32xbf16>
    %cst_20 = arith.constant dense<0.000000e+00> : vector<16x16xf32>
    %36 = tpu.matmul %35, %24, %cst_20 {dimension_numbers = #tpu.dot_dimension_numbers<[1], [0], [0], [1], [0, 0, 1, 1], [], []>} : vector<16x32xbf16>, vector<32x16xbf16>, vector<16x16xf32> -> vector<16x16xf32>
    %cst_21 = arith.constant 0.353553385 : f32
    %37 = vector.broadcast %cst_21 : f32 to vector<16x16xf32>
    %38 = arith.mulf %36, %37 : vector<16x16xf32>
    %cst_22 = arith.constant dense<0xFF800000> : vector<16xf32>
    %39 = vector.multi_reduction <maximumf>, %38, %cst_22 [1] : vector<16x16xf32> to vector<16xf32>
    %40 = vector.shape_cast %39 : vector<16xf32> to vector<16x1xf32>
    %41 = vector.broadcast %40 : vector<16x1xf32> to vector<16x16xf32>
    %42 = arith.subf %38, %41 : vector<16x16xf32>
    %43 = math.exp %42 : vector<16x16xf32>
    %cst_23 = arith.constant dense<0.000000e+00> : vector<16xf32>
    %44 = vector.multi_reduction <add>, %43, %cst_23 [1] : vector<16x16xf32> to vector<16xf32>
    %45 = vector.shape_cast %44 : vector<16xf32> to vector<16x1xf32>
    %46 = tpu.reciprocal %45 {approx = true} : vector<16x1xf32> -> vector<16x1xf32>
    %47 = vector.broadcast %46 : vector<16x1xf32> to vector<16x16xf32>
    %48 = arith.mulf %43, %47 : vector<16x16xf32>
    %49 = vector.broadcast %32 : vector<1x32xf32> to vector<16x32xf32>
    %50 = arith.mulf %21, %49 : vector<16x32xf32>
    %51 = arith.truncf %48 : vector<16x16xf32> to vector<16x16xbf16>
    %52 = arith.truncf %50 : vector<16x32xf32> to vector<16x32xbf16>
    %cst_24 = arith.constant dense<0.000000e+00> : vector<16x32xf32>
    %53 = tpu.matmul %51, %52, %cst_24 {dimension_numbers = #tpu.dot_dimension_numbers<[1], [0], [0], [1], [0, 0, 1, 1], [], []>} : vector<16x16xbf16>, vector<16x32xbf16>, vector<16x32xf32> -> vector<16x32xf32>
    %54 = arith.addf %25, %53 : vector<16x32xf32>
    %c8_i32_25 = arith.constant 8 : i32
    %55 = vector.broadcast %c8_i32_25 : i32 to vector<1x32xi32>
    %56 = arith.cmpi sge, %22, %55 : vector<1x32xi32>
    %c16_i32 = arith.constant 16 : i32
    %57 = vector.broadcast %c16_i32 : i32 to vector<1x32xi32>
    %58 = arith.cmpi slt, %22, %57 : vector<1x32xi32>
    %59 = arith.andi %56, %58 : vector<1x32xi1>
    %60 = arith.extui %59 : vector<1x32xi1> to vector<1x32xi32>
    %61 = arith.sitofp %60 : vector<1x32xi32> to vector<1x32xf32>
    %62 = vector.broadcast %61 : vector<1x32xf32> to vector<16x32xf32>
    %63 = arith.mulf %9, %62 : vector<16x32xf32>
    %64 = arith.truncf %63 : vector<16x32xf32> to vector<16x32xbf16>
    %cst_26 = arith.constant dense<0.000000e+00> : vector<16x16xf32>
    %65 = tpu.matmul %64, %24, %cst_26 {dimension_numbers = #tpu.dot_dimension_numbers<[1], [0], [0], [1], [0, 0, 1, 1], [], []>} : vector<16x32xbf16>, vector<32x16xbf16>, vector<16x16xf32> -> vector<16x16xf32>
    %cst_27 = arith.constant 0.353553385 : f32
    %66 = vector.broadcast %cst_27 : f32 to vector<16x16xf32>
    %67 = arith.mulf %65, %66 : vector<16x16xf32>
    %cst_28 = arith.constant dense<0xFF800000> : vector<16xf32>
    %68 = vector.multi_reduction <maximumf>, %67, %cst_28 [1] : vector<16x16xf32> to vector<16xf32>
    %69 = vector.shape_cast %68 : vector<16xf32> to vector<16x1xf32>
    %70 = vector.broadcast %69 : vector<16x1xf32> to vector<16x16xf32>
    %71 = arith.subf %67, %70 : vector<16x16xf32>
    %72 = math.exp %71 : vector<16x16xf32>
    %cst_29 = arith.constant dense<0.000000e+00> : vector<16xf32>
    %73 = vector.multi_reduction <add>, %72, %cst_29 [1] : vector<16x16xf32> to vector<16xf32>
    %74 = vector.shape_cast %73 : vector<16xf32> to vector<16x1xf32>
    %75 = tpu.reciprocal %74 {approx = true} : vector<16x1xf32> -> vector<16x1xf32>
    %76 = vector.broadcast %75 : vector<16x1xf32> to vector<16x16xf32>
    %77 = arith.mulf %72, %76 : vector<16x16xf32>
    %78 = vector.broadcast %61 : vector<1x32xf32> to vector<16x32xf32>
    %79 = arith.mulf %21, %78 : vector<16x32xf32>
    %80 = arith.truncf %77 : vector<16x16xf32> to vector<16x16xbf16>
    %81 = arith.truncf %79 : vector<16x32xf32> to vector<16x32xbf16>
    %cst_30 = arith.constant dense<0.000000e+00> : vector<16x32xf32>
    %82 = tpu.matmul %80, %81, %cst_30 {dimension_numbers = #tpu.dot_dimension_numbers<[1], [0], [0], [1], [0, 0, 1, 1], [], []>} : vector<16x16xbf16>, vector<16x32xbf16>, vector<16x32xf32> -> vector<16x32xf32>
    %83 = arith.addf %54, %82 : vector<16x32xf32>
    %c16_i32_31 = arith.constant 16 : i32
    %84 = vector.broadcast %c16_i32_31 : i32 to vector<1x32xi32>
    %85 = arith.cmpi sge, %22, %84 : vector<1x32xi32>
    %c24_i32 = arith.constant 24 : i32
    %86 = vector.broadcast %c24_i32 : i32 to vector<1x32xi32>
    %87 = arith.cmpi slt, %22, %86 : vector<1x32xi32>
    %88 = arith.andi %85, %87 : vector<1x32xi1>
    %89 = arith.extui %88 : vector<1x32xi1> to vector<1x32xi32>
    %90 = arith.sitofp %89 : vector<1x32xi32> to vector<1x32xf32>
    %91 = vector.broadcast %90 : vector<1x32xf32> to vector<16x32xf32>
    %92 = arith.mulf %9, %91 : vector<16x32xf32>
    %93 = arith.truncf %92 : vector<16x32xf32> to vector<16x32xbf16>
    %cst_32 = arith.constant dense<0.000000e+00> : vector<16x16xf32>
    %94 = tpu.matmul %93, %24, %cst_32 {dimension_numbers = #tpu.dot_dimension_numbers<[1], [0], [0], [1], [0, 0, 1, 1], [], []>} : vector<16x32xbf16>, vector<32x16xbf16>, vector<16x16xf32> -> vector<16x16xf32>
    %cst_33 = arith.constant 0.353553385 : f32
    %95 = vector.broadcast %cst_33 : f32 to vector<16x16xf32>
    %96 = arith.mulf %94, %95 : vector<16x16xf32>
    %cst_34 = arith.constant dense<0xFF800000> : vector<16xf32>
    %97 = vector.multi_reduction <maximumf>, %96, %cst_34 [1] : vector<16x16xf32> to vector<16xf32>
    %98 = vector.shape_cast %97 : vector<16xf32> to vector<16x1xf32>
    %99 = vector.broadcast %98 : vector<16x1xf32> to vector<16x16xf32>
    %100 = arith.subf %96, %99 : vector<16x16xf32>
    %101 = math.exp %100 : vector<16x16xf32>
    %cst_35 = arith.constant dense<0.000000e+00> : vector<16xf32>
    %102 = vector.multi_reduction <add>, %101, %cst_35 [1] : vector<16x16xf32> to vector<16xf32>
    %103 = vector.shape_cast %102 : vector<16xf32> to vector<16x1xf32>
    %104 = tpu.reciprocal %103 {approx = true} : vector<16x1xf32> -> vector<16x1xf32>
    %105 = vector.broadcast %104 : vector<16x1xf32> to vector<16x16xf32>
    %106 = arith.mulf %101, %105 : vector<16x16xf32>
    %107 = vector.broadcast %90 : vector<1x32xf32> to vector<16x32xf32>
    %108 = arith.mulf %21, %107 : vector<16x32xf32>
    %109 = arith.truncf %106 : vector<16x16xf32> to vector<16x16xbf16>
    %110 = arith.truncf %108 : vector<16x32xf32> to vector<16x32xbf16>
    %cst_36 = arith.constant dense<0.000000e+00> : vector<16x32xf32>
    %111 = tpu.matmul %109, %110, %cst_36 {dimension_numbers = #tpu.dot_dimension_numbers<[1], [0], [0], [1], [0, 0, 1, 1], [], []>} : vector<16x16xbf16>, vector<16x32xbf16>, vector<16x32xf32> -> vector<16x32xf32>
    %112 = arith.addf %83, %111 : vector<16x32xf32>
    %c24_i32_37 = arith.constant 24 : i32
    %113 = vector.broadcast %c24_i32_37 : i32 to vector<1x32xi32>
    %114 = arith.cmpi sge, %22, %113 : vector<1x32xi32>
    %c32_i32 = arith.constant 32 : i32
    %115 = vector.broadcast %c32_i32 : i32 to vector<1x32xi32>
    %116 = arith.cmpi slt, %22, %115 : vector<1x32xi32>
    %117 = arith.andi %114, %116 : vector<1x32xi1>
    %118 = arith.extui %117 : vector<1x32xi1> to vector<1x32xi32>
    %119 = arith.sitofp %118 : vector<1x32xi32> to vector<1x32xf32>
    %120 = vector.broadcast %119 : vector<1x32xf32> to vector<16x32xf32>
    %121 = arith.mulf %9, %120 : vector<16x32xf32>
    %122 = arith.truncf %121 : vector<16x32xf32> to vector<16x32xbf16>
    %cst_38 = arith.constant dense<0.000000e+00> : vector<16x16xf32>
    %123 = tpu.matmul %122, %24, %cst_38 {dimension_numbers = #tpu.dot_dimension_numbers<[1], [0], [0], [1], [0, 0, 1, 1], [], []>} : vector<16x32xbf16>, vector<32x16xbf16>, vector<16x16xf32> -> vector<16x16xf32>
    %cst_39 = arith.constant 0.353553385 : f32
    %124 = vector.broadcast %cst_39 : f32 to vector<16x16xf32>
    %125 = arith.mulf %123, %124 : vector<16x16xf32>
    %cst_40 = arith.constant dense<0xFF800000> : vector<16xf32>
    %126 = vector.multi_reduction <maximumf>, %125, %cst_40 [1] : vector<16x16xf32> to vector<16xf32>
    %127 = vector.shape_cast %126 : vector<16xf32> to vector<16x1xf32>
    %128 = vector.broadcast %127 : vector<16x1xf32> to vector<16x16xf32>
    %129 = arith.subf %125, %128 : vector<16x16xf32>
    %130 = math.exp %129 : vector<16x16xf32>
    %cst_41 = arith.constant dense<0.000000e+00> : vector<16xf32>
    %131 = vector.multi_reduction <add>, %130, %cst_41 [1] : vector<16x16xf32> to vector<16xf32>
    %132 = vector.shape_cast %131 : vector<16xf32> to vector<16x1xf32>
    %133 = tpu.reciprocal %132 {approx = true} : vector<16x1xf32> -> vector<16x1xf32>
    %134 = vector.broadcast %133 : vector<16x1xf32> to vector<16x16xf32>
    %135 = arith.mulf %130, %134 : vector<16x16xf32>
    %136 = vector.broadcast %119 : vector<1x32xf32> to vector<16x32xf32>
    %137 = arith.mulf %21, %136 : vector<16x32xf32>
    %138 = arith.truncf %135 : vector<16x16xf32> to vector<16x16xbf16>
    %139 = arith.truncf %137 : vector<16x32xf32> to vector<16x32xbf16>
    %cst_42 = arith.constant dense<0.000000e+00> : vector<16x32xf32>
    %140 = tpu.matmul %138, %139, %cst_42 {dimension_numbers = #tpu.dot_dimension_numbers<[1], [0], [0], [1], [0, 0, 1, 1], [], []>} : vector<16x16xbf16>, vector<16x32xbf16>, vector<16x32xf32> -> vector<16x32xf32>
    %141 = arith.addf %112, %140 : vector<16x32xf32>
    %c0_43 = arith.constant 0 : index
    %c0_44 = arith.constant 0 : index
    %142 = vector.load %arg9[%c0_43, %c0_44] : memref<32x32xbf16, #tpu.memory_space<vmem>>, vector<32x32xbf16>
    %143 = arith.truncf %141 : vector<16x32xf32> to vector<16x32xbf16>
    %cst_45 = arith.constant dense<0.000000e+00> : vector<16x32xf32>
    %144 = tpu.matmul %143, %142, %cst_45 {dimension_numbers = #tpu.dot_dimension_numbers<[1], [0], [0], [1], [0, 0, 1, 1], [], []>} : vector<16x32xbf16>, vector<32x32xbf16>, vector<16x32xf32> -> vector<16x32xf32>
    %c0_46 = arith.constant 0 : index
    %c0_47 = arith.constant 0 : index
    %145 = vector.load %arg10[%c0_46, %c0_47] : memref<1x32xf32, #tpu.memory_space<vmem>>, vector<1x32xf32>
    %146 = vector.broadcast %145 : vector<1x32xf32> to vector<16x32xf32>
    %147 = arith.addf %144, %146 : vector<16x32xf32>
    %148 = arith.addf %1, %147 : vector<16x32xf32>
    %c0_48 = arith.constant 0 : index
    %c0_49 = arith.constant 0 : index
    %149 = vector.load %arg11[%c0_48, %c0_49] : memref<1x32xf32, #tpu.memory_space<vmem>>, vector<1x32xf32>
    %c0_50 = arith.constant 0 : index
    %c0_51 = arith.constant 0 : index
    %150 = vector.load %arg12[%c0_50, %c0_51] : memref<1x32xf32, #tpu.memory_space<vmem>>, vector<1x32xf32>
    %cst_52 = arith.constant dense<0.000000e+00> : vector<16xf32>
    %151 = vector.multi_reduction <add>, %148, %cst_52 [1] : vector<16x32xf32> to vector<16xf32>
    %152 = vector.shape_cast %151 : vector<16xf32> to vector<16x1xf32>
    %cst_53 = arith.constant 3.200000e+01 : f32
    %153 = vector.broadcast %cst_53 : f32 to vector<16x1xf32>
    %154 = arith.divf %152, %153 : vector<16x1xf32>
    %155 = vector.broadcast %154 : vector<16x1xf32> to vector<16x32xf32>
    %156 = arith.subf %148, %155 : vector<16x32xf32>
    %157 = arith.mulf %156, %156 : vector<16x32xf32>
    %cst_54 = arith.constant dense<0.000000e+00> : vector<16xf32>
    %158 = vector.multi_reduction <add>, %157, %cst_54 [1] : vector<16x32xf32> to vector<16xf32>
    %159 = vector.shape_cast %158 : vector<16xf32> to vector<16x1xf32>
    %cst_55 = arith.constant 3.200000e+01 : f32
    %160 = vector.broadcast %cst_55 : f32 to vector<16x1xf32>
    %161 = arith.divf %159, %160 : vector<16x1xf32>
    %cst_56 = arith.constant 9.99999974E-6 : f32
    %162 = vector.broadcast %cst_56 : f32 to vector<16x1xf32>
    %163 = arith.addf %161, %162 : vector<16x1xf32>
    %164 = math.rsqrt %163 : vector<16x1xf32>
    %165 = vector.broadcast %164 : vector<16x1xf32> to vector<16x32xf32>
    %166 = arith.mulf %156, %165 : vector<16x32xf32>
    %167 = vector.broadcast %149 : vector<1x32xf32> to vector<16x32xf32>
    %168 = arith.mulf %166, %167 : vector<16x32xf32>
    %169 = vector.broadcast %150 : vector<1x32xf32> to vector<16x32xf32>
    %170 = arith.addf %168, %169 : vector<16x32xf32>
    %c0_57 = arith.constant 0 : index
    %c0_58 = arith.constant 0 : index
    %171 = vector.load %arg13[%c0_57, %c0_58] : memref<32x32xbf16, #tpu.memory_space<vmem>>, vector<32x32xbf16>
    %172 = arith.truncf %170 : vector<16x32xf32> to vector<16x32xbf16>
    %cst_59 = arith.constant dense<0.000000e+00> : vector<16x32xf32>
    %173 = tpu.matmul %172, %171, %cst_59 {dimension_numbers = #tpu.dot_dimension_numbers<[1], [0], [0], [1], [0, 0, 1, 1], [], []>} : vector<16x32xbf16>, vector<32x32xbf16>, vector<16x32xf32> -> vector<16x32xf32>
    %c0_60 = arith.constant 0 : index
    %c0_61 = arith.constant 0 : index
    %174 = vector.load %arg16[%c0_60, %c0_61] : memref<1x32xf32, #tpu.memory_space<vmem>>, vector<1x32xf32>
    %175 = vector.broadcast %174 : vector<1x32xf32> to vector<16x32xf32>
    %176 = arith.addf %173, %175 : vector<16x32xf32>
    %c0_62 = arith.constant 0 : index
    %c0_63 = arith.constant 0 : index
    %177 = vector.load %arg14[%c0_62, %c0_63] : memref<32x32xbf16, #tpu.memory_space<vmem>>, vector<32x32xbf16>
    %178 = arith.truncf %3 : vector<24x32xf32> to vector<24x32xbf16>
    %cst_64 = arith.constant dense<0.000000e+00> : vector<24x32xf32>
    %179 = tpu.matmul %178, %177, %cst_64 {dimension_numbers = #tpu.dot_dimension_numbers<[1], [0], [0], [1], [0, 0, 1, 1], [], []>} : vector<24x32xbf16>, vector<32x32xbf16>, vector<24x32xf32> -> vector<24x32xf32>
    %c0_65 = arith.constant 0 : index
    %c0_66 = arith.constant 0 : index
    %180 = vector.load %arg17[%c0_65, %c0_66] : memref<1x32xf32, #tpu.memory_space<vmem>>, vector<1x32xf32>
    %181 = vector.broadcast %180 : vector<1x32xf32> to vector<24x32xf32>
    %182 = arith.addf %179, %181 : vector<24x32xf32>
    %c0_67 = arith.constant 0 : index
    %c0_68 = arith.constant 0 : index
    %183 = vector.load %arg15[%c0_67, %c0_68] : memref<32x32xbf16, #tpu.memory_space<vmem>>, vector<32x32xbf16>
    %184 = arith.truncf %3 : vector<24x32xf32> to vector<24x32xbf16>
    %cst_69 = arith.constant dense<0.000000e+00> : vector<24x32xf32>
    %185 = tpu.matmul %184, %183, %cst_69 {dimension_numbers = #tpu.dot_dimension_numbers<[1], [0], [0], [1], [0, 0, 1, 1], [], []>} : vector<24x32xbf16>, vector<32x32xbf16>, vector<24x32xf32> -> vector<24x32xf32>
    %c0_70 = arith.constant 0 : index
    %c0_71 = arith.constant 0 : index
    %186 = vector.load %arg18[%c0_70, %c0_71] : memref<1x32xf32, #tpu.memory_space<vmem>>, vector<1x32xf32>
    %187 = vector.broadcast %186 : vector<1x32xf32> to vector<24x32xf32>
    %188 = arith.addf %185, %187 : vector<24x32xf32>
    %189 = tpu.iota {dimensions = array<i32: 1>} : vector<1x32xi32>
    %190 = tpu.transpose %182, [1, 0] : vector<24x32xf32> -> vector<32x24xf32>
    %191 = arith.truncf %190 : vector<32x24xf32> to vector<32x24xbf16>
    %cst_72 = arith.constant 0.000000e+00 : f32
    %192 = vector.broadcast %cst_72 : f32 to vector<16x32xf32>
    %c0_i32_73 = arith.constant 0 : i32
    %193 = vector.broadcast %c0_i32_73 : i32 to vector<1x32xi32>
    %194 = arith.cmpi sge, %189, %193 : vector<1x32xi32>
    %c8_i32_74 = arith.constant 8 : i32
    %195 = vector.broadcast %c8_i32_74 : i32 to vector<1x32xi32>
    %196 = arith.cmpi slt, %189, %195 : vector<1x32xi32>
    %197 = arith.andi %194, %196 : vector<1x32xi1>
    %198 = arith.extui %197 : vector<1x32xi1> to vector<1x32xi32>
    %199 = arith.sitofp %198 : vector<1x32xi32> to vector<1x32xf32>
    %200 = vector.broadcast %199 : vector<1x32xf32> to vector<16x32xf32>
    %201 = arith.mulf %176, %200 : vector<16x32xf32>
    %202 = arith.truncf %201 : vector<16x32xf32> to vector<16x32xbf16>
    %cst_75 = arith.constant dense<0.000000e+00> : vector<16x24xf32>
    %203 = tpu.matmul %202, %191, %cst_75 {dimension_numbers = #tpu.dot_dimension_numbers<[1], [0], [0], [1], [0, 0, 1, 1], [], []>} : vector<16x32xbf16>, vector<32x24xbf16>, vector<16x24xf32> -> vector<16x24xf32>
    %cst_76 = arith.constant 0.353553385 : f32
    %204 = vector.broadcast %cst_76 : f32 to vector<16x24xf32>
    %205 = arith.mulf %203, %204 : vector<16x24xf32>
    %cst_77 = arith.constant dense<0xFF800000> : vector<16xf32>
    %206 = vector.multi_reduction <maximumf>, %205, %cst_77 [1] : vector<16x24xf32> to vector<16xf32>
    %207 = vector.shape_cast %206 : vector<16xf32> to vector<16x1xf32>
    %208 = vector.broadcast %207 : vector<16x1xf32> to vector<16x24xf32>
    %209 = arith.subf %205, %208 : vector<16x24xf32>
    %210 = math.exp %209 : vector<16x24xf32>
    %cst_78 = arith.constant dense<0.000000e+00> : vector<16xf32>
    %211 = vector.multi_reduction <add>, %210, %cst_78 [1] : vector<16x24xf32> to vector<16xf32>
    %212 = vector.shape_cast %211 : vector<16xf32> to vector<16x1xf32>
    %213 = tpu.reciprocal %212 {approx = true} : vector<16x1xf32> -> vector<16x1xf32>
    %214 = vector.broadcast %213 : vector<16x1xf32> to vector<16x24xf32>
    %215 = arith.mulf %210, %214 : vector<16x24xf32>
    %216 = vector.broadcast %199 : vector<1x32xf32> to vector<24x32xf32>
    %217 = arith.mulf %188, %216 : vector<24x32xf32>
    %218 = arith.truncf %215 : vector<16x24xf32> to vector<16x24xbf16>
    %219 = arith.truncf %217 : vector<24x32xf32> to vector<24x32xbf16>
    %cst_79 = arith.constant dense<0.000000e+00> : vector<16x32xf32>
    %220 = tpu.matmul %218, %219, %cst_79 {dimension_numbers = #tpu.dot_dimension_numbers<[1], [0], [0], [1], [0, 0, 1, 1], [], []>} : vector<16x24xbf16>, vector<24x32xbf16>, vector<16x32xf32> -> vector<16x32xf32>
    %221 = arith.addf %192, %220 : vector<16x32xf32>
    %c8_i32_80 = arith.constant 8 : i32
    %222 = vector.broadcast %c8_i32_80 : i32 to vector<1x32xi32>
    %223 = arith.cmpi sge, %189, %222 : vector<1x32xi32>
    %c16_i32_81 = arith.constant 16 : i32
    %224 = vector.broadcast %c16_i32_81 : i32 to vector<1x32xi32>
    %225 = arith.cmpi slt, %189, %224 : vector<1x32xi32>
    %226 = arith.andi %223, %225 : vector<1x32xi1>
    %227 = arith.extui %226 : vector<1x32xi1> to vector<1x32xi32>
    %228 = arith.sitofp %227 : vector<1x32xi32> to vector<1x32xf32>
    %229 = vector.broadcast %228 : vector<1x32xf32> to vector<16x32xf32>
    %230 = arith.mulf %176, %229 : vector<16x32xf32>
    %231 = arith.truncf %230 : vector<16x32xf32> to vector<16x32xbf16>
    %cst_82 = arith.constant dense<0.000000e+00> : vector<16x24xf32>
    %232 = tpu.matmul %231, %191, %cst_82 {dimension_numbers = #tpu.dot_dimension_numbers<[1], [0], [0], [1], [0, 0, 1, 1], [], []>} : vector<16x32xbf16>, vector<32x24xbf16>, vector<16x24xf32> -> vector<16x24xf32>
    %cst_83 = arith.constant 0.353553385 : f32
    %233 = vector.broadcast %cst_83 : f32 to vector<16x24xf32>
    %234 = arith.mulf %232, %233 : vector<16x24xf32>
    %cst_84 = arith.constant dense<0xFF800000> : vector<16xf32>
    %235 = vector.multi_reduction <maximumf>, %234, %cst_84 [1] : vector<16x24xf32> to vector<16xf32>
    %236 = vector.shape_cast %235 : vector<16xf32> to vector<16x1xf32>
    %237 = vector.broadcast %236 : vector<16x1xf32> to vector<16x24xf32>
    %238 = arith.subf %234, %237 : vector<16x24xf32>
    %239 = math.exp %238 : vector<16x24xf32>
    %cst_85 = arith.constant dense<0.000000e+00> : vector<16xf32>
    %240 = vector.multi_reduction <add>, %239, %cst_85 [1] : vector<16x24xf32> to vector<16xf32>
    %241 = vector.shape_cast %240 : vector<16xf32> to vector<16x1xf32>
    %242 = tpu.reciprocal %241 {approx = true} : vector<16x1xf32> -> vector<16x1xf32>
    %243 = vector.broadcast %242 : vector<16x1xf32> to vector<16x24xf32>
    %244 = arith.mulf %239, %243 : vector<16x24xf32>
    %245 = vector.broadcast %228 : vector<1x32xf32> to vector<24x32xf32>
    %246 = arith.mulf %188, %245 : vector<24x32xf32>
    %247 = arith.truncf %244 : vector<16x24xf32> to vector<16x24xbf16>
    %248 = arith.truncf %246 : vector<24x32xf32> to vector<24x32xbf16>
    %cst_86 = arith.constant dense<0.000000e+00> : vector<16x32xf32>
    %249 = tpu.matmul %247, %248, %cst_86 {dimension_numbers = #tpu.dot_dimension_numbers<[1], [0], [0], [1], [0, 0, 1, 1], [], []>} : vector<16x24xbf16>, vector<24x32xbf16>, vector<16x32xf32> -> vector<16x32xf32>
    %250 = arith.addf %221, %249 : vector<16x32xf32>
    %c16_i32_87 = arith.constant 16 : i32
    %251 = vector.broadcast %c16_i32_87 : i32 to vector<1x32xi32>
    %252 = arith.cmpi sge, %189, %251 : vector<1x32xi32>
    %c24_i32_88 = arith.constant 24 : i32
    %253 = vector.broadcast %c24_i32_88 : i32 to vector<1x32xi32>
    %254 = arith.cmpi slt, %189, %253 : vector<1x32xi32>
    %255 = arith.andi %252, %254 : vector<1x32xi1>
    %256 = arith.extui %255 : vector<1x32xi1> to vector<1x32xi32>
    %257 = arith.sitofp %256 : vector<1x32xi32> to vector<1x32xf32>
    %258 = vector.broadcast %257 : vector<1x32xf32> to vector<16x32xf32>
    %259 = arith.mulf %176, %258 : vector<16x32xf32>
    %260 = arith.truncf %259 : vector<16x32xf32> to vector<16x32xbf16>
    %cst_89 = arith.constant dense<0.000000e+00> : vector<16x24xf32>
    %261 = tpu.matmul %260, %191, %cst_89 {dimension_numbers = #tpu.dot_dimension_numbers<[1], [0], [0], [1], [0, 0, 1, 1], [], []>} : vector<16x32xbf16>, vector<32x24xbf16>, vector<16x24xf32> -> vector<16x24xf32>
    %cst_90 = arith.constant 0.353553385 : f32
    %262 = vector.broadcast %cst_90 : f32 to vector<16x24xf32>
    %263 = arith.mulf %261, %262 : vector<16x24xf32>
    %cst_91 = arith.constant dense<0xFF800000> : vector<16xf32>
    %264 = vector.multi_reduction <maximumf>, %263, %cst_91 [1] : vector<16x24xf32> to vector<16xf32>
    %265 = vector.shape_cast %264 : vector<16xf32> to vector<16x1xf32>
    %266 = vector.broadcast %265 : vector<16x1xf32> to vector<16x24xf32>
    %267 = arith.subf %263, %266 : vector<16x24xf32>
    %268 = math.exp %267 : vector<16x24xf32>
    %cst_92 = arith.constant dense<0.000000e+00> : vector<16xf32>
    %269 = vector.multi_reduction <add>, %268, %cst_92 [1] : vector<16x24xf32> to vector<16xf32>
    %270 = vector.shape_cast %269 : vector<16xf32> to vector<16x1xf32>
    %271 = tpu.reciprocal %270 {approx = true} : vector<16x1xf32> -> vector<16x1xf32>
    %272 = vector.broadcast %271 : vector<16x1xf32> to vector<16x24xf32>
    %273 = arith.mulf %268, %272 : vector<16x24xf32>
    %274 = vector.broadcast %257 : vector<1x32xf32> to vector<24x32xf32>
    %275 = arith.mulf %188, %274 : vector<24x32xf32>
    %276 = arith.truncf %273 : vector<16x24xf32> to vector<16x24xbf16>
    %277 = arith.truncf %275 : vector<24x32xf32> to vector<24x32xbf16>
    %cst_93 = arith.constant dense<0.000000e+00> : vector<16x32xf32>
    %278 = tpu.matmul %276, %277, %cst_93 {dimension_numbers = #tpu.dot_dimension_numbers<[1], [0], [0], [1], [0, 0, 1, 1], [], []>} : vector<16x24xbf16>, vector<24x32xbf16>, vector<16x32xf32> -> vector<16x32xf32>
    %279 = arith.addf %250, %278 : vector<16x32xf32>
    %c24_i32_94 = arith.constant 24 : i32
    %280 = vector.broadcast %c24_i32_94 : i32 to vector<1x32xi32>
    %281 = arith.cmpi sge, %189, %280 : vector<1x32xi32>
    %c32_i32_95 = arith.constant 32 : i32
    %282 = vector.broadcast %c32_i32_95 : i32 to vector<1x32xi32>
    %283 = arith.cmpi slt, %189, %282 : vector<1x32xi32>
    %284 = arith.andi %281, %283 : vector<1x32xi1>
    %285 = arith.extui %284 : vector<1x32xi1> to vector<1x32xi32>
    %286 = arith.sitofp %285 : vector<1x32xi32> to vector<1x32xf32>
    %287 = vector.broadcast %286 : vector<1x32xf32> to vector<16x32xf32>
    %288 = arith.mulf %176, %287 : vector<16x32xf32>
    %289 = arith.truncf %288 : vector<16x32xf32> to vector<16x32xbf16>
    %cst_96 = arith.constant dense<0.000000e+00> : vector<16x24xf32>
    %290 = tpu.matmul %289, %191, %cst_96 {dimension_numbers = #tpu.dot_dimension_numbers<[1], [0], [0], [1], [0, 0, 1, 1], [], []>} : vector<16x32xbf16>, vector<32x24xbf16>, vector<16x24xf32> -> vector<16x24xf32>
    %cst_97 = arith.constant 0.353553385 : f32
    %291 = vector.broadcast %cst_97 : f32 to vector<16x24xf32>
    %292 = arith.mulf %290, %291 : vector<16x24xf32>
    %cst_98 = arith.constant dense<0xFF800000> : vector<16xf32>
    %293 = vector.multi_reduction <maximumf>, %292, %cst_98 [1] : vector<16x24xf32> to vector<16xf32>
    %294 = vector.shape_cast %293 : vector<16xf32> to vector<16x1xf32>
    %295 = vector.broadcast %294 : vector<16x1xf32> to vector<16x24xf32>
    %296 = arith.subf %292, %295 : vector<16x24xf32>
    %297 = math.exp %296 : vector<16x24xf32>
    %cst_99 = arith.constant dense<0.000000e+00> : vector<16xf32>
    %298 = vector.multi_reduction <add>, %297, %cst_99 [1] : vector<16x24xf32> to vector<16xf32>
    %299 = vector.shape_cast %298 : vector<16xf32> to vector<16x1xf32>
    %300 = tpu.reciprocal %299 {approx = true} : vector<16x1xf32> -> vector<16x1xf32>
    %301 = vector.broadcast %300 : vector<16x1xf32> to vector<16x24xf32>
    %302 = arith.mulf %297, %301 : vector<16x24xf32>
    %303 = vector.broadcast %286 : vector<1x32xf32> to vector<24x32xf32>
    %304 = arith.mulf %188, %303 : vector<24x32xf32>
    %305 = arith.truncf %302 : vector<16x24xf32> to vector<16x24xbf16>
    %306 = arith.truncf %304 : vector<24x32xf32> to vector<24x32xbf16>
    %cst_100 = arith.constant dense<0.000000e+00> : vector<16x32xf32>
    %307 = tpu.matmul %305, %306, %cst_100 {dimension_numbers = #tpu.dot_dimension_numbers<[1], [0], [0], [1], [0, 0, 1, 1], [], []>} : vector<16x24xbf16>, vector<24x32xbf16>, vector<16x32xf32> -> vector<16x32xf32>
    %308 = arith.addf %279, %307 : vector<16x32xf32>
    %c0_101 = arith.constant 0 : index
    %c0_102 = arith.constant 0 : index
    %309 = vector.load %arg19[%c0_101, %c0_102] : memref<32x32xbf16, #tpu.memory_space<vmem>>, vector<32x32xbf16>
    %310 = arith.truncf %308 : vector<16x32xf32> to vector<16x32xbf16>
    %cst_103 = arith.constant dense<0.000000e+00> : vector<16x32xf32>
    %311 = tpu.matmul %310, %309, %cst_103 {dimension_numbers = #tpu.dot_dimension_numbers<[1], [0], [0], [1], [0, 0, 1, 1], [], []>} : vector<16x32xbf16>, vector<32x32xbf16>, vector<16x32xf32> -> vector<16x32xf32>
    %c0_104 = arith.constant 0 : index
    %c0_105 = arith.constant 0 : index
    %312 = vector.load %arg20[%c0_104, %c0_105] : memref<1x32xf32, #tpu.memory_space<vmem>>, vector<1x32xf32>
    %313 = vector.broadcast %312 : vector<1x32xf32> to vector<16x32xf32>
    %314 = arith.addf %311, %313 : vector<16x32xf32>
    %315 = arith.addf %170, %314 : vector<16x32xf32>
    %c0_106 = arith.constant 0 : index
    %c0_107 = arith.constant 0 : index
    %316 = vector.load %arg21[%c0_106, %c0_107] : memref<1x32xf32, #tpu.memory_space<vmem>>, vector<1x32xf32>
    %c0_108 = arith.constant 0 : index
    %c0_109 = arith.constant 0 : index
    %317 = vector.load %arg22[%c0_108, %c0_109] : memref<1x32xf32, #tpu.memory_space<vmem>>, vector<1x32xf32>
    %cst_110 = arith.constant dense<0.000000e+00> : vector<16xf32>
    %318 = vector.multi_reduction <add>, %315, %cst_110 [1] : vector<16x32xf32> to vector<16xf32>
    %319 = vector.shape_cast %318 : vector<16xf32> to vector<16x1xf32>
    %cst_111 = arith.constant 3.200000e+01 : f32
    %320 = vector.broadcast %cst_111 : f32 to vector<16x1xf32>
    %321 = arith.divf %319, %320 : vector<16x1xf32>
    %322 = vector.broadcast %321 : vector<16x1xf32> to vector<16x32xf32>
    %323 = arith.subf %315, %322 : vector<16x32xf32>
    %324 = arith.mulf %323, %323 : vector<16x32xf32>
    %cst_112 = arith.constant dense<0.000000e+00> : vector<16xf32>
    %325 = vector.multi_reduction <add>, %324, %cst_112 [1] : vector<16x32xf32> to vector<16xf32>
    %326 = vector.shape_cast %325 : vector<16xf32> to vector<16x1xf32>
    %cst_113 = arith.constant 3.200000e+01 : f32
    %327 = vector.broadcast %cst_113 : f32 to vector<16x1xf32>
    %328 = arith.divf %326, %327 : vector<16x1xf32>
    %cst_114 = arith.constant 9.99999974E-6 : f32
    %329 = vector.broadcast %cst_114 : f32 to vector<16x1xf32>
    %330 = arith.addf %328, %329 : vector<16x1xf32>
    %331 = math.rsqrt %330 : vector<16x1xf32>
    %332 = vector.broadcast %331 : vector<16x1xf32> to vector<16x32xf32>
    %333 = arith.mulf %323, %332 : vector<16x32xf32>
    %334 = vector.broadcast %316 : vector<1x32xf32> to vector<16x32xf32>
    %335 = arith.mulf %333, %334 : vector<16x32xf32>
    %336 = vector.broadcast %317 : vector<1x32xf32> to vector<16x32xf32>
    %337 = arith.addf %335, %336 : vector<16x32xf32>
    %c0_115 = arith.constant 0 : index
    %c0_116 = arith.constant 0 : index
    %338 = vector.load %arg23[%c0_115, %c0_116] : memref<32x2048xbf16, #tpu.memory_space<vmem>>, vector<32x2048xbf16>
    %339 = arith.truncf %337 : vector<16x32xf32> to vector<16x32xbf16>
    %cst_117 = arith.constant dense<0.000000e+00> : vector<16x2048xf32>
    %340 = tpu.matmul %339, %338, %cst_117 {dimension_numbers = #tpu.dot_dimension_numbers<[1], [0], [0], [1], [0, 0, 1, 1], [], []>} : vector<16x32xbf16>, vector<32x2048xbf16>, vector<16x2048xf32> -> vector<16x2048xf32>
    %c0_118 = arith.constant 0 : index
    %c0_119 = arith.constant 0 : index
    %341 = vector.load %arg24[%c0_118, %c0_119] : memref<1x2048xf32, #tpu.memory_space<vmem>>, vector<1x2048xf32>
    %342 = vector.broadcast %341 : vector<1x2048xf32> to vector<16x2048xf32>
    %343 = arith.addf %340, %342 : vector<16x2048xf32>
    %cst_120 = arith.constant 0.000000e+00 : f32
    %344 = vector.broadcast %cst_120 : f32 to vector<16x2048xf32>
    %345 = arith.maximumf %343, %344 : vector<16x2048xf32>
    %c0_121 = arith.constant 0 : index
    %c0_122 = arith.constant 0 : index
    %346 = vector.load %arg25[%c0_121, %c0_122] : memref<2048x32xbf16, #tpu.memory_space<vmem>>, vector<2048x32xbf16>
    %347 = arith.truncf %345 : vector<16x2048xf32> to vector<16x2048xbf16>
    %cst_123 = arith.constant dense<0.000000e+00> : vector<16x32xf32>
    %348 = tpu.matmul %347, %346, %cst_123 {dimension_numbers = #tpu.dot_dimension_numbers<[1], [0], [0], [1], [0, 0, 1, 1], [], []>} : vector<16x2048xbf16>, vector<2048x32xbf16>, vector<16x32xf32> -> vector<16x32xf32>
    %349 = arith.addf %337, %348 : vector<16x32xf32>
    %c0_124 = arith.constant 0 : index
    %c0_125 = arith.constant 0 : index
    %350 = vector.load %arg26[%c0_124, %c0_125] : memref<1x32xf32, #tpu.memory_space<vmem>>, vector<1x32xf32>
    %351 = vector.broadcast %350 : vector<1x32xf32> to vector<16x32xf32>
    %352 = arith.addf %349, %351 : vector<16x32xf32>
    %c0_126 = arith.constant 0 : index
    %c0_127 = arith.constant 0 : index
    %353 = vector.load %arg27[%c0_126, %c0_127] : memref<1x32xf32, #tpu.memory_space<vmem>>, vector<1x32xf32>
    %c0_128 = arith.constant 0 : index
    %c0_129 = arith.constant 0 : index
    %354 = vector.load %arg28[%c0_128, %c0_129] : memref<1x32xf32, #tpu.memory_space<vmem>>, vector<1x32xf32>
    %cst_130 = arith.constant dense<0.000000e+00> : vector<16xf32>
    %355 = vector.multi_reduction <add>, %352, %cst_130 [1] : vector<16x32xf32> to vector<16xf32>
    %356 = vector.shape_cast %355 : vector<16xf32> to vector<16x1xf32>
    %cst_131 = arith.constant 3.200000e+01 : f32
    %357 = vector.broadcast %cst_131 : f32 to vector<16x1xf32>
    %358 = arith.divf %356, %357 : vector<16x1xf32>
    %359 = vector.broadcast %358 : vector<16x1xf32> to vector<16x32xf32>
    %360 = arith.subf %352, %359 : vector<16x32xf32>
    %361 = arith.mulf %360, %360 : vector<16x32xf32>
    %cst_132 = arith.constant dense<0.000000e+00> : vector<16xf32>
    %362 = vector.multi_reduction <add>, %361, %cst_132 [1] : vector<16x32xf32> to vector<16xf32>
    %363 = vector.shape_cast %362 : vector<16xf32> to vector<16x1xf32>
    %cst_133 = arith.constant 3.200000e+01 : f32
    %364 = vector.broadcast %cst_133 : f32 to vector<16x1xf32>
    %365 = arith.divf %363, %364 : vector<16x1xf32>
    %cst_134 = arith.constant 9.99999974E-6 : f32
    %366 = vector.broadcast %cst_134 : f32 to vector<16x1xf32>
    %367 = arith.addf %365, %366 : vector<16x1xf32>
    %368 = math.rsqrt %367 : vector<16x1xf32>
    %369 = vector.broadcast %368 : vector<16x1xf32> to vector<16x32xf32>
    %370 = arith.mulf %360, %369 : vector<16x32xf32>
    %371 = vector.broadcast %353 : vector<1x32xf32> to vector<16x32xf32>
    %372 = arith.mulf %370, %371 : vector<16x32xf32>
    %373 = vector.broadcast %354 : vector<1x32xf32> to vector<16x32xf32>
    %374 = arith.addf %372, %373 : vector<16x32xf32>
    %c0_135 = arith.constant 0 : index
    %c0_136 = arith.constant 0 : index
    %c0_137 = arith.constant 0 : index
    %375 = vector.load %arg29[%c0_135, %c0_136, %c0_137] : memref<1x16x32xf32, #tpu.memory_space<vmem>>, vector<1x16x32xf32>
    %376 = vector.shape_cast %375 : vector<1x16x32xf32> to vector<16x32xf32>
    %377 = vector.shape_cast %374 : vector<16x32xf32> to vector<1x16x32xf32>
    tpu.vector_store %arg29[%c0_135, %c0_136, %c0_137], %377 {strides = array<i32>} : memref<1x16x32xf32, #tpu.memory_space<vmem>>, vector<1x16x32xf32>,
    return
  }
  func.func @transform_0(%arg0: i32) -> (i32, i32, i32) {
    %c0_i32 = arith.constant 0 : i32
    %c0_i32_0 = arith.constant 0 : i32
    %c0_i32_1 = arith.constant 0 : i32
    return %arg0, %c0_i32, %c0_i32_0 : i32, i32, i32
  }
  func.func @transform_1(%arg0: i32) -> (i32, i32, i32) {
    %c0_i32 = arith.constant 0 : i32
    %c0_i32_0 = arith.constant 0 : i32
    %c0_i32_1 = arith.constant 0 : i32
    return %arg0, %c0_i32, %c0_i32_0 : i32, i32, i32
  }
  func.func @transform_2(%arg0: i32) -> (i32, i32) {
    %c0_i32 = arith.constant 0 : i32
    %c0_i32_0 = arith.constant 0 : i32
    %c0_i32_1 = arith.constant 0 : i32
    return %c0_i32, %c0_i32_0 : i32, i32
  }
  func.func @transform_3(%arg0: i32) -> (i32, i32) {
    %c0_i32 = arith.constant 0 : i32
    %c0_i32_0 = arith.constant 0 : i32
    %c0_i32_1 = arith.constant 0 : i32
    return %c0_i32, %c0_i32_0 : i32, i32
  }
  func.func @transform_4(%arg0: i32) -> (i32, i32) {
    %c0_i32 = arith.constant 0 : i32
    %c0_i32_0 = arith.constant 0 : i32
    %c0_i32_1 = arith.constant 0 : i32
    return %c0_i32, %c0_i32_0 : i32, i32
  }
  func.func @transform_5(%arg0: i32) -> (i32, i32) {
    %c0_i32 = arith.constant 0 : i32
    %c0_i32_0 = arith.constant 0 : i32
    %c0_i32_1 = arith.constant 0 : i32
    return %c0_i32, %c0_i32_0 : i32, i32
  }
  func.func @transform_6(%arg0: i32) -> (i32, i32) {
    %c0_i32 = arith.constant 0 : i32
    %c0_i32_0 = arith.constant 0 : i32
    %c0_i32_1 = arith.constant 0 : i32
    return %c0_i32, %c0_i32_0 : i32, i32
  }
  func.func @transform_7(%arg0: i32) -> (i32, i32) {
    %c0_i32 = arith.constant 0 : i32
    %c0_i32_0 = arith.constant 0 : i32
    %c0_i32_1 = arith.constant 0 : i32
    return %c0_i32, %c0_i32_0 : i32, i32
  }
  func.func @transform_8(%arg0: i32) -> (i32, i32) {
    %c0_i32 = arith.constant 0 : i32
    %c0_i32_0 = arith.constant 0 : i32
    %c0_i32_1 = arith.constant 0 : i32
    return %c0_i32, %c0_i32_0 : i32, i32
  }
  func.func @transform_9(%arg0: i32) -> (i32, i32) {
    %c0_i32 = arith.constant 0 : i32
    %c0_i32_0 = arith.constant 0 : i32
    %c0_i32_1 = arith.constant 0 : i32
    return %c0_i32, %c0_i32_0 : i32, i32
  }
  func.func @transform_10(%arg0: i32) -> (i32, i32) {
    %c0_i32 = arith.constant 0 : i32
    %c0_i32_0 = arith.constant 0 : i32
    %c0_i32_1 = arith.constant 0 : i32
    return %c0_i32, %c0_i32_0 : i32, i32
  }
  func.func @transform_11(%arg0: i32) -> (i32, i32) {
    %c0_i32 = arith.constant 0 : i32
    %c0_i32_0 = arith.constant 0 : i32
    %c0_i32_1 = arith.constant 0 : i32
    return %c0_i32, %c0_i32_0 : i32, i32
  }
  func.func @transform_12(%arg0: i32) -> (i32, i32) {
    %c0_i32 = arith.constant 0 : i32
    %c0_i32_0 = arith.constant 0 : i32
    %c0_i32_1 = arith.constant 0 : i32
    return %c0_i32, %c0_i32_0 : i32, i32
  }
  func.func @transform_13(%arg0: i32) -> (i32, i32) {
    %c0_i32 = arith.constant 0 : i32
    %c0_i32_0 = arith.constant 0 : i32
    %c0_i32_1 = arith.constant 0 : i32
    return %c0_i32, %c0_i32_0 : i32, i32
  }
  func.func @transform_14(%arg0: i32) -> (i32, i32) {
    %c0_i32 = arith.constant 0 : i32
    %c0_i32_0 = arith.constant 0 : i32
    %c0_i32_1 = arith.constant 0 : i32
    return %c0_i32, %c0_i32_0 : i32, i32
  }
  func.func @transform_15(%arg0: i32) -> (i32, i32) {
    %c0_i32 = arith.constant 0 : i32
    %c0_i32_0 = arith.constant 0 : i32
    %c0_i32_1 = arith.constant 0 : i32
    return %c0_i32, %c0_i32_0 : i32, i32
  }
  func.func @transform_16(%arg0: i32) -> (i32, i32) {
    %c0_i32 = arith.constant 0 : i32
    %c0_i32_0 = arith.constant 0 : i32
    %c0_i32_1 = arith.constant 0 : i32
    return %c0_i32, %c0_i32_0 : i32, i32
  }
  func.func @transform_17(%arg0: i32) -> (i32, i32) {
    %c0_i32 = arith.constant 0 : i32
    %c0_i32_0 = arith.constant 0 : i32
    %c0_i32_1 = arith.constant 0 : i32
    return %c0_i32, %c0_i32_0 : i32, i32
  }
  func.func @transform_18(%arg0: i32) -> (i32, i32) {
    %c0_i32 = arith.constant 0 : i32
    %c0_i32_0 = arith.constant 0 : i32
    %c0_i32_1 = arith.constant 0 : i32
    return %c0_i32, %c0_i32_0 : i32, i32
  }
  func.func @transform_19(%arg0: i32) -> (i32, i32) {
    %c0_i32 = arith.constant 0 : i32
    %c0_i32_0 = arith.constant 0 : i32
    %c0_i32_1 = arith.constant 0 : i32
    return %c0_i32, %c0_i32_0 : i32, i32
  }
  func.func @transform_20(%arg0: i32) -> (i32, i32) {
    %c0_i32 = arith.constant 0 : i32
    %c0_i32_0 = arith.constant 0 : i32
    %c0_i32_1 = arith.constant 0 : i32
    return %c0_i32, %c0_i32_0 : i32, i32
  }
  func.func @transform_21(%arg0: i32) -> (i32, i32) {
    %c0_i32 = arith.constant 0 : i32
    %c0_i32_0 = arith.constant 0 : i32
    %c0_i32_1 = arith.constant 0 : i32
    return %c0_i32, %c0_i32_0 : i32, i32
  }
  func.func @transform_22(%arg0: i32) -> (i32, i32) {
    %c0_i32 = arith.constant 0 : i32
    %c0_i32_0 = arith.constant 0 : i32
    %c0_i32_1 = arith.constant 0 : i32
    return %c0_i32, %c0_i32_0 : i32, i32
  }
  func.func @transform_23(%arg0: i32) -> (i32, i32) {
    %c0_i32 = arith.constant 0 : i32
    %c0_i32_0 = arith.constant 0 : i32
    %c0_i32_1 = arith.constant 0 : i32
    return %c0_i32, %c0_i32_0 : i32, i32
  }
  func.func @transform_24(%arg0: i32) -> (i32, i32) {
    %c0_i32 = arith.constant 0 : i32
    %c0_i32_0 = arith.constant 0 : i32
    %c0_i32_1 = arith.constant 0 : i32
    return %c0_i32, %c0_i32_0 : i32, i32
  }
  func.func @transform_25(%arg0: i32) -> (i32, i32) {
    %c0_i32 = arith.constant 0 : i32
    %c0_i32_0 = arith.constant 0 : i32
    %c0_i32_1 = arith.constant 0 : i32
    return %c0_i32, %c0_i32_0 : i32, i32
  }
  func.func @transform_26(%arg0: i32) -> (i32, i32) {
    %c0_i32 = arith.constant 0 : i32
    %c0_i32_0 = arith.constant 0 : i32
    %c0_i32_1 = arith.constant 0 : i32
    return %c0_i32, %c0_i32_0 : i32, i32
  }
  func.func @transform_27(%arg0: i32) -> (i32, i32) {
    %c0_i32 = arith.constant 0 : i32
    %c0_i32_0 = arith.constant 0 : i32
    %c0_i32_1 = arith.constant 0 : i32
    return %c0_i32, %c0_i32_0 : i32, i32
  }
  func.func @transform_28(%arg0: i32) -> (i32, i32, i32) {
    %c0_i32 = arith.constant 0 : i32
    %c0_i32_0 = arith.constant 0 : i32
    %c0_i32_1 = arith.constant 0 : i32
    return %arg0, %c0_i32, %c0_i32_0 : i32, i32, i32
  }
}

module attributes {stable_mosaic.version = 11 : i64} {
  func.func @_output_proj_kernel(%arg0: i32, %arg1: memref<1x16x32xf32, #tpu.memory_space<vmem>>, %arg2: memref<32x32xbf16, #tpu.memory_space<vmem>>, %arg3: memref<1x32xf32, #tpu.memory_space<vmem>>, %arg4: memref<32x128xbf16, #tpu.memory_space<vmem>>, %arg5: memref<1x128xf32, #tpu.memory_space<vmem>>, %arg6: memref<1x16x128xf32, #tpu.memory_space<vmem>>) attributes {dimension_semantics = [#tpu.dimension_semantics<parallel>], iteration_bounds = array<i64: 2>, scalar_prefetch = 0 : i64, scratch_operands = 0 : i64, tpu.core_type = #tpu.core_type<tc>, window_params = [{transform_indices = @transform_0, window_bounds = array<i64: 1, 16, 32>}, {pipeline_mode = #tpu.pipeline_mode<synchronous>, transform_indices = @transform_1, window_bounds = array<i64: 32, 32>}, {pipeline_mode = #tpu.pipeline_mode<synchronous>, transform_indices = @transform_2, window_bounds = array<i64: 1, 32>}, {pipeline_mode = #tpu.pipeline_mode<synchronous>, transform_indices = @transform_3, window_bounds = array<i64: 32, 128>}, {pipeline_mode = #tpu.pipeline_mode<synchronous>, transform_indices = @transform_4, window_bounds = array<i64: 1, 128>}, {transform_indices = @transform_5, window_bounds = array<i64: 1, 16, 128>}]} {
    %c0 = arith.constant 0 : index
    %c0_0 = arith.constant 0 : index
    %c0_1 = arith.constant 0 : index
    %0 = vector.load %arg1[%c0, %c0_0, %c0_1] : memref<1x16x32xf32, #tpu.memory_space<vmem>>, vector<1x16x32xf32>
    %1 = vector.shape_cast %0 : vector<1x16x32xf32> to vector<16x32xf32>
    %c0_2 = arith.constant 0 : index
    %c0_3 = arith.constant 0 : index
    %2 = vector.load %arg2[%c0_2, %c0_3] : memref<32x32xbf16, #tpu.memory_space<vmem>>, vector<32x32xbf16>
    %3 = arith.truncf %1 : vector<16x32xf32> to vector<16x32xbf16>
    %cst = arith.constant dense<0.000000e+00> : vector<16x32xf32>
    %4 = tpu.matmul %3, %2, %cst {dimension_numbers = #tpu.dot_dimension_numbers<[1], [0], [0], [1], [0, 0, 1, 1], [], []>} : vector<16x32xbf16>, vector<32x32xbf16>, vector<16x32xf32> -> vector<16x32xf32>
    %c0_4 = arith.constant 0 : index
    %c0_5 = arith.constant 0 : index
    %5 = vector.load %arg3[%c0_4, %c0_5] : memref<1x32xf32, #tpu.memory_space<vmem>>, vector<1x32xf32>
    %6 = vector.broadcast %5 : vector<1x32xf32> to vector<16x32xf32>
    %7 = arith.addf %4, %6 : vector<16x32xf32>
    %cst_6 = arith.constant 0.000000e+00 : f32
    %8 = vector.broadcast %cst_6 : f32 to vector<16x32xf32>
    %9 = arith.maximumf %7, %8 : vector<16x32xf32>
    %c0_7 = arith.constant 0 : index
    %c0_8 = arith.constant 0 : index
    %10 = vector.load %arg4[%c0_7, %c0_8] : memref<32x128xbf16, #tpu.memory_space<vmem>>, vector<32x128xbf16>
    %11 = arith.truncf %9 : vector<16x32xf32> to vector<16x32xbf16>
    %cst_9 = arith.constant dense<0.000000e+00> : vector<16x128xf32>
    %12 = tpu.matmul %11, %10, %cst_9 {dimension_numbers = #tpu.dot_dimension_numbers<[1], [0], [0], [1], [0, 0, 1, 1], [], []>} : vector<16x32xbf16>, vector<32x128xbf16>, vector<16x128xf32> -> vector<16x128xf32>
    %c0_10 = arith.constant 0 : index
    %c0_11 = arith.constant 0 : index
    %13 = vector.load %arg5[%c0_10, %c0_11] : memref<1x128xf32, #tpu.memory_space<vmem>>, vector<1x128xf32>
    %14 = vector.broadcast %13 : vector<1x128xf32> to vector<16x128xf32>
    %15 = arith.addf %12, %14 : vector<16x128xf32>
    %c0_12 = arith.constant 0 : index
    %c0_13 = arith.constant 0 : index
    %c0_14 = arith.constant 0 : index
    %16 = vector.load %arg6[%c0_12, %c0_13, %c0_14] : memref<1x16x128xf32, #tpu.memory_space<vmem>>, vector<1x16x128xf32>
    %17 = vector.shape_cast %16 : vector<1x16x128xf32> to vector<16x128xf32>
    %18 = vector.shape_cast %15 : vector<16x128xf32> to vector<1x16x128xf32>
    tpu.vector_store %arg6[%c0_12, %c0_13, %c0_14], %18 {strides = array<i32>} : memref<1x16x128xf32, #tpu.memory_space<vmem>>, vector<1x16x128xf32>,
    return
  }
  func.func @transform_0(%arg0: i32) -> (i32, i32, i32) {
    %c0_i32 = arith.constant 0 : i32
    %c0_i32_0 = arith.constant 0 : i32
    %c0_i32_1 = arith.constant 0 : i32
    return %arg0, %c0_i32, %c0_i32_0 : i32, i32, i32
  }
  func.func @transform_1(%arg0: i32) -> (i32, i32) {
    %c0_i32 = arith.constant 0 : i32
    %c0_i32_0 = arith.constant 0 : i32
    %c0_i32_1 = arith.constant 0 : i32
    return %c0_i32, %c0_i32_0 : i32, i32
  }
  func.func @transform_2(%arg0: i32) -> (i32, i32) {
    %c0_i32 = arith.constant 0 : i32
    %c0_i32_0 = arith.constant 0 : i32
    %c0_i32_1 = arith.constant 0 : i32
    return %c0_i32, %c0_i32_0 : i32, i32
  }
  func.func @transform_3(%arg0: i32) -> (i32, i32) {
    %c0_i32 = arith.constant 0 : i32
    %c0_i32_0 = arith.constant 0 : i32
    %c0_i32_1 = arith.constant 0 : i32
    return %c0_i32, %c0_i32_0 : i32, i32
  }
  func.func @transform_4(%arg0: i32) -> (i32, i32) {
    %c0_i32 = arith.constant 0 : i32
    %c0_i32_0 = arith.constant 0 : i32
    %c0_i32_1 = arith.constant 0 : i32
    return %c0_i32, %c0_i32_0 : i32, i32
  }
  func.func @transform_5(%arg0: i32) -> (i32, i32, i32) {
    %c0_i32 = arith.constant 0 : i32
    %c0_i32_0 = arith.constant 0 : i32
    %c0_i32_1 = arith.constant 0 : i32
    return %arg0, %c0_i32, %c0_i32_0 : i32, i32, i32
  }
}

</mosaic_0001>

<llo_original>
// kernel: csi2pointcloud_forward.4
$region0: #{csi2pointcloud_forward.4}
  #allocation0 [shape = 'u32[]', space=smem, size = 0x4, offset = 0x4, fixed_abs, tag = 'smem constant byte address 0x4 - core index']
  #allocation1 [shape = 'u32[144,128]{1,0:T(1,128)}', space=vmem, size = 0x12000, scoped, tag = 'internal scratch']
  #allocation2 [shape = 'f32[24,32]{1,0:T(8,128)}', space=vmem, size = 0x3000, scoped, tag = 'scratch operand']
  %s0 = inlined_call_operand.vmem [shape: f32[2,8,24,6], index: 0, kind: input, shape index: {}]
  %s1 = inlined_call_operand.vmem [shape: f32[6,32], index: 1, kind: input, shape index: {}]
  %s2 = inlined_call_operand.vmem [shape: f32[1,32], index: 2, kind: input, shape index: {}]
  %s3 = inlined_call_operand.vmem [shape: f32[24,32], index: 3, kind: input, shape index: {}]
  %s4 = inlined_call_operand.vmem [shape: f32[2,24,32], index: 4, kind: output, shape index: {}]
  %s5 = sld [smem:[#allocation0]]
  $region57: #{csi2pointcloud_forward.4} parent=0
    _
  %s7 = ssub.s32 1, %s5
  %s8 = scalar_select 0, %s7, %s5
  loop: start=0, step=1, limit=18
  $region2: #{csi2pointcloud_forward.4} parent=0 // loop_pre_header
    _
  $region3: #{csi2pointcloud_forward.4} parent=0 // loop_header
    %s10 = sphi 0, %s14
    %p11 = scmp.ge.s32.totalorder %s10, 18
    %s17 = sphi 0, %s29
    %s18 = sphi 0, %s25
    %s19 = sphi 0, %s17
    %s20 = sphi 0, %s18
    %s21 = sphi 0, %s19
    %s22 = sphi 0, %s20
    %s34 = sphi 0, %s36
    %s37 = sphi 0, %s34
    %s38 = sphi 0, %s37
    %s54 = sphi 0, %s38
    %s58 = sphi 0, %s58
    %s60 = sphi 0, %s58
    %s61 = sphi 0, %s60
    %s75 = sphi 0, %s61
    %s79 = sphi 0, %s79
    %s81 = sphi 0, %s79
    %s82 = sphi 0, %s81
    %s96 = sphi 0, %s82
    %s100 = sphi 0, %s100
    %s102 = sphi 0, %s100
    %s103 = sphi 0, %s102
    %s117 = sphi 0, %s103
    %s123 = sphi 0, %s125
    %s126 = sphi 0, %s123
    %s127 = sphi 0, %s126
    %s143 = sphi 0, %s127
  $region4: #{csi2pointcloud_forward.4} parent=0 // loop_header_branch
    %13 = sbr.rel (%p11) target = $region8
  $region5: #{csi2pointcloud_forward.4} parent=0 // loop_body
    %s15 = ssub.s32 %s10, 1
    %s16 = ssub.s32 %s10, 2
    %s23 = sadd.s32 1, %s18
    %p24 = scmp.ge.s32.totalorder %s23, 8
    %s25 = scalar_select %p24, 0, %s23
    %s26 = sadd.s32 1, %s17
    %s27 = scalar_select %p24, %s26, %s17
    %p28 = scmp.ge.s32.totalorder %s27, 2
    %s29 = scalar_select %p28, 0, %s27
    %s30 = ssub.s32 %s17, %s29
    %s31 = ssub.s32 %s18, %s25
    %s32 = sor.u32 %s30, %s31
    %p33 = scmp.eq.s32.totalorder %s32, 0
    %s35 = sadd.s32 %s34, 1
    %s36 = scalar_select %p33, %s34, %s35
    %p39 = pneg %p33
    %p40 = scmp.eq.s32.totalorder %s10, 15
    %p41 = por %p39, %p40
    %p42 = scmp.ne.s32.totalorder %s34, %s37
    %p43 = scmp.eq.s32.totalorder %s10, 0
    %p44 = por %p42, %p43
    %p45 = scmp.ne.s32.totalorder %s34, %s37
    %p46 = scmp.eq.s32.totalorder %s15, 15
    %p47 = por %p45, %p46
    %p48 = scmp.ne.s32.totalorder %s37, %s38
    %p49 = scmp.eq.s32.totalorder %s15, 0
    %p50 = por %p48, %p49
    %p51 = scmp.ne.s32.totalorder %s37, %s38
    %p52 = scmp.eq.s32.totalorder %s16, 15
    %p53 = por %p51, %p52
    %p55 = scmp.ne.s32.totalorder %s38, %s54
    %p56 = scmp.eq.s32.totalorder %s16, 0
    %p57 = por %p55, %p56
    %s59 = sadd.s32 %s58, 1
    %p62 = scmp.eq.s32.totalorder %s10, 15
    %p63 = scmp.ne.s32.totalorder %s58, %s60
    %p64 = scmp.eq.s32.totalorder %s10, 0
    %p65 = por %p63, %p64
    %p66 = scmp.ne.s32.totalorder %s58, %s60
    %p67 = scmp.eq.s32.totalorder %s15, 15
    %p68 = por %p66, %p67
    %p69 = scmp.ne.s32.totalorder %s60, %s61
    %p70 = scmp.eq.s32.totalorder %s15, 0
    %p71 = por %p69, %p70
    %p72 = scmp.ne.s32.totalorder %s60, %s61
    %p73 = scmp.eq.s32.totalorder %s16, 15
    %p74 = por %p72, %p73
    %p76 = scmp.ne.s32.totalorder %s61, %s75
    %p77 = scmp.eq.s32.totalorder %s16, 0
    %p78 = por %p76, %p77
    %s80 = sadd.s32 %s79, 1
    %p83 = scmp.eq.s32.totalorder %s10, 15
    %p84 = scmp.ne.s32.totalorder %s79, %s81
    %p85 = scmp.eq.s32.totalorder %s10, 0
    %p86 = por %p84, %p85
    %p87 = scmp.ne.s32.totalorder %s79, %s81
    %p88 = scmp.eq.s32.totalorder %s15, 15
    %p89 = por %p87, %p88
    %p90 = scmp.ne.s32.totalorder %s81, %s82
    %p91 = scmp.eq.s32.totalorder %s15, 0
    %p92 = por %p90, %p91
    %p93 = scmp.ne.s32.totalorder %s81, %s82
    %p94 = scmp.eq.s32.totalorder %s16, 15
    %p95 = por %p93, %p94
    %p97 = scmp.ne.s32.totalorder %s82, %s96
    %p98 = scmp.eq.s32.totalorder %s16, 0
    %p99 = por %p97, %p98
    %s101 = sadd.s32 %s100, 1
    %p104 = scmp.eq.s32.totalorder %s10, 15
    %p105 = scmp.ne.s32.totalorder %s100, %s102
    %p106 = scmp.eq.s32.totalorder %s10, 0
    %p107 = por %p105, %p106
    %p108 = scmp.ne.s32.totalorder %s100, %s102
    %p109 = scmp.eq.s32.totalorder %s15, 15
    %p110 = por %p108, %p109
    %p111 = scmp.ne.s32.totalorder %s102, %s103
    %p112 = scmp.eq.s32.totalorder %s15, 0
    %p113 = por %p111, %p112
    %p114 = scmp.ne.s32.totalorder %s102, %s103
    %p115 = scmp.eq.s32.totalorder %s16, 15
    %p116 = por %p114, %p115
    %p118 = scmp.ne.s32.totalorder %s103, %s117
    %p119 = scmp.eq.s32.totalorder %s16, 0
    %p120 = por %p118, %p119
    %s121 = ssub.s32 %s17, %s29
    %p122 = scmp.eq.s32.totalorder %s121, 0
    %s124 = sadd.s32 %s123, 1
    %s125 = scalar_select %p122, %s123, %s124
    %p128 = pneg %p122
    %p129 = scmp.eq.s32.totalorder %s10, 15
    %p130 = por %p128, %p129
    %p131 = scmp.ne.s32.totalorder %s123, %s126
    %p132 = scmp.eq.s32.totalorder %s10, 0
    %p133 = por %p131, %p132
    %p134 = scmp.ne.s32.totalorder %s123, %s126
    %p135 = scmp.eq.s32.totalorder %s15, 15
    %p136 = por %p134, %p135
    %p137 = scmp.ne.s32.totalorder %s126, %s127
    %p138 = scmp.eq.s32.totalorder %s15, 0
    %p139 = por %p137, %p138
    %p140 = scmp.ne.s32.totalorder %s126, %s127
    %p141 = scmp.eq.s32.totalorder %s16, 15
    %p142 = por %p140, %p141
    %p144 = scmp.ne.s32.totalorder %s127, %s143
    %p145 = scmp.eq.s32.totalorder %s16, 0
    %p146 = por %p144, %p145
    %p147 = scmp.le.s32.totalorder 1, %s10
    %p148 = scmp.lt.s32.totalorder %s10, 17
    %p149 = pnand %p147, %p148
    %p150 = pneg %p149
    // Predicated region
    $region9: #{csi2pointcloud_forward.4} parent=5 // pred_check
      _
    $region10: #{csi2pointcloud_forward.4} parent=5 // pred_check_branch
      %152 = sbr.rel (%p149) target = $region12
    $region11: #{csi2pointcloud_forward.4} parent=5 // pred_region
      %s153 = ssub.s32 %s10, 1
      // Predicated region
      $region13: #{csi2pointcloud_forward.4} parent=11 // pred_check
        %p154 = pneg %p71
      $region14: #{csi2pointcloud_forward.4} parent=11 // pred_check_branch
        %156 = sbr.rel (%p154) target = $region16
      $region15: #{csi2pointcloud_forward.4} parent=11 // pred_region
        _
      $region16: #{csi2pointcloud_forward.4} parent=11 // pred_fallthru
        _
      // Predicated region
      $region17: #{csi2pointcloud_forward.4} parent=11 // pred_check
        %p157 = pneg %p92
      $region18: #{csi2pointcloud_forward.4} parent=11 // pred_check_branch
        %159 = sbr.rel (%p157) target = $region20
      $region19: #{csi2pointcloud_forward.4} parent=11 // pred_region
        _
      $region20: #{csi2pointcloud_forward.4} parent=11 // pred_fallthru
        _
      // Predicated region
      $region21: #{csi2pointcloud_forward.4} parent=11 // pred_check
        %p160 = pneg %p113
      $region22: #{csi2pointcloud_forward.4} parent=11 // pred_check_branch
        %162 = sbr.rel (%p160) target = $region24
      $region23: #{csi2pointcloud_forward.4} parent=11 // pred_region
        _
      $region24: #{csi2pointcloud_forward.4} parent=11 // pred_fallthru
        _
    $region12: #{csi2pointcloud_forward.4} parent=5 // pred_fallthru
      _
    %p163 = scmp.lt.s32.totalorder %s10, 16
    // Predicated region
    $region25: #{csi2pointcloud_forward.4} parent=5 // pred_check
      %p164 = pneg %p163
    $region26: #{csi2pointcloud_forward.4} parent=5 // pred_check_branch
      %166 = sbr.rel (%p164) target = $region28
    $region27: #{csi2pointcloud_forward.4} parent=5 // pred_region
      // Predicated region
      $region29: #{csi2pointcloud_forward.4} parent=27 // pred_check
        %p167 = pneg %p44
      $region30: #{csi2pointcloud_forward.4} parent=27 // pred_check_branch
        %169 = sbr.rel (%p167) target = $region32
      $region31: #{csi2pointcloud_forward.4} parent=27 // pred_region
        %p170 = scmp.lt.s32.totalorder %s17, 1
        %s171 = scalar_select %p170, %s17, 1
        %p172 = scmp.lt.s32.totalorder %s18, 7
        %s173 = scalar_select %p172, %s18, 7
        %s174 = smul.addr %s173, 3
        %s175 = smul.addr %s171, 24
        %s176 = sadd.s32 %s174, %s175
        %s177 = smul.addr %s176, 8
        %s178 = scalar_lea.vmem %s0, %s177
      $region32: #{csi2pointcloud_forward.4} parent=27 // pred_fallthru
        _
    $region28: #{csi2pointcloud_forward.4} parent=5 // pred_fallthru
      _
    %p179 = scmp.le.s32.totalorder 1, %s10
    %p180 = scmp.lt.s32.totalorder %s10, 17
    %p181 = pnand %p179, %p180
    %p182 = pneg %p181
    // Predicated region
    $region33: #{csi2pointcloud_forward.4} parent=5 // pred_check
      _
    $region34: #{csi2pointcloud_forward.4} parent=5 // pred_check_branch
      %184 = sbr.rel (%p181) target = $region36
    $region35: #{csi2pointcloud_forward.4} parent=5 // pred_region
      %s185 = ssub.s32 %s10, 1
      %p186 = scmp.lt.s32.totalorder %s19, 1
      %s187 = scalar_select %p186, %s19, 1
      %p188 = scmp.lt.s32.totalorder %s20, 7
      %s189 = scalar_select %p188, %s20, 7
      %s190 = smul.addr %s189, 3
      %s191 = smul.addr %s187, 24
      %s192 = sadd.s32 %s190, %s191
      %s193 = smul.addr %s192, 8
      %s194 = scalar_lea.vmem %s0, %s193
      %p195 = pneg %p50
      %p196 = pneg %p47
      %p197 = pneg %p71
      %p198 = pneg %p68
      %p199 = pneg %p92
      %p200 = pneg %p89
      %p201 = pneg %p113
      %p202 = pneg %p110
      %p203 = pneg %p139
      %p204 = pneg %p136
      %p205 = scmp.lt.s32.totalorder %s19, 1
      %s206 = scalar_select %p205, %s19, 1
      %s207 = smul.addr %s206, 3
      %s208 = smul.addr %s207, 8
      %s209 = scalar_lea.vmem %s4, %s208
      %p210 = scmp.lt.s32.totalorder %s19, 1
      %s211 = scalar_select %p210, %s19, 1
      %p212 = scmp.lt.s32.totalorder %s20, 7
      %s213 = scalar_select %p212, %s20, 7
      %s214 = smul.addr %s213, 3
      %s215 = smul.addr %s211, 24
      %s216 = sadd.s32 %s214, %s215
      %s217 = smul.addr %s216, 8
      %s218 = scalar_lea.vmem %s0, %s217
      %p219 = scmp.lt.s32.totalorder %s19, 1
      %s220 = scalar_select %p219, %s19, 1
      %s221 = smul.addr %s220, 3
      %s222 = smul.addr %s221, 8
      %s223 = scalar_lea.vmem %s4, %s222
      %p224 = scmp.eq.s32.totalorder %s20, 0
      // Predicated region
      $region37: #{csi2pointcloud_forward.4} parent=35 // pred_check
        %p225 = pneg %p224
      $region38: #{csi2pointcloud_forward.4} parent=35 // pred_check_branch
        %227 = sbr.rel (%p225) target = $region40
      $region39: #{csi2pointcloud_forward.4} parent=35 // pred_region
        %vm228 = vcmask 261120
        %229 = vst.msk [vmem:[#allocation2] sm:$0xff] %vm228, 0.0
        %230 = vst.msk [vmem:[#allocation2 + $0x8] sm:$0xff] %vm228, 0.0
        %231 = vst.msk [vmem:[#allocation2 + $0x10] sm:$0xff] %vm228, 0.0
      $region40: #{csi2pointcloud_forward.4} parent=35 // pred_fallthru
        _
      %v232 = vld [vmem:[%s218] sm:$0xff]
      %v233 = vld [vmem:[%s218 + $0x8] sm:$0xff]
      %v234 = vld [vmem:[%s218 + $0x10] sm:$0xff]
      %v235 = vld [vmem:[%s1] sm:$0x3f]
      %v236 = vld [vmem:[%s2] sm:$0x1]
      %v238 = vlaneseq
      %v239 = vshrl.u32 %v238, 7
      %v240 = vsub.s32 0, %v239
      %v241 = vrot.slane %v236, %v240
      %vm243 = vcmask 48128
      %v245 = vsel %vm243, %v232, 0
      %v248 = vsel %vm243, %v233, 0
      %v251 = vsel %vm243, %v234, 0
      %vm253 = vcmask 1045504
      %v255 = vsel %vm253, %v235, 0
      %257 = vmatprep.subr.mxu0 0.0
      %258 = vmatpush1.msra.mxu0 0.0
      %259 = vmatprep.subr.mxu0 0.0
      %260 = vmatpush1.msra.mxu0 0.0
      %261 = vmatprep.subr.mxu0 0.0
      %262 = vmatpush1.msra.mxu0 0.0
      %263 = vmatprep.subr.mxu0 0.0
      %264 = vmatpush1.msra.mxu0 0.0
      %265 = vmatprep.subr.mxu0 0.0
      %266 = vmatpush1.msra.mxu0 0.0
      %267 = vmatprep.subr.mxu0 0.0
      %268 = vmatpush1.msra.mxu0 0.0
      %269 = vmatprep.subr.mxu0 0.0
      %270 = vmatpush1.msra.mxu0 0.0
      %271 = vmatprep.subr.mxu0 0.0
      %272 = vmatpush1.msra.mxu0 0.0
      %273 = vmatprep.subr.mxu0 0.0
      %274 = vmatpush1.msra.mxu0 0.0
      %275 = vmatprep.subr.mxu0 0.0
      %276 = vmatpush1.msra.mxu0 0.0
      %277 = vmatprep.subr.mxu0 0.0
      %278 = vmatpush1.msra.mxu0 0.0
      %279 = vmatprep.subr.mxu0 0.0
      %280 = vmatpush1.msra.mxu0 0.0
      %281 = vmatprep.subr.mxu0 0.0
      %282 = vmatpush1.msra.mxu0 0.0
      %283 = vmatprep.subr.mxu0 0.0
      %284 = vmatpush1.msra.mxu0 0.0
      %285 = vmatprep.subr.mxu0 0.0
      %286 = vmatpush1.msra.mxu0 0.0
      %287 = vmatprep.subr.mxu0 0.0
      %288 = vmatpush1.msra.mxu0 %v255
      %289 = vmatprep.subr.mxu0 0.0
      %290 = vmatpush2.msra.mxu0 0.0
      %291 = vmatprep.subr.mxu0 0.0
      %292 = vmatpush2.msra.mxu0 0.0
      %293 = vmatprep.subr.mxu0 0.0
      %294 = vmatpush2.msra.mxu0 0.0
      %295 = vmatprep.subr.mxu0 0.0
      %296 = vmatpush2.msra.mxu0 0.0
      %297 = vmatprep.subr.mxu0 0.0
      %298 = vmatpush2.msra.mxu0 0.0
      %299 = vmatprep.subr.mxu0 0.0
      %300 = vmatpush2.msra.mxu0 0.0
      %301 = vmatprep.subr.mxu0 0.0
      %302 = vmatpush2.msra.mxu0 0.0
      %303 = vmatprep.subr.mxu0 0.0
      %304 = vmatpush2.msra.mxu0 0.0
      %305 = vmatprep.subr.mxu0 0.0
      %306 = vmatpush2.msra.mxu0 0.0
      %307 = vmatprep.subr.mxu0 0.0
      %308 = vmatpush2.msra.mxu0 0.0
      %309 = vmatprep.subr.mxu0 0.0
      %310 = vmatpush2.msra.mxu0 0.0
      %311 = vmatprep.subr.mxu0 0.0
      %312 = vmatpush2.msra.mxu0 0.0
      %313 = vmatprep.subr.mxu0 0.0
      %314 = vmatpush2.msra.mxu0 0.0
      %315 = vmatprep.subr.mxu0 0.0
      %316 = vmatpush2.msra.mxu0 0.0
      %317 = vmatprep.subr.mxu0 0.0
      %318 = vmatpush2.msra.mxu0 0.0
      %319 = vmatprep.subr.mxu0 0.0
      %320 = vmatpush2.msra.mxu0 0.0
      %321 = vmatprep.mubr.f32.mxu0 0.0
      %322 = vmatmul.mubr.f32.gmra.mxu0 %v245
      %v323 = vpop.f32.mrf.mxu0
      %v324 = vadd.f32 %v241, %v323
      %v325 = vpop.f32.mrf.mxu0
      %326 = vmatprep.mubr.f32.mxu0 0.0
      %327 = vmatmul.mubr.f32.gmra.mxu0 %v248
      %v328 = vpop.f32.mrf.mxu0
      %v329 = vadd.f32 %v241, %v328
      %v330 = vpop.f32.mrf.mxu0
      %331 = vmatprep.mubr.f32.mxu0 0.0
      %332 = vmatmul.mubr.f32.gmra.mxu0 %v251
      %v333 = vpop.f32.mrf.mxu0
      %v334 = vadd.f32 %v241, %v333
      %v335 = vpop.f32.mrf.mxu0
      %336 = vdwg.mxu0
      %v337 = vld [vmem:[#allocation2] sm:$0xff]
      %v338 = vld [vmem:[#allocation2 + $0x8] sm:$0xff]
      %v339 = vld [vmem:[#allocation2 + $0x10] sm:$0xff]
      %v340 = vmax.f32 %v324, 0.0
      %v341 = vmax.f32 %v329, 0.0
      %v342 = vmax.f32 %v334, 0.0
      %v343 = vadd.f32 %v337, %v340
      %v344 = vadd.f32 %v338, %v341
      %v345 = vadd.f32 %v339, %v342
      %vm346 = vcmask 261120
      %347 = vst.msk [vmem:[#allocation2] sm:$0xff] %vm346, %v343
      %348 = vst.msk [vmem:[#allocation2 + $0x8] sm:$0xff] %vm346, %v344
      %349 = vst.msk [vmem:[#allocation2 + $0x10] sm:$0xff] %vm346, %v345
      %p350 = scmp.eq.s32.totalorder %s20, 7
      // Predicated region
      $region41: #{csi2pointcloud_forward.4} parent=35 // pred_check
        %p351 = pneg %p350
      $region42: #{csi2pointcloud_forward.4} parent=35 // pred_check_branch
        %353 = sbr.rel (%p351) target = $region44
      $region43: #{csi2pointcloud_forward.4} parent=35 // pred_region
        %v354 = vld [vmem:[#allocation2] sm:$0xff]
        %v355 = vld [vmem:[#allocation2 + $0x8] sm:$0xff]
        %v356 = vld [vmem:[#allocation2 + $0x10] sm:$0xff]
        %v357 = vmul.f32 %v354, 0.125
        %v358 = vmul.f32 %v355, 0.125
        %v359 = vmul.f32 %v356, 0.125
        %v360 = vld [vmem:[%s3] sm:$0xff]
        %v361 = vld [vmem:[%s3 + $0x8] sm:$0xff]
        %v362 = vld [vmem:[%s3 + $0x10] sm:$0xff]
        %v363 = vadd.f32 %v357, %v360
        %v364 = vadd.f32 %v358, %v361
        %v365 = vadd.f32 %v359, %v362
        %366 = vst.msk [vmem:[%s223] sm:$0xff] %vm346, %v363
        %367 = vst.msk [vmem:[%s223 + $0x8] sm:$0xff] %vm346, %v364
        %368 = vst.msk [vmem:[%s223 + $0x10] sm:$0xff] %vm346, %v365
      $region44: #{csi2pointcloud_forward.4} parent=35 // pred_fallthru
        _
      %p369 = scmp.lt.s32.totalorder %s19, 1
      %s370 = scalar_select %p369, %s19, 1
      %s371 = smul.addr %s370, 3
      %s372 = smul.addr %s371, 8
      %s373 = scalar_lea.vmem %s4, %s372
      // Predicated region
      $region45: #{csi2pointcloud_forward.4} parent=35 // pred_check
        %p374 = pneg %p136
      $region46: #{csi2pointcloud_forward.4} parent=35 // pred_check_branch
        %376 = sbr.rel (%p374) target = $region48
      $region47: #{csi2pointcloud_forward.4} parent=35 // pred_region
        _
      $region48: #{csi2pointcloud_forward.4} parent=35 // pred_fallthru
        _
    $region36: #{csi2pointcloud_forward.4} parent=5 // pred_fallthru
      _
    %p377 = scmp.le.s32.totalorder 2, %s10
    // Predicated region
    $region49: #{csi2pointcloud_forward.4} parent=5 // pred_check
      %p378 = pneg %p377
    $region50: #{csi2pointcloud_forward.4} parent=5 // pred_check_branch
      %380 = sbr.rel (%p378) target = $region52
    $region51: #{csi2pointcloud_forward.4} parent=5 // pred_region
      %s381 = ssub.s32 %s10, 2
      // Predicated region
      $region53: #{csi2pointcloud_forward.4} parent=51 // pred_check
        %p382 = pneg %p142
      $region54: #{csi2pointcloud_forward.4} parent=51 // pred_check_branch
        %384 = sbr.rel (%p382) target = $region56
      $region55: #{csi2pointcloud_forward.4} parent=51 // pred_region
        %p385 = scmp.lt.s32.totalorder %s21, 1
        %s386 = scalar_select %p385, %s21, 1
        %s387 = smul.addr %s386, 3
        %s388 = smul.addr %s387, 8
        %s389 = scalar_lea.vmem %s4, %s388
      $region56: #{csi2pointcloud_forward.4} parent=51 // pred_fallthru
        _
    $region52: #{csi2pointcloud_forward.4} parent=5 // pred_fallthru
      _
  $region6: #{csi2pointcloud_forward.4} parent=0 // loop_footer
    %s14 = sadd.s32 1, %s10
  $region7: #{csi2pointcloud_forward.4} parent=0 // loop_footer_branch
    %9 = sbr.rel target = $region3
  $region8: #{csi2pointcloud_forward.4} parent=0 // loop_exit
    _

// kernel: csi2pointcloud_forward.7
$region0: #{csi2pointcloud_forward.7}
  #allocation0 [shape = 'u32[]', space=smem, size = 0x4, offset = 0x4, fixed_abs, tag = 'smem constant byte address 0x4 - core index']
  #allocation1 [shape = 'u32[144,128]{1,0:T(1,128)}', space=vmem, size = 0x12000, scoped, tag = 'internal scratch']
  %s0 = inlined_call_operand.vmem [shape: f32[2,16,32], index: 0, kind: input, shape index: {}]
  %s1 = inlined_call_operand.vmem [shape: bf16[32,32], index: 1, kind: input, shape index: {}]
  %s2 = inlined_call_operand.vmem [shape: f32[1,32], index: 2, kind: input, shape index: {}]
  %s3 = inlined_call_operand.vmem [shape: bf16[32,128], index: 3, kind: input, shape index: {}]
  %s4 = inlined_call_operand.vmem [shape: f32[1,128], index: 4, kind: input, shape index: {}]
  %s5 = inlined_call_operand.vmem [shape: f32[2,16,128], index: 5, kind: output, shape index: {}]
  %s6 = sld [smem:[#allocation0]]
  $region53: #{csi2pointcloud_forward.7} parent=0
    _
  %s8 = ssub.s32 1, %s6
  %s9 = scalar_select 0, %s8, %s6
  loop: start=0, step=1, limit=4
  $region2: #{csi2pointcloud_forward.7} parent=0 // loop_pre_header
    _
  $region3: #{csi2pointcloud_forward.7} parent=0 // loop_header
    %s11 = sphi 0, %s15
    %p12 = scmp.ge.s32.totalorder %s11, 4
    %s21 = sphi 0, %s23
    %s24 = sphi 0, %s21
    %s25 = sphi 0, %s24
    %s41 = sphi 0, %s25
    %s45 = sphi 0, %s45
    %s47 = sphi 0, %s45
    %s48 = sphi 0, %s47
    %s62 = sphi 0, %s48
    %s66 = sphi 0, %s66
    %s68 = sphi 0, %s66
    %s69 = sphi 0, %s68
    %s83 = sphi 0, %s69
    %s87 = sphi 0, %s87
    %s89 = sphi 0, %s87
    %s90 = sphi 0, %s89
    %s104 = sphi 0, %s90
    %s108 = sphi 0, %s108
    %s110 = sphi 0, %s108
    %s111 = sphi 0, %s110
    %s125 = sphi 0, %s111
    %s131 = sphi 0, %s133
    %s134 = sphi 0, %s131
    %s135 = sphi 0, %s134
    %s151 = sphi 0, %s135
  $region4: #{csi2pointcloud_forward.7} parent=0 // loop_header_branch
    %14 = sbr.rel (%p12) target = $region8
  $region5: #{csi2pointcloud_forward.7} parent=0 // loop_body
    %s16 = ssub.s32 %s11, 1
    %s17 = ssub.s32 %s11, 2
    %s18 = sadd.s32 %s11, 1
    %s19 = ssub.s32 %s11, %s18
    %p20 = scmp.eq.s32.totalorder %s19, 0
    %s22 = sadd.s32 %s21, 1
    %s23 = scalar_select %p20, %s21, %s22
    %p26 = pneg %p20
    %p27 = scmp.eq.s32.totalorder %s11, 1
    %p28 = por %p26, %p27
    %p29 = scmp.ne.s32.totalorder %s21, %s24
    %p30 = scmp.eq.s32.totalorder %s11, 0
    %p31 = por %p29, %p30
    %p32 = scmp.ne.s32.totalorder %s21, %s24
    %p33 = scmp.eq.s32.totalorder %s16, 1
    %p34 = por %p32, %p33
    %p35 = scmp.ne.s32.totalorder %s24, %s25
    %p36 = scmp.eq.s32.totalorder %s16, 0
    %p37 = por %p35, %p36
    %p38 = scmp.ne.s32.totalorder %s24, %s25
    %p39 = scmp.eq.s32.totalorder %s17, 1
    %p40 = por %p38, %p39
    %p42 = scmp.ne.s32.totalorder %s25, %s41
    %p43 = scmp.eq.s32.totalorder %s17, 0
    %p44 = por %p42, %p43
    %s46 = sadd.s32 %s45, 1
    %p49 = scmp.eq.s32.totalorder %s11, 1
    %p50 = scmp.ne.s32.totalorder %s45, %s47
    %p51 = scmp.eq.s32.totalorder %s11, 0
    %p52 = por %p50, %p51
    %p53 = scmp.ne.s32.totalorder %s45, %s47
    %p54 = scmp.eq.s32.totalorder %s16, 1
    %p55 = por %p53, %p54
    %p56 = scmp.ne.s32.totalorder %s47, %s48
    %p57 = scmp.eq.s32.totalorder %s16, 0
    %p58 = por %p56, %p57
    %p59 = scmp.ne.s32.totalorder %s47, %s48
    %p60 = scmp.eq.s32.totalorder %s17, 1
    %p61 = por %p59, %p60
    %p63 = scmp.ne.s32.totalorder %s48, %s62
    %p64 = scmp.eq.s32.totalorder %s17, 0
    %p65 = por %p63, %p64
    %s67 = sadd.s32 %s66, 1
    %p70 = scmp.eq.s32.totalorder %s11, 1
    %p71 = scmp.ne.s32.totalorder %s66, %s68
    %p72 = scmp.eq.s32.totalorder %s11, 0
    %p73 = por %p71, %p72
    %p74 = scmp.ne.s32.totalorder %s66, %s68
    %p75 = scmp.eq.s32.totalorder %s16, 1
    %p76 = por %p74, %p75
    %p77 = scmp.ne.s32.totalorder %s68, %s69
    %p78 = scmp.eq.s32.totalorder %s16, 0
    %p79 = por %p77, %p78
    %p80 = scmp.ne.s32.totalorder %s68, %s69
    %p81 = scmp.eq.s32.totalorder %s17, 1
    %p82 = por %p80, %p81
    %p84 = scmp.ne.s32.totalorder %s69, %s83
    %p85 = scmp.eq.s32.totalorder %s17, 0
    %p86 = por %p84, %p85
    %s88 = sadd.s32 %s87, 1
    %p91 = scmp.eq.s32.totalorder %s11, 1
    %p92 = scmp.ne.s32.totalorder %s87, %s89
    %p93 = scmp.eq.s32.totalorder %s11, 0
    %p94 = por %p92, %p93
    %p95 = scmp.ne.s32.totalorder %s87, %s89
    %p96 = scmp.eq.s32.totalorder %s16, 1
    %p97 = por %p95, %p96
    %p98 = scmp.ne.s32.totalorder %s89, %s90
    %p99 = scmp.eq.s32.totalorder %s16, 0
    %p100 = por %p98, %p99
    %p101 = scmp.ne.s32.totalorder %s89, %s90
    %p102 = scmp.eq.s32.totalorder %s17, 1
    %p103 = por %p101, %p102
    %p105 = scmp.ne.s32.totalorder %s90, %s104
    %p106 = scmp.eq.s32.totalorder %s17, 0
    %p107 = por %p105, %p106
    %s109 = sadd.s32 %s108, 1
    %p112 = scmp.eq.s32.totalorder %s11, 1
    %p113 = scmp.ne.s32.totalorder %s108, %s110
    %p114 = scmp.eq.s32.totalorder %s11, 0
    %p115 = por %p113, %p114
    %p116 = scmp.ne.s32.totalorder %s108, %s110
    %p117 = scmp.eq.s32.totalorder %s16, 1
    %p118 = por %p116, %p117
    %p119 = scmp.ne.s32.totalorder %s110, %s111
    %p120 = scmp.eq.s32.totalorder %s16, 0
    %p121 = por %p119, %p120
    %p122 = scmp.ne.s32.totalorder %s110, %s111
    %p123 = scmp.eq.s32.totalorder %s17, 1
    %p124 = por %p122, %p123
    %p126 = scmp.ne.s32.totalorder %s111, %s125
    %p127 = scmp.eq.s32.totalorder %s17, 0
    %p128 = por %p126, %p127
    %s129 = ssub.s32 %s11, %s18
    %p130 = scmp.eq.s32.totalorder %s129, 0
    %s132 = sadd.s32 %s131, 1
    %s133 = scalar_select %p130, %s131, %s132
    %p136 = pneg %p130
    %p137 = scmp.eq.s32.totalorder %s11, 1
    %p138 = por %p136, %p137
    %p139 = scmp.ne.s32.totalorder %s131, %s134
    %p140 = scmp.eq.s32.totalorder %s11, 0
    %p141 = por %p139, %p140
    %p142 = scmp.ne.s32.totalorder %s131, %s134
    %p143 = scmp.eq.s32.totalorder %s16, 1
    %p144 = por %p142, %p143
    %p145 = scmp.ne.s32.totalorder %s134, %s135
    %p146 = scmp.eq.s32.totalorder %s16, 0
    %p147 = por %p145, %p146
    %p148 = scmp.ne.s32.totalorder %s134, %s135
    %p149 = scmp.eq.s32.totalorder %s17, 1
    %p150 = por %p148, %p149
    %p152 = scmp.ne.s32.totalorder %s135, %s151
    %p153 = scmp.eq.s32.totalorder %s17, 0
    %p154 = por %p152, %p153
    %p155 = scmp.le.s32.totalorder 1, %s11
    %p156 = scmp.lt.s32.totalorder %s11, 3
    %p157 = pnand %p155, %p156
    %p158 = pneg %p157
    // Predicated region
    $region9: #{csi2pointcloud_forward.7} parent=5 // pred_check
      _
    $region10: #{csi2pointcloud_forward.7} parent=5 // pred_check_branch
      %160 = sbr.rel (%p157) target = $region12
    $region11: #{csi2pointcloud_forward.7} parent=5 // pred_region
      %s161 = ssub.s32 %s11, 1
      // Predicated region
      $region13: #{csi2pointcloud_forward.7} parent=11 // pred_check
        %p162 = pneg %p58
      $region14: #{csi2pointcloud_forward.7} parent=11 // pred_check_branch
        %164 = sbr.rel (%p162) target = $region16
      $region15: #{csi2pointcloud_forward.7} parent=11 // pred_region
        _
      $region16: #{csi2pointcloud_forward.7} parent=11 // pred_fallthru
        _
      // Predicated region
      $region17: #{csi2pointcloud_forward.7} parent=11 // pred_check
        %p165 = pneg %p79
      $region18: #{csi2pointcloud_forward.7} parent=11 // pred_check_branch
        %167 = sbr.rel (%p165) target = $region20
      $region19: #{csi2pointcloud_forward.7} parent=11 // pred_region
        _
      $region20: #{csi2pointcloud_forward.7} parent=11 // pred_fallthru
        _
      // Predicated region
      $region21: #{csi2pointcloud_forward.7} parent=11 // pred_check
        %p168 = pneg %p100
      $region22: #{csi2pointcloud_forward.7} parent=11 // pred_check_branch
        %170 = sbr.rel (%p168) target = $region24
      $region23: #{csi2pointcloud_forward.7} parent=11 // pred_region
        _
      $region24: #{csi2pointcloud_forward.7} parent=11 // pred_fallthru
        _
      // Predicated region
      $region25: #{csi2pointcloud_forward.7} parent=11 // pred_check
        %p171 = pneg %p121
      $region26: #{csi2pointcloud_forward.7} parent=11 // pred_check_branch
        %173 = sbr.rel (%p171) target = $region28
      $region27: #{csi2pointcloud_forward.7} parent=11 // pred_region
        _
      $region28: #{csi2pointcloud_forward.7} parent=11 // pred_fallthru
        _
    $region12: #{csi2pointcloud_forward.7} parent=5 // pred_fallthru
      _
    %p174 = scmp.lt.s32.totalorder %s11, 2
    // Predicated region
    $region29: #{csi2pointcloud_forward.7} parent=5 // pred_check
      %p175 = pneg %p174
    $region30: #{csi2pointcloud_forward.7} parent=5 // pred_check_branch
      %177 = sbr.rel (%p175) target = $region32
    $region31: #{csi2pointcloud_forward.7} parent=5 // pred_region
      // Predicated region
      $region33: #{csi2pointcloud_forward.7} parent=31 // pred_check
        %p178 = pneg %p31
      $region34: #{csi2pointcloud_forward.7} parent=31 // pred_check_branch
        %180 = sbr.rel (%p178) target = $region36
      $region35: #{csi2pointcloud_forward.7} parent=31 // pred_region
        %p181 = scmp.lt.s32.totalorder %s11, 1
        %s182 = scalar_select %p181, %s11, 1
        %s183 = smul.addr %s182, 2
        %s184 = smul.addr %s183, 8
        %s185 = scalar_lea.vmem %s0, %s184
      $region36: #{csi2pointcloud_forward.7} parent=31 // pred_fallthru
        _
    $region32: #{csi2pointcloud_forward.7} parent=5 // pred_fallthru
      _
    %p186 = scmp.le.s32.totalorder 1, %s11
    %p187 = scmp.lt.s32.totalorder %s11, 3
    %p188 = pnand %p186, %p187
    %p189 = pneg %p188
    // Predicated region
    $region37: #{csi2pointcloud_forward.7} parent=5 // pred_check
      _
    $region38: #{csi2pointcloud_forward.7} parent=5 // pred_check_branch
      %191 = sbr.rel (%p188) target = $region40
    $region39: #{csi2pointcloud_forward.7} parent=5 // pred_region
      %s192 = ssub.s32 %s11, 1
      %p193 = scmp.lt.s32.totalorder %s16, 1
      %s194 = scalar_select %p193, %s16, 1
      %s195 = smul.addr %s194, 2
      %s196 = smul.addr %s195, 8
      %s197 = scalar_lea.vmem %s0, %s196
      %p198 = pneg %p37
      %p199 = pneg %p34
      %p200 = pneg %p58
      %p201 = pneg %p55
      %p202 = pneg %p79
      %p203 = pneg %p76
      %p204 = pneg %p100
      %p205 = pneg %p97
      %p206 = pneg %p121
      %p207 = pneg %p118
      %p208 = pneg %p147
      %p209 = pneg %p144
      %p210 = scmp.lt.s32.totalorder %s16, 1
      %s211 = scalar_select %p210, %s16, 1
      %s212 = smul.addr %s211, 2
      %s213 = smul.addr %s212, 8
      %s214 = scalar_lea.vmem %s5, %s213
      %p215 = scmp.lt.s32.totalorder %s16, 1
      %s216 = scalar_select %p215, %s16, 1
      %s217 = smul.addr %s216, 2
      %s218 = smul.addr %s217, 8
      %s219 = scalar_lea.vmem %s0, %s218
      %p220 = scmp.lt.s32.totalorder %s16, 1
      %s221 = scalar_select %p220, %s16, 1
      %s222 = smul.addr %s221, 2
      %s223 = smul.addr %s222, 8
      %s224 = scalar_lea.vmem %s5, %s223
      %v226 = vld [vmem:[%s219] sm:$0xff]
      %v227 = vld [vmem:[%s219 + $0x8] sm:$0xff]
      %v228 = vld [vmem:[%s1] sm:$0xf]
      %v229 = vld [vmem:[%s1 + $0x4] sm:$0xf]
      %v230 = vld [vmem:[%s1 + $0x8] sm:$0xf]
      %v231 = vld [vmem:[%s1 + $0xc] sm:$0xf]
      %v232 = vpack.c.bf16 %v227, %v226
      %v233 = vld [vmem:[%s2] sm:$0x1]
      %v235 = vlaneseq
      %v236 = vshrl.u32 %v235, 7
      %v237 = vsub.s32 0, %v236
      %v238 = vrot.slane %v233, %v237
      %v244 = vunpack.c.l.b16 %v228
      %v245 = vunpack.c.l.b16 %v229
      %v246 = vunpack.c.l.b16 %v230
      %v247 = vunpack.c.l.b16 %v231
      %v248 = vpack.c.b16 %v245, %v244
      %v249 = vpack.c.b16 %v247, %v246
      %vm252 = vcmask 261120
      %v254 = vsel %vm252, %v232, 0
      %256 = vmatprep.subr.bf16.mxu0 0
      %257 = vmatpush1.bf16.msra.mxu0 0
      %258 = vmatprep.subr.bf16.mxu0 0
      %259 = vmatpush1.bf16.msra.mxu0 0
      %260 = vmatprep.subr.bf16.mxu0 0
      %261 = vmatpush1.bf16.msra.mxu0 0
      %262 = vmatprep.subr.bf16.mxu0 0
      %263 = vmatpush1.bf16.msra.mxu0 0
      %264 = vmatprep.subr.bf16.mxu0 0
      %265 = vmatpush1.bf16.msra.mxu0 0
      %266 = vmatprep.subr.bf16.mxu0 0
      %267 = vmatpush1.bf16.msra.mxu0 0
      %268 = vmatprep.subr.bf16.mxu0 0
      %269 = vmatpush1.bf16.msra.mxu0 %v249
      %270 = vmatprep.subr.bf16.mxu0 0
      %271 = vmatpush1.bf16.msra.mxu0 %v248
      %272 = vmatprep.subr.bf16.mxu0 0
      %273 = vmatpush2.bf16.msra.mxu0 0
      %274 = vmatprep.subr.bf16.mxu0 0
      %275 = vmatpush2.bf16.msra.mxu0 0
      %276 = vmatprep.subr.bf16.mxu0 0
      %277 = vmatpush2.bf16.msra.mxu0 0
      %278 = vmatprep.subr.bf16.mxu0 0
      %279 = vmatpush2.bf16.msra.mxu0 0
      %280 = vmatprep.subr.bf16.mxu0 0
      %281 = vmatpush2.bf16.msra.mxu0 0
      %282 = vmatprep.subr.bf16.mxu0 0
      %283 = vmatpush2.bf16.msra.mxu0 0
      %284 = vmatprep.subr.bf16.mxu0 0
      %285 = vmatpush2.bf16.msra.mxu0 0
      %286 = vmatprep.subr.bf16.mxu0 0
      %287 = vmatpush2.bf16.msra.mxu0 0
      %288 = vmatprep.mubr.bf16.mxu0 0
      %289 = vmatmul.mubr.bf16.gmra.mxu0 %v254
      %v290 = vpop.f32.mrf.mxu0
      %v291 = vadd.f32 %v238, %v290
      %v292 = vpop.f32.mrf.mxu0
      %v293 = vpop.f32.mrf.mxu0
      %v294 = vadd.f32 %v238, %v293
      %v295 = vpop.f32.mrf.mxu0
      %296 = vdwg.mxu0
      %v297 = vmax.f32 %v291, 0.0
      %v298 = vmax.f32 %v294, 0.0
      %v299 = vld [vmem:[%s3] sm:$0xf]
      %v300 = vld [vmem:[%s3 + $0x4] sm:$0xf]
      %v301 = vld [vmem:[%s3 + $0x8] sm:$0xf]
      %v302 = vld [vmem:[%s3 + $0xc] sm:$0xf]
      %v303 = vpack.c.bf16 %v298, %v297
      %v304 = vld [vmem:[%s4] sm:$0x1]
      %v306 = vlaneseq
      %v307 = vshrl.u32 %v306, 7
      %v308 = vsub.s32 0, %v307
      %v309 = vrot.slane %v304, %v308
      %v315 = vunpack.c.l.b16 %v299
      %v316 = vunpack.c.l.b16 %v300
      %v317 = vunpack.c.l.b16 %v301
      %v318 = vunpack.c.l.b16 %v302
      %v319 = vpack.c.b16 %v316, %v315
      %v320 = vpack.c.b16 %v318, %v317
      %v324 = vsel %vm252, %v303, 0
      %326 = vmatprep.subr.bf16.mxu0 0
      %327 = vmatpush1.bf16.msra.mxu0 0
      %328 = vmatprep.subr.bf16.mxu0 0
      %329 = vmatpush1.bf16.msra.mxu0 0
      %330 = vmatprep.subr.bf16.mxu0 0
      %331 = vmatpush1.bf16.msra.mxu0 0
      %332 = vmatprep.subr.bf16.mxu0 0
      %333 = vmatpush1.bf16.msra.mxu0 0
      %334 = vmatprep.subr.bf16.mxu0 0
      %335 = vmatpush1.bf16.msra.mxu0 0
      %336 = vmatprep.subr.bf16.mxu0 0
      %337 = vmatpush1.bf16.msra.mxu0 0
      %338 = vmatprep.subr.bf16.mxu0 0
      %339 = vmatpush1.bf16.msra.mxu0 %v320
      %340 = vmatprep.subr.bf16.mxu0 0
      %341 = vmatpush1.bf16.msra.mxu0 %v319
      %342 = vmatprep.subr.bf16.mxu0 0
      %343 = vmatpush2.bf16.msra.mxu0 0
      %344 = vmatprep.subr.bf16.mxu0 0
      %345 = vmatpush2.bf16.msra.mxu0 0
      %346 = vmatprep.subr.bf16.mxu0 0
      %347 = vmatpush2.bf16.msra.mxu0 0
      %348 = vmatprep.subr.bf16.mxu0 0
      %349 = vmatpush2.bf16.msra.mxu0 0
      %350 = vmatprep.subr.bf16.mxu0 0
      %351 = vmatpush2.bf16.msra.mxu0 0
      %352 = vmatprep.subr.bf16.mxu0 0
      %353 = vmatpush2.bf16.msra.mxu0 0
      %354 = vmatprep.subr.bf16.mxu0 0
      %355 = vmatpush2.bf16.msra.mxu0 0
      %356 = vmatprep.subr.bf16.mxu0 0
      %357 = vmatpush2.bf16.msra.mxu0 0
      %358 = vmatprep.mubr.bf16.mxu0 0
      %359 = vmatmul.mubr.bf16.gmra.mxu0 %v324
      %v360 = vpop.f32.mrf.mxu0
      %v361 = vadd.f32 %v309, %v360
      %v362 = vpop.f32.mrf.mxu0
      %v363 = vpop.f32.mrf.mxu0
      %v364 = vadd.f32 %v309, %v363
      %v365 = vpop.f32.mrf.mxu0
      %366 = vdwg.mxu0
      %367 = vst [vmem:[%s224] sm:$0xff] %v361
      %368 = vst [vmem:[%s224 + $0x8] sm:$0xff] %v364
      %p369 = scmp.lt.s32.totalorder %s16, 1
      %s370 = scalar_select %p369, %s16, 1
      %s371 = smul.addr %s370, 2
      %s372 = smul.addr %s371, 8
      %s373 = scalar_lea.vmem %s5, %s372
      // Predicated region
      $region41: #{csi2pointcloud_forward.7} parent=39 // pred_check
        %p374 = pneg %p144
      $region42: #{csi2pointcloud_forward.7} parent=39 // pred_check_branch
        %376 = sbr.rel (%p374) target = $region44
      $region43: #{csi2pointcloud_forward.7} parent=39 // pred_region
        _
      $region44: #{csi2pointcloud_forward.7} parent=39 // pred_fallthru
        _
    $region40: #{csi2pointcloud_forward.7} parent=5 // pred_fallthru
      _
    %p377 = scmp.le.s32.totalorder 2, %s11
    // Predicated region
    $region45: #{csi2pointcloud_forward.7} parent=5 // pred_check
      %p378 = pneg %p377
    $region46: #{csi2pointcloud_forward.7} parent=5 // pred_check_branch
      %380 = sbr.rel (%p378) target = $region48
    $region47: #{csi2pointcloud_forward.7} parent=5 // pred_region
      %s381 = ssub.s32 %s11, 2
      // Predicated region
      $region49: #{csi2pointcloud_forward.7} parent=47 // pred_check
        %p382 = pneg %p150
      $region50: #{csi2pointcloud_forward.7} parent=47 // pred_check_branch
        %384 = sbr.rel (%p382) target = $region52
      $region51: #{csi2pointcloud_forward.7} parent=47 // pred_region
        %p385 = scmp.lt.s32.totalorder %s17, 1
        %s386 = scalar_select %p385, %s17, 1
        %s387 = smul.addr %s386, 2
        %s388 = smul.addr %s387, 8
        %s389 = scalar_lea.vmem %s5, %s388
      $region52: #{csi2pointcloud_forward.7} parent=47 // pred_fallthru
        _
    $region48: #{csi2pointcloud_forward.7} parent=5 // pred_fallthru
      _
  $region6: #{csi2pointcloud_forward.7} parent=0 // loop_footer
    %s15 = sadd.s32 1, %s11
  $region7: #{csi2pointcloud_forward.7} parent=0 // loop_footer_branch
    %10 = sbr.rel target = $region3
  $region8: #{csi2pointcloud_forward.7} parent=0 // loop_exit
    _

// kernel: csi2pointcloud_forward.5
$region0: #{csi2pointcloud_forward.5}
  #allocation0 [shape = 'u32[]', space=smem, size = 0x4, offset = 0x4, fixed_abs, tag = 'smem constant byte address 0x4 - core index']
  #allocation1 [shape = 'u32[144,128]{1,0:T(1,128)}', space=vmem, size = 0x12000, scoped, tag = 'internal scratch']
  %s0 = inlined_call_operand.vmem [shape: f32[2,24,32], index: 0, kind: input, shape index: {}]
  %s1 = inlined_call_operand.vmem [shape: bf16[32,32], index: 1, kind: input, shape index: {}]
  %s2 = inlined_call_operand.vmem [shape: bf16[32,32], index: 2, kind: input, shape index: {}]
  %s3 = inlined_call_operand.vmem [shape: bf16[32,32], index: 3, kind: input, shape index: {}]
  %s4 = inlined_call_operand.vmem [shape: f32[1,32], index: 4, kind: input, shape index: {}]
  %s5 = inlined_call_operand.vmem [shape: f32[1,32], index: 5, kind: input, shape index: {}]
  %s6 = inlined_call_operand.vmem [shape: f32[1,32], index: 6, kind: input, shape index: {}]
  %s7 = inlined_call_operand.vmem [shape: bf16[32,32], index: 7, kind: input, shape index: {}]
  %s8 = inlined_call_operand.vmem [shape: f32[1,32], index: 8, kind: input, shape index: {}]
  %s9 = inlined_call_operand.vmem [shape: f32[1,32], index: 9, kind: input, shape index: {}]
  %s10 = inlined_call_operand.vmem [shape: f32[1,32], index: 10, kind: input, shape index: {}]
  %s11 = inlined_call_operand.vmem [shape: bf16[32,2048], index: 11, kind: input, shape index: {}]
  %s12 = inlined_call_operand.vmem [shape: f32[1,2048], index: 12, kind: input, shape index: {}]
  %s13 = inlined_call_operand.vmem [shape: bf16[2048,32], index: 13, kind: input, shape index: {}]
  %s14 = inlined_call_operand.vmem [shape: f32[1,32], index: 14, kind: input, shape index: {}]
  %s15 = inlined_call_operand.vmem [shape: f32[1,32], index: 15, kind: input, shape index: {}]
  %s16 = inlined_call_operand.vmem [shape: f32[1,32], index: 16, kind: input, shape index: {}]
  %s17 = inlined_call_operand.vmem [shape: f32[2,24,32], index: 17, kind: output, shape index: {}]
  %s18 = sld [smem:[#allocation0]]
  $region101: #{csi2pointcloud_forward.5} parent=0
    _
  %s20 = ssub.s32 1, %s18
  %s21 = scalar_select 0, %s20, %s18
  loop: start=0, step=1, limit=4
  $region2: #{csi2pointcloud_forward.5} parent=0 // loop_pre_header
    _
  $region3: #{csi2pointcloud_forward.5} parent=0 // loop_header
    %s23 = sphi 0, %s27
    %p24 = scmp.ge.s32.totalorder %s23, 4
    %s33 = sphi 0, %s35
    %s36 = sphi 0, %s33
    %s37 = sphi 0, %s36
    %s53 = sphi 0, %s37
    %s57 = sphi 0, %s57
    %s59 = sphi 0, %s57
    %s60 = sphi 0, %s59
    %s74 = sphi 0, %s60
    %s78 = sphi 0, %s78
    %s80 = sphi 0, %s78
    %s81 = sphi 0, %s80
    %s95 = sphi 0, %s81
    %s99 = sphi 0, %s99
    %s101 = sphi 0, %s99
    %s102 = sphi 0, %s101
    %s116 = sphi 0, %s102
    %s120 = sphi 0, %s120
    %s122 = sphi 0, %s120
    %s123 = sphi 0, %s122
    %s137 = sphi 0, %s123
    %s141 = sphi 0, %s141
    %s143 = sphi 0, %s141
    %s144 = sphi 0, %s143
    %s158 = sphi 0, %s144
    %s162 = sphi 0, %s162
    %s164 = sphi 0, %s162
    %s165 = sphi 0, %s164
    %s179 = sphi 0, %s165
    %s183 = sphi 0, %s183
    %s185 = sphi 0, %s183
    %s186 = sphi 0, %s185
    %s200 = sphi 0, %s186
    %s204 = sphi 0, %s204
    %s206 = sphi 0, %s204
    %s207 = sphi 0, %s206
    %s221 = sphi 0, %s207
    %s225 = sphi 0, %s225
    %s227 = sphi 0, %s225
    %s228 = sphi 0, %s227
    %s242 = sphi 0, %s228
    %s246 = sphi 0, %s246
    %s248 = sphi 0, %s246
    %s249 = sphi 0, %s248
    %s263 = sphi 0, %s249
    %s267 = sphi 0, %s267
    %s269 = sphi 0, %s267
    %s270 = sphi 0, %s269
    %s284 = sphi 0, %s270
    %s288 = sphi 0, %s288
    %s290 = sphi 0, %s288
    %s291 = sphi 0, %s290
    %s305 = sphi 0, %s291
    %s309 = sphi 0, %s309
    %s311 = sphi 0, %s309
    %s312 = sphi 0, %s311
    %s326 = sphi 0, %s312
    %s330 = sphi 0, %s330
    %s332 = sphi 0, %s330
    %s333 = sphi 0, %s332
    %s347 = sphi 0, %s333
    %s351 = sphi 0, %s351
    %s353 = sphi 0, %s351
    %s354 = sphi 0, %s353
    %s368 = sphi 0, %s354
    %s372 = sphi 0, %s372
    %s374 = sphi 0, %s372
    %s375 = sphi 0, %s374
    %s389 = sphi 0, %s375
    %s395 = sphi 0, %s397
    %s398 = sphi 0, %s395
    %s399 = sphi 0, %s398
    %s415 = sphi 0, %s399
  $region4: #{csi2pointcloud_forward.5} parent=0 // loop_header_branch
    %26 = sbr.rel (%p24) target = $region8
  $region5: #{csi2pointcloud_forward.5} parent=0 // loop_body
    %s28 = ssub.s32 %s23, 1
    %s29 = ssub.s32 %s23, 2
    %s30 = sadd.s32 %s23, 1
    %s31 = ssub.s32 %s23, %s30
    %p32 = scmp.eq.s32.totalorder %s31, 0
    %s34 = sadd.s32 %s33, 1
    %s35 = scalar_select %p32, %s33, %s34
    %p38 = pneg %p32
    %p39 = scmp.eq.s32.totalorder %s23, 1
    %p40 = por %p38, %p39
    %p41 = scmp.ne.s32.totalorder %s33, %s36
    %p42 = scmp.eq.s32.totalorder %s23, 0
    %p43 = por %p41, %p42
    %p44 = scmp.ne.s32.totalorder %s33, %s36
    %p45 = scmp.eq.s32.totalorder %s28, 1
    %p46 = por %p44, %p45
    %p47 = scmp.ne.s32.totalorder %s36, %s37
    %p48 = scmp.eq.s32.totalorder %s28, 0
    %p49 = por %p47, %p48
    %p50 = scmp.ne.s32.totalorder %s36, %s37
    %p51 = scmp.eq.s32.totalorder %s29, 1
    %p52 = por %p50, %p51
    %p54 = scmp.ne.s32.totalorder %s37, %s53
    %p55 = scmp.eq.s32.totalorder %s29, 0
    %p56 = por %p54, %p55
    %s58 = sadd.s32 %s57, 1
    %p61 = scmp.eq.s32.totalorder %s23, 1
    %p62 = scmp.ne.s32.totalorder %s57, %s59
    %p63 = scmp.eq.s32.totalorder %s23, 0
    %p64 = por %p62, %p63
    %p65 = scmp.ne.s32.totalorder %s57, %s59
    %p66 = scmp.eq.s32.totalorder %s28, 1
    %p67 = por %p65, %p66
    %p68 = scmp.ne.s32.totalorder %s59, %s60
    %p69 = scmp.eq.s32.totalorder %s28, 0
    %p70 = por %p68, %p69
    %p71 = scmp.ne.s32.totalorder %s59, %s60
    %p72 = scmp.eq.s32.totalorder %s29, 1
    %p73 = por %p71, %p72
    %p75 = scmp.ne.s32.totalorder %s60, %s74
    %p76 = scmp.eq.s32.totalorder %s29, 0
    %p77 = por %p75, %p76
    %s79 = sadd.s32 %s78, 1
    %p82 = scmp.eq.s32.totalorder %s23, 1
    %p83 = scmp.ne.s32.totalorder %s78, %s80
    %p84 = scmp.eq.s32.totalorder %s23, 0
    %p85 = por %p83, %p84
    %p86 = scmp.ne.s32.totalorder %s78, %s80
    %p87 = scmp.eq.s32.totalorder %s28, 1
    %p88 = por %p86, %p87
    %p89 = scmp.ne.s32.totalorder %s80, %s81
    %p90 = scmp.eq.s32.totalorder %s28, 0
    %p91 = por %p89, %p90
    %p92 = scmp.ne.s32.totalorder %s80, %s81
    %p93 = scmp.eq.s32.totalorder %s29, 1
    %p94 = por %p92, %p93
    %p96 = scmp.ne.s32.totalorder %s81, %s95
    %p97 = scmp.eq.s32.totalorder %s29, 0
    %p98 = por %p96, %p97
    %s100 = sadd.s32 %s99, 1
    %p103 = scmp.eq.s32.totalorder %s23, 1
    %p104 = scmp.ne.s32.totalorder %s99, %s101
    %p105 = scmp.eq.s32.totalorder %s23, 0
    %p106 = por %p104, %p105
    %p107 = scmp.ne.s32.totalorder %s99, %s101
    %p108 = scmp.eq.s32.totalorder %s28, 1
    %p109 = por %p107, %p108
    %p110 = scmp.ne.s32.totalorder %s101, %s102
    %p111 = scmp.eq.s32.totalorder %s28, 0
    %p112 = por %p110, %p111
    %p113 = scmp.ne.s32.totalorder %s101, %s102
    %p114 = scmp.eq.s32.totalorder %s29, 1
    %p115 = por %p113, %p114
    %p117 = scmp.ne.s32.totalorder %s102, %s116
    %p118 = scmp.eq.s32.totalorder %s29, 0
    %p119 = por %p117, %p118
    %s121 = sadd.s32 %s120, 1
    %p124 = scmp.eq.s32.totalorder %s23, 1
    %p125 = scmp.ne.s32.totalorder %s120, %s122
    %p126 = scmp.eq.s32.totalorder %s23, 0
    %p127 = por %p125, %p126
    %p128 = scmp.ne.s32.totalorder %s120, %s122
    %p129 = scmp.eq.s32.totalorder %s28, 1
    %p130 = por %p128, %p129
    %p131 = scmp.ne.s32.totalorder %s122, %s123
    %p132 = scmp.eq.s32.totalorder %s28, 0
    %p133 = por %p131, %p132
    %p134 = scmp.ne.s32.totalorder %s122, %s123
    %p135 = scmp.eq.s32.totalorder %s29, 1
    %p136 = por %p134, %p135
    %p138 = scmp.ne.s32.totalorder %s123, %s137
    %p139 = scmp.eq.s32.totalorder %s29, 0
    %p140 = por %p138, %p139
    %s142 = sadd.s32 %s141, 1
    %p145 = scmp.eq.s32.totalorder %s23, 1
    %p146 = scmp.ne.s32.totalorder %s141, %s143
    %p147 = scmp.eq.s32.totalorder %s23, 0
    %p148 = por %p146, %p147
    %p149 = scmp.ne.s32.totalorder %s141, %s143
    %p150 = scmp.eq.s32.totalorder %s28, 1
    %p151 = por %p149, %p150
    %p152 = scmp.ne.s32.totalorder %s143, %s144
    %p153 = scmp.eq.s32.totalorder %s28, 0
    %p154 = por %p152, %p153
    %p155 = scmp.ne.s32.totalorder %s143, %s144
    %p156 = scmp.eq.s32.totalorder %s29, 1
    %p157 = por %p155, %p156
    %p159 = scmp.ne.s32.totalorder %s144, %s158
    %p160 = scmp.eq.s32.totalorder %s29, 0
    %p161 = por %p159, %p160
    %s163 = sadd.s32 %s162, 1
    %p166 = scmp.eq.s32.totalorder %s23, 1
    %p167 = scmp.ne.s32.totalorder %s162, %s164
    %p168 = scmp.eq.s32.totalorder %s23, 0
    %p169 = por %p167, %p168
    %p170 = scmp.ne.s32.totalorder %s162, %s164
    %p171 = scmp.eq.s32.totalorder %s28, 1
    %p172 = por %p170, %p171
    %p173 = scmp.ne.s32.totalorder %s164, %s165
    %p174 = scmp.eq.s32.totalorder %s28, 0
    %p175 = por %p173, %p174
    %p176 = scmp.ne.s32.totalorder %s164, %s165
    %p177 = scmp.eq.s32.totalorder %s29, 1
    %p178 = por %p176, %p177
    %p180 = scmp.ne.s32.totalorder %s165, %s179
    %p181 = scmp.eq.s32.totalorder %s29, 0
    %p182 = por %p180, %p181
    %s184 = sadd.s32 %s183, 1
    %p187 = scmp.eq.s32.totalorder %s23, 1
    %p188 = scmp.ne.s32.totalorder %s183, %s185
    %p189 = scmp.eq.s32.totalorder %s23, 0
    %p190 = por %p188, %p189
    %p191 = scmp.ne.s32.totalorder %s183, %s185
    %p192 = scmp.eq.s32.totalorder %s28, 1
    %p193 = por %p191, %p192
    %p194 = scmp.ne.s32.totalorder %s185, %s186
    %p195 = scmp.eq.s32.totalorder %s28, 0
    %p196 = por %p194, %p195
    %p197 = scmp.ne.s32.totalorder %s185, %s186
    %p198 = scmp.eq.s32.totalorder %s29, 1
    %p199 = por %p197, %p198
    %p201 = scmp.ne.s32.totalorder %s186, %s200
    %p202 = scmp.eq.s32.totalorder %s29, 0
    %p203 = por %p201, %p202
    %s205 = sadd.s32 %s204, 1
    %p208 = scmp.eq.s32.totalorder %s23, 1
    %p209 = scmp.ne.s32.totalorder %s204, %s206
    %p210 = scmp.eq.s32.totalorder %s23, 0
    %p211 = por %p209, %p210
    %p212 = scmp.ne.s32.totalorder %s204, %s206
    %p213 = scmp.eq.s32.totalorder %s28, 1
    %p214 = por %p212, %p213
    %p215 = scmp.ne.s32.totalorder %s206, %s207
    %p216 = scmp.eq.s32.totalorder %s28, 0
    %p217 = por %p215, %p216
    %p218 = scmp.ne.s32.totalorder %s206, %s207
    %p219 = scmp.eq.s32.totalorder %s29, 1
    %p220 = por %p218, %p219
    %p222 = scmp.ne.s32.totalorder %s207, %s221
    %p223 = scmp.eq.s32.totalorder %s29, 0
    %p224 = por %p222, %p223
    %s226 = sadd.s32 %s225, 1
    %p229 = scmp.eq.s32.totalorder %s23, 1
    %p230 = scmp.ne.s32.totalorder %s225, %s227
    %p231 = scmp.eq.s32.totalorder %s23, 0
    %p232 = por %p230, %p231
    %p233 = scmp.ne.s32.totalorder %s225, %s227
    %p234 = scmp.eq.s32.totalorder %s28, 1
    %p235 = por %p233, %p234
    %p236 = scmp.ne.s32.totalorder %s227, %s228
    %p237 = scmp.eq.s32.totalorder %s28, 0
    %p238 = por %p236, %p237
    %p239 = scmp.ne.s32.totalorder %s227, %s228
    %p240 = scmp.eq.s32.totalorder %s29, 1
    %p241 = por %p239, %p240
    %p243 = scmp.ne.s32.totalorder %s228, %s242
    %p244 = scmp.eq.s32.totalorder %s29, 0
    %p245 = por %p243, %p244
    %s247 = sadd.s32 %s246, 1
    %p250 = scmp.eq.s32.totalorder %s23, 1
    %p251 = scmp.ne.s32.totalorder %s246, %s248
    %p252 = scmp.eq.s32.totalorder %s23, 0
    %p253 = por %p251, %p252
    %p254 = scmp.ne.s32.totalorder %s246, %s248
    %p255 = scmp.eq.s32.totalorder %s28, 1
    %p256 = por %p254, %p255
    %p257 = scmp.ne.s32.totalorder %s248, %s249
    %p258 = scmp.eq.s32.totalorder %s28, 0
    %p259 = por %p257, %p258
    %p260 = scmp.ne.s32.totalorder %s248, %s249
    %p261 = scmp.eq.s32.totalorder %s29, 1
    %p262 = por %p260, %p261
    %p264 = scmp.ne.s32.totalorder %s249, %s263
    %p265 = scmp.eq.s32.totalorder %s29, 0
    %p266 = por %p264, %p265
    %s268 = sadd.s32 %s267, 1
    %p271 = scmp.eq.s32.totalorder %s23, 1
    %p272 = scmp.ne.s32.totalorder %s267, %s269
    %p273 = scmp.eq.s32.totalorder %s23, 0
    %p274 = por %p272, %p273
    %p275 = scmp.ne.s32.totalorder %s267, %s269
    %p276 = scmp.eq.s32.totalorder %s28, 1
    %p277 = por %p275, %p276
    %p278 = scmp.ne.s32.totalorder %s269, %s270
    %p279 = scmp.eq.s32.totalorder %s28, 0
    %p280 = por %p278, %p279
    %p281 = scmp.ne.s32.totalorder %s269, %s270
    %p282 = scmp.eq.s32.totalorder %s29, 1
    %p283 = por %p281, %p282
    %p285 = scmp.ne.s32.totalorder %s270, %s284
    %p286 = scmp.eq.s32.totalorder %s29, 0
    %p287 = por %p285, %p286
    %s289 = sadd.s32 %s288, 1
    %p292 = scmp.eq.s32.totalorder %s23, 1
    %p293 = scmp.ne.s32.totalorder %s288, %s290
    %p294 = scmp.eq.s32.totalorder %s23, 0
    %p295 = por %p293, %p294
    %p296 = scmp.ne.s32.totalorder %s288, %s290
    %p297 = scmp.eq.s32.totalorder %s28, 1
    %p298 = por %p296, %p297
    %p299 = scmp.ne.s32.totalorder %s290, %s291
    %p300 = scmp.eq.s32.totalorder %s28, 0
    %p301 = por %p299, %p300
    %p302 = scmp.ne.s32.totalorder %s290, %s291
    %p303 = scmp.eq.s32.totalorder %s29, 1
    %p304 = por %p302, %p303
    %p306 = scmp.ne.s32.totalorder %s291, %s305
    %p307 = scmp.eq.s32.totalorder %s29, 0
    %p308 = por %p306, %p307
    %s310 = sadd.s32 %s309, 1
    %p313 = scmp.eq.s32.totalorder %s23, 1
    %p314 = scmp.ne.s32.totalorder %s309, %s311
    %p315 = scmp.eq.s32.totalorder %s23, 0
    %p316 = por %p314, %p315
    %p317 = scmp.ne.s32.totalorder %s309, %s311
    %p318 = scmp.eq.s32.totalorder %s28, 1
    %p319 = por %p317, %p318
    %p320 = scmp.ne.s32.totalorder %s311, %s312
    %p321 = scmp.eq.s32.totalorder %s28, 0
    %p322 = por %p320, %p321
    %p323 = scmp.ne.s32.totalorder %s311, %s312
    %p324 = scmp.eq.s32.totalorder %s29, 1
    %p325 = por %p323, %p324
    %p327 = scmp.ne.s32.totalorder %s312, %s326
    %p328 = scmp.eq.s32.totalorder %s29, 0
    %p329 = por %p327, %p328
    %s331 = sadd.s32 %s330, 1
    %p334 = scmp.eq.s32.totalorder %s23, 1
    %p335 = scmp.ne.s32.totalorder %s330, %s332
    %p336 = scmp.eq.s32.totalorder %s23, 0
    %p337 = por %p335, %p336
    %p338 = scmp.ne.s32.totalorder %s330, %s332
    %p339 = scmp.eq.s32.totalorder %s28, 1
    %p340 = por %p338, %p339
    %p341 = scmp.ne.s32.totalorder %s332, %s333
    %p342 = scmp.eq.s32.totalorder %s28, 0
    %p343 = por %p341, %p342
    %p344 = scmp.ne.s32.totalorder %s332, %s333
    %p345 = scmp.eq.s32.totalorder %s29, 1
    %p346 = por %p344, %p345
    %p348 = scmp.ne.s32.totalorder %s333, %s347
    %p349 = scmp.eq.s32.totalorder %s29, 0
    %p350 = por %p348, %p349
    %s352 = sadd.s32 %s351, 1
    %p355 = scmp.eq.s32.totalorder %s23, 1
    %p356 = scmp.ne.s32.totalorder %s351, %s353
    %p357 = scmp.eq.s32.totalorder %s23, 0
    %p358 = por %p356, %p357
    %p359 = scmp.ne.s32.totalorder %s351, %s353
    %p360 = scmp.eq.s32.totalorder %s28, 1
    %p361 = por %p359, %p360
    %p362 = scmp.ne.s32.totalorder %s353, %s354
    %p363 = scmp.eq.s32.totalorder %s28, 0
    %p364 = por %p362, %p363
    %p365 = scmp.ne.s32.totalorder %s353, %s354
    %p366 = scmp.eq.s32.totalorder %s29, 1
    %p367 = por %p365, %p366
    %p369 = scmp.ne.s32.totalorder %s354, %s368
    %p370 = scmp.eq.s32.totalorder %s29, 0
    %p371 = por %p369, %p370
    %s373 = sadd.s32 %s372, 1
    %p376 = scmp.eq.s32.totalorder %s23, 1
    %p377 = scmp.ne.s32.totalorder %s372, %s374
    %p378 = scmp.eq.s32.totalorder %s23, 0
    %p379 = por %p377, %p378
    %p380 = scmp.ne.s32.totalorder %s372, %s374
    %p381 = scmp.eq.s32.totalorder %s28, 1
    %p382 = por %p380, %p381
    %p383 = scmp.ne.s32.totalorder %s374, %s375
    %p384 = scmp.eq.s32.totalorder %s28, 0
    %p385 = por %p383, %p384
    %p386 = scmp.ne.s32.totalorder %s374, %s375
    %p387 = scmp.eq.s32.totalorder %s29, 1
    %p388 = por %p386, %p387
    %p390 = scmp.ne.s32.totalorder %s375, %s389
    %p391 = scmp.eq.s32.totalorder %s29, 0
    %p392 = por %p390, %p391
    %s393 = ssub.s32 %s23, %s30
    %p394 = scmp.eq.s32.totalorder %s393, 0
    %s396 = sadd.s32 %s395, 1
    %s397 = scalar_select %p394, %s395, %s396
    %p400 = pneg %p394
    %p401 = scmp.eq.s32.totalorder %s23, 1
    %p402 = por %p400, %p401
    %p403 = scmp.ne.s32.totalorder %s395, %s398
    %p404 = scmp.eq.s32.totalorder %s23, 0
    %p405 = por %p403, %p404
    %p406 = scmp.ne.s32.totalorder %s395, %s398
    %p407 = scmp.eq.s32.totalorder %s28, 1
    %p408 = por %p406, %p407
    %p409 = scmp.ne.s32.totalorder %s398, %s399
    %p410 = scmp.eq.s32.totalorder %s28, 0
    %p411 = por %p409, %p410
    %p412 = scmp.ne.s32.totalorder %s398, %s399
    %p413 = scmp.eq.s32.totalorder %s29, 1
    %p414 = por %p412, %p413
    %p416 = scmp.ne.s32.totalorder %s399, %s415
    %p417 = scmp.eq.s32.totalorder %s29, 0
    %p418 = por %p416, %p417
    %p419 = scmp.le.s32.totalorder 1, %s23
    %p420 = scmp.lt.s32.totalorder %s23, 3
    %p421 = pnand %p419, %p420
    %p422 = pneg %p421
    // Predicated region
    $region9: #{csi2pointcloud_forward.5} parent=5 // pred_check
      _
    $region10: #{csi2pointcloud_forward.5} parent=5 // pred_check_branch
      %424 = sbr.rel (%p421) target = $region12
    $region11: #{csi2pointcloud_forward.5} parent=5 // pred_region
      %s425 = ssub.s32 %s23, 1
      // Predicated region
      $region13: #{csi2pointcloud_forward.5} parent=11 // pred_check
        %p426 = pneg %p70
      $region14: #{csi2pointcloud_forward.5} parent=11 // pred_check_branch
        %428 = sbr.rel (%p426) target = $region16
      $region15: #{csi2pointcloud_forward.5} parent=11 // pred_region
        _
      $region16: #{csi2pointcloud_forward.5} parent=11 // pred_fallthru
        _
      // Predicated region
      $region17: #{csi2pointcloud_forward.5} parent=11 // pred_check
        %p429 = pneg %p91
      $region18: #{csi2pointcloud_forward.5} parent=11 // pred_check_branch
        %431 = sbr.rel (%p429) target = $region20
      $region19: #{csi2pointcloud_forward.5} parent=11 // pred_region
        _
      $region20: #{csi2pointcloud_forward.5} parent=11 // pred_fallthru
        _
      // Predicated region
      $region21: #{csi2pointcloud_forward.5} parent=11 // pred_check
        %p432 = pneg %p112
      $region22: #{csi2pointcloud_forward.5} parent=11 // pred_check_branch
        %434 = sbr.rel (%p432) target = $region24
      $region23: #{csi2pointcloud_forward.5} parent=11 // pred_region
        _
      $region24: #{csi2pointcloud_forward.5} parent=11 // pred_fallthru
        _
      // Predicated region
      $region25: #{csi2pointcloud_forward.5} parent=11 // pred_check
        %p435 = pneg %p133
      $region26: #{csi2pointcloud_forward.5} parent=11 // pred_check_branch
        %437 = sbr.rel (%p435) target = $region28
      $region27: #{csi2pointcloud_forward.5} parent=11 // pred_region
        _
      $region28: #{csi2pointcloud_forward.5} parent=11 // pred_fallthru
        _
      // Predicated region
      $region29: #{csi2pointcloud_forward.5} parent=11 // pred_check
        %p438 = pneg %p154
      $region30: #{csi2pointcloud_forward.5} parent=11 // pred_check_branch
        %440 = sbr.rel (%p438) target = $region32
      $region31: #{csi2pointcloud_forward.5} parent=11 // pred_region
        _
      $region32: #{csi2pointcloud_forward.5} parent=11 // pred_fallthru
        _
      // Predicated region
      $region33: #{csi2pointcloud_forward.5} parent=11 // pred_check
        %p441 = pneg %p175
      $region34: #{csi2pointcloud_forward.5} parent=11 // pred_check_branch
        %443 = sbr.rel (%p441) target = $region36
      $region35: #{csi2pointcloud_forward.5} parent=11 // pred_region
        _
      $region36: #{csi2pointcloud_forward.5} parent=11 // pred_fallthru
        _
      // Predicated region
      $region37: #{csi2pointcloud_forward.5} parent=11 // pred_check
        %p444 = pneg %p196
      $region38: #{csi2pointcloud_forward.5} parent=11 // pred_check_branch
        %446 = sbr.rel (%p444) target = $region40
      $region39: #{csi2pointcloud_forward.5} parent=11 // pred_region
        _
      $region40: #{csi2pointcloud_forward.5} parent=11 // pred_fallthru
        _
      // Predicated region
      $region41: #{csi2pointcloud_forward.5} parent=11 // pred_check
        %p447 = pneg %p217
      $region42: #{csi2pointcloud_forward.5} parent=11 // pred_check_branch
        %449 = sbr.rel (%p447) target = $region44
      $region43: #{csi2pointcloud_forward.5} parent=11 // pred_region
        _
      $region44: #{csi2pointcloud_forward.5} parent=11 // pred_fallthru
        _
      // Predicated region
      $region45: #{csi2pointcloud_forward.5} parent=11 // pred_check
        %p450 = pneg %p238
      $region46: #{csi2pointcloud_forward.5} parent=11 // pred_check_branch
        %452 = sbr.rel (%p450) target = $region48
      $region47: #{csi2pointcloud_forward.5} parent=11 // pred_region
        _
      $region48: #{csi2pointcloud_forward.5} parent=11 // pred_fallthru
        _
      // Predicated region
      $region49: #{csi2pointcloud_forward.5} parent=11 // pred_check
        %p453 = pneg %p259
      $region50: #{csi2pointcloud_forward.5} parent=11 // pred_check_branch
        %455 = sbr.rel (%p453) target = $region52
      $region51: #{csi2pointcloud_forward.5} parent=11 // pred_region
        _
      $region52: #{csi2pointcloud_forward.5} parent=11 // pred_fallthru
        _
      // Predicated region
      $region53: #{csi2pointcloud_forward.5} parent=11 // pred_check
        %p456 = pneg %p280
      $region54: #{csi2pointcloud_forward.5} parent=11 // pred_check_branch
        %458 = sbr.rel (%p456) target = $region56
      $region55: #{csi2pointcloud_forward.5} parent=11 // pred_region
        _
      $region56: #{csi2pointcloud_forward.5} parent=11 // pred_fallthru
        _
      // Predicated region
      $region57: #{csi2pointcloud_forward.5} parent=11 // pred_check
        %p459 = pneg %p301
      $region58: #{csi2pointcloud_forward.5} parent=11 // pred_check_branch
        %461 = sbr.rel (%p459) target = $region60
      $region59: #{csi2pointcloud_forward.5} parent=11 // pred_region
        _
      $region60: #{csi2pointcloud_forward.5} parent=11 // pred_fallthru
        _
      // Predicated region
      $region61: #{csi2pointcloud_forward.5} parent=11 // pred_check
        %p462 = pneg %p322
      $region62: #{csi2pointcloud_forward.5} parent=11 // pred_check_branch
        %464 = sbr.rel (%p462) target = $region64
      $region63: #{csi2pointcloud_forward.5} parent=11 // pred_region
        _
      $region64: #{csi2pointcloud_forward.5} parent=11 // pred_fallthru
        _
      // Predicated region
      $region65: #{csi2pointcloud_forward.5} parent=11 // pred_check
        %p465 = pneg %p343
      $region66: #{csi2pointcloud_forward.5} parent=11 // pred_check_branch
        %467 = sbr.rel (%p465) target = $region68
      $region67: #{csi2pointcloud_forward.5} parent=11 // pred_region
        _
      $region68: #{csi2pointcloud_forward.5} parent=11 // pred_fallthru
        _
      // Predicated region
      $region69: #{csi2pointcloud_forward.5} parent=11 // pred_check
        %p468 = pneg %p364
      $region70: #{csi2pointcloud_forward.5} parent=11 // pred_check_branch
        %470 = sbr.rel (%p468) target = $region72
      $region71: #{csi2pointcloud_forward.5} parent=11 // pred_region
        _
      $region72: #{csi2pointcloud_forward.5} parent=11 // pred_fallthru
        _
      // Predicated region
      $region73: #{csi2pointcloud_forward.5} parent=11 // pred_check
        %p471 = pneg %p385
      $region74: #{csi2pointcloud_forward.5} parent=11 // pred_check_branch
        %473 = sbr.rel (%p471) target = $region76
      $region75: #{csi2pointcloud_forward.5} parent=11 // pred_region
        _
      $region76: #{csi2pointcloud_forward.5} parent=11 // pred_fallthru
        _
    $region12: #{csi2pointcloud_forward.5} parent=5 // pred_fallthru
      _
    %p474 = scmp.lt.s32.totalorder %s23, 2
    // Predicated region
    $region77: #{csi2pointcloud_forward.5} parent=5 // pred_check
      %p475 = pneg %p474
    $region78: #{csi2pointcloud_forward.5} parent=5 // pred_check_branch
      %477 = sbr.rel (%p475) target = $region80
    $region79: #{csi2pointcloud_forward.5} parent=5 // pred_region
      // Predicated region
      $region81: #{csi2pointcloud_forward.5} parent=79 // pred_check
        %p478 = pneg %p43
      $region82: #{csi2pointcloud_forward.5} parent=79 // pred_check_branch
        %480 = sbr.rel (%p478) target = $region84
      $region83: #{csi2pointcloud_forward.5} parent=79 // pred_region
        %p481 = scmp.lt.s32.totalorder %s23, 1
        %s482 = scalar_select %p481, %s23, 1
        %s483 = smul.addr %s482, 3
        %s484 = smul.addr %s483, 8
        %s485 = scalar_lea.vmem %s0, %s484
      $region84: #{csi2pointcloud_forward.5} parent=79 // pred_fallthru
        _
    $region80: #{csi2pointcloud_forward.5} parent=5 // pred_fallthru
      _
    %p486 = scmp.le.s32.totalorder 1, %s23
    %p487 = scmp.lt.s32.totalorder %s23, 3
    %p488 = pnand %p486, %p487
    %p489 = pneg %p488
    // Predicated region
    $region85: #{csi2pointcloud_forward.5} parent=5 // pred_check
      _
    $region86: #{csi2pointcloud_forward.5} parent=5 // pred_check_branch
      %491 = sbr.rel (%p488) target = $region88
    $region87: #{csi2pointcloud_forward.5} parent=5 // pred_region
      %s492 = ssub.s32 %s23, 1
      %p493 = scmp.lt.s32.totalorder %s28, 1
      %s494 = scalar_select %p493, %s28, 1
      %s495 = smul.addr %s494, 3
      %s496 = smul.addr %s495, 8
      %s497 = scalar_lea.vmem %s0, %s496
      %p498 = pneg %p49
      %p499 = pneg %p46
      %p500 = pneg %p70
      %p501 = pneg %p67
      %p502 = pneg %p91
      %p503 = pneg %p88
      %p504 = pneg %p112
      %p505 = pneg %p109
      %p506 = pneg %p133
      %p507 = pneg %p130
      %p508 = pneg %p154
      %p509 = pneg %p151
      %p510 = pneg %p175
      %p511 = pneg %p172
      %p512 = pneg %p196
      %p513 = pneg %p193
      %p514 = pneg %p217
      %p515 = pneg %p214
      %p516 = pneg %p238
      %p517 = pneg %p235
      %p518 = pneg %p259
      %p519 = pneg %p256
      %p520 = pneg %p280
      %p521 = pneg %p277
      %p522 = pneg %p301
      %p523 = pneg %p298
      %p524 = pneg %p322
      %p525 = pneg %p319
      %p526 = pneg %p343
      %p527 = pneg %p340
      %p528 = pneg %p364
      %p529 = pneg %p361
      %p530 = pneg %p385
      %p531 = pneg %p382
      %p532 = pneg %p411
      %p533 = pneg %p408
      %p534 = scmp.lt.s32.totalorder %s28, 1
      %s535 = scalar_select %p534, %s28, 1
      %s536 = smul.addr %s535, 3
      %s537 = smul.addr %s536, 8
      %s538 = scalar_lea.vmem %s17, %s537
      %p539 = scmp.lt.s32.totalorder %s28, 1
      %s540 = scalar_select %p539, %s28, 1
      %s541 = smul.addr %s540, 3
      %s542 = smul.addr %s541, 8
      %s543 = scalar_lea.vmem %s0, %s542
      %p544 = scmp.lt.s32.totalorder %s28, 1
      %s545 = scalar_select %p544, %s28, 1
      %s546 = smul.addr %s545, 3
      %s547 = smul.addr %s546, 8
      %s548 = scalar_lea.vmem %s17, %s547
      %v550 = vld [vmem:[%s543] sm:$0xff]
      %v551 = vld [vmem:[%s543 + $0x8] sm:$0xff]
      %v552 = vld [vmem:[%s543 + $0x10] sm:$0xff]
      %v553 = vld [vmem:[%s1] sm:$0xf]
      %v554 = vld [vmem:[%s1 + $0x4] sm:$0xf]
      %v555 = vld [vmem:[%s1 + $0x8] sm:$0xf]
      %v556 = vld [vmem:[%s1 + $0xc] sm:$0xf]
      %v557 = vpack.c.bf16 %v551, %v550
      %v558 = vpack.c.bf16 %v552, %v552
      %v559 = vld [vmem:[%s4] sm:$0x1]
      %v561 = vlaneseq
      %v562 = vshrl.u32 %v561, 7
      %v563 = vsub.s32 0, %v562
      %v564 = vrot.slane %v559, %v563
      %v570 = vunpack.c.l.b16 %v553
      %v571 = vunpack.c.l.b16 %v554
      %v572 = vunpack.c.l.b16 %v555
      %v573 = vunpack.c.l.b16 %v556
      %v574 = vpack.c.b16 %v571, %v570
      %v575 = vpack.c.b16 %v573, %v572
      %vm578 = vcmask 261120
      %v580 = vsel %vm578, %v557, 0
      %v583 = vsel %vm578, %v558, 0
      %585 = vmatprep.subr.bf16.mxu0 0
      %586 = vmatpush1.bf16.msra.mxu0 0
      %587 = vmatprep.subr.bf16.mxu0 0
      %588 = vmatpush1.bf16.msra.mxu0 0
      %589 = vmatprep.subr.bf16.mxu0 0
      %590 = vmatpush1.bf16.msra.mxu0 0
      %591 = vmatprep.subr.bf16.mxu0 0
      %592 = vmatpush1.bf16.msra.mxu0 0
      %593 = vmatprep.subr.bf16.mxu0 0
      %594 = vmatpush1.bf16.msra.mxu0 0
      %595 = vmatprep.subr.bf16.mxu0 0
      %596 = vmatpush1.bf16.msra.mxu0 0
      %597 = vmatprep.subr.bf16.mxu0 0
      %598 = vmatpush1.bf16.msra.mxu0 %v575
      %599 = vmatprep.subr.bf16.mxu0 0
      %600 = vmatpush1.bf16.msra.mxu0 %v574
      %601 = vmatprep.subr.bf16.mxu0 0
      %602 = vmatpush2.bf16.msra.mxu0 0
      %603 = vmatprep.subr.bf16.mxu0 0
      %604 = vmatpush2.bf16.msra.mxu0 0
      %605 = vmatprep.subr.bf16.mxu0 0
      %606 = vmatpush2.bf16.msra.mxu0 0
      %607 = vmatprep.subr.bf16.mxu0 0
      %608 = vmatpush2.bf16.msra.mxu0 0
      %609 = vmatprep.subr.bf16.mxu0 0
      %610 = vmatpush2.bf16.msra.mxu0 0
      %611 = vmatprep.subr.bf16.mxu0 0
      %612 = vmatpush2.bf16.msra.mxu0 0
      %613 = vmatprep.subr.bf16.mxu0 0
      %614 = vmatpush2.bf16.msra.mxu0 0
      %615 = vmatprep.subr.bf16.mxu0 0
      %616 = vmatpush2.bf16.msra.mxu0 0
      %617 = vmatprep.mubr.bf16.mxu0 0
      %618 = vmatmul.mubr.bf16.gmra.mxu0 %v580
      %v619 = vpop.f32.mrf.mxu0
      %v620 = vadd.f32 %v564, %v619
      %v621 = vpop.f32.mrf.mxu0
      %v622 = vpop.f32.mrf.mxu0
      %v623 = vadd.f32 %v564, %v622
      %v624 = vpop.f32.mrf.mxu0
      %625 = vmatprep.mubr.bf16.mxu0 0
      %626 = vmatmul.mubr.bf16.gmra.mxu0 %v583
      %v627 = vpop.f32.mrf.mxu0
      %v628 = vadd.f32 %v564, %v627
      %v629 = vpop.f32.mrf.mxu0
      %v630 = vpop.f32.mrf.mxu0
      %v631 = vpop.f32.mrf.mxu0
      %632 = vdwg.mxu0
      %v633 = vld [vmem:[%s2] sm:$0xf]
      %v634 = vld [vmem:[%s2 + $0x4] sm:$0xf]
      %v635 = vld [vmem:[%s2 + $0x8] sm:$0xf]
      %v636 = vld [vmem:[%s2 + $0xc] sm:$0xf]
      %v637 = vld [vmem:[%s5] sm:$0x1]
      %v639 = vlaneseq
      %v640 = vshrl.u32 %v639, 7
      %v641 = vsub.s32 0, %v640
      %v642 = vrot.slane %v637, %v641
      %v648 = vunpack.c.l.b16 %v633
      %v649 = vunpack.c.l.b16 %v634
      %v650 = vunpack.c.l.b16 %v635
      %v651 = vunpack.c.l.b16 %v636
      %v652 = vpack.c.b16 %v649, %v648
      %v653 = vpack.c.b16 %v651, %v650
      %656 = vmatprep.subr.bf16.mxu0 0
      %657 = vmatpush1.bf16.msra.mxu0 0
      %658 = vmatprep.subr.bf16.mxu0 0
      %659 = vmatpush1.bf16.msra.mxu0 0
      %660 = vmatprep.subr.bf16.mxu0 0
      %661 = vmatpush1.bf16.msra.mxu0 0
      %662 = vmatprep.subr.bf16.mxu0 0
      %663 = vmatpush1.bf16.msra.mxu0 0
      %664 = vmatprep.subr.bf16.mxu0 0
      %665 = vmatpush1.bf16.msra.mxu0 0
      %666 = vmatprep.subr.bf16.mxu0 0
      %667 = vmatpush1.bf16.msra.mxu0 0
      %668 = vmatprep.subr.bf16.mxu0 0
      %669 = vmatpush1.bf16.msra.mxu0 %v653
      %670 = vmatprep.subr.bf16.mxu0 0
      %671 = vmatpush1.bf16.msra.mxu0 %v652
      %672 = vmatprep.subr.bf16.mxu0 0
      %673 = vmatpush2.bf16.msra.mxu0 0
      %674 = vmatprep.subr.bf16.mxu0 0
      %675 = vmatpush2.bf16.msra.mxu0 0
      %676 = vmatprep.subr.bf16.mxu0 0
      %677 = vmatpush2.bf16.msra.mxu0 0
      %678 = vmatprep.subr.bf16.mxu0 0
      %679 = vmatpush2.bf16.msra.mxu0 0
      %680 = vmatprep.subr.bf16.mxu0 0
      %681 = vmatpush2.bf16.msra.mxu0 0
      %682 = vmatprep.subr.bf16.mxu0 0
      %683 = vmatpush2.bf16.msra.mxu0 0
      %684 = vmatprep.subr.bf16.mxu0 0
      %685 = vmatpush2.bf16.msra.mxu0 0
      %686 = vmatprep.subr.bf16.mxu0 0
      %687 = vmatpush2.bf16.msra.mxu0 0
      %688 = vmatprep.mubr.bf16.mxu0 0
      %689 = vmatmul.mubr.bf16.gmra.mxu0 %v580
      %v690 = vpop.f32.mrf.mxu0
      %v691 = vadd.f32 %v642, %v690
      %v692 = vpop.f32.mrf.mxu0
      %v693 = vpop.f32.mrf.mxu0
      %v694 = vadd.f32 %v642, %v693
      %v695 = vpop.f32.mrf.mxu0
      %696 = vmatprep.mubr.bf16.mxu0 0
      %697 = vmatmul.mubr.bf16.gmra.mxu0 %v583
      %v698 = vpop.f32.mrf.mxu0
      %v699 = vadd.f32 %v642, %v698
      %v700 = vpop.f32.mrf.mxu0
      %v701 = vpop.f32.mrf.mxu0
      %v702 = vpop.f32.mrf.mxu0
      %703 = vdwg.mxu0
      %v704 = vld [vmem:[%s3] sm:$0xf]
      %v705 = vld [vmem:[%s3 + $0x4] sm:$0xf]
      %v706 = vld [vmem:[%s3 + $0x8] sm:$0xf]
      %v707 = vld [vmem:[%s3 + $0xc] sm:$0xf]
      %v708 = vld [vmem:[%s6] sm:$0x1]
      %v710 = vlaneseq
      %v711 = vshrl.u32 %v710, 7
      %v712 = vsub.s32 0, %v711
      %v713 = vrot.slane %v708, %v712
      %v719 = vunpack.c.l.b16 %v704
      %v720 = vunpack.c.l.b16 %v705
      %v721 = vunpack.c.l.b16 %v706
      %v722 = vunpack.c.l.b16 %v707
      %v723 = vpack.c.b16 %v720, %v719
      %v724 = vpack.c.b16 %v722, %v721
      %727 = vmatprep.subr.bf16.mxu0 0
      %728 = vmatpush1.bf16.msra.mxu0 0
      %729 = vmatprep.subr.bf16.mxu0 0
      %730 = vmatpush1.bf16.msra.mxu0 0
      %731 = vmatprep.subr.bf16.mxu0 0
      %732 = vmatpush1.bf16.msra.mxu0 0
      %733 = vmatprep.subr.bf16.mxu0 0
      %734 = vmatpush1.bf16.msra.mxu0 0
      %735 = vmatprep.subr.bf16.mxu0 0
      %736 = vmatpush1.bf16.msra.mxu0 0
      %737 = vmatprep.subr.bf16.mxu0 0
      %738 = vmatpush1.bf16.msra.mxu0 0
      %739 = vmatprep.subr.bf16.mxu0 0
      %740 = vmatpush1.bf16.msra.mxu0 %v724
      %741 = vmatprep.subr.bf16.mxu0 0
      %742 = vmatpush1.bf16.msra.mxu0 %v723
      %743 = vmatprep.subr.bf16.mxu0 0
      %744 = vmatpush2.bf16.msra.mxu0 0
      %745 = vmatprep.subr.bf16.mxu0 0
      %746 = vmatpush2.bf16.msra.mxu0 0
      %747 = vmatprep.subr.bf16.mxu0 0
      %748 = vmatpush2.bf16.msra.mxu0 0
      %749 = vmatprep.subr.bf16.mxu0 0
      %750 = vmatpush2.bf16.msra.mxu0 0
      %751 = vmatprep.subr.bf16.mxu0 0
      %752 = vmatpush2.bf16.msra.mxu0 0
      %753 = vmatprep.subr.bf16.mxu0 0
      %754 = vmatpush2.bf16.msra.mxu0 0
      %755 = vmatprep.subr.bf16.mxu0 0
      %756 = vmatpush2.bf16.msra.mxu0 0
      %757 = vmatprep.subr.bf16.mxu0 0
      %758 = vmatpush2.bf16.msra.mxu0 0
      %759 = vmatprep.mubr.bf16.mxu0 0
      %760 = vmatmul.mubr.bf16.gmra.mxu0 %v580
      %v761 = vpop.f32.mrf.mxu0
      %v762 = vadd.f32 %v713, %v761
      %v763 = vpop.f32.mrf.mxu0
      %v764 = vpop.f32.mrf.mxu0
      %v765 = vadd.f32 %v713, %v764
      %v766 = vpop.f32.mrf.mxu0
      %767 = vmatprep.mubr.bf16.mxu0 0
      %768 = vmatmul.mubr.bf16.gmra.mxu0 %v583
      %v769 = vpop.f32.mrf.mxu0
      %v770 = vadd.f32 %v713, %v769
      %v771 = vpop.f32.mrf.mxu0
      %v772 = vpop.f32.mrf.mxu0
      %v773 = vpop.f32.mrf.mxu0
      %774 = vdwg.mxu0
      %v775 = vlaneseq
      %v776 = vand.u32 %v775, 127
      %777 = vxpose.xlu0.b32.start [1/16] %v691, 128
      %778 = vxpose.xlu0.b32.cont [2/16] %v694, 128
      %779 = vxpose.xlu0.b32.cont [3/16] %v699, 128
      %780 = vxpose.xlu0.b32.cont [4/16] 0.0, 128
      %781 = vxpose.xlu0.b32.cont [5/16] 0.0, 128
      %782 = vxpose.xlu0.b32.cont [6/16] 0.0, 128
      %783 = vxpose.xlu0.b32.cont [7/16] 0.0, 128
      %784 = vxpose.xlu0.b32.cont [8/16] 0.0, 128
      %785 = vxpose.xlu0.b32.cont [9/16] 0.0, 128
      %786 = vxpose.xlu0.b32.cont [10/16] 0.0, 128
      %787 = vxpose.xlu0.b32.cont [11/16] 0.0, 128
      %788 = vxpose.xlu0.b32.cont [12/16] 0.0, 128
      %789 = vxpose.xlu0.b32.cont [13/16] 0.0, 128
      %790 = vxpose.xlu0.b32.cont [14/16] 0.0, 128
      %791 = vxpose.xlu0.b32.cont [15/16] 0.0, 128
      %792 = vxpose.xlu0.b32.end [16/16] 0.0, 128
      %v793 = vpop.trf.xlu0
      %v794 = vpop.trf.xlu0
      %v795 = vpop.trf.xlu0
      %v796 = vpop.trf.xlu0
      %v797 = vpop.trf.xlu0
      %v798 = vpop.trf.xlu0
      %v799 = vpop.trf.xlu0
      %v800 = vpop.trf.xlu0
      %v801 = vpop.trf.xlu0
      %v802 = vpop.trf.xlu0
      %v803 = vpop.trf.xlu0
      %v804 = vpop.trf.xlu0
      %v805 = vpop.trf.xlu0
      %v806 = vpop.trf.xlu0
      %v807 = vpop.trf.xlu0
      %v808 = vpop.trf.xlu0
      %v809 = vpack.c.bf16 %v794, %v793
      %v810 = vpack.c.bf16 %v796, %v795
      %vm811 = vcmp.ge.s32.totalorder %v776, 0
      %vm812 = vcmp.lt.s32.totalorder %v776, 8
      %vm813 = vmand %vm811, %vm812
      %v814 = vsel %vm813, 1, 0
      %v815 = vcvt.s32.f32 %v814
      %v816 = vmul.f32 %v620, %v815
      %v817 = vmul.f32 %v623, %v815
      %v818 = vmul.f32 %v628, %v815
      %v819 = vpack.c.bf16 %v817, %v816
      %v820 = vpack.c.bf16 %v818, %v818
      %v822 = vsel %vm578, %v819, 0
      %v825 = vsel %vm578, %v820, 0
      %827 = vmatprep.subr.bf16.mxu0 0
      %828 = vmatpush1.bf16.msra.mxu0 0
      %829 = vmatprep.subr.bf16.mxu0 0
      %830 = vmatpush1.bf16.msra.mxu0 0
      %831 = vmatprep.subr.bf16.mxu0 0
      %832 = vmatpush1.bf16.msra.mxu0 0
      %833 = vmatprep.subr.bf16.mxu0 0
      %834 = vmatpush1.bf16.msra.mxu0 0
      %835 = vmatprep.subr.bf16.mxu0 0
      %836 = vmatpush1.bf16.msra.mxu0 0
      %837 = vmatprep.subr.bf16.mxu0 0
      %838 = vmatpush1.bf16.msra.mxu0 0
      %839 = vmatprep.subr.bf16.mxu0 0
      %840 = vmatpush1.bf16.msra.mxu0 %v810
      %841 = vmatprep.subr.bf16.mxu0 0
      %842 = vmatpush1.bf16.msra.mxu0 %v809
      %843 = vmatprep.subr.bf16.mxu0 0
      %844 = vmatpush2.bf16.msra.mxu0 0
      %845 = vmatprep.subr.bf16.mxu0 0
      %846 = vmatpush2.bf16.msra.mxu0 0
      %847 = vmatprep.subr.bf16.mxu0 0
      %848 = vmatpush2.bf16.msra.mxu0 0
      %849 = vmatprep.subr.bf16.mxu0 0
      %850 = vmatpush2.bf16.msra.mxu0 0
      %851 = vmatprep.subr.bf16.mxu0 0
      %852 = vmatpush2.bf16.msra.mxu0 0
      %853 = vmatprep.subr.bf16.mxu0 0
      %854 = vmatpush2.bf16.msra.mxu0 0
      %855 = vmatprep.subr.bf16.mxu0 0
      %856 = vmatpush2.bf16.msra.mxu0 0
      %857 = vmatprep.subr.bf16.mxu0 0
      %858 = vmatpush2.bf16.msra.mxu0 0
      %859 = vmatprep.mubr.bf16.mxu0 0
      %860 = vmatmul.mubr.bf16.gmra.mxu0 %v822
      %v861 = vpop.f32.mrf.mxu0
      %v862 = vadd.f32 0.0, %v861
      %v863 = vpop.f32.mrf.mxu0
      %v864 = vpop.f32.mrf.mxu0
      %v865 = vadd.f32 0.0, %v864
      %v866 = vpop.f32.mrf.mxu0
      %867 = vmatprep.mubr.bf16.mxu0 0
      %868 = vmatmul.mubr.bf16.gmra.mxu0 %v825
      %v869 = vpop.f32.mrf.mxu0
      %v870 = vadd.f32 0.0, %v869
      %v871 = vpop.f32.mrf.mxu0
      %v872 = vpop.f32.mrf.mxu0
      %v873 = vpop.f32.mrf.mxu0
      %874 = vdwg.mxu0
      %v875 = vmul.f32 %v862, 0.35355338
      %v876 = vmul.f32 %v865, 0.35355338
      %v877 = vmul.f32 %v870, 0.35355338
      %vm878 = vcmask 195584
      %v879 = vsel %vm878, %v875, -inf
      %880 = vmax.xlane.f32.xlu0 %v879
      %v881 = vpop.xlane.xlu0 %880
      %v882 = vsel %vm878, %v876, -inf
      %883 = vmax.xlane.f32.xlu0 %v882
      %v884 = vpop.xlane.xlu0 %883
      %v885 = vsel %vm878, %v877, -inf
      %886 = vmax.xlane.f32.xlu0 %v885
      %v887 = vpop.xlane.xlu0 %886
      %v888 = vsub.f32 %v875, %v881
      %v889 = vsub.f32 %v876, %v884
      %v890 = vsub.f32 %v877, %v887
      %v891 = vmul.f32 %v888, 1.442695
      %v892 = vpow.pop %v891
      %v893 = vmul.f32 %v889, 1.442695
      %v894 = vpow.pop %v893
      %v895 = vmul.f32 %v890, 1.442695
      %v896 = vpow.pop %v895
      %v897 = vsel %vm878, %v892, 0.0
      %898 = vadd.xlane.f32.xlu0 %v897
      %v899 = vpop.xlane.xlu0 %898
      %v900 = vsel %vm878, %v894, 0.0
      %901 = vadd.xlane.f32.xlu0 %v900
      %v902 = vpop.xlane.xlu0 %901
      %v903 = vsel %vm878, %v896, 0.0
      %904 = vadd.xlane.f32.xlu0 %v903
      %v905 = vpop.xlane.xlu0 %904
      %v906 = vrcp.pop %v899
      %v907 = vrcp.pop %v902
      %v908 = vrcp.pop %v905
      %v909 = vmul.f32 %v892, %v906
      %v910 = vmul.f32 %v894, %v907
      %v911 = vmul.f32 %v896, %v908
      %v912 = vmul.f32 %v762, %v815
      %v913 = vmul.f32 %v765, %v815
      %v914 = vmul.f32 %v770, %v815
      %v915 = vpack.c.bf16 %v910, %v909
      %v916 = vpack.c.bf16 %v911, %v911
      %v917 = vpack.c.bf16 %v913, %v912
      %v918 = vpack.c.bf16 %v914, %v914
      %vm919 = vcmp.ge.s32.totalorder %v776, 8
      %vm920 = vcmp.lt.s32.totalorder %v776, 16
      %vm921 = vmand %vm919, %vm920
      %v922 = vsel %vm921, 1, 0
      %v923 = vcvt.s32.f32 %v922
      %v924 = vmul.f32 %v620, %v923
      %v925 = vmul.f32 %v623, %v923
      %v926 = vmul.f32 %v628, %v923
      %v927 = vpack.c.bf16 %v925, %v924
      %v928 = vpack.c.bf16 %v926, %v926
      %v930 = vsel %vm578, %v927, 0
      %v933 = vsel %vm578, %v928, 0
      %935 = vmatprep.subr.bf16.mxu0 0
      %936 = vmatpush1.bf16.msra.mxu0 0
      %937 = vmatprep.subr.bf16.mxu0 0
      %938 = vmatpush1.bf16.msra.mxu0 0
      %939 = vmatprep.subr.bf16.mxu0 0
      %940 = vmatpush1.bf16.msra.mxu0 0
      %941 = vmatprep.subr.bf16.mxu0 0
      %942 = vmatpush1.bf16.msra.mxu0 0
      %943 = vmatprep.subr.bf16.mxu0 0
      %944 = vmatpush1.bf16.msra.mxu0 0
      %945 = vmatprep.subr.bf16.mxu0 0
      %946 = vmatpush1.bf16.msra.mxu0 0
      %947 = vmatprep.subr.bf16.mxu0 0
      %948 = vmatpush1.bf16.msra.mxu0 %v810
      %949 = vmatprep.subr.bf16.mxu0 0
      %950 = vmatpush1.bf16.msra.mxu0 %v809
      %951 = vmatprep.subr.bf16.mxu0 0
      %952 = vmatpush2.bf16.msra.mxu0 0
      %953 = vmatprep.subr.bf16.mxu0 0
      %954 = vmatpush2.bf16.msra.mxu0 0
      %955 = vmatprep.subr.bf16.mxu0 0
      %956 = vmatpush2.bf16.msra.mxu0 0
      %957 = vmatprep.subr.bf16.mxu0 0
      %958 = vmatpush2.bf16.msra.mxu0 0
      %959 = vmatprep.subr.bf16.mxu0 0
      %960 = vmatpush2.bf16.msra.mxu0 0
      %961 = vmatprep.subr.bf16.mxu0 0
      %962 = vmatpush2.bf16.msra.mxu0 0
      %963 = vmatprep.subr.bf16.mxu0 0
      %964 = vmatpush2.bf16.msra.mxu0 0
      %965 = vmatprep.subr.bf16.mxu0 0
      %966 = vmatpush2.bf16.msra.mxu0 0
      %967 = vmatprep.mubr.bf16.mxu0 0
      %968 = vmatmul.mubr.bf16.gmra.mxu0 %v930
      %v969 = vpop.f32.mrf.mxu0
      %v970 = vadd.f32 0.0, %v969
      %v971 = vpop.f32.mrf.mxu0
      %v972 = vpop.f32.mrf.mxu0
      %v973 = vadd.f32 0.0, %v972
      %v974 = vpop.f32.mrf.mxu0
      %975 = vmatprep.mubr.bf16.mxu0 0
      %976 = vmatmul.mubr.bf16.gmra.mxu0 %v933
      %v977 = vpop.f32.mrf.mxu0
      %v978 = vadd.f32 0.0, %v977
      %v979 = vpop.f32.mrf.mxu0
      %v980 = vpop.f32.mrf.mxu0
      %v981 = vpop.f32.mrf.mxu0
      %982 = vdwg.mxu0
      %v983 = vmul.f32 %v970, 0.35355338
      %v984 = vmul.f32 %v973, 0.35355338
      %v985 = vmul.f32 %v978, 0.35355338
      %v986 = vsel %vm878, %v983, -inf
      %987 = vmax.xlane.f32.xlu0 %v986
      %v988 = vpop.xlane.xlu0 %987
      %v989 = vsel %vm878, %v984, -inf
      %990 = vmax.xlane.f32.xlu0 %v989
      %v991 = vpop.xlane.xlu0 %990
      %v992 = vsel %vm878, %v985, -inf
      %993 = vmax.xlane.f32.xlu0 %v992
      %v994 = vpop.xlane.xlu0 %993
      %v995 = vsub.f32 %v983, %v988
      %v996 = vsub.f32 %v984, %v991
      %v997 = vsub.f32 %v985, %v994
      %v998 = vmul.f32 %v995, 1.442695
      %v999 = vpow.pop %v998
      %v1000 = vmul.f32 %v996, 1.442695
      %v1001 = vpow.pop %v1000
      %v1002 = vmul.f32 %v997, 1.442695
      %v1003 = vpow.pop %v1002
      %v1004 = vsel %vm878, %v999, 0.0
      %1005 = vadd.xlane.f32.xlu0 %v1004
      %v1006 = vpop.xlane.xlu0 %1005
      %v1007 = vsel %vm878, %v1001, 0.0
      %1008 = vadd.xlane.f32.xlu0 %v1007
      %v1009 = vpop.xlane.xlu0 %1008
      %v1010 = vsel %vm878, %v1003, 0.0
      %1011 = vadd.xlane.f32.xlu0 %v1010
      %v1012 = vpop.xlane.xlu0 %1011
      %v1013 = vrcp.pop %v1006
      %v1014 = vrcp.pop %v1009
      %v1015 = vrcp.pop %v1012
      %v1016 = vmul.f32 %v999, %v1013
      %v1017 = vmul.f32 %v1001, %v1014
      %v1018 = vmul.f32 %v1003, %v1015
      %v1019 = vmul.f32 %v762, %v923
      %v1020 = vmul.f32 %v765, %v923
      %v1021 = vmul.f32 %v770, %v923
      %v1022 = vpack.c.bf16 %v1017, %v1016
      %v1023 = vpack.c.bf16 %v1018, %v1018
      %v1024 = vpack.c.bf16 %v1020, %v1019
      %v1025 = vpack.c.bf16 %v1021, %v1021
      %v1027 = vsel %vm878, %v1022, 0
      %v1030 = vsel %vm878, %v1023, 0
      %vm1032 = vcmask 1043456
      %v1034 = vsel %vm1032, %v1025, 0
      %1036 = vmatprep.subr.bf16.mxu0 0
      %1037 = vmatpush1.bf16.msra.mxu0 0
      %1038 = vmatprep.subr.bf16.mxu0 0
      %1039 = vmatpush1.bf16.msra.mxu0 0
      %1040 = vmatprep.subr.bf16.mxu0 0
      %1041 = vmatpush1.bf16.msra.mxu0 0
      %1042 = vmatprep.subr.bf16.mxu0 0
      %1043 = vmatpush1.bf16.msra.mxu0 0
      %1044 = vmatprep.subr.bf16.mxu0 0
      %1045 = vmatpush1.bf16.msra.mxu0 0
      %1046 = vmatprep.subr.bf16.mxu0 0
      %1047 = vmatpush1.bf16.msra.mxu0 0
      %1048 = vmatprep.subr.bf16.mxu0 0
      %1049 = vmatpush1.bf16.msra.mxu0 %v1034
      %1050 = vmatprep.subr.bf16.mxu0 0
      %1051 = vmatpush1.bf16.msra.mxu0 %v1024
      %1052 = vmatprep.subr.bf16.mxu0 0
      %1053 = vmatpush2.bf16.msra.mxu0 0
      %1054 = vmatprep.subr.bf16.mxu0 0
      %1055 = vmatpush2.bf16.msra.mxu0 0
      %1056 = vmatprep.subr.bf16.mxu0 0
      %1057 = vmatpush2.bf16.msra.mxu0 0
      %1058 = vmatprep.subr.bf16.mxu0 0
      %1059 = vmatpush2.bf16.msra.mxu0 0
      %1060 = vmatprep.subr.bf16.mxu0 0
      %1061 = vmatpush2.bf16.msra.mxu0 0
      %1062 = vmatprep.subr.bf16.mxu0 0
      %1063 = vmatpush2.bf16.msra.mxu0 0
      %1064 = vmatprep.subr.bf16.mxu0 0
      %1065 = vmatpush2.bf16.msra.mxu0 0
      %1066 = vmatprep.subr.bf16.mxu0 0
      %1067 = vmatpush2.bf16.msra.mxu0 0
      %1068 = vmatprep.mubr.bf16.mxu0 0
      %1069 = vmatmul.mubr.bf16.gmra.mxu0 %v1027
      %v1070 = vpop.f32.mrf.mxu0
      %v1071 = vadd.f32 0.0, %v1070
      %v1072 = vpop.f32.mrf.mxu0
      %v1073 = vpop.f32.mrf.mxu0
      %v1074 = vadd.f32 0.0, %v1073
      %v1075 = vpop.f32.mrf.mxu0
      %1076 = vmatprep.mubr.bf16.mxu0 0
      %1077 = vmatmul.mubr.bf16.gmra.mxu0 %v1030
      %v1078 = vpop.f32.mrf.mxu0
      %v1079 = vadd.f32 0.0, %v1078
      %v1080 = vpop.f32.mrf.mxu0
      %v1081 = vpop.f32.mrf.mxu0
      %v1082 = vpop.f32.mrf.mxu0
      %1083 = vdwg.mxu0
      %v1085 = vsel %vm878, %v915, 0
      %v1088 = vsel %vm878, %v916, 0
      %v1091 = vsel %vm1032, %v918, 0
      %1093 = vmatprep.subr.bf16.mxu0 0
      %1094 = vmatpush1.bf16.msra.mxu0 0
      %1095 = vmatprep.subr.bf16.mxu0 0
      %1096 = vmatpush1.bf16.msra.mxu0 0
      %1097 = vmatprep.subr.bf16.mxu0 0
      %1098 = vmatpush1.bf16.msra.mxu0 0
      %1099 = vmatprep.subr.bf16.mxu0 0
      %1100 = vmatpush1.bf16.msra.mxu0 0
      %1101 = vmatprep.subr.bf16.mxu0 0
      %1102 = vmatpush1.bf16.msra.mxu0 0
      %1103 = vmatprep.subr.bf16.mxu0 0
      %1104 = vmatpush1.bf16.msra.mxu0 0
      %1105 = vmatprep.subr.bf16.mxu0 0
      %1106 = vmatpush1.bf16.msra.mxu0 %v1091
      %1107 = vmatprep.subr.bf16.mxu0 0
      %1108 = vmatpush1.bf16.msra.mxu0 %v917
      %1109 = vmatprep.subr.bf16.mxu0 0
      %1110 = vmatpush2.bf16.msra.mxu0 0
      %1111 = vmatprep.subr.bf16.mxu0 0
      %1112 = vmatpush2.bf16.msra.mxu0 0
      %1113 = vmatprep.subr.bf16.mxu0 0
      %1114 = vmatpush2.bf16.msra.mxu0 0
      %1115 = vmatprep.subr.bf16.mxu0 0
      %1116 = vmatpush2.bf16.msra.mxu0 0
      %1117 = vmatprep.subr.bf16.mxu0 0
      %1118 = vmatpush2.bf16.msra.mxu0 0
      %1119 = vmatprep.subr.bf16.mxu0 0
      %1120 = vmatpush2.bf16.msra.mxu0 0
      %1121 = vmatprep.subr.bf16.mxu0 0
      %1122 = vmatpush2.bf16.msra.mxu0 0
      %1123 = vmatprep.subr.bf16.mxu0 0
      %1124 = vmatpush2.bf16.msra.mxu0 0
      %1125 = vmatprep.mubr.bf16.mxu0 0
      %1126 = vmatmul.mubr.bf16.gmra.mxu0 %v1085
      %v1127 = vpop.f32.mrf.mxu0
      %v1128 = vadd.f32 %v1071, %v1127
      %v1129 = vpop.f32.mrf.mxu0
      %v1130 = vpop.f32.mrf.mxu0
      %v1131 = vadd.f32 %v1074, %v1130
      %v1132 = vpop.f32.mrf.mxu0
      %1133 = vmatprep.mubr.bf16.mxu0 0
      %1134 = vmatmul.mubr.bf16.gmra.mxu0 %v1088
      %v1135 = vpop.f32.mrf.mxu0
      %v1136 = vadd.f32 %v1079, %v1135
      %v1137 = vpop.f32.mrf.mxu0
      %v1138 = vpop.f32.mrf.mxu0
      %v1139 = vpop.f32.mrf.mxu0
      %1140 = vdwg.mxu0
      %vm1141 = vcmp.ge.s32.totalorder %v776, 16
      %vm1142 = vcmp.lt.s32.totalorder %v776, 24
      %vm1143 = vmand %vm1141, %vm1142
      %v1144 = vsel %vm1143, 1, 0
      %v1145 = vcvt.s32.f32 %v1144
      %v1146 = vmul.f32 %v620, %v1145
      %v1147 = vmul.f32 %v623, %v1145
      %v1148 = vmul.f32 %v628, %v1145
      %v1149 = vpack.c.bf16 %v1147, %v1146
      %v1150 = vpack.c.bf16 %v1148, %v1148
      %v1152 = vsel %vm578, %v1149, 0
      %v1155 = vsel %vm578, %v1150, 0
      %1157 = vmatprep.subr.bf16.mxu0 0
      %1158 = vmatpush1.bf16.msra.mxu0 0
      %1159 = vmatprep.subr.bf16.mxu0 0
      %1160 = vmatpush1.bf16.msra.mxu0 0
      %1161 = vmatprep.subr.bf16.mxu0 0
      %1162 = vmatpush1.bf16.msra.mxu0 0
      %1163 = vmatprep.subr.bf16.mxu0 0
      %1164 = vmatpush1.bf16.msra.mxu0 0
      %1165 = vmatprep.subr.bf16.mxu0 0
      %1166 = vmatpush1.bf16.msra.mxu0 0
      %1167 = vmatprep.subr.bf16.mxu0 0
      %1168 = vmatpush1.bf16.msra.mxu0 0
      %1169 = vmatprep.subr.bf16.mxu0 0
      %1170 = vmatpush1.bf16.msra.mxu0 %v810
      %1171 = vmatprep.subr.bf16.mxu0 0
      %1172 = vmatpush1.bf16.msra.mxu0 %v809
      %1173 = vmatprep.subr.bf16.mxu0 0
      %1174 = vmatpush2.bf16.msra.mxu0 0
      %1175 = vmatprep.subr.bf16.mxu0 0
      %1176 = vmatpush2.bf16.msra.mxu0 0
      %1177 = vmatprep.subr.bf16.mxu0 0
      %1178 = vmatpush2.bf16.msra.mxu0 0
      %1179 = vmatprep.subr.bf16.mxu0 0
      %1180 = vmatpush2.bf16.msra.mxu0 0
      %1181 = vmatprep.subr.bf16.mxu0 0
      %1182 = vmatpush2.bf16.msra.mxu0 0
      %1183 = vmatprep.subr.bf16.mxu0 0
      %1184 = vmatpush2.bf16.msra.mxu0 0
      %1185 = vmatprep.subr.bf16.mxu0 0
      %1186 = vmatpush2.bf16.msra.mxu0 0
      %1187 = vmatprep.subr.bf16.mxu0 0
      %1188 = vmatpush2.bf16.msra.mxu0 0
      %1189 = vmatprep.mubr.bf16.mxu0 0
      %1190 = vmatmul.mubr.bf16.gmra.mxu0 %v1152
      %v1191 = vpop.f32.mrf.mxu0
      %v1192 = vadd.f32 0.0, %v1191
      %v1193 = vpop.f32.mrf.mxu0
      %v1194 = vpop.f32.mrf.mxu0
      %v1195 = vadd.f32 0.0, %v1194
      %v1196 = vpop.f32.mrf.mxu0
      %1197 = vmatprep.mubr.bf16.mxu0 0
      %1198 = vmatmul.mubr.bf16.gmra.mxu0 %v1155
      %v1199 = vpop.f32.mrf.mxu0
      %v1200 = vadd.f32 0.0, %v1199
      %v1201 = vpop.f32.mrf.mxu0
      %v1202 = vpop.f32.mrf.mxu0
      %v1203 = vpop.f32.mrf.mxu0
      %1204 = vdwg.mxu0
      %v1205 = vmul.f32 %v1192, 0.35355338
      %v1206 = vmul.f32 %v1195, 0.35355338
      %v1207 = vmul.f32 %v1200, 0.35355338
      %v1208 = vsel %vm878, %v1205, -inf
      %1209 = vmax.xlane.f32.xlu0 %v1208
      %v1210 = vpop.xlane.xlu0 %1209
      %v1211 = vsel %vm878, %v1206, -inf
      %1212 = vmax.xlane.f32.xlu0 %v1211
      %v1213 = vpop.xlane.xlu0 %1212
      %v1214 = vsel %vm878, %v1207, -inf
      %1215 = vmax.xlane.f32.xlu0 %v1214
      %v1216 = vpop.xlane.xlu0 %1215
      %v1217 = vsub.f32 %v1205, %v1210
      %v1218 = vsub.f32 %v1206, %v1213
      %v1219 = vsub.f32 %v1207, %v1216
      %v1220 = vmul.f32 %v1217, 1.442695
      %v1221 = vpow.pop %v1220
      %v1222 = vmul.f32 %v1218, 1.442695
      %v1223 = vpow.pop %v1222
      %v1224 = vmul.f32 %v1219, 1.442695
      %v1225 = vpow.pop %v1224
      %v1226 = vsel %vm878, %v1221, 0.0
      %1227 = vadd.xlane.f32.xlu0 %v1226
      %v1228 = vpop.xlane.xlu0 %1227
      %v1229 = vsel %vm878, %v1223, 0.0
      %1230 = vadd.xlane.f32.xlu0 %v1229
      %v1231 = vpop.xlane.xlu0 %1230
      %v1232 = vsel %vm878, %v1225, 0.0
      %1233 = vadd.xlane.f32.xlu0 %v1232
      %v1234 = vpop.xlane.xlu0 %1233
      %v1235 = vrcp.pop %v1228
      %v1236 = vrcp.pop %v1231
      %v1237 = vrcp.pop %v1234
      %v1238 = vmul.f32 %v1221, %v1235
      %v1239 = vmul.f32 %v1223, %v1236
      %v1240 = vmul.f32 %v1225, %v1237
      %v1241 = vmul.f32 %v762, %v1145
      %v1242 = vmul.f32 %v765, %v1145
      %v1243 = vmul.f32 %v770, %v1145
      %v1244 = vpack.c.bf16 %v1239, %v1238
      %v1245 = vpack.c.bf16 %v1240, %v1240
      %v1246 = vpack.c.bf16 %v1242, %v1241
      %v1247 = vpack.c.bf16 %v1243, %v1243
      %v1249 = vsel %vm878, %v1244, 0
      %v1252 = vsel %vm878, %v1245, 0
      %v1255 = vsel %vm1032, %v1247, 0
      %1257 = vmatprep.subr.bf16.mxu0 0
      %1258 = vmatpush1.bf16.msra.mxu0 0
      %1259 = vmatprep.subr.bf16.mxu0 0
      %1260 = vmatpush1.bf16.msra.mxu0 0
      %1261 = vmatprep.subr.bf16.mxu0 0
      %1262 = vmatpush1.bf16.msra.mxu0 0
      %1263 = vmatprep.subr.bf16.mxu0 0
      %1264 = vmatpush1.bf16.msra.mxu0 0
      %1265 = vmatprep.subr.bf16.mxu0 0
      %1266 = vmatpush1.bf16.msra.mxu0 0
      %1267 = vmatprep.subr.bf16.mxu0 0
      %1268 = vmatpush1.bf16.msra.mxu0 0
      %1269 = vmatprep.subr.bf16.mxu0 0
      %1270 = vmatpush1.bf16.msra.mxu0 %v1255
      %1271 = vmatprep.subr.bf16.mxu0 0
      %1272 = vmatpush1.bf16.msra.mxu0 %v1246
      %1273 = vmatprep.subr.bf16.mxu0 0
      %1274 = vmatpush2.bf16.msra.mxu0 0
      %1275 = vmatprep.subr.bf16.mxu0 0
      %1276 = vmatpush2.bf16.msra.mxu0 0
      %1277 = vmatprep.subr.bf16.mxu0 0
      %1278 = vmatpush2.bf16.msra.mxu0 0
      %1279 = vmatprep.subr.bf16.mxu0 0
      %1280 = vmatpush2.bf16.msra.mxu0 0
      %1281 = vmatprep.subr.bf16.mxu0 0
      %1282 = vmatpush2.bf16.msra.mxu0 0
      %1283 = vmatprep.subr.bf16.mxu0 0
      %1284 = vmatpush2.bf16.msra.mxu0 0
      %1285 = vmatprep.subr.bf16.mxu0 0
      %1286 = vmatpush2.bf16.msra.mxu0 0
      %1287 = vmatprep.subr.bf16.mxu0 0
      %1288 = vmatpush2.bf16.msra.mxu0 0
      %1289 = vmatprep.mubr.bf16.mxu0 0
      %1290 = vmatmul.mubr.bf16.gmra.mxu0 %v1249
      %v1291 = vpop.f32.mrf.mxu0
      %v1292 = vadd.f32 0.0, %v1291
      %v1293 = vpop.f32.mrf.mxu0
      %v1294 = vpop.f32.mrf.mxu0
      %v1295 = vadd.f32 0.0, %v1294
      %v1296 = vpop.f32.mrf.mxu0
      %1297 = vmatprep.mubr.bf16.mxu0 0
      %1298 = vmatmul.mubr.bf16.gmra.mxu0 %v1252
      %v1299 = vpop.f32.mrf.mxu0
      %v1300 = vadd.f32 0.0, %v1299
      %v1301 = vpop.f32.mrf.mxu0
      %v1302 = vpop.f32.mrf.mxu0
      %v1303 = vpop.f32.mrf.mxu0
      %1304 = vdwg.mxu0
      %v1305 = vadd.f32 %v1128, %v1292
      %v1306 = vadd.f32 %v1131, %v1295
      %v1307 = vadd.f32 %v1136, %v1300
      %vm1308 = vcmp.ge.s32.totalorder %v776, 24
      %vm1309 = vcmp.lt.s32.totalorder %v776, 32
      %vm1310 = vmand %vm1308, %vm1309
      %v1311 = vsel %vm1310, 1, 0
      %v1312 = vcvt.s32.f32 %v1311
      %v1313 = vmul.f32 %v620, %v1312
      %v1314 = vmul.f32 %v623, %v1312
      %v1315 = vmul.f32 %v628, %v1312
      %v1316 = vpack.c.bf16 %v1314, %v1313
      %v1317 = vpack.c.bf16 %v1315, %v1315
      %v1319 = vsel %vm578, %v1316, 0
      %v1322 = vsel %vm578, %v1317, 0
      %1324 = vmatprep.subr.bf16.mxu0 0
      %1325 = vmatpush1.bf16.msra.mxu0 0
      %1326 = vmatprep.subr.bf16.mxu0 0
      %1327 = vmatpush1.bf16.msra.mxu0 0
      %1328 = vmatprep.subr.bf16.mxu0 0
      %1329 = vmatpush1.bf16.msra.mxu0 0
      %1330 = vmatprep.subr.bf16.mxu0 0
      %1331 = vmatpush1.bf16.msra.mxu0 0
      %1332 = vmatprep.subr.bf16.mxu0 0
      %1333 = vmatpush1.bf16.msra.mxu0 0
      %1334 = vmatprep.subr.bf16.mxu0 0
      %1335 = vmatpush1.bf16.msra.mxu0 0
      %1336 = vmatprep.subr.bf16.mxu0 0
      %1337 = vmatpush1.bf16.msra.mxu0 %v810
      %1338 = vmatprep.subr.bf16.mxu0 0
      %1339 = vmatpush1.bf16.msra.mxu0 %v809
      %1340 = vmatprep.subr.bf16.mxu0 0
      %1341 = vmatpush2.bf16.msra.mxu0 0
      %1342 = vmatprep.subr.bf16.mxu0 0
      %1343 = vmatpush2.bf16.msra.mxu0 0
      %1344 = vmatprep.subr.bf16.mxu0 0
      %1345 = vmatpush2.bf16.msra.mxu0 0
      %1346 = vmatprep.subr.bf16.mxu0 0
      %1347 = vmatpush2.bf16.msra.mxu0 0
      %1348 = vmatprep.subr.bf16.mxu0 0
      %1349 = vmatpush2.bf16.msra.mxu0 0
      %1350 = vmatprep.subr.bf16.mxu0 0
      %1351 = vmatpush2.bf16.msra.mxu0 0
      %1352 = vmatprep.subr.bf16.mxu0 0
      %1353 = vmatpush2.bf16.msra.mxu0 0
      %1354 = vmatprep.subr.bf16.mxu0 0
      %1355 = vmatpush2.bf16.msra.mxu0 0
      %1356 = vmatprep.mubr.bf16.mxu0 0
      %1357 = vmatmul.mubr.bf16.gmra.mxu0 %v1319
      %v1358 = vpop.f32.mrf.mxu0
      %v1359 = vadd.f32 0.0, %v1358
      %v1360 = vpop.f32.mrf.mxu0
      %v1361 = vpop.f32.mrf.mxu0
      %v1362 = vadd.f32 0.0, %v1361
      %v1363 = vpop.f32.mrf.mxu0
      %1364 = vmatprep.mubr.bf16.mxu0 0
      %1365 = vmatmul.mubr.bf16.gmra.mxu0 %v1322
      %v1366 = vpop.f32.mrf.mxu0
      %v1367 = vadd.f32 0.0, %v1366
      %v1368 = vpop.f32.mrf.mxu0
      %v1369 = vpop.f32.mrf.mxu0
      %v1370 = vpop.f32.mrf.mxu0
      %1371 = vdwg.mxu0
      %v1372 = vmul.f32 %v1359, 0.35355338
      %v1373 = vmul.f32 %v1362, 0.35355338
      %v1374 = vmul.f32 %v1367, 0.35355338
      %v1375 = vsel %vm878, %v1372, -inf
      %1376 = vmax.xlane.f32.xlu0 %v1375
      %v1377 = vpop.xlane.xlu0 %1376
      %v1378 = vsel %vm878, %v1373, -inf
      %1379 = vmax.xlane.f32.xlu0 %v1378
      %v1380 = vpop.xlane.xlu0 %1379
      %v1381 = vsel %vm878, %v1374, -inf
      %1382 = vmax.xlane.f32.xlu0 %v1381
      %v1383 = vpop.xlane.xlu0 %1382
      %v1384 = vsub.f32 %v1372, %v1377
      %v1385 = vsub.f32 %v1373, %v1380
      %v1386 = vsub.f32 %v1374, %v1383
      %v1387 = vmul.f32 %v1384, 1.442695
      %v1388 = vpow.pop %v1387
      %v1389 = vmul.f32 %v1385, 1.442695
      %v1390 = vpow.pop %v1389
      %v1391 = vmul.f32 %v1386, 1.442695
      %v1392 = vpow.pop %v1391
      %v1393 = vsel %vm878, %v1388, 0.0
      %1394 = vadd.xlane.f32.xlu0 %v1393
      %v1395 = vpop.xlane.xlu0 %1394
      %v1396 = vsel %vm878, %v1390, 0.0
      %1397 = vadd.xlane.f32.xlu0 %v1396
      %v1398 = vpop.xlane.xlu0 %1397
      %v1399 = vsel %vm878, %v1392, 0.0
      %1400 = vadd.xlane.f32.xlu0 %v1399
      %v1401 = vpop.xlane.xlu0 %1400
      %v1402 = vrcp.pop %v1395
      %v1403 = vrcp.pop %v1398
      %v1404 = vrcp.pop %v1401
      %v1405 = vmul.f32 %v1388, %v1402
      %v1406 = vmul.f32 %v1390, %v1403
      %v1407 = vmul.f32 %v1392, %v1404
      %v1408 = vmul.f32 %v762, %v1312
      %v1409 = vmul.f32 %v765, %v1312
      %v1410 = vmul.f32 %v770, %v1312
      %v1411 = vpack.c.bf16 %v1406, %v1405
      %v1412 = vpack.c.bf16 %v1407, %v1407
      %v1413 = vpack.c.bf16 %v1409, %v1408
      %v1414 = vpack.c.bf16 %v1410, %v1410
      %v1416 = vsel %vm878, %v1411, 0
      %v1419 = vsel %vm878, %v1412, 0
      %v1422 = vsel %vm1032, %v1414, 0
      %1424 = vmatprep.subr.bf16.mxu0 0
      %1425 = vmatpush1.bf16.msra.mxu0 0
      %1426 = vmatprep.subr.bf16.mxu0 0
      %1427 = vmatpush1.bf16.msra.mxu0 0
      %1428 = vmatprep.subr.bf16.mxu0 0
      %1429 = vmatpush1.bf16.msra.mxu0 0
      %1430 = vmatprep.subr.bf16.mxu0 0
      %1431 = vmatpush1.bf16.msra.mxu0 0
      %1432 = vmatprep.subr.bf16.mxu0 0
      %1433 = vmatpush1.bf16.msra.mxu0 0
      %1434 = vmatprep.subr.bf16.mxu0 0
      %1435 = vmatpush1.bf16.msra.mxu0 0
      %1436 = vmatprep.subr.bf16.mxu0 0
      %1437 = vmatpush1.bf16.msra.mxu0 %v1422
      %1438 = vmatprep.subr.bf16.mxu0 0
      %1439 = vmatpush1.bf16.msra.mxu0 %v1413
      %1440 = vmatprep.subr.bf16.mxu0 0
      %1441 = vmatpush2.bf16.msra.mxu0 0
      %1442 = vmatprep.subr.bf16.mxu0 0
      %1443 = vmatpush2.bf16.msra.mxu0 0
      %1444 = vmatprep.subr.bf16.mxu0 0
      %1445 = vmatpush2.bf16.msra.mxu0 0
      %1446 = vmatprep.subr.bf16.mxu0 0
      %1447 = vmatpush2.bf16.msra.mxu0 0
      %1448 = vmatprep.subr.bf16.mxu0 0
      %1449 = vmatpush2.bf16.msra.mxu0 0
      %1450 = vmatprep.subr.bf16.mxu0 0
      %1451 = vmatpush2.bf16.msra.mxu0 0
      %1452 = vmatprep.subr.bf16.mxu0 0
      %1453 = vmatpush2.bf16.msra.mxu0 0
      %1454 = vmatprep.subr.bf16.mxu0 0
      %1455 = vmatpush2.bf16.msra.mxu0 0
      %1456 = vmatprep.mubr.bf16.mxu0 0
      %1457 = vmatmul.mubr.bf16.gmra.mxu0 %v1416
      %v1458 = vpop.f32.mrf.mxu0
      %v1459 = vadd.f32 0.0, %v1458
      %v1460 = vpop.f32.mrf.mxu0
      %v1461 = vpop.f32.mrf.mxu0
      %v1462 = vadd.f32 0.0, %v1461
      %v1463 = vpop.f32.mrf.mxu0
      %1464 = vmatprep.mubr.bf16.mxu0 0
      %1465 = vmatmul.mubr.bf16.gmra.mxu0 %v1419
      %v1466 = vpop.f32.mrf.mxu0
      %v1467 = vadd.f32 0.0, %v1466
      %v1468 = vpop.f32.mrf.mxu0
      %v1469 = vpop.f32.mrf.mxu0
      %v1470 = vpop.f32.mrf.mxu0
      %1471 = vdwg.mxu0
      %v1472 = vadd.f32 %v1305, %v1459
      %v1473 = vadd.f32 %v1306, %v1462
      %v1474 = vadd.f32 %v1307, %v1467
      %v1475 = vld [vmem:[%s7] sm:$0xf]
      %v1476 = vld [vmem:[%s7 + $0x4] sm:$0xf]
      %v1477 = vld [vmem:[%s7 + $0x8] sm:$0xf]
      %v1478 = vld [vmem:[%s7 + $0xc] sm:$0xf]
      %v1479 = vpack.c.bf16 %v1473, %v1472
      %v1480 = vpack.c.bf16 %v1474, %v1474
      %v1481 = vld [vmem:[%s8] sm:$0x1]
      %v1483 = vlaneseq
      %v1484 = vshrl.u32 %v1483, 7
      %v1485 = vsub.s32 0, %v1484
      %v1486 = vrot.slane %v1481, %v1485
      %v1492 = vunpack.c.l.b16 %v1475
      %v1493 = vunpack.c.l.b16 %v1476
      %v1494 = vunpack.c.l.b16 %v1477
      %v1495 = vunpack.c.l.b16 %v1478
      %v1496 = vpack.c.b16 %v1493, %v1492
      %v1497 = vpack.c.b16 %v1495, %v1494
      %v1501 = vsel %vm578, %v1479, 0
      %v1504 = vsel %vm578, %v1480, 0
      %1506 = vmatprep.subr.bf16.mxu0 0
      %1507 = vmatpush1.bf16.msra.mxu0 0
      %1508 = vmatprep.subr.bf16.mxu0 0
      %1509 = vmatpush1.bf16.msra.mxu0 0
      %1510 = vmatprep.subr.bf16.mxu0 0
      %1511 = vmatpush1.bf16.msra.mxu0 0
      %1512 = vmatprep.subr.bf16.mxu0 0
      %1513 = vmatpush1.bf16.msra.mxu0 0
      %1514 = vmatprep.subr.bf16.mxu0 0
      %1515 = vmatpush1.bf16.msra.mxu0 0
      %1516 = vmatprep.subr.bf16.mxu0 0
      %1517 = vmatpush1.bf16.msra.mxu0 0
      %1518 = vmatprep.subr.bf16.mxu0 0
      %1519 = vmatpush1.bf16.msra.mxu0 %v1497
      %1520 = vmatprep.subr.bf16.mxu0 0
      %1521 = vmatpush1.bf16.msra.mxu0 %v1496
      %1522 = vmatprep.subr.bf16.mxu0 0
      %1523 = vmatpush2.bf16.msra.mxu0 0
      %1524 = vmatprep.subr.bf16.mxu0 0
      %1525 = vmatpush2.bf16.msra.mxu0 0
      %1526 = vmatprep.subr.bf16.mxu0 0
      %1527 = vmatpush2.bf16.msra.mxu0 0
      %1528 = vmatprep.subr.bf16.mxu0 0
      %1529 = vmatpush2.bf16.msra.mxu0 0
      %1530 = vmatprep.subr.bf16.mxu0 0
      %1531 = vmatpush2.bf16.msra.mxu0 0
      %1532 = vmatprep.subr.bf16.mxu0 0
      %1533 = vmatpush2.bf16.msra.mxu0 0
      %1534 = vmatprep.subr.bf16.mxu0 0
      %1535 = vmatpush2.bf16.msra.mxu0 0
      %1536 = vmatprep.subr.bf16.mxu0 0
      %1537 = vmatpush2.bf16.msra.mxu0 0
      %1538 = vmatprep.mubr.bf16.mxu0 0
      %1539 = vmatmul.mubr.bf16.gmra.mxu0 %v1501
      %v1540 = vpop.f32.mrf.mxu0
      %v1541 = vadd.f32 %v1486, %v1540
      %v1542 = vpop.f32.mrf.mxu0
      %v1543 = vpop.f32.mrf.mxu0
      %v1544 = vadd.f32 %v1486, %v1543
      %v1545 = vpop.f32.mrf.mxu0
      %1546 = vmatprep.mubr.bf16.mxu0 0
      %1547 = vmatmul.mubr.bf16.gmra.mxu0 %v1504
      %v1548 = vpop.f32.mrf.mxu0
      %v1549 = vadd.f32 %v1486, %v1548
      %v1550 = vpop.f32.mrf.mxu0
      %v1551 = vpop.f32.mrf.mxu0
      %v1552 = vpop.f32.mrf.mxu0
      %1553 = vdwg.mxu0
      %v1554 = vadd.f32 %v550, %v1541
      %v1555 = vadd.f32 %v551, %v1544
      %v1556 = vadd.f32 %v552, %v1549
      %v1557 = vld [vmem:[%s9] sm:$0x1]
      %v1558 = vld [vmem:[%s10] sm:$0x1]
      %v1559 = vsel %vm578, %v1554, 0.0
      %1560 = vadd.xlane.f32.xlu0 %v1559
      %v1561 = vpop.xlane.xlu0 %1560
      %v1562 = vsel %vm578, %v1555, 0.0
      %1563 = vadd.xlane.f32.xlu0 %v1562
      %v1564 = vpop.xlane.xlu0 %1563
      %v1565 = vsel %vm578, %v1556, 0.0
      %1566 = vadd.xlane.f32.xlu0 %v1565
      %v1567 = vpop.xlane.xlu0 %1566
      %v1568 = vrcp.pop 32.0
      %v1569 = vmul.f32 %v1561, %v1568
      %v1570 = vmul.f32 %v1564, %v1568
      %v1571 = vmul.f32 %v1567, %v1568
      %v1572 = vsub.f32 %v1554, %v1569
      %v1573 = vsub.f32 %v1555, %v1570
      %v1574 = vsub.f32 %v1556, %v1571
      %v1575 = vmul.f32 %v1572, %v1572
      %v1576 = vmul.f32 %v1573, %v1573
      %v1577 = vmul.f32 %v1574, %v1574
      %v1578 = vsel %vm578, %v1575, 0.0
      %1579 = vadd.xlane.f32.xlu0 %v1578
      %v1580 = vpop.xlane.xlu0 %1579
      %v1581 = vsel %vm578, %v1576, 0.0
      %1582 = vadd.xlane.f32.xlu0 %v1581
      %v1583 = vpop.xlane.xlu0 %1582
      %v1584 = vsel %vm578, %v1577, 0.0
      %1585 = vadd.xlane.f32.xlu0 %v1584
      %v1586 = vpop.xlane.xlu0 %1585
      %v1587 = vmul.f32 %v1580, %v1568
      %v1588 = vmul.f32 %v1583, %v1568
      %v1589 = vmul.f32 %v1586, %v1568
      %v1590 = vadd.f32 %v1587, 1e-05
      %v1591 = vadd.f32 %v1588, 1e-05
      %v1592 = vadd.f32 %v1589, 1e-05
      %v1593 = vrsqrt.pop %v1590
      %v1594 = vrsqrt.pop %v1591
      %v1595 = vrsqrt.pop %v1592
      %v1596 = vmul.f32 %v1572, %v1593
      %v1597 = vmul.f32 %v1573, %v1594
      %v1598 = vmul.f32 %v1574, %v1595
      %v1600 = vlaneseq
      %v1601 = vshrl.u32 %v1600, 7
      %v1602 = vsub.s32 0, %v1601
      %v1603 = vrot.slane %v1557, %v1602
      %v1605 = vmul.f32 %v1596, %v1603
      %v1606 = vmul.f32 %v1597, %v1603
      %v1607 = vmul.f32 %v1598, %v1603
      %v1609 = vlaneseq
      %v1610 = vshrl.u32 %v1609, 7
      %v1611 = vsub.s32 0, %v1610
      %v1612 = vrot.slane %v1558, %v1611
      %v1614 = vadd.f32 %v1605, %v1612
      %v1615 = vadd.f32 %v1606, %v1612
      %v1616 = vadd.f32 %v1607, %v1612
      %v1617 = vld [vmem:[%s11] sm:$0xff]
      %v1618 = vld [vmem:[%s11 + $0x8] sm:$0xff]
      %v1619 = vld [vmem:[%s11 + $0x10] sm:$0xff]
      %v1620 = vld [vmem:[%s11 + $0x18] sm:$0xff]
      %v1621 = vld [vmem:[%s11 + $0x20] sm:$0xff]
      %v1622 = vld [vmem:[%s11 + $0x28] sm:$0xff]
      %v1623 = vld [vmem:[%s11 + $0x30] sm:$0xff]
      %v1624 = vld [vmem:[%s11 + $0x38] sm:$0xff]
      %v1625 = vld [vmem:[%s11 + $0x40] sm:$0xff]
      %v1626 = vld [vmem:[%s11 + $0x48] sm:$0xff]
      %v1627 = vld [vmem:[%s11 + $0x50] sm:$0xff]
      %v1628 = vld [vmem:[%s11 + $0x58] sm:$0xff]
      %v1629 = vld [vmem:[%s11 + $0x60] sm:$0xff]
      %v1630 = vld [vmem:[%s11 + $0x68] sm:$0xff]
      %v1631 = vld [vmem:[%s11 + $0x70] sm:$0xff]
      %v1632 = vld [vmem:[%s11 + $0x78] sm:$0xff]
      %v1633 = vld [vmem:[%s11 + $0x80] sm:$0xff]
      %v1634 = vld [vmem:[%s11 + $0x88] sm:$0xff]
      %v1635 = vld [vmem:[%s11 + $0x90] sm:$0xff]
      %v1636 = vld [vmem:[%s11 + $0x98] sm:$0xff]
      %v1637 = vld [vmem:[%s11 + $0xa0] sm:$0xff]
      %v1638 = vld [vmem:[%s11 + $0xa8] sm:$0xff]
      %v1639 = vld [vmem:[%s11 + $0xb0] sm:$0xff]
      %v1640 = vld [vmem:[%s11 + $0xb8] sm:$0xff]
      %v1641 = vld [vmem:[%s11 + $0xc0] sm:$0xff]
      %v1642 = vld [vmem:[%s11 + $0xc8] sm:$0xff]
      %v1643 = vld [vmem:[%s11 + $0xd0] sm:$0xff]
      %v1644 = vld [vmem:[%s11 + $0xd8] sm:$0xff]
      %v1645 = vld [vmem:[%s11 + $0xe0] sm:$0xff]
      %v1646 = vld [vmem:[%s11 + $0xe8] sm:$0xff]
      %v1647 = vld [vmem:[%s11 + $0xf0] sm:$0xff]
      %v1648 = vld [vmem:[%s11 + $0xf8] sm:$0xff]
      %v1649 = vpack.c.bf16 %v1615, %v1614
      %v1650 = vpack.c.bf16 %v1616, %v1616
      %v1651 = vld [vmem:[%s12] sm:$0xff]
      %v1652 = vld [vmem:[%s12 + $0x8] sm:$0xff]
      %v1655 = vlaneseq
      %v1656 = vshrl.u32 %v1655, 7
      %v1657 = vsub.s32 0, %v1656
      %v1658 = vrot.slane %v1651, %v1657
      %v1659 = vlaneseq
      %v1660 = vshrl.u32 %v1659, 7
      %v1661 = vsub.s32 1, %v1660
      %v1662 = vrot.slane %v1651, %v1661
      %v1663 = vlaneseq
      %v1664 = vshrl.u32 %v1663, 7
      %v1665 = vsub.s32 2, %v1664
      %v1666 = vrot.slane %v1651, %v1665
      %v1667 = vlaneseq
      %v1668 = vshrl.u32 %v1667, 7
      %v1669 = vsub.s32 3, %v1668
      %v1670 = vrot.slane %v1651, %v1669
      %v1671 = vlaneseq
      %v1672 = vshrl.u32 %v1671, 7
      %v1673 = vsub.s32 4, %v1672
      %v1674 = vrot.slane %v1651, %v1673
      %v1675 = vlaneseq
      %v1676 = vshrl.u32 %v1675, 7
      %v1677 = vsub.s32 5, %v1676
      %v1678 = vrot.slane %v1651, %v1677
      %v1679 = vlaneseq
      %v1680 = vshrl.u32 %v1679, 7
      %v1681 = vsub.s32 6, %v1680
      %v1682 = vrot.slane %v1651, %v1681
      %v1683 = vlaneseq
      %v1684 = vshrl.u32 %v1683, 7
      %v1685 = vsub.s32 7, %v1684
      %v1686 = vrot.slane %v1651, %v1685
      %v1687 = vlaneseq
      %v1688 = vshrl.u32 %v1687, 7
      %v1689 = vsub.s32 0, %v1688
      %v1690 = vrot.slane %v1652, %v1689
      %v1691 = vlaneseq
      %v1692 = vshrl.u32 %v1691, 7
      %v1693 = vsub.s32 1, %v1692
      %v1694 = vrot.slane %v1652, %v1693
      %v1695 = vlaneseq
      %v1696 = vshrl.u32 %v1695, 7
      %v1697 = vsub.s32 2, %v1696
      %v1698 = vrot.slane %v1652, %v1697
      %v1699 = vlaneseq
      %v1700 = vshrl.u32 %v1699, 7
      %v1701 = vsub.s32 3, %v1700
      %v1702 = vrot.slane %v1652, %v1701
      %v1703 = vlaneseq
      %v1704 = vshrl.u32 %v1703, 7
      %v1705 = vsub.s32 4, %v1704
      %v1706 = vrot.slane %v1652, %v1705
      %v1707 = vlaneseq
      %v1708 = vshrl.u32 %v1707, 7
      %v1709 = vsub.s32 5, %v1708
      %v1710 = vrot.slane %v1652, %v1709
      %v1711 = vlaneseq
      %v1712 = vshrl.u32 %v1711, 7
      %v1713 = vsub.s32 6, %v1712
      %v1714 = vrot.slane %v1652, %v1713
      %v1715 = vlaneseq
      %v1716 = vshrl.u32 %v1715, 7
      %v1717 = vsub.s32 7, %v1716
      %v1718 = vrot.slane %v1652, %v1717
      %v1767 = vunpack.c.l.b16 %v1617
      %v1768 = vunpack.c.h.b16 %v1617
      %v1769 = vunpack.c.l.b16 %v1618
      %v1770 = vunpack.c.h.b16 %v1618
      %v1771 = vunpack.c.l.b16 %v1619
      %v1772 = vunpack.c.h.b16 %v1619
      %v1773 = vunpack.c.l.b16 %v1620
      %v1774 = vunpack.c.h.b16 %v1620
      %v1775 = vunpack.c.l.b16 %v1621
      %v1776 = vunpack.c.h.b16 %v1621
      %v1777 = vunpack.c.l.b16 %v1622
      %v1778 = vunpack.c.h.b16 %v1622
      %v1779 = vunpack.c.l.b16 %v1623
      %v1780 = vunpack.c.h.b16 %v1623
      %v1781 = vunpack.c.l.b16 %v1624
      %v1782 = vunpack.c.h.b16 %v1624
      %v1783 = vunpack.c.l.b16 %v1625
      %v1784 = vunpack.c.h.b16 %v1625
      %v1785 = vunpack.c.l.b16 %v1626
      %v1786 = vunpack.c.h.b16 %v1626
      %v1787 = vunpack.c.l.b16 %v1627
      %v1788 = vunpack.c.h.b16 %v1627
      %v1789 = vunpack.c.l.b16 %v1628
      %v1790 = vunpack.c.h.b16 %v1628
      %v1791 = vunpack.c.l.b16 %v1629
      %v1792 = vunpack.c.h.b16 %v1629
      %v1793 = vunpack.c.l.b16 %v1630
      %v1794 = vunpack.c.h.b16 %v1630
      %v1795 = vunpack.c.l.b16 %v1631
      %v1796 = vunpack.c.h.b16 %v1631
      %v1797 = vunpack.c.l.b16 %v1632
      %v1798 = vunpack.c.h.b16 %v1632
      %v1799 = vunpack.c.l.b16 %v1633
      %v1800 = vunpack.c.h.b16 %v1633
      %v1801 = vunpack.c.l.b16 %v1634
      %v1802 = vunpack.c.h.b16 %v1634
      %v1803 = vunpack.c.l.b16 %v1635
      %v1804 = vunpack.c.h.b16 %v1635
      %v1805 = vunpack.c.l.b16 %v1636
      %v1806 = vunpack.c.h.b16 %v1636
      %v1807 = vunpack.c.l.b16 %v1637
      %v1808 = vunpack.c.h.b16 %v1637
      %v1809 = vunpack.c.l.b16 %v1638
      %v1810 = vunpack.c.h.b16 %v1638
      %v1811 = vunpack.c.l.b16 %v1639
      %v1812 = vunpack.c.h.b16 %v1639
      %v1813 = vunpack.c.l.b16 %v1640
      %v1814 = vunpack.c.h.b16 %v1640
      %v1815 = vunpack.c.l.b16 %v1641
      %v1816 = vunpack.c.h.b16 %v1641
      %v1817 = vunpack.c.l.b16 %v1642
      %v1818 = vunpack.c.h.b16 %v1642
      %v1819 = vunpack.c.l.b16 %v1643
      %v1820 = vunpack.c.h.b16 %v1643
      %v1821 = vunpack.c.l.b16 %v1644
      %v1822 = vunpack.c.h.b16 %v1644
      %v1823 = vunpack.c.l.b16 %v1645
      %v1824 = vunpack.c.h.b16 %v1645
      %v1825 = vunpack.c.l.b16 %v1646
      %v1826 = vunpack.c.h.b16 %v1646
      %v1827 = vunpack.c.l.b16 %v1647
      %v1828 = vunpack.c.h.b16 %v1647
      %v1829 = vunpack.c.l.b16 %v1648
      %v1830 = vunpack.c.h.b16 %v1648
      %v1831 = vpack.c.b16 %v1783, %v1767
      %v1832 = vpack.c.b16 %v1784, %v1768
      %v1833 = vpack.c.b16 %v1785, %v1769
      %v1834 = vpack.c.b16 %v1786, %v1770
      %v1835 = vpack.c.b16 %v1787, %v1771
      %v1836 = vpack.c.b16 %v1788, %v1772
      %v1837 = vpack.c.b16 %v1789, %v1773
      %v1838 = vpack.c.b16 %v1790, %v1774
      %v1839 = vpack.c.b16 %v1791, %v1775
      %v1840 = vpack.c.b16 %v1792, %v1776
      %v1841 = vpack.c.b16 %v1793, %v1777
      %v1842 = vpack.c.b16 %v1794, %v1778
      %v1843 = vpack.c.b16 %v1795, %v1779
      %v1844 = vpack.c.b16 %v1796, %v1780
      %v1845 = vpack.c.b16 %v1797, %v1781
      %v1846 = vpack.c.b16 %v1798, %v1782
      %v1847 = vpack.c.b16 %v1815, %v1799
      %v1848 = vpack.c.b16 %v1816, %v1800
      %v1849 = vpack.c.b16 %v1817, %v1801
      %v1850 = vpack.c.b16 %v1818, %v1802
      %v1851 = vpack.c.b16 %v1819, %v1803
      %v1852 = vpack.c.b16 %v1820, %v1804
      %v1853 = vpack.c.b16 %v1821, %v1805
      %v1854 = vpack.c.b16 %v1822, %v1806
      %v1855 = vpack.c.b16 %v1823, %v1807
      %v1856 = vpack.c.b16 %v1824, %v1808
      %v1857 = vpack.c.b16 %v1825, %v1809
      %v1858 = vpack.c.b16 %v1826, %v1810
      %v1859 = vpack.c.b16 %v1827, %v1811
      %v1860 = vpack.c.b16 %v1828, %v1812
      %v1861 = vpack.c.b16 %v1829, %v1813
      %v1862 = vpack.c.b16 %v1830, %v1814
      %v1896 = vsel %vm578, %v1649, 0
      %v1899 = vsel %vm578, %v1650, 0
      %1901 = vmatprep.subr.bf16.mxu0 0
      %1902 = vmatpush1.bf16.msra.mxu0 0
      %1903 = vmatprep.subr.bf16.mxu0 0
      %1904 = vmatpush1.bf16.msra.mxu0 0
      %1905 = vmatprep.subr.bf16.mxu0 0
      %1906 = vmatpush1.bf16.msra.mxu0 0
      %1907 = vmatprep.subr.bf16.mxu0 0
      %1908 = vmatpush1.bf16.msra.mxu0 0
      %1909 = vmatprep.subr.bf16.mxu0 0
      %1910 = vmatpush1.bf16.msra.mxu0 0
      %1911 = vmatprep.subr.bf16.mxu0 0
      %1912 = vmatpush1.bf16.msra.mxu0 0
      %1913 = vmatprep.subr.bf16.mxu0 %v1848
      %1914 = vmatpush1.bf16.msra.mxu0 %v1847
      %1915 = vmatprep.subr.bf16.mxu0 %v1832
      %1916 = vmatpush1.bf16.msra.mxu0 %v1831
      %1917 = vmatprep.subr.bf16.mxu0 0
      %1918 = vmatpush2.bf16.msra.mxu0 0
      %1919 = vmatprep.subr.bf16.mxu0 0
      %1920 = vmatpush2.bf16.msra.mxu0 0
      %1921 = vmatprep.subr.bf16.mxu0 0
      %1922 = vmatpush2.bf16.msra.mxu0 0
      %1923 = vmatprep.subr.bf16.mxu0 0
      %1924 = vmatpush2.bf16.msra.mxu0 0
      %1925 = vmatprep.subr.bf16.mxu0 0
      %1926 = vmatpush2.bf16.msra.mxu0 0
      %1927 = vmatprep.subr.bf16.mxu0 0
      %1928 = vmatpush2.bf16.msra.mxu0 0
      %1929 = vmatprep.subr.bf16.mxu0 0
      %1930 = vmatpush2.bf16.msra.mxu0 0
      %1931 = vmatprep.subr.bf16.mxu0 0
      %1932 = vmatpush2.bf16.msra.mxu0 0
      %1933 = vmatprep.mubr.bf16.mxu0 0
      %1934 = vmatmul.mubr.bf16.gmra.mxu0 %v1896
      %v1935 = vpop.f32.mrf.mxu0
      %v1936 = vadd.f32 %v1658, %v1935
      %v1937 = vpop.f32.mrf.mxu0
      %v1938 = vadd.f32 %v1662, %v1937
      %v1939 = vpop.f32.mrf.mxu0
      %v1940 = vadd.f32 %v1658, %v1939
      %v1941 = vpop.f32.mrf.mxu0
      %v1942 = vadd.f32 %v1662, %v1941
      %1943 = vmatprep.mubr.bf16.mxu0 0
      %1944 = vmatmul.mubr.bf16.gmra.mxu0 %v1899
      %v1945 = vpop.f32.mrf.mxu0
      %v1946 = vadd.f32 %v1658, %v1945
      %v1947 = vpop.f32.mrf.mxu0
      %v1948 = vadd.f32 %v1662, %v1947
      %v1949 = vpop.f32.mrf.mxu0
      %v1950 = vpop.f32.mrf.mxu0
      %1951 = vdwg.mxu0
      %1952 = vmatprep.subr.bf16.mxu0 0
      %1953 = vmatpush1.bf16.msra.mxu0 0
      %1954 = vmatprep.subr.bf16.mxu0 0
      %1955 = vmatpush1.bf16.msra.mxu0 0
      %1956 = vmatprep.subr.bf16.mxu0 0
      %1957 = vmatpush1.bf16.msra.mxu0 0
      %1958 = vmatprep.subr.bf16.mxu0 0
      %1959 = vmatpush1.bf16.msra.mxu0 0
      %1960 = vmatprep.subr.bf16.mxu0 0
      %1961 = vmatpush1.bf16.msra.mxu0 0
      %1962 = vmatprep.subr.bf16.mxu0 0
      %1963 = vmatpush1.bf16.msra.mxu0 0
      %1964 = vmatprep.subr.bf16.mxu0 %v1850
      %1965 = vmatpush1.bf16.msra.mxu0 %v1849
      %1966 = vmatprep.subr.bf16.mxu0 %v1834
      %1967 = vmatpush1.bf16.msra.mxu0 %v1833
      %1968 = vmatprep.subr.bf16.mxu0 0
      %1969 = vmatpush2.bf16.msra.mxu0 0
      %1970 = vmatprep.subr.bf16.mxu0 0
      %1971 = vmatpush2.bf16.msra.mxu0 0
      %1972 = vmatprep.subr.bf16.mxu0 0
      %1973 = vmatpush2.bf16.msra.mxu0 0
      %1974 = vmatprep.subr.bf16.mxu0 0
      %1975 = vmatpush2.bf16.msra.mxu0 0
      %1976 = vmatprep.subr.bf16.mxu0 0
      %1977 = vmatpush2.bf16.msra.mxu0 0
      %1978 = vmatprep.subr.bf16.mxu0 0
      %1979 = vmatpush2.bf16.msra.mxu0 0
      %1980 = vmatprep.subr.bf16.mxu0 0
      %1981 = vmatpush2.bf16.msra.mxu0 0
      %1982 = vmatprep.subr.bf16.mxu0 0
      %1983 = vmatpush2.bf16.msra.mxu0 0
      %1984 = vmatprep.mubr.bf16.mxu0 0
      %1985 = vmatmul.mubr.bf16.gmra.mxu0 %v1896
      %v1986 = vpop.f32.mrf.mxu0
      %v1987 = vadd.f32 %v1666, %v1986
      %v1988 = vpop.f32.mrf.mxu0
      %v1989 = vadd.f32 %v1670, %v1988
      %v1990 = vpop.f32.mrf.mxu0
      %v1991 = vadd.f32 %v1666, %v1990
      %v1992 = vpop.f32.mrf.mxu0
      %v1993 = vadd.f32 %v1670, %v1992
      %1994 = vmatprep.mubr.bf16.mxu0 0
      %1995 = vmatmul.mubr.bf16.gmra.mxu0 %v1899
      %v1996 = vpop.f32.mrf.mxu0
      %v1997 = vadd.f32 %v1666, %v1996
      %v1998 = vpop.f32.mrf.mxu0
      %v1999 = vadd.f32 %v1670, %v1998
      %v2000 = vpop.f32.mrf.mxu0
      %v2001 = vpop.f32.mrf.mxu0
      %2002 = vdwg.mxu0
      %2003 = vmatprep.subr.bf16.mxu0 0
      %2004 = vmatpush1.bf16.msra.mxu0 0
      %2005 = vmatprep.subr.bf16.mxu0 0
      %2006 = vmatpush1.bf16.msra.mxu0 0
      %2007 = vmatprep.subr.bf16.mxu0 0
      %2008 = vmatpush1.bf16.msra.mxu0 0
      %2009 = vmatprep.subr.bf16.mxu0 0
      %2010 = vmatpush1.bf16.msra.mxu0 0
      %2011 = vmatprep.subr.bf16.mxu0 0
      %2012 = vmatpush1.bf16.msra.mxu0 0
      %2013 = vmatprep.subr.bf16.mxu0 0
      %2014 = vmatpush1.bf16.msra.mxu0 0
      %2015 = vmatprep.subr.bf16.mxu0 %v1852
      %2016 = vmatpush1.bf16.msra.mxu0 %v1851
      %2017 = vmatprep.subr.bf16.mxu0 %v1836
      %2018 = vmatpush1.bf16.msra.mxu0 %v1835
      %2019 = vmatprep.subr.bf16.mxu0 0
      %2020 = vmatpush2.bf16.msra.mxu0 0
      %2021 = vmatprep.subr.bf16.mxu0 0
      %2022 = vmatpush2.bf16.msra.mxu0 0
      %2023 = vmatprep.subr.bf16.mxu0 0
      %2024 = vmatpush2.bf16.msra.mxu0 0
      %2025 = vmatprep.subr.bf16.mxu0 0
      %2026 = vmatpush2.bf16.msra.mxu0 0
      %2027 = vmatprep.subr.bf16.mxu0 0
      %2028 = vmatpush2.bf16.msra.mxu0 0
      %2029 = vmatprep.subr.bf16.mxu0 0
      %2030 = vmatpush2.bf16.msra.mxu0 0
      %2031 = vmatprep.subr.bf16.mxu0 0
      %2032 = vmatpush2.bf16.msra.mxu0 0
      %2033 = vmatprep.subr.bf16.mxu0 0
      %2034 = vmatpush2.bf16.msra.mxu0 0
      %2035 = vmatprep.mubr.bf16.mxu0 0
      %2036 = vmatmul.mubr.bf16.gmra.mxu0 %v1896
      %v2037 = vpop.f32.mrf.mxu0
      %v2038 = vadd.f32 %v1674, %v2037
      %v2039 = vpop.f32.mrf.mxu0
      %v2040 = vadd.f32 %v1678, %v2039
      %v2041 = vpop.f32.mrf.mxu0
      %v2042 = vadd.f32 %v1674, %v2041
      %v2043 = vpop.f32.mrf.mxu0
      %v2044 = vadd.f32 %v1678, %v2043
      %2045 = vmatprep.mubr.bf16.mxu0 0
      %2046 = vmatmul.mubr.bf16.gmra.mxu0 %v1899
      %v2047 = vpop.f32.mrf.mxu0
      %v2048 = vadd.f32 %v1674, %v2047
      %v2049 = vpop.f32.mrf.mxu0
      %v2050 = vadd.f32 %v1678, %v2049
      %v2051 = vpop.f32.mrf.mxu0
      %v2052 = vpop.f32.mrf.mxu0
      %2053 = vdwg.mxu0
      %2054 = vmatprep.subr.bf16.mxu0 0
      %2055 = vmatpush1.bf16.msra.mxu0 0
      %2056 = vmatprep.subr.bf16.mxu0 0
      %2057 = vmatpush1.bf16.msra.mxu0 0
      %2058 = vmatprep.subr.bf16.mxu0 0
      %2059 = vmatpush1.bf16.msra.mxu0 0
      %2060 = vmatprep.subr.bf16.mxu0 0
      %2061 = vmatpush1.bf16.msra.mxu0 0
      %2062 = vmatprep.subr.bf16.mxu0 0
      %2063 = vmatpush1.bf16.msra.mxu0 0
      %2064 = vmatprep.subr.bf16.mxu0 0
      %2065 = vmatpush1.bf16.msra.mxu0 0
      %2066 = vmatprep.subr.bf16.mxu0 %v1854
      %2067 = vmatpush1.bf16.msra.mxu0 %v1853
      %2068 = vmatprep.subr.bf16.mxu0 %v1838
      %2069 = vmatpush1.bf16.msra.mxu0 %v1837
      %2070 = vmatprep.subr.bf16.mxu0 0
      %2071 = vmatpush2.bf16.msra.mxu0 0
      %2072 = vmatprep.subr.bf16.mxu0 0
      %2073 = vmatpush2.bf16.msra.mxu0 0
      %2074 = vmatprep.subr.bf16.mxu0 0
      %2075 = vmatpush2.bf16.msra.mxu0 0
      %2076 = vmatprep.subr.bf16.mxu0 0
      %2077 = vmatpush2.bf16.msra.mxu0 0
      %2078 = vmatprep.subr.bf16.mxu0 0
      %2079 = vmatpush2.bf16.msra.mxu0 0
      %2080 = vmatprep.subr.bf16.mxu0 0
      %2081 = vmatpush2.bf16.msra.mxu0 0
      %2082 = vmatprep.subr.bf16.mxu0 0
      %2083 = vmatpush2.bf16.msra.mxu0 0
      %2084 = vmatprep.subr.bf16.mxu0 0
      %2085 = vmatpush2.bf16.msra.mxu0 0
      %2086 = vmatprep.mubr.bf16.mxu0 0
      %2087 = vmatmul.mubr.bf16.gmra.mxu0 %v1896
      %v2088 = vpop.f32.mrf.mxu0
      %v2089 = vadd.f32 %v1682, %v2088
      %v2090 = vpop.f32.mrf.mxu0
      %v2091 = vadd.f32 %v1686, %v2090
      %v2092 = vpop.f32.mrf.mxu0
      %v2093 = vadd.f32 %v1682, %v2092
      %v2094 = vpop.f32.mrf.mxu0
      %v2095 = vadd.f32 %v1686, %v2094
      %2096 = vmatprep.mubr.bf16.mxu0 0
      %2097 = vmatmul.mubr.bf16.gmra.mxu0 %v1899
      %v2098 = vpop.f32.mrf.mxu0
      %v2099 = vadd.f32 %v1682, %v2098
      %v2100 = vpop.f32.mrf.mxu0
      %v2101 = vadd.f32 %v1686, %v2100
      %v2102 = vpop.f32.mrf.mxu0
      %v2103 = vpop.f32.mrf.mxu0
      %2104 = vdwg.mxu0
      %2105 = vmatprep.subr.bf16.mxu0 0
      %2106 = vmatpush1.bf16.msra.mxu0 0
      %2107 = vmatprep.subr.bf16.mxu0 0
      %2108 = vmatpush1.bf16.msra.mxu0 0
      %2109 = vmatprep.subr.bf16.mxu0 0
      %2110 = vmatpush1.bf16.msra.mxu0 0
      %2111 = vmatprep.subr.bf16.mxu0 0
      %2112 = vmatpush1.bf16.msra.mxu0 0
      %2113 = vmatprep.subr.bf16.mxu0 0
      %2114 = vmatpush1.bf16.msra.mxu0 0
      %2115 = vmatprep.subr.bf16.mxu0 0
      %2116 = vmatpush1.bf16.msra.mxu0 0
      %2117 = vmatprep.subr.bf16.mxu0 %v1856
      %2118 = vmatpush1.bf16.msra.mxu0 %v1855
      %2119 = vmatprep.subr.bf16.mxu0 %v1840
      %2120 = vmatpush1.bf16.msra.mxu0 %v1839
      %2121 = vmatprep.subr.bf16.mxu0 0
      %2122 = vmatpush2.bf16.msra.mxu0 0
      %2123 = vmatprep.subr.bf16.mxu0 0
      %2124 = vmatpush2.bf16.msra.mxu0 0
      %2125 = vmatprep.subr.bf16.mxu0 0
      %2126 = vmatpush2.bf16.msra.mxu0 0
      %2127 = vmatprep.subr.bf16.mxu0 0
      %2128 = vmatpush2.bf16.msra.mxu0 0
      %2129 = vmatprep.subr.bf16.mxu0 0
      %2130 = vmatpush2.bf16.msra.mxu0 0
      %2131 = vmatprep.subr.bf16.mxu0 0
      %2132 = vmatpush2.bf16.msra.mxu0 0
      %2133 = vmatprep.subr.bf16.mxu0 0
      %2134 = vmatpush2.bf16.msra.mxu0 0
      %2135 = vmatprep.subr.bf16.mxu0 0
      %2136 = vmatpush2.bf16.msra.mxu0 0
      %2137 = vmatprep.mubr.bf16.mxu0 0
      %2138 = vmatmul.mubr.bf16.gmra.mxu0 %v1896
      %v2139 = vpop.f32.mrf.mxu0
      %v2140 = vadd.f32 %v1690, %v2139
      %v2141 = vpop.f32.mrf.mxu0
      %v2142 = vadd.f32 %v1694, %v2141
      %v2143 = vpop.f32.mrf.mxu0
      %v2144 = vadd.f32 %v1690, %v2143
      %v2145 = vpop.f32.mrf.mxu0
      %v2146 = vadd.f32 %v1694, %v2145
      %2147 = vmatprep.mubr.bf16.mxu0 0
      %2148 = vmatmul.mubr.bf16.gmra.mxu0 %v1899
      %v2149 = vpop.f32.mrf.mxu0
      %v2150 = vadd.f32 %v1690, %v2149
      %v2151 = vpop.f32.mrf.mxu0
      %v2152 = vadd.f32 %v1694, %v2151
      %v2153 = vpop.f32.mrf.mxu0
      %v2154 = vpop.f32.mrf.mxu0
      %2155 = vdwg.mxu0
      %2156 = vmatprep.subr.bf16.mxu0 0
      %2157 = vmatpush1.bf16.msra.mxu0 0
      %2158 = vmatprep.subr.bf16.mxu0 0
      %2159 = vmatpush1.bf16.msra.mxu0 0
      %2160 = vmatprep.subr.bf16.mxu0 0
      %2161 = vmatpush1.bf16.msra.mxu0 0
      %2162 = vmatprep.subr.bf16.mxu0 0
      %2163 = vmatpush1.bf16.msra.mxu0 0
      %2164 = vmatprep.subr.bf16.mxu0 0
      %2165 = vmatpush1.bf16.msra.mxu0 0
      %2166 = vmatprep.subr.bf16.mxu0 0
      %2167 = vmatpush1.bf16.msra.mxu0 0
      %2168 = vmatprep.subr.bf16.mxu0 %v1858
      %2169 = vmatpush1.bf16.msra.mxu0 %v1857
      %2170 = vmatprep.subr.bf16.mxu0 %v1842
      %2171 = vmatpush1.bf16.msra.mxu0 %v1841
      %2172 = vmatprep.subr.bf16.mxu0 0
      %2173 = vmatpush2.bf16.msra.mxu0 0
      %2174 = vmatprep.subr.bf16.mxu0 0
      %2175 = vmatpush2.bf16.msra.mxu0 0
      %2176 = vmatprep.subr.bf16.mxu0 0
      %2177 = vmatpush2.bf16.msra.mxu0 0
      %2178 = vmatprep.subr.bf16.mxu0 0
      %2179 = vmatpush2.bf16.msra.mxu0 0
      %2180 = vmatprep.subr.bf16.mxu0 0
      %2181 = vmatpush2.bf16.msra.mxu0 0
      %2182 = vmatprep.subr.bf16.mxu0 0
      %2183 = vmatpush2.bf16.msra.mxu0 0
      %2184 = vmatprep.subr.bf16.mxu0 0
      %2185 = vmatpush2.bf16.msra.mxu0 0
      %2186 = vmatprep.subr.bf16.mxu0 0
      %2187 = vmatpush2.bf16.msra.mxu0 0
      %2188 = vmatprep.mubr.bf16.mxu0 0
      %2189 = vmatmul.mubr.bf16.gmra.mxu0 %v1896
      %v2190 = vpop.f32.mrf.mxu0
      %v2191 = vadd.f32 %v1698, %v2190
      %v2192 = vpop.f32.mrf.mxu0
      %v2193 = vadd.f32 %v1702, %v2192
      %v2194 = vpop.f32.mrf.mxu0
      %v2195 = vadd.f32 %v1698, %v2194
      %v2196 = vpop.f32.mrf.mxu0
      %v2197 = vadd.f32 %v1702, %v2196
      %2198 = vmatprep.mubr.bf16.mxu0 0
      %2199 = vmatmul.mubr.bf16.gmra.mxu0 %v1899
      %v2200 = vpop.f32.mrf.mxu0
      %v2201 = vadd.f32 %v1698, %v2200
      %v2202 = vpop.f32.mrf.mxu0
      %v2203 = vadd.f32 %v1702, %v2202
      %v2204 = vpop.f32.mrf.mxu0
      %v2205 = vpop.f32.mrf.mxu0
      %2206 = vdwg.mxu0
      %2207 = vmatprep.subr.bf16.mxu0 0
      %2208 = vmatpush1.bf16.msra.mxu0 0
      %2209 = vmatprep.subr.bf16.mxu0 0
      %2210 = vmatpush1.bf16.msra.mxu0 0
      %2211 = vmatprep.subr.bf16.mxu0 0
      %2212 = vmatpush1.bf16.msra.mxu0 0
      %2213 = vmatprep.subr.bf16.mxu0 0
      %2214 = vmatpush1.bf16.msra.mxu0 0
      %2215 = vmatprep.subr.bf16.mxu0 0
      %2216 = vmatpush1.bf16.msra.mxu0 0
      %2217 = vmatprep.subr.bf16.mxu0 0
      %2218 = vmatpush1.bf16.msra.mxu0 0
      %2219 = vmatprep.subr.bf16.mxu0 %v1860
      %2220 = vmatpush1.bf16.msra.mxu0 %v1859
      %2221 = vmatprep.subr.bf16.mxu0 %v1844
      %2222 = vmatpush1.bf16.msra.mxu0 %v1843
      %2223 = vmatprep.subr.bf16.mxu0 0
      %2224 = vmatpush2.bf16.msra.mxu0 0
      %2225 = vmatprep.subr.bf16.mxu0 0
      %2226 = vmatpush2.bf16.msra.mxu0 0
      %2227 = vmatprep.subr.bf16.mxu0 0
      %2228 = vmatpush2.bf16.msra.mxu0 0
      %2229 = vmatprep.subr.bf16.mxu0 0
      %2230 = vmatpush2.bf16.msra.mxu0 0
      %2231 = vmatprep.subr.bf16.mxu0 0
      %2232 = vmatpush2.bf16.msra.mxu0 0
      %2233 = vmatprep.subr.bf16.mxu0 0
      %2234 = vmatpush2.bf16.msra.mxu0 0
      %2235 = vmatprep.subr.bf16.mxu0 0
      %2236 = vmatpush2.bf16.msra.mxu0 0
      %2237 = vmatprep.subr.bf16.mxu0 0
      %2238 = vmatpush2.bf16.msra.mxu0 0
      %2239 = vmatprep.mubr.bf16.mxu0 0
      %2240 = vmatmul.mubr.bf16.gmra.mxu0 %v1896
      %v2241 = vpop.f32.mrf.mxu0
      %v2242 = vadd.f32 %v1706, %v2241
      %v2243 = vpop.f32.mrf.mxu0
      %v2244 = vadd.f32 %v1710, %v2243
      %v2245 = vpop.f32.mrf.mxu0
      %v2246 = vadd.f32 %v1706, %v2245
      %v2247 = vpop.f32.mrf.mxu0
      %v2248 = vadd.f32 %v1710, %v2247
      %2249 = vmatprep.mubr.bf16.mxu0 0
      %2250 = vmatmul.mubr.bf16.gmra.mxu0 %v1899
      %v2251 = vpop.f32.mrf.mxu0
      %v2252 = vadd.f32 %v1706, %v2251
      %v2253 = vpop.f32.mrf.mxu0
      %v2254 = vadd.f32 %v1710, %v2253
      %v2255 = vpop.f32.mrf.mxu0
      %v2256 = vpop.f32.mrf.mxu0
      %2257 = vdwg.mxu0
      %2258 = vmatprep.subr.bf16.mxu0 0
      %2259 = vmatpush1.bf16.msra.mxu0 0
      %2260 = vmatprep.subr.bf16.mxu0 0
      %2261 = vmatpush1.bf16.msra.mxu0 0
      %2262 = vmatprep.subr.bf16.mxu0 0
      %2263 = vmatpush1.bf16.msra.mxu0 0
      %2264 = vmatprep.subr.bf16.mxu0 0
      %2265 = vmatpush1.bf16.msra.mxu0 0
      %2266 = vmatprep.subr.bf16.mxu0 0
      %2267 = vmatpush1.bf16.msra.mxu0 0
      %2268 = vmatprep.subr.bf16.mxu0 0
      %2269 = vmatpush1.bf16.msra.mxu0 0
      %2270 = vmatprep.subr.bf16.mxu0 %v1862
      %2271 = vmatpush1.bf16.msra.mxu0 %v1861
      %2272 = vmatprep.subr.bf16.mxu0 %v1846
      %2273 = vmatpush1.bf16.msra.mxu0 %v1845
      %2274 = vmatprep.subr.bf16.mxu0 0
      %2275 = vmatpush2.bf16.msra.mxu0 0
      %2276 = vmatprep.subr.bf16.mxu0 0
      %2277 = vmatpush2.bf16.msra.mxu0 0
      %2278 = vmatprep.subr.bf16.mxu0 0
      %2279 = vmatpush2.bf16.msra.mxu0 0
      %2280 = vmatprep.subr.bf16.mxu0 0
      %2281 = vmatpush2.bf16.msra.mxu0 0
      %2282 = vmatprep.subr.bf16.mxu0 0
      %2283 = vmatpush2.bf16.msra.mxu0 0
      %2284 = vmatprep.subr.bf16.mxu0 0
      %2285 = vmatpush2.bf16.msra.mxu0 0
      %2286 = vmatprep.subr.bf16.mxu0 0
      %2287 = vmatpush2.bf16.msra.mxu0 0
      %2288 = vmatprep.subr.bf16.mxu0 0
      %2289 = vmatpush2.bf16.msra.mxu0 0
      %2290 = vmatprep.mubr.bf16.mxu0 0
      %2291 = vmatmul.mubr.bf16.gmra.mxu0 %v1896
      %v2292 = vpop.f32.mrf.mxu0
      %v2293 = vadd.f32 %v1714, %v2292
      %v2294 = vpop.f32.mrf.mxu0
      %v2295 = vadd.f32 %v1718, %v2294
      %v2296 = vpop.f32.mrf.mxu0
      %v2297 = vadd.f32 %v1714, %v2296
      %v2298 = vpop.f32.mrf.mxu0
      %v2299 = vadd.f32 %v1718, %v2298
      %2300 = vmatprep.mubr.bf16.mxu0 0
      %2301 = vmatmul.mubr.bf16.gmra.mxu0 %v1899
      %v2302 = vpop.f32.mrf.mxu0
      %v2303 = vadd.f32 %v1714, %v2302
      %v2304 = vpop.f32.mrf.mxu0
      %v2305 = vadd.f32 %v1718, %v2304
      %v2306 = vpop.f32.mrf.mxu0
      %v2307 = vpop.f32.mrf.mxu0
      %2308 = vdwg.mxu0
      %v2309 = vmax.f32 %v1936, 0.0
      %v2310 = vmax.f32 %v1938, 0.0
      %v2311 = vmax.f32 %v1987, 0.0
      %v2312 = vmax.f32 %v1989, 0.0
      %v2313 = vmax.f32 %v2038, 0.0
      %v2314 = vmax.f32 %v2040, 0.0
      %v2315 = vmax.f32 %v2089, 0.0
      %v2316 = vmax.f32 %v2091, 0.0
      %v2317 = vmax.f32 %v2140, 0.0
      %v2318 = vmax.f32 %v2142, 0.0
      %v2319 = vmax.f32 %v2191, 0.0
      %v2320 = vmax.f32 %v2193, 0.0
      %v2321 = vmax.f32 %v2242, 0.0
      %v2322 = vmax.f32 %v2244, 0.0
      %v2323 = vmax.f32 %v2293, 0.0
      %v2324 = vmax.f32 %v2295, 0.0
      %v2325 = vmax.f32 %v1940, 0.0
      %v2326 = vmax.f32 %v1942, 0.0
      %v2327 = vmax.f32 %v1991, 0.0
      %v2328 = vmax.f32 %v1993, 0.0
      %v2329 = vmax.f32 %v2042, 0.0
      %v2330 = vmax.f32 %v2044, 0.0
      %v2331 = vmax.f32 %v2093, 0.0
      %v2332 = vmax.f32 %v2095, 0.0
      %v2333 = vmax.f32 %v2144, 0.0
      %v2334 = vmax.f32 %v2146, 0.0
      %v2335 = vmax.f32 %v2195, 0.0
      %v2336 = vmax.f32 %v2197, 0.0
      %v2337 = vmax.f32 %v2246, 0.0
      %v2338 = vmax.f32 %v2248, 0.0
      %v2339 = vmax.f32 %v2297, 0.0
      %v2340 = vmax.f32 %v2299, 0.0
      %v2341 = vmax.f32 %v1946, 0.0
      %v2342 = vmax.f32 %v1948, 0.0
      %v2343 = vmax.f32 %v1997, 0.0
      %v2344 = vmax.f32 %v1999, 0.0
      %v2345 = vmax.f32 %v2048, 0.0
      %v2346 = vmax.f32 %v2050, 0.0
      %v2347 = vmax.f32 %v2099, 0.0
      %v2348 = vmax.f32 %v2101, 0.0
      %v2349 = vmax.f32 %v2150, 0.0
      %v2350 = vmax.f32 %v2152, 0.0
      %v2351 = vmax.f32 %v2201, 0.0
      %v2352 = vmax.f32 %v2203, 0.0
      %v2353 = vmax.f32 %v2252, 0.0
      %v2354 = vmax.f32 %v2254, 0.0
      %v2355 = vmax.f32 %v2303, 0.0
      %v2356 = vmax.f32 %v2305, 0.0
      %v2357 = vld [vmem:[%s13] sm:$0xf]
      %v2358 = vld [vmem:[%s13 + $0x4] sm:$0xf]
      %v2359 = vld [vmem:[%s13 + $0x8] sm:$0xf]
      %v2360 = vld [vmem:[%s13 + $0xc] sm:$0xf]
      %v2361 = vld [vmem:[%s13 + $0x10] sm:$0xf]
      %v2362 = vld [vmem:[%s13 + $0x14] sm:$0xf]
      %v2363 = vld [vmem:[%s13 + $0x18] sm:$0xf]
      %v2364 = vld [vmem:[%s13 + $0x1c] sm:$0xf]
      %v2365 = vld [vmem:[%s13 + $0x20] sm:$0xf]
      %v2366 = vld [vmem:[%s13 + $0x24] sm:$0xf]
      %v2367 = vld [vmem:[%s13 + $0x28] sm:$0xf]
      %v2368 = vld [vmem:[%s13 + $0x2c] sm:$0xf]
      %v2369 = vld [vmem:[%s13 + $0x30] sm:$0xf]
      %v2370 = vld [vmem:[%s13 + $0x34] sm:$0xf]
      %v2371 = vld [vmem:[%s13 + $0x38] sm:$0xf]
      %v2372 = vld [vmem:[%s13 + $0x3c] sm:$0xf]
      %v2373 = vld [vmem:[%s13 + $0x40] sm:$0xf]
      %v2374 = vld [vmem:[%s13 + $0x44] sm:$0xf]
      %v2375 = vld [vmem:[%s13 + $0x48] sm:$0xf]
      %v2376 = vld [vmem:[%s13 + $0x4c] sm:$0xf]
      %v2377 = vld [vmem:[%s13 + $0x50] sm:$0xf]
      %v2378 = vld [vmem:[%s13 + $0x54] sm:$0xf]
      %v2379 = vld [vmem:[%s13 + $0x58] sm:$0xf]
      %v2380 = vld [vmem:[%s13 + $0x5c] sm:$0xf]
      %v2381 = vld [vmem:[%s13 + $0x60] sm:$0xf]
      %v2382 = vld [vmem:[%s13 + $0x64] sm:$0xf]
      %v2383 = vld [vmem:[%s13 + $0x68] sm:$0xf]
      %v2384 = vld [vmem:[%s13 + $0x6c] sm:$0xf]
      %v2385 = vld [vmem:[%s13 + $0x70] sm:$0xf]
      %v2386 = vld [vmem:[%s13 + $0x74] sm:$0xf]
      %v2387 = vld [vmem:[%s13 + $0x78] sm:$0xf]
      %v2388 = vld [vmem:[%s13 + $0x7c] sm:$0xf]
      %v2389 = vld [vmem:[%s13 + $0x80] sm:$0xf]
      %v2390 = vld [vmem:[%s13 + $0x84] sm:$0xf]
      %v2391 = vld [vmem:[%s13 + $0x88] sm:$0xf]
      %v2392 = vld [vmem:[%s13 + $0x8c] sm:$0xf]
      %v2393 = vld [vmem:[%s13 + $0x90] sm:$0xf]
      %v2394 = vld [vmem:[%s13 + $0x94] sm:$0xf]
      %v2395 = vld [vmem:[%s13 + $0x98] sm:$0xf]
      %v2396 = vld [vmem:[%s13 + $0x9c] sm:$0xf]
      %v2397 = vld [vmem:[%s13 + $0xa0] sm:$0xf]
      %v2398 = vld [vmem:[%s13 + $0xa4] sm:$0xf]
      %v2399 = vld [vmem:[%s13 + $0xa8] sm:$0xf]
      %v2400 = vld [vmem:[%s13 + $0xac] sm:$0xf]
      %v2401 = vld [vmem:[%s13 + $0xb0] sm:$0xf]
      %v2402 = vld [vmem:[%s13 + $0xb4] sm:$0xf]
      %v2403 = vld [vmem:[%s13 + $0xb8] sm:$0xf]
      %v2404 = vld [vmem:[%s13 + $0xbc] sm:$0xf]
      %v2405 = vld [vmem:[%s13 + $0xc0] sm:$0xf]
      %v2406 = vld [vmem:[%s13 + $0xc4] sm:$0xf]
      %v2407 = vld [vmem:[%s13 + $0xc8] sm:$0xf]
      %v2408 = vld [vmem:[%s13 + $0xcc] sm:$0xf]
      %v2409 = vld [vmem:[%s13 + $0xd0] sm:$0xf]
      %v2410 = vld [vmem:[%s13 + $0xd4] sm:$0xf]
      %v2411 = vld [vmem:[%s13 + $0xd8] sm:$0xf]
      %v2412 = vld [vmem:[%s13 + $0xdc] sm:$0xf]
      %v2413 = vld [vmem:[%s13 + $0xe0] sm:$0xf]
      %v2414 = vld [vmem:[%s13 + $0xe4] sm:$0xf]
      %v2415 = vld [vmem:[%s13 + $0xe8] sm:$0xf]
      %v2416 = vld [vmem:[%s13 + $0xec] sm:$0xf]
      %v2417 = vld [vmem:[%s13 + $0xf0] sm:$0xf]
      %v2418 = vld [vmem:[%s13 + $0xf4] sm:$0xf]
      %v2419 = vld [vmem:[%s13 + $0xf8] sm:$0xf]
      %v2420 = vld [vmem:[%s13 + $0xfc] sm:$0xf]
      %v2421 = vld [vmem:[%s13 + $0x100] sm:$0xf]
      %v2422 = vld [vmem:[%s13 + $0x104] sm:$0xf]
      %v2423 = vld [vmem:[%s13 + $0x108] sm:$0xf]
      %v2424 = vld [vmem:[%s13 + $0x10c] sm:$0xf]
      %v2425 = vld [vmem:[%s13 + $0x110] sm:$0xf]
      %v2426 = vld [vmem:[%s13 + $0x114] sm:$0xf]
      %v2427 = vld [vmem:[%s13 + $0x118] sm:$0xf]
      %v2428 = vld [vmem:[%s13 + $0x11c] sm:$0xf]
      %v2429 = vld [vmem:[%s13 + $0x120] sm:$0xf]
      %v2430 = vld [vmem:[%s13 + $0x124] sm:$0xf]
      %v2431 = vld [vmem:[%s13 + $0x128] sm:$0xf]
      %v2432 = vld [vmem:[%s13 + $0x12c] sm:$0xf]
      %v2433 = vld [vmem:[%s13 + $0x130] sm:$0xf]
      %v2434 = vld [vmem:[%s13 + $0x134] sm:$0xf]
      %v2435 = vld [vmem:[%s13 + $0x138] sm:$0xf]
      %v2436 = vld [vmem:[%s13 + $0x13c] sm:$0xf]
      %v2437 = vld [vmem:[%s13 + $0x140] sm:$0xf]
      %v2438 = vld [vmem:[%s13 + $0x144] sm:$0xf]
      %v2439 = vld [vmem:[%s13 + $0x148] sm:$0xf]
      %v2440 = vld [vmem:[%s13 + $0x14c] sm:$0xf]
      %v2441 = vld [vmem:[%s13 + $0x150] sm:$0xf]
      %v2442 = vld [vmem:[%s13 + $0x154] sm:$0xf]
      %v2443 = vld [vmem:[%s13 + $0x158] sm:$0xf]
      %v2444 = vld [vmem:[%s13 + $0x15c] sm:$0xf]
      %v2445 = vld [vmem:[%s13 + $0x160] sm:$0xf]
      %v2446 = vld [vmem:[%s13 + $0x164] sm:$0xf]
      %v2447 = vld [vmem:[%s13 + $0x168] sm:$0xf]
      %v2448 = vld [vmem:[%s13 + $0x16c] sm:$0xf]
      %v2449 = vld [vmem:[%s13 + $0x170] sm:$0xf]
      %v2450 = vld [vmem:[%s13 + $0x174] sm:$0xf]
      %v2451 = vld [vmem:[%s13 + $0x178] sm:$0xf]
      %v2452 = vld [vmem:[%s13 + $0x17c] sm:$0xf]
      %v2453 = vld [vmem:[%s13 + $0x180] sm:$0xf]
      %v2454 = vld [vmem:[%s13 + $0x184] sm:$0xf]
      %v2455 = vld [vmem:[%s13 + $0x188] sm:$0xf]
      %v2456 = vld [vmem:[%s13 + $0x18c] sm:$0xf]
      %v2457 = vld [vmem:[%s13 + $0x190] sm:$0xf]
      %v2458 = vld [vmem:[%s13 + $0x194] sm:$0xf]
      %v2459 = vld [vmem:[%s13 + $0x198] sm:$0xf]
      %v2460 = vld [vmem:[%s13 + $0x19c] sm:$0xf]
      %v2461 = vld [vmem:[%s13 + $0x1a0] sm:$0xf]
      %v2462 = vld [vmem:[%s13 + $0x1a4] sm:$0xf]
      %v2463 = vld [vmem:[%s13 + $0x1a8] sm:$0xf]
      %v2464 = vld [vmem:[%s13 + $0x1ac] sm:$0xf]
      %v2465 = vld [vmem:[%s13 + $0x1b0] sm:$0xf]
      %v2466 = vld [vmem:[%s13 + $0x1b4] sm:$0xf]
      %v2467 = vld [vmem:[%s13 + $0x1b8] sm:$0xf]
      %v2468 = vld [vmem:[%s13 + $0x1bc] sm:$0xf]
      %v2469 = vld [vmem:[%s13 + $0x1c0] sm:$0xf]
      %v2470 = vld [vmem:[%s13 + $0x1c4] sm:$0xf]
      %v2471 = vld [vmem:[%s13 + $0x1c8] sm:$0xf]
      %v2472 = vld [vmem:[%s13 + $0x1cc] sm:$0xf]
      %v2473 = vld [vmem:[%s13 + $0x1d0] sm:$0xf]
      %v2474 = vld [vmem:[%s13 + $0x1d4] sm:$0xf]
      %v2475 = vld [vmem:[%s13 + $0x1d8] sm:$0xf]
      %v2476 = vld [vmem:[%s13 + $0x1dc] sm:$0xf]
      %v2477 = vld [vmem:[%s13 + $0x1e0] sm:$0xf]
      %v2478 = vld [vmem:[%s13 + $0x1e4] sm:$0xf]
      %v2479 = vld [vmem:[%s13 + $0x1e8] sm:$0xf]
      %v2480 = vld [vmem:[%s13 + $0x1ec] sm:$0xf]
      %v2481 = vld [vmem:[%s13 + $0x1f0] sm:$0xf]
      %v2482 = vld [vmem:[%s13 + $0x1f4] sm:$0xf]
      %v2483 = vld [vmem:[%s13 + $0x1f8] sm:$0xf]
      %v2484 = vld [vmem:[%s13 + $0x1fc] sm:$0xf]
      %v2485 = vld [vmem:[%s13 + $0x200] sm:$0xf]
      %v2486 = vld [vmem:[%s13 + $0x204] sm:$0xf]
      %v2487 = vld [vmem:[%s13 + $0x208] sm:$0xf]
      %v2488 = vld [vmem:[%s13 + $0x20c] sm:$0xf]
      %v2489 = vld [vmem:[%s13 + $0x210] sm:$0xf]
      %v2490 = vld [vmem:[%s13 + $0x214] sm:$0xf]
      %v2491 = vld [vmem:[%s13 + $0x218] sm:$0xf]
      %v2492 = vld [vmem:[%s13 + $0x21c] sm:$0xf]
      %v2493 = vld [vmem:[%s13 + $0x220] sm:$0xf]
      %v2494 = vld [vmem:[%s13 + $0x224] sm:$0xf]
      %v2495 = vld [vmem:[%s13 + $0x228] sm:$0xf]
      %v2496 = vld [vmem:[%s13 + $0x22c] sm:$0xf]
      %v2497 = vld [vmem:[%s13 + $0x230] sm:$0xf]
      %v2498 = vld [vmem:[%s13 + $0x234] sm:$0xf]
      %v2499 = vld [vmem:[%s13 + $0x238] sm:$0xf]
      %v2500 = vld [vmem:[%s13 + $0x23c] sm:$0xf]
      %v2501 = vld [vmem:[%s13 + $0x240] sm:$0xf]
      %v2502 = vld [vmem:[%s13 + $0x244] sm:$0xf]
      %v2503 = vld [vmem:[%s13 + $0x248] sm:$0xf]
      %v2504 = vld [vmem:[%s13 + $0x24c] sm:$0xf]
      %v2505 = vld [vmem:[%s13 + $0x250] sm:$0xf]
      %v2506 = vld [vmem:[%s13 + $0x254] sm:$0xf]
      %v2507 = vld [vmem:[%s13 + $0x258] sm:$0xf]
      %v2508 = vld [vmem:[%s13 + $0x25c] sm:$0xf]
      %v2509 = vld [vmem:[%s13 + $0x260] sm:$0xf]
      %v2510 = vld [vmem:[%s13 + $0x264] sm:$0xf]
      %v2511 = vld [vmem:[%s13 + $0x268] sm:$0xf]
      %v2512 = vld [vmem:[%s13 + $0x26c] sm:$0xf]
      %v2513 = vld [vmem:[%s13 + $0x270] sm:$0xf]
      %v2514 = vld [vmem:[%s13 + $0x274] sm:$0xf]
      %v2515 = vld [vmem:[%s13 + $0x278] sm:$0xf]
      %v2516 = vld [vmem:[%s13 + $0x27c] sm:$0xf]
      %v2517 = vld [vmem:[%s13 + $0x280] sm:$0xf]
      %v2518 = vld [vmem:[%s13 + $0x284] sm:$0xf]
      %v2519 = vld [vmem:[%s13 + $0x288] sm:$0xf]
      %v2520 = vld [vmem:[%s13 + $0x28c] sm:$0xf]
      %v2521 = vld [vmem:[%s13 + $0x290] sm:$0xf]
      %v2522 = vld [vmem:[%s13 + $0x294] sm:$0xf]
      %v2523 = vld [vmem:[%s13 + $0x298] sm:$0xf]
      %v2524 = vld [vmem:[%s13 + $0x29c] sm:$0xf]
      %v2525 = vld [vmem:[%s13 + $0x2a0] sm:$0xf]
      %v2526 = vld [vmem:[%s13 + $0x2a4] sm:$0xf]
      %v2527 = vld [vmem:[%s13 + $0x2a8] sm:$0xf]
      %v2528 = vld [vmem:[%s13 + $0x2ac] sm:$0xf]
      %v2529 = vld [vmem:[%s13 + $0x2b0] sm:$0xf]
      %v2530 = vld [vmem:[%s13 + $0x2b4] sm:$0xf]
      %v2531 = vld [vmem:[%s13 + $0x2b8] sm:$0xf]
      %v2532 = vld [vmem:[%s13 + $0x2bc] sm:$0xf]
      %v2533 = vld [vmem:[%s13 + $0x2c0] sm:$0xf]
      %v2534 = vld [vmem:[%s13 + $0x2c4] sm:$0xf]
      %v2535 = vld [vmem:[%s13 + $0x2c8] sm:$0xf]
      %v2536 = vld [vmem:[%s13 + $0x2cc] sm:$0xf]
      %v2537 = vld [vmem:[%s13 + $0x2d0] sm:$0xf]
      %v2538 = vld [vmem:[%s13 + $0x2d4] sm:$0xf]
      %v2539 = vld [vmem:[%s13 + $0x2d8] sm:$0xf]
      %v2540 = vld [vmem:[%s13 + $0x2dc] sm:$0xf]
      %v2541 = vld [vmem:[%s13 + $0x2e0] sm:$0xf]
      %v2542 = vld [vmem:[%s13 + $0x2e4] sm:$0xf]
      %v2543 = vld [vmem:[%s13 + $0x2e8] sm:$0xf]
      %v2544 = vld [vmem:[%s13 + $0x2ec] sm:$0xf]
      %v2545 = vld [vmem:[%s13 + $0x2f0] sm:$0xf]
      %v2546 = vld [vmem:[%s13 + $0x2f4] sm:$0xf]
      %v2547 = vld [vmem:[%s13 + $0x2f8] sm:$0xf]
      %v2548 = vld [vmem:[%s13 + $0x2fc] sm:$0xf]
      %v2549 = vld [vmem:[%s13 + $0x300] sm:$0xf]
      %v2550 = vld [vmem:[%s13 + $0x304] sm:$0xf]
      %v2551 = vld [vmem:[%s13 + $0x308] sm:$0xf]
      %v2552 = vld [vmem:[%s13 + $0x30c] sm:$0xf]
      %v2553 = vld [vmem:[%s13 + $0x310] sm:$0xf]
      %v2554 = vld [vmem:[%s13 + $0x314] sm:$0xf]
      %v2555 = vld [vmem:[%s13 + $0x318] sm:$0xf]
      %v2556 = vld [vmem:[%s13 + $0x31c] sm:$0xf]
      %v2557 = vld [vmem:[%s13 + $0x320] sm:$0xf]
      %v2558 = vld [vmem:[%s13 + $0x324] sm:$0xf]
      %v2559 = vld [vmem:[%s13 + $0x328] sm:$0xf]
      %v2560 = vld [vmem:[%s13 + $0x32c] sm:$0xf]
      %v2561 = vld [vmem:[%s13 + $0x330] sm:$0xf]
      %v2562 = vld [vmem:[%s13 + $0x334] sm:$0xf]
      %v2563 = vld [vmem:[%s13 + $0x338] sm:$0xf]
      %v2564 = vld [vmem:[%s13 + $0x33c] sm:$0xf]
      %v2565 = vld [vmem:[%s13 + $0x340] sm:$0xf]
      %v2566 = vld [vmem:[%s13 + $0x344] sm:$0xf]
      %v2567 = vld [vmem:[%s13 + $0x348] sm:$0xf]
      %v2568 = vld [vmem:[%s13 + $0x34c] sm:$0xf]
      %v2569 = vld [vmem:[%s13 + $0x350] sm:$0xf]
      %v2570 = vld [vmem:[%s13 + $0x354] sm:$0xf]
      %v2571 = vld [vmem:[%s13 + $0x358] sm:$0xf]
      %v2572 = vld [vmem:[%s13 + $0x35c] sm:$0xf]
      %v2573 = vld [vmem:[%s13 + $0x360] sm:$0xf]
      %v2574 = vld [vmem:[%s13 + $0x364] sm:$0xf]
      %v2575 = vld [vmem:[%s13 + $0x368] sm:$0xf]
      %v2576 = vld [vmem:[%s13 + $0x36c] sm:$0xf]
      %v2577 = vld [vmem:[%s13 + $0x370] sm:$0xf]
      %v2578 = vld [vmem:[%s13 + $0x374] sm:$0xf]
      %v2579 = vld [vmem:[%s13 + $0x378] sm:$0xf]
      %v2580 = vld [vmem:[%s13 + $0x37c] sm:$0xf]
      %v2581 = vld [vmem:[%s13 + $0x380] sm:$0xf]
      %v2582 = vld [vmem:[%s13 + $0x384] sm:$0xf]
      %v2583 = vld [vmem:[%s13 + $0x388] sm:$0xf]
      %v2584 = vld [vmem:[%s13 + $0x38c] sm:$0xf]
      %v2585 = vld [vmem:[%s13 + $0x390] sm:$0xf]
      %v2586 = vld [vmem:[%s13 + $0x394] sm:$0xf]
      %v2587 = vld [vmem:[%s13 + $0x398] sm:$0xf]
      %v2588 = vld [vmem:[%s13 + $0x39c] sm:$0xf]
      %v2589 = vld [vmem:[%s13 + $0x3a0] sm:$0xf]
      %v2590 = vld [vmem:[%s13 + $0x3a4] sm:$0xf]
      %v2591 = vld [vmem:[%s13 + $0x3a8] sm:$0xf]
      %v2592 = vld [vmem:[%s13 + $0x3ac] sm:$0xf]
      %v2593 = vld [vmem:[%s13 + $0x3b0] sm:$0xf]
      %v2594 = vld [vmem:[%s13 + $0x3b4] sm:$0xf]
      %v2595 = vld [vmem:[%s13 + $0x3b8] sm:$0xf]
      %v2596 = vld [vmem:[%s13 + $0x3bc] sm:$0xf]
      %v2597 = vld [vmem:[%s13 + $0x3c0] sm:$0xf]
      %v2598 = vld [vmem:[%s13 + $0x3c4] sm:$0xf]
      %v2599 = vld [vmem:[%s13 + $0x3c8] sm:$0xf]
      %v2600 = vld [vmem:[%s13 + $0x3cc] sm:$0xf]
      %v2601 = vld [vmem:[%s13 + $0x3d0] sm:$0xf]
      %v2602 = vld [vmem:[%s13 + $0x3d4] sm:$0xf]
      %v2603 = vld [vmem:[%s13 + $0x3d8] sm:$0xf]
      %v2604 = vld [vmem:[%s13 + $0x3dc] sm:$0xf]
      %v2605 = vld [vmem:[%s13 + $0x3e0] sm:$0xf]
      %v2606 = vld [vmem:[%s13 + $0x3e4] sm:$0xf]
      %v2607 = vld [vmem:[%s13 + $0x3e8] sm:$0xf]
      %v2608 = vld [vmem:[%s13 + $0x3ec] sm:$0xf]
      %v2609 = vld [vmem:[%s13 + $0x3f0] sm:$0xf]
      %v2610 = vld [vmem:[%s13 + $0x3f4] sm:$0xf]
      %v2611 = vld [vmem:[%s13 + $0x3f8] sm:$0xf]
      %v2612 = vld [vmem:[%s13 + $0x3fc] sm:$0xf]
      %v2613 = vpack.c.bf16 %v2325, %v2309
      %v2614 = vpack.c.bf16 %v2326, %v2310
      %v2615 = vpack.c.bf16 %v2327, %v2311
      %v2616 = vpack.c.bf16 %v2328, %v2312
      %v2617 = vpack.c.bf16 %v2329, %v2313
      %v2618 = vpack.c.bf16 %v2330, %v2314
      %v2619 = vpack.c.bf16 %v2331, %v2315
      %v2620 = vpack.c.bf16 %v2332, %v2316
      %v2621 = vpack.c.bf16 %v2333, %v2317
      %v2622 = vpack.c.bf16 %v2334, %v2318
      %v2623 = vpack.c.bf16 %v2335, %v2319
      %v2624 = vpack.c.bf16 %v2336, %v2320
      %v2625 = vpack.c.bf16 %v2337, %v2321
      %v2626 = vpack.c.bf16 %v2338, %v2322
      %v2627 = vpack.c.bf16 %v2339, %v2323
      %v2628 = vpack.c.bf16 %v2340, %v2324
      %v2629 = vpack.c.bf16 %v2341, %v2341
      %v2630 = vpack.c.bf16 %v2342, %v2342
      %v2631 = vpack.c.bf16 %v2343, %v2343
      %v2632 = vpack.c.bf16 %v2344, %v2344
      %v2633 = vpack.c.bf16 %v2345, %v2345
      %v2634 = vpack.c.bf16 %v2346, %v2346
      %v2635 = vpack.c.bf16 %v2347, %v2347
      %v2636 = vpack.c.bf16 %v2348, %v2348
      %v2637 = vpack.c.bf16 %v2349, %v2349
      %v2638 = vpack.c.bf16 %v2350, %v2350
      %v2639 = vpack.c.bf16 %v2351, %v2351
      %v2640 = vpack.c.bf16 %v2352, %v2352
      %v2641 = vpack.c.bf16 %v2353, %v2353
      %v2642 = vpack.c.bf16 %v2354, %v2354
      %v2643 = vpack.c.bf16 %v2355, %v2355
      %v2644 = vpack.c.bf16 %v2356, %v2356
      %v2901 = vunpack.c.l.b16 %v2357
      %v2902 = vunpack.c.l.b16 %v2358
      %v2903 = vunpack.c.l.b16 %v2359
      %v2904 = vunpack.c.l.b16 %v2360
      %v2905 = vunpack.c.l.b16 %v2361
      %v2906 = vunpack.c.l.b16 %v2362
      %v2907 = vunpack.c.l.b16 %v2363
      %v2908 = vunpack.c.l.b16 %v2364
      %v2909 = vunpack.c.l.b16 %v2365
      %v2910 = vunpack.c.l.b16 %v2366
      %v2911 = vunpack.c.l.b16 %v2367
      %v2912 = vunpack.c.l.b16 %v2368
      %v2913 = vunpack.c.l.b16 %v2369
      %v2914 = vunpack.c.l.b16 %v2370
      %v2915 = vunpack.c.l.b16 %v2371
      %v2916 = vunpack.c.l.b16 %v2372
      %v2917 = vunpack.c.l.b16 %v2373
      %v2918 = vunpack.c.l.b16 %v2374
      %v2919 = vunpack.c.l.b16 %v2375
      %v2920 = vunpack.c.l.b16 %v2376
      %v2921 = vunpack.c.l.b16 %v2377
      %v2922 = vunpack.c.l.b16 %v2378
      %v2923 = vunpack.c.l.b16 %v2379
      %v2924 = vunpack.c.l.b16 %v2380
      %v2925 = vunpack.c.l.b16 %v2381
      %v2926 = vunpack.c.l.b16 %v2382
      %v2927 = vunpack.c.l.b16 %v2383
      %v2928 = vunpack.c.l.b16 %v2384
      %v2929 = vunpack.c.l.b16 %v2385
      %v2930 = vunpack.c.l.b16 %v2386
      %v2931 = vunpack.c.l.b16 %v2387
      %v2932 = vunpack.c.l.b16 %v2388
      %v2933 = vunpack.c.l.b16 %v2389
      %v2934 = vunpack.c.l.b16 %v2390
      %v2935 = vunpack.c.l.b16 %v2391
      %v2936 = vunpack.c.l.b16 %v2392
      %v2937 = vunpack.c.l.b16 %v2393
      %v2938 = vunpack.c.l.b16 %v2394
      %v2939 = vunpack.c.l.b16 %v2395
      %v2940 = vunpack.c.l.b16 %v2396
      %v2941 = vunpack.c.l.b16 %v2397
      %v2942 = vunpack.c.l.b16 %v2398
      %v2943 = vunpack.c.l.b16 %v2399
      %v2944 = vunpack.c.l.b16 %v2400
      %v2945 = vunpack.c.l.b16 %v2401
      %v2946 = vunpack.c.l.b16 %v2402
      %v2947 = vunpack.c.l.b16 %v2403
      %v2948 = vunpack.c.l.b16 %v2404
      %v2949 = vunpack.c.l.b16 %v2405
      %v2950 = vunpack.c.l.b16 %v2406
      %v2951 = vunpack.c.l.b16 %v2407
      %v2952 = vunpack.c.l.b16 %v2408
      %v2953 = vunpack.c.l.b16 %v2409
      %v2954 = vunpack.c.l.b16 %v2410
      %v2955 = vunpack.c.l.b16 %v2411
      %v2956 = vunpack.c.l.b16 %v2412
      %v2957 = vunpack.c.l.b16 %v2413
      %v2958 = vunpack.c.l.b16 %v2414
      %v2959 = vunpack.c.l.b16 %v2415
      %v2960 = vunpack.c.l.b16 %v2416
      %v2961 = vunpack.c.l.b16 %v2417
      %v2962 = vunpack.c.l.b16 %v2418
      %v2963 = vunpack.c.l.b16 %v2419
      %v2964 = vunpack.c.l.b16 %v2420
      %v2965 = vunpack.c.l.b16 %v2421
      %v2966 = vunpack.c.l.b16 %v2422
      %v2967 = vunpack.c.l.b16 %v2423
      %v2968 = vunpack.c.l.b16 %v2424
      %v2969 = vunpack.c.l.b16 %v2425
      %v2970 = vunpack.c.l.b16 %v2426
      %v2971 = vunpack.c.l.b16 %v2427
      %v2972 = vunpack.c.l.b16 %v2428
      %v2973 = vunpack.c.l.b16 %v2429
      %v2974 = vunpack.c.l.b16 %v2430
      %v2975 = vunpack.c.l.b16 %v2431
      %v2976 = vunpack.c.l.b16 %v2432
      %v2977 = vunpack.c.l.b16 %v2433
      %v2978 = vunpack.c.l.b16 %v2434
      %v2979 = vunpack.c.l.b16 %v2435
      %v2980 = vunpack.c.l.b16 %v2436
      %v2981 = vunpack.c.l.b16 %v2437
      %v2982 = vunpack.c.l.b16 %v2438
      %v2983 = vunpack.c.l.b16 %v2439
      %v2984 = vunpack.c.l.b16 %v2440
      %v2985 = vunpack.c.l.b16 %v2441
      %v2986 = vunpack.c.l.b16 %v2442
      %v2987 = vunpack.c.l.b16 %v2443
      %v2988 = vunpack.c.l.b16 %v2444
      %v2989 = vunpack.c.l.b16 %v2445
      %v2990 = vunpack.c.l.b16 %v2446
      %v2991 = vunpack.c.l.b16 %v2447
      %v2992 = vunpack.c.l.b16 %v2448
      %v2993 = vunpack.c.l.b16 %v2449
      %v2994 = vunpack.c.l.b16 %v2450
      %v2995 = vunpack.c.l.b16 %v2451
      %v2996 = vunpack.c.l.b16 %v2452
      %v2997 = vunpack.c.l.b16 %v2453
      %v2998 = vunpack.c.l.b16 %v2454
      %v2999 = vunpack.c.l.b16 %v2455
      %v3000 = vunpack.c.l.b16 %v2456
      %v3001 = vunpack.c.l.b16 %v2457
      %v3002 = vunpack.c.l.b16 %v2458
      %v3003 = vunpack.c.l.b16 %v2459
      %v3004 = vunpack.c.l.b16 %v2460
      %v3005 = vunpack.c.l.b16 %v2461
      %v3006 = vunpack.c.l.b16 %v2462
      %v3007 = vunpack.c.l.b16 %v2463
      %v3008 = vunpack.c.l.b16 %v2464
      %v3009 = vunpack.c.l.b16 %v2465
      %v3010 = vunpack.c.l.b16 %v2466
      %v3011 = vunpack.c.l.b16 %v2467
      %v3012 = vunpack.c.l.b16 %v2468
      %v3013 = vunpack.c.l.b16 %v2469
      %v3014 = vunpack.c.l.b16 %v2470
      %v3015 = vunpack.c.l.b16 %v2471
      %v3016 = vunpack.c.l.b16 %v2472
      %v3017 = vunpack.c.l.b16 %v2473
      %v3018 = vunpack.c.l.b16 %v2474
      %v3019 = vunpack.c.l.b16 %v2475
      %v3020 = vunpack.c.l.b16 %v2476
      %v3021 = vunpack.c.l.b16 %v2477
      %v3022 = vunpack.c.l.b16 %v2478
      %v3023 = vunpack.c.l.b16 %v2479
      %v3024 = vunpack.c.l.b16 %v2480
      %v3025 = vunpack.c.l.b16 %v2481
      %v3026 = vunpack.c.l.b16 %v2482
      %v3027 = vunpack.c.l.b16 %v2483
      %v3028 = vunpack.c.l.b16 %v2484
      %v3029 = vunpack.c.l.b16 %v2485
      %v3030 = vunpack.c.l.b16 %v2486
      %v3031 = vunpack.c.l.b16 %v2487
      %v3032 = vunpack.c.l.b16 %v2488
      %v3033 = vunpack.c.l.b16 %v2489
      %v3034 = vunpack.c.l.b16 %v2490
      %v3035 = vunpack.c.l.b16 %v2491
      %v3036 = vunpack.c.l.b16 %v2492
      %v3037 = vunpack.c.l.b16 %v2493
      %v3038 = vunpack.c.l.b16 %v2494
      %v3039 = vunpack.c.l.b16 %v2495
      %v3040 = vunpack.c.l.b16 %v2496
      %v3041 = vunpack.c.l.b16 %v2497
      %v3042 = vunpack.c.l.b16 %v2498
      %v3043 = vunpack.c.l.b16 %v2499
      %v3044 = vunpack.c.l.b16 %v2500
      %v3045 = vunpack.c.l.b16 %v2501
      %v3046 = vunpack.c.l.b16 %v2502
      %v3047 = vunpack.c.l.b16 %v2503
      %v3048 = vunpack.c.l.b16 %v2504
      %v3049 = vunpack.c.l.b16 %v2505
      %v3050 = vunpack.c.l.b16 %v2506
      %v3051 = vunpack.c.l.b16 %v2507
      %v3052 = vunpack.c.l.b16 %v2508
      %v3053 = vunpack.c.l.b16 %v2509
      %v3054 = vunpack.c.l.b16 %v2510
      %v3055 = vunpack.c.l.b16 %v2511
      %v3056 = vunpack.c.l.b16 %v2512
      %v3057 = vunpack.c.l.b16 %v2513
      %v3058 = vunpack.c.l.b16 %v2514
      %v3059 = vunpack.c.l.b16 %v2515
      %v3060 = vunpack.c.l.b16 %v2516
      %v3061 = vunpack.c.l.b16 %v2517
      %v3062 = vunpack.c.l.b16 %v2518
      %v3063 = vunpack.c.l.b16 %v2519
      %v3064 = vunpack.c.l.b16 %v2520
      %v3065 = vunpack.c.l.b16 %v2521
      %v3066 = vunpack.c.l.b16 %v2522
      %v3067 = vunpack.c.l.b16 %v2523
      %v3068 = vunpack.c.l.b16 %v2524
      %v3069 = vunpack.c.l.b16 %v2525
      %v3070 = vunpack.c.l.b16 %v2526
      %v3071 = vunpack.c.l.b16 %v2527
      %v3072 = vunpack.c.l.b16 %v2528
      %v3073 = vunpack.c.l.b16 %v2529
      %v3074 = vunpack.c.l.b16 %v2530
      %v3075 = vunpack.c.l.b16 %v2531
      %v3076 = vunpack.c.l.b16 %v2532
      %v3077 = vunpack.c.l.b16 %v2533
      %v3078 = vunpack.c.l.b16 %v2534
      %v3079 = vunpack.c.l.b16 %v2535
      %v3080 = vunpack.c.l.b16 %v2536
      %v3081 = vunpack.c.l.b16 %v2537
      %v3082 = vunpack.c.l.b16 %v2538
      %v3083 = vunpack.c.l.b16 %v2539
      %v3084 = vunpack.c.l.b16 %v2540
      %v3085 = vunpack.c.l.b16 %v2541
      %v3086 = vunpack.c.l.b16 %v2542
      %v3087 = vunpack.c.l.b16 %v2543
      %v3088 = vunpack.c.l.b16 %v2544
      %v3089 = vunpack.c.l.b16 %v2545
      %v3090 = vunpack.c.l.b16 %v2546
      %v3091 = vunpack.c.l.b16 %v2547
      %v3092 = vunpack.c.l.b16 %v2548
      %v3093 = vunpack.c.l.b16 %v2549
      %v3094 = vunpack.c.l.b16 %v2550
      %v3095 = vunpack.c.l.b16 %v2551
      %v3096 = vunpack.c.l.b16 %v2552
      %v3097 = vunpack.c.l.b16 %v2553
      %v3098 = vunpack.c.l.b16 %v2554
      %v3099 = vunpack.c.l.b16 %v2555
      %v3100 = vunpack.c.l.b16 %v2556
      %v3101 = vunpack.c.l.b16 %v2557
      %v3102 = vunpack.c.l.b16 %v2558
      %v3103 = vunpack.c.l.b16 %v2559
      %v3104 = vunpack.c.l.b16 %v2560
      %v3105 = vunpack.c.l.b16 %v2561
      %v3106 = vunpack.c.l.b16 %v2562
      %v3107 = vunpack.c.l.b16 %v2563
      %v3108 = vunpack.c.l.b16 %v2564
      %v3109 = vunpack.c.l.b16 %v2565
      %v3110 = vunpack.c.l.b16 %v2566
      %v3111 = vunpack.c.l.b16 %v2567
      %v3112 = vunpack.c.l.b16 %v2568
      %v3113 = vunpack.c.l.b16 %v2569
      %v3114 = vunpack.c.l.b16 %v2570
      %v3115 = vunpack.c.l.b16 %v2571
      %v3116 = vunpack.c.l.b16 %v2572
      %v3117 = vunpack.c.l.b16 %v2573
      %v3118 = vunpack.c.l.b16 %v2574
      %v3119 = vunpack.c.l.b16 %v2575
      %v3120 = vunpack.c.l.b16 %v2576
      %v3121 = vunpack.c.l.b16 %v2577
      %v3122 = vunpack.c.l.b16 %v2578
      %v3123 = vunpack.c.l.b16 %v2579
      %v3124 = vunpack.c.l.b16 %v2580
      %v3125 = vunpack.c.l.b16 %v2581
      %v3126 = vunpack.c.l.b16 %v2582
      %v3127 = vunpack.c.l.b16 %v2583
      %v3128 = vunpack.c.l.b16 %v2584
      %v3129 = vunpack.c.l.b16 %v2585
      %v3130 = vunpack.c.l.b16 %v2586
      %v3131 = vunpack.c.l.b16 %v2587
      %v3132 = vunpack.c.l.b16 %v2588
      %v3133 = vunpack.c.l.b16 %v2589
      %v3134 = vunpack.c.l.b16 %v2590
      %v3135 = vunpack.c.l.b16 %v2591
      %v3136 = vunpack.c.l.b16 %v2592
      %v3137 = vunpack.c.l.b16 %v2593
      %v3138 = vunpack.c.l.b16 %v2594
      %v3139 = vunpack.c.l.b16 %v2595
      %v3140 = vunpack.c.l.b16 %v2596
      %v3141 = vunpack.c.l.b16 %v2597
      %v3142 = vunpack.c.l.b16 %v2598
      %v3143 = vunpack.c.l.b16 %v2599
      %v3144 = vunpack.c.l.b16 %v2600
      %v3145 = vunpack.c.l.b16 %v2601
      %v3146 = vunpack.c.l.b16 %v2602
      %v3147 = vunpack.c.l.b16 %v2603
      %v3148 = vunpack.c.l.b16 %v2604
      %v3149 = vunpack.c.l.b16 %v2605
      %v3150 = vunpack.c.l.b16 %v2606
      %v3151 = vunpack.c.l.b16 %v2607
      %v3152 = vunpack.c.l.b16 %v2608
      %v3153 = vunpack.c.l.b16 %v2609
      %v3154 = vunpack.c.l.b16 %v2610
      %v3155 = vunpack.c.l.b16 %v2611
      %v3156 = vunpack.c.l.b16 %v2612
      %v3157 = vpack.c.b16 %v2902, %v2901
      %v3158 = vpack.c.b16 %v2904, %v2903
      %v3159 = vpack.c.b16 %v2906, %v2905
      %v3160 = vpack.c.b16 %v2908, %v2907
      %v3161 = vpack.c.b16 %v2910, %v2909
      %v3162 = vpack.c.b16 %v2912, %v2911
      %v3163 = vpack.c.b16 %v2914, %v2913
      %v3164 = vpack.c.b16 %v2916, %v2915
      %v3165 = vpack.c.b16 %v2918, %v2917
      %v3166 = vpack.c.b16 %v2920, %v2919
      %v3167 = vpack.c.b16 %v2922, %v2921
      %v3168 = vpack.c.b16 %v2924, %v2923
      %v3169 = vpack.c.b16 %v2926, %v2925
      %v3170 = vpack.c.b16 %v2928, %v2927
      %v3171 = vpack.c.b16 %v2930, %v2929
      %v3172 = vpack.c.b16 %v2932, %v2931
      %v3173 = vpack.c.b16 %v2934, %v2933
      %v3174 = vpack.c.b16 %v2936, %v2935
      %v3175 = vpack.c.b16 %v2938, %v2937
      %v3176 = vpack.c.b16 %v2940, %v2939
      %v3177 = vpack.c.b16 %v2942, %v2941
      %v3178 = vpack.c.b16 %v2944, %v2943
      %v3179 = vpack.c.b16 %v2946, %v2945
      %v3180 = vpack.c.b16 %v2948, %v2947
      %v3181 = vpack.c.b16 %v2950, %v2949
      %v3182 = vpack.c.b16 %v2952, %v2951
      %v3183 = vpack.c.b16 %v2954, %v2953
      %v3184 = vpack.c.b16 %v2956, %v2955
      %v3185 = vpack.c.b16 %v2958, %v2957
      %v3186 = vpack.c.b16 %v2960, %v2959
      %v3187 = vpack.c.b16 %v2962, %v2961
      %v3188 = vpack.c.b16 %v2964, %v2963
      %v3189 = vpack.c.b16 %v2966, %v2965
      %v3190 = vpack.c.b16 %v2968, %v2967
      %v3191 = vpack.c.b16 %v2970, %v2969
      %v3192 = vpack.c.b16 %v2972, %v2971
      %v3193 = vpack.c.b16 %v2974, %v2973
      %v3194 = vpack.c.b16 %v2976, %v2975
      %v3195 = vpack.c.b16 %v2978, %v2977
      %v3196 = vpack.c.b16 %v2980, %v2979
      %v3197 = vpack.c.b16 %v2982, %v2981
      %v3198 = vpack.c.b16 %v2984, %v2983
      %v3199 = vpack.c.b16 %v2986, %v2985
      %v3200 = vpack.c.b16 %v2988, %v2987
      %v3201 = vpack.c.b16 %v2990, %v2989
      %v3202 = vpack.c.b16 %v2992, %v2991
      %v3203 = vpack.c.b16 %v2994, %v2993
      %v3204 = vpack.c.b16 %v2996, %v2995
      %v3205 = vpack.c.b16 %v2998, %v2997
      %v3206 = vpack.c.b16 %v3000, %v2999
      %v3207 = vpack.c.b16 %v3002, %v3001
      %v3208 = vpack.c.b16 %v3004, %v3003
      %v3209 = vpack.c.b16 %v3006, %v3005
      %v3210 = vpack.c.b16 %v3008, %v3007
      %v3211 = vpack.c.b16 %v3010, %v3009
      %v3212 = vpack.c.b16 %v3012, %v3011
      %v3213 = vpack.c.b16 %v3014, %v3013
      %v3214 = vpack.c.b16 %v3016, %v3015
      %v3215 = vpack.c.b16 %v3018, %v3017
      %v3216 = vpack.c.b16 %v3020, %v3019
      %v3217 = vpack.c.b16 %v3022, %v3021
      %v3218 = vpack.c.b16 %v3024, %v3023
      %v3219 = vpack.c.b16 %v3026, %v3025
      %v3220 = vpack.c.b16 %v3028, %v3027
      %v3221 = vpack.c.b16 %v3030, %v3029
      %v3222 = vpack.c.b16 %v3032, %v3031
      %v3223 = vpack.c.b16 %v3034, %v3033
      %v3224 = vpack.c.b16 %v3036, %v3035
      %v3225 = vpack.c.b16 %v3038, %v3037
      %v3226 = vpack.c.b16 %v3040, %v3039
      %v3227 = vpack.c.b16 %v3042, %v3041
      %v3228 = vpack.c.b16 %v3044, %v3043
      %v3229 = vpack.c.b16 %v3046, %v3045
      %v3230 = vpack.c.b16 %v3048, %v3047
      %v3231 = vpack.c.b16 %v3050, %v3049
      %v3232 = vpack.c.b16 %v3052, %v3051
      %v3233 = vpack.c.b16 %v3054, %v3053
      %v3234 = vpack.c.b16 %v3056, %v3055
      %v3235 = vpack.c.b16 %v3058, %v3057
      %v3236 = vpack.c.b16 %v3060, %v3059
      %v3237 = vpack.c.b16 %v3062, %v3061
      %v3238 = vpack.c.b16 %v3064, %v3063
      %v3239 = vpack.c.b16 %v3066, %v3065
      %v3240 = vpack.c.b16 %v3068, %v3067
      %v3241 = vpack.c.b16 %v3070, %v3069
      %v3242 = vpack.c.b16 %v3072, %v3071
      %v3243 = vpack.c.b16 %v3074, %v3073
      %v3244 = vpack.c.b16 %v3076, %v3075
      %v3245 = vpack.c.b16 %v3078, %v3077
      %v3246 = vpack.c.b16 %v3080, %v3079
      %v3247 = vpack.c.b16 %v3082, %v3081
      %v3248 = vpack.c.b16 %v3084, %v3083
      %v3249 = vpack.c.b16 %v3086, %v3085
      %v3250 = vpack.c.b16 %v3088, %v3087
      %v3251 = vpack.c.b16 %v3090, %v3089
      %v3252 = vpack.c.b16 %v3092, %v3091
      %v3253 = vpack.c.b16 %v3094, %v3093
      %v3254 = vpack.c.b16 %v3096, %v3095
      %v3255 = vpack.c.b16 %v3098, %v3097
      %v3256 = vpack.c.b16 %v3100, %v3099
      %v3257 = vpack.c.b16 %v3102, %v3101
      %v3258 = vpack.c.b16 %v3104, %v3103
      %v3259 = vpack.c.b16 %v3106, %v3105
      %v3260 = vpack.c.b16 %v3108, %v3107
      %v3261 = vpack.c.b16 %v3110, %v3109
      %v3262 = vpack.c.b16 %v3112, %v3111
      %v3263 = vpack.c.b16 %v3114, %v3113
      %v3264 = vpack.c.b16 %v3116, %v3115
      %v3265 = vpack.c.b16 %v3118, %v3117
      %v3266 = vpack.c.b16 %v3120, %v3119
      %v3267 = vpack.c.b16 %v3122, %v3121
      %v3268 = vpack.c.b16 %v3124, %v3123
      %v3269 = vpack.c.b16 %v3126, %v3125
      %v3270 = vpack.c.b16 %v3128, %v3127
      %v3271 = vpack.c.b16 %v3130, %v3129
      %v3272 = vpack.c.b16 %v3132, %v3131
      %v3273 = vpack.c.b16 %v3134, %v3133
      %v3274 = vpack.c.b16 %v3136, %v3135
      %v3275 = vpack.c.b16 %v3138, %v3137
      %v3276 = vpack.c.b16 %v3140, %v3139
      %v3277 = vpack.c.b16 %v3142, %v3141
      %v3278 = vpack.c.b16 %v3144, %v3143
      %v3279 = vpack.c.b16 %v3146, %v3145
      %v3280 = vpack.c.b16 %v3148, %v3147
      %v3281 = vpack.c.b16 %v3150, %v3149
      %v3282 = vpack.c.b16 %v3152, %v3151
      %v3283 = vpack.c.b16 %v3154, %v3153
      %v3284 = vpack.c.b16 %v3156, %v3155
      %3413 = vmatprep.subr.bf16.mxu0 0
      %3414 = vmatpush1.bf16.msra.mxu0 %v3164
      %3415 = vmatprep.subr.bf16.mxu0 0
      %3416 = vmatpush1.bf16.msra.mxu0 %v3163
      %3417 = vmatprep.subr.bf16.mxu0 0
      %3418 = vmatpush1.bf16.msra.mxu0 %v3162
      %3419 = vmatprep.subr.bf16.mxu0 0
      %3420 = vmatpush1.bf16.msra.mxu0 %v3161
      %3421 = vmatprep.subr.bf16.mxu0 0
      %3422 = vmatpush1.bf16.msra.mxu0 %v3160
      %3423 = vmatprep.subr.bf16.mxu0 0
      %3424 = vmatpush1.bf16.msra.mxu0 %v3159
      %3425 = vmatprep.subr.bf16.mxu0 0
      %3426 = vmatpush1.bf16.msra.mxu0 %v3158
      %3427 = vmatprep.subr.bf16.mxu0 0
      %3428 = vmatpush1.bf16.msra.mxu0 %v3157
      %3429 = vmatprep.subr.bf16.mxu0 0
      %3430 = vmatpush2.bf16.msra.mxu0 %v3172
      %3431 = vmatprep.subr.bf16.mxu0 0
      %3432 = vmatpush2.bf16.msra.mxu0 %v3171
      %3433 = vmatprep.subr.bf16.mxu0 0
      %3434 = vmatpush2.bf16.msra.mxu0 %v3170
      %3435 = vmatprep.subr.bf16.mxu0 0
      %3436 = vmatpush2.bf16.msra.mxu0 %v3169
      %3437 = vmatprep.subr.bf16.mxu0 0
      %3438 = vmatpush2.bf16.msra.mxu0 %v3168
      %3439 = vmatprep.subr.bf16.mxu0 0
      %3440 = vmatpush2.bf16.msra.mxu0 %v3167
      %3441 = vmatprep.subr.bf16.mxu0 0
      %3442 = vmatpush2.bf16.msra.mxu0 %v3166
      %3443 = vmatprep.subr.bf16.mxu0 0
      %3444 = vmatpush2.bf16.msra.mxu0 %v3165
      %3445 = vmatprep.mubr.bf16.mxu0 %v2614
      %3446 = vmatmul.mubr.bf16.gmra.mxu0 %v2613
      %v3447 = vpop.f32.mrf.mxu0
      %v3448 = vadd.f32 0.0, %v3447
      %v3449 = vpop.f32.mrf.mxu0
      %v3450 = vpop.f32.mrf.mxu0
      %v3451 = vadd.f32 0.0, %v3450
      %v3452 = vpop.f32.mrf.mxu0
      %3453 = vmatprep.mubr.bf16.mxu0 %v2630
      %3454 = vmatmul.mubr.bf16.gmra.mxu0 %v2629
      %v3455 = vpop.f32.mrf.mxu0
      %v3456 = vadd.f32 0.0, %v3455
      %v3457 = vpop.f32.mrf.mxu0
      %v3458 = vpop.f32.mrf.mxu0
      %v3459 = vpop.f32.mrf.mxu0
      %3460 = vdwg.mxu0
      %3461 = vmatprep.subr.bf16.mxu0 0
      %3462 = vmatpush1.bf16.msra.mxu0 %v3180
      %3463 = vmatprep.subr.bf16.mxu0 0
      %3464 = vmatpush1.bf16.msra.mxu0 %v3179
      %3465 = vmatprep.subr.bf16.mxu0 0
      %3466 = vmatpush1.bf16.msra.mxu0 %v3178
      %3467 = vmatprep.subr.bf16.mxu0 0
      %3468 = vmatpush1.bf16.msra.mxu0 %v3177
      %3469 = vmatprep.subr.bf16.mxu0 0
      %3470 = vmatpush1.bf16.msra.mxu0 %v3176
      %3471 = vmatprep.subr.bf16.mxu0 0
      %3472 = vmatpush1.bf16.msra.mxu0 %v3175
      %3473 = vmatprep.subr.bf16.mxu0 0
      %3474 = vmatpush1.bf16.msra.mxu0 %v3174
      %3475 = vmatprep.subr.bf16.mxu0 0
      %3476 = vmatpush1.bf16.msra.mxu0 %v3173
      %3477 = vmatprep.subr.bf16.mxu0 0
      %3478 = vmatpush2.bf16.msra.mxu0 %v3188
      %3479 = vmatprep.subr.bf16.mxu0 0
      %3480 = vmatpush2.bf16.msra.mxu0 %v3187
      %3481 = vmatprep.subr.bf16.mxu0 0
      %3482 = vmatpush2.bf16.msra.mxu0 %v3186
      %3483 = vmatprep.subr.bf16.mxu0 0
      %3484 = vmatpush2.bf16.msra.mxu0 %v3185
      %3485 = vmatprep.subr.bf16.mxu0 0
      %3486 = vmatpush2.bf16.msra.mxu0 %v3184
      %3487 = vmatprep.subr.bf16.mxu0 0
      %3488 = vmatpush2.bf16.msra.mxu0 %v3183
      %3489 = vmatprep.subr.bf16.mxu0 0
      %3490 = vmatpush2.bf16.msra.mxu0 %v3182
      %3491 = vmatprep.subr.bf16.mxu0 0
      %3492 = vmatpush2.bf16.msra.mxu0 %v3181
      %3493 = vmatprep.mubr.bf16.mxu0 %v2616
      %3494 = vmatmul.mubr.bf16.gmra.mxu0 %v2615
      %v3495 = vpop.f32.mrf.mxu0
      %v3496 = vadd.f32 %v3448, %v3495
      %v3497 = vpop.f32.mrf.mxu0
      %v3498 = vpop.f32.mrf.mxu0
      %v3499 = vadd.f32 %v3451, %v3498
      %v3500 = vpop.f32.mrf.mxu0
      %3501 = vmatprep.mubr.bf16.mxu0 %v2632
      %3502 = vmatmul.mubr.bf16.gmra.mxu0 %v2631
      %v3503 = vpop.f32.mrf.mxu0
      %v3504 = vadd.f32 %v3456, %v3503
      %v3505 = vpop.f32.mrf.mxu0
      %v3506 = vpop.f32.mrf.mxu0
      %v3507 = vpop.f32.mrf.mxu0
      %3508 = vdwg.mxu0
      %3509 = vmatprep.subr.bf16.mxu0 0
      %3510 = vmatpush1.bf16.msra.mxu0 %v3196
      %3511 = vmatprep.subr.bf16.mxu0 0
      %3512 = vmatpush1.bf16.msra.mxu0 %v3195
      %3513 = vmatprep.subr.bf16.mxu0 0
      %3514 = vmatpush1.bf16.msra.mxu0 %v3194
      %3515 = vmatprep.subr.bf16.mxu0 0
      %3516 = vmatpush1.bf16.msra.mxu0 %v3193
      %3517 = vmatprep.subr.bf16.mxu0 0
      %3518 = vmatpush1.bf16.msra.mxu0 %v3192
      %3519 = vmatprep.subr.bf16.mxu0 0
      %3520 = vmatpush1.bf16.msra.mxu0 %v3191
      %3521 = vmatprep.subr.bf16.mxu0 0
      %3522 = vmatpush1.bf16.msra.mxu0 %v3190
      %3523 = vmatprep.subr.bf16.mxu0 0
      %3524 = vmatpush1.bf16.msra.mxu0 %v3189
      %3525 = vmatprep.subr.bf16.mxu0 0
      %3526 = vmatpush2.bf16.msra.mxu0 %v3204
      %3527 = vmatprep.subr.bf16.mxu0 0
      %3528 = vmatpush2.bf16.msra.mxu0 %v3203
      %3529 = vmatprep.subr.bf16.mxu0 0
      %3530 = vmatpush2.bf16.msra.mxu0 %v3202
      %3531 = vmatprep.subr.bf16.mxu0 0
      %3532 = vmatpush2.bf16.msra.mxu0 %v3201
      %3533 = vmatprep.subr.bf16.mxu0 0
      %3534 = vmatpush2.bf16.msra.mxu0 %v3200
      %3535 = vmatprep.subr.bf16.mxu0 0
      %3536 = vmatpush2.bf16.msra.mxu0 %v3199
      %3537 = vmatprep.subr.bf16.mxu0 0
      %3538 = vmatpush2.bf16.msra.mxu0 %v3198
      %3539 = vmatprep.subr.bf16.mxu0 0
      %3540 = vmatpush2.bf16.msra.mxu0 %v3197
      %3541 = vmatprep.mubr.bf16.mxu0 %v2618
      %3542 = vmatmul.mubr.bf16.gmra.mxu0 %v2617
      %v3543 = vpop.f32.mrf.mxu0
      %v3544 = vadd.f32 %v3496, %v3543
      %v3545 = vpop.f32.mrf.mxu0
      %v3546 = vpop.f32.mrf.mxu0
      %v3547 = vadd.f32 %v3499, %v3546
      %v3548 = vpop.f32.mrf.mxu0
      %3549 = vmatprep.mubr.bf16.mxu0 %v2634
      %3550 = vmatmul.mubr.bf16.gmra.mxu0 %v2633
      %v3551 = vpop.f32.mrf.mxu0
      %v3552 = vadd.f32 %v3504, %v3551
      %v3553 = vpop.f32.mrf.mxu0
      %v3554 = vpop.f32.mrf.mxu0
      %v3555 = vpop.f32.mrf.mxu0
      %3556 = vdwg.mxu0
      %3557 = vmatprep.subr.bf16.mxu0 0
      %3558 = vmatpush1.bf16.msra.mxu0 %v3212
      %3559 = vmatprep.subr.bf16.mxu0 0
      %3560 = vmatpush1.bf16.msra.mxu0 %v3211
      %3561 = vmatprep.subr.bf16.mxu0 0
      %3562 = vmatpush1.bf16.msra.mxu0 %v3210
      %3563 = vmatprep.subr.bf16.mxu0 0
      %3564 = vmatpush1.bf16.msra.mxu0 %v3209
      %3565 = vmatprep.subr.bf16.mxu0 0
      %3566 = vmatpush1.bf16.msra.mxu0 %v3208
      %3567 = vmatprep.subr.bf16.mxu0 0
      %3568 = vmatpush1.bf16.msra.mxu0 %v3207
      %3569 = vmatprep.subr.bf16.mxu0 0
      %3570 = vmatpush1.bf16.msra.mxu0 %v3206
      %3571 = vmatprep.subr.bf16.mxu0 0
      %3572 = vmatpush1.bf16.msra.mxu0 %v3205
      %3573 = vmatprep.subr.bf16.mxu0 0
      %3574 = vmatpush2.bf16.msra.mxu0 %v3220
      %3575 = vmatprep.subr.bf16.mxu0 0
      %3576 = vmatpush2.bf16.msra.mxu0 %v3219
      %3577 = vmatprep.subr.bf16.mxu0 0
      %3578 = vmatpush2.bf16.msra.mxu0 %v3218
      %3579 = vmatprep.subr.bf16.mxu0 0
      %3580 = vmatpush2.bf16.msra.mxu0 %v3217
      %3581 = vmatprep.subr.bf16.mxu0 0
      %3582 = vmatpush2.bf16.msra.mxu0 %v3216
      %3583 = vmatprep.subr.bf16.mxu0 0
      %3584 = vmatpush2.bf16.msra.mxu0 %v3215
      %3585 = vmatprep.subr.bf16.mxu0 0
      %3586 = vmatpush2.bf16.msra.mxu0 %v3214
      %3587 = vmatprep.subr.bf16.mxu0 0
      %3588 = vmatpush2.bf16.msra.mxu0 %v3213
      %3589 = vmatprep.mubr.bf16.mxu0 %v2620
      %3590 = vmatmul.mubr.bf16.gmra.mxu0 %v2619
      %v3591 = vpop.f32.mrf.mxu0
      %v3592 = vadd.f32 %v3544, %v3591
      %v3593 = vpop.f32.mrf.mxu0
      %v3594 = vpop.f32.mrf.mxu0
      %v3595 = vadd.f32 %v3547, %v3594
      %v3596 = vpop.f32.mrf.mxu0
      %3597 = vmatprep.mubr.bf16.mxu0 %v2636
      %3598 = vmatmul.mubr.bf16.gmra.mxu0 %v2635
      %v3599 = vpop.f32.mrf.mxu0
      %v3600 = vadd.f32 %v3552, %v3599
      %v3601 = vpop.f32.mrf.mxu0
      %v3602 = vpop.f32.mrf.mxu0
      %v3603 = vpop.f32.mrf.mxu0
      %3604 = vdwg.mxu0
      %3605 = vmatprep.subr.bf16.mxu0 0
      %3606 = vmatpush1.bf16.msra.mxu0 %v3228
      %3607 = vmatprep.subr.bf16.mxu0 0
      %3608 = vmatpush1.bf16.msra.mxu0 %v3227
      %3609 = vmatprep.subr.bf16.mxu0 0
      %3610 = vmatpush1.bf16.msra.mxu0 %v3226
      %3611 = vmatprep.subr.bf16.mxu0 0
      %3612 = vmatpush1.bf16.msra.mxu0 %v3225
      %3613 = vmatprep.subr.bf16.mxu0 0
      %3614 = vmatpush1.bf16.msra.mxu0 %v3224
      %3615 = vmatprep.subr.bf16.mxu0 0
      %3616 = vmatpush1.bf16.msra.mxu0 %v3223
      %3617 = vmatprep.subr.bf16.mxu0 0
      %3618 = vmatpush1.bf16.msra.mxu0 %v3222
      %3619 = vmatprep.subr.bf16.mxu0 0
      %3620 = vmatpush1.bf16.msra.mxu0 %v3221
      %3621 = vmatprep.subr.bf16.mxu0 0
      %3622 = vmatpush2.bf16.msra.mxu0 %v3236
      %3623 = vmatprep.subr.bf16.mxu0 0
      %3624 = vmatpush2.bf16.msra.mxu0 %v3235
      %3625 = vmatprep.subr.bf16.mxu0 0
      %3626 = vmatpush2.bf16.msra.mxu0 %v3234
      %3627 = vmatprep.subr.bf16.mxu0 0
      %3628 = vmatpush2.bf16.msra.mxu0 %v3233
      %3629 = vmatprep.subr.bf16.mxu0 0
      %3630 = vmatpush2.bf16.msra.mxu0 %v3232
      %3631 = vmatprep.subr.bf16.mxu0 0
      %3632 = vmatpush2.bf16.msra.mxu0 %v3231
      %3633 = vmatprep.subr.bf16.mxu0 0
      %3634 = vmatpush2.bf16.msra.mxu0 %v3230
      %3635 = vmatprep.subr.bf16.mxu0 0
      %3636 = vmatpush2.bf16.msra.mxu0 %v3229
      %3637 = vmatprep.mubr.bf16.mxu0 %v2622
      %3638 = vmatmul.mubr.bf16.gmra.mxu0 %v2621
      %v3639 = vpop.f32.mrf.mxu0
      %v3640 = vadd.f32 %v3592, %v3639
      %v3641 = vpop.f32.mrf.mxu0
      %v3642 = vpop.f32.mrf.mxu0
      %v3643 = vadd.f32 %v3595, %v3642
      %v3644 = vpop.f32.mrf.mxu0
      %3645 = vmatprep.mubr.bf16.mxu0 %v2638
      %3646 = vmatmul.mubr.bf16.gmra.mxu0 %v2637
      %v3647 = vpop.f32.mrf.mxu0
      %v3648 = vadd.f32 %v3600, %v3647
      %v3649 = vpop.f32.mrf.mxu0
      %v3650 = vpop.f32.mrf.mxu0
      %v3651 = vpop.f32.mrf.mxu0
      %3652 = vdwg.mxu0
      %3653 = vmatprep.subr.bf16.mxu0 0
      %3654 = vmatpush1.bf16.msra.mxu0 %v3244
      %3655 = vmatprep.subr.bf16.mxu0 0
      %3656 = vmatpush1.bf16.msra.mxu0 %v3243
      %3657 = vmatprep.subr.bf16.mxu0 0
      %3658 = vmatpush1.bf16.msra.mxu0 %v3242
      %3659 = vmatprep.subr.bf16.mxu0 0
      %3660 = vmatpush1.bf16.msra.mxu0 %v3241
      %3661 = vmatprep.subr.bf16.mxu0 0
      %3662 = vmatpush1.bf16.msra.mxu0 %v3240
      %3663 = vmatprep.subr.bf16.mxu0 0
      %3664 = vmatpush1.bf16.msra.mxu0 %v3239
      %3665 = vmatprep.subr.bf16.mxu0 0
      %3666 = vmatpush1.bf16.msra.mxu0 %v3238
      %3667 = vmatprep.subr.bf16.mxu0 0
      %3668 = vmatpush1.bf16.msra.mxu0 %v3237
      %3669 = vmatprep.subr.bf16.mxu0 0
      %3670 = vmatpush2.bf16.msra.mxu0 %v3252
      %3671 = vmatprep.subr.bf16.mxu0 0
      %3672 = vmatpush2.bf16.msra.mxu0 %v3251
      %3673 = vmatprep.subr.bf16.mxu0 0
      %3674 = vmatpush2.bf16.msra.mxu0 %v3250
      %3675 = vmatprep.subr.bf16.mxu0 0
      %3676 = vmatpush2.bf16.msra.mxu0 %v3249
      %3677 = vmatprep.subr.bf16.mxu0 0
      %3678 = vmatpush2.bf16.msra.mxu0 %v3248
      %3679 = vmatprep.subr.bf16.mxu0 0
      %3680 = vmatpush2.bf16.msra.mxu0 %v3247
      %3681 = vmatprep.subr.bf16.mxu0 0
      %3682 = vmatpush2.bf16.msra.mxu0 %v3246
      %3683 = vmatprep.subr.bf16.mxu0 0
      %3684 = vmatpush2.bf16.msra.mxu0 %v3245
      %3685 = vmatprep.mubr.bf16.mxu0 %v2624
      %3686 = vmatmul.mubr.bf16.gmra.mxu0 %v2623
      %v3687 = vpop.f32.mrf.mxu0
      %v3688 = vadd.f32 %v3640, %v3687
      %v3689 = vpop.f32.mrf.mxu0
      %v3690 = vpop.f32.mrf.mxu0
      %v3691 = vadd.f32 %v3643, %v3690
      %v3692 = vpop.f32.mrf.mxu0
      %3693 = vmatprep.mubr.bf16.mxu0 %v2640
      %3694 = vmatmul.mubr.bf16.gmra.mxu0 %v2639
      %v3695 = vpop.f32.mrf.mxu0
      %v3696 = vadd.f32 %v3648, %v3695
      %v3697 = vpop.f32.mrf.mxu0
      %v3698 = vpop.f32.mrf.mxu0
      %v3699 = vpop.f32.mrf.mxu0
      %3700 = vdwg.mxu0
      %3701 = vmatprep.subr.bf16.mxu0 0
      %3702 = vmatpush1.bf16.msra.mxu0 %v3260
      %3703 = vmatprep.subr.bf16.mxu0 0
      %3704 = vmatpush1.bf16.msra.mxu0 %v3259
      %3705 = vmatprep.subr.bf16.mxu0 0
      %3706 = vmatpush1.bf16.msra.mxu0 %v3258
      %3707 = vmatprep.subr.bf16.mxu0 0
      %3708 = vmatpush1.bf16.msra.mxu0 %v3257
      %3709 = vmatprep.subr.bf16.mxu0 0
      %3710 = vmatpush1.bf16.msra.mxu0 %v3256
      %3711 = vmatprep.subr.bf16.mxu0 0
      %3712 = vmatpush1.bf16.msra.mxu0 %v3255
      %3713 = vmatprep.subr.bf16.mxu0 0
      %3714 = vmatpush1.bf16.msra.mxu0 %v3254
      %3715 = vmatprep.subr.bf16.mxu0 0
      %3716 = vmatpush1.bf16.msra.mxu0 %v3253
      %3717 = vmatprep.subr.bf16.mxu0 0
      %3718 = vmatpush2.bf16.msra.mxu0 %v3268
      %3719 = vmatprep.subr.bf16.mxu0 0
      %3720 = vmatpush2.bf16.msra.mxu0 %v3267
      %3721 = vmatprep.subr.bf16.mxu0 0
      %3722 = vmatpush2.bf16.msra.mxu0 %v3266
      %3723 = vmatprep.subr.bf16.mxu0 0
      %3724 = vmatpush2.bf16.msra.mxu0 %v3265
      %3725 = vmatprep.subr.bf16.mxu0 0
      %3726 = vmatpush2.bf16.msra.mxu0 %v3264
      %3727 = vmatprep.subr.bf16.mxu0 0
      %3728 = vmatpush2.bf16.msra.mxu0 %v3263
      %3729 = vmatprep.subr.bf16.mxu0 0
      %3730 = vmatpush2.bf16.msra.mxu0 %v3262
      %3731 = vmatprep.subr.bf16.mxu0 0
      %3732 = vmatpush2.bf16.msra.mxu0 %v3261
      %3733 = vmatprep.mubr.bf16.mxu0 %v2626
      %3734 = vmatmul.mubr.bf16.gmra.mxu0 %v2625
      %v3735 = vpop.f32.mrf.mxu0
      %v3736 = vadd.f32 %v3688, %v3735
      %v3737 = vpop.f32.mrf.mxu0
      %v3738 = vpop.f32.mrf.mxu0
      %v3739 = vadd.f32 %v3691, %v3738
      %v3740 = vpop.f32.mrf.mxu0
      %3741 = vmatprep.mubr.bf16.mxu0 %v2642
      %3742 = vmatmul.mubr.bf16.gmra.mxu0 %v2641
      %v3743 = vpop.f32.mrf.mxu0
      %v3744 = vadd.f32 %v3696, %v3743
      %v3745 = vpop.f32.mrf.mxu0
      %v3746 = vpop.f32.mrf.mxu0
      %v3747 = vpop.f32.mrf.mxu0
      %3748 = vdwg.mxu0
      %3749 = vmatprep.subr.bf16.mxu0 0
      %3750 = vmatpush1.bf16.msra.mxu0 %v3276
      %3751 = vmatprep.subr.bf16.mxu0 0
      %3752 = vmatpush1.bf16.msra.mxu0 %v3275
      %3753 = vmatprep.subr.bf16.mxu0 0
      %3754 = vmatpush1.bf16.msra.mxu0 %v3274
      %3755 = vmatprep.subr.bf16.mxu0 0
      %3756 = vmatpush1.bf16.msra.mxu0 %v3273
      %3757 = vmatprep.subr.bf16.mxu0 0
      %3758 = vmatpush1.bf16.msra.mxu0 %v3272
      %3759 = vmatprep.subr.bf16.mxu0 0
      %3760 = vmatpush1.bf16.msra.mxu0 %v3271
      %3761 = vmatprep.subr.bf16.mxu0 0
      %3762 = vmatpush1.bf16.msra.mxu0 %v3270
      %3763 = vmatprep.subr.bf16.mxu0 0
      %3764 = vmatpush1.bf16.msra.mxu0 %v3269
      %3765 = vmatprep.subr.bf16.mxu0 0
      %3766 = vmatpush2.bf16.msra.mxu0 %v3284
      %3767 = vmatprep.subr.bf16.mxu0 0
      %3768 = vmatpush2.bf16.msra.mxu0 %v3283
      %3769 = vmatprep.subr.bf16.mxu0 0
      %3770 = vmatpush2.bf16.msra.mxu0 %v3282
      %3771 = vmatprep.subr.bf16.mxu0 0
      %3772 = vmatpush2.bf16.msra.mxu0 %v3281
      %3773 = vmatprep.subr.bf16.mxu0 0
      %3774 = vmatpush2.bf16.msra.mxu0 %v3280
      %3775 = vmatprep.subr.bf16.mxu0 0
      %3776 = vmatpush2.bf16.msra.mxu0 %v3279
      %3777 = vmatprep.subr.bf16.mxu0 0
      %3778 = vmatpush2.bf16.msra.mxu0 %v3278
      %3779 = vmatprep.subr.bf16.mxu0 0
      %3780 = vmatpush2.bf16.msra.mxu0 %v3277
      %3781 = vmatprep.mubr.bf16.mxu0 %v2628
      %3782 = vmatmul.mubr.bf16.gmra.mxu0 %v2627
      %v3783 = vpop.f32.mrf.mxu0
      %v3784 = vadd.f32 %v3736, %v3783
      %v3785 = vpop.f32.mrf.mxu0
      %v3786 = vpop.f32.mrf.mxu0
      %v3787 = vadd.f32 %v3739, %v3786
      %v3788 = vpop.f32.mrf.mxu0
      %3789 = vmatprep.mubr.bf16.mxu0 %v2644
      %3790 = vmatmul.mubr.bf16.gmra.mxu0 %v2643
      %v3791 = vpop.f32.mrf.mxu0
      %v3792 = vadd.f32 %v3744, %v3791
      %v3793 = vpop.f32.mrf.mxu0
      %v3794 = vpop.f32.mrf.mxu0
      %v3795 = vpop.f32.mrf.mxu0
      %3796 = vdwg.mxu0
      %v3797 = vadd.f32 %v1614, %v3784
      %v3798 = vadd.f32 %v1615, %v3787
      %v3799 = vadd.f32 %v1616, %v3792
      %v3800 = vld [vmem:[%s14] sm:$0x1]
      %v3802 = vlaneseq
      %v3803 = vshrl.u32 %v3802, 7
      %v3804 = vsub.s32 0, %v3803
      %v3805 = vrot.slane %v3800, %v3804
      %v3807 = vadd.f32 %v3797, %v3805
      %v3808 = vadd.f32 %v3798, %v3805
      %v3809 = vadd.f32 %v3799, %v3805
      %v3810 = vld [vmem:[%s15] sm:$0x1]
      %v3811 = vld [vmem:[%s16] sm:$0x1]
      %v3812 = vsel %vm578, %v3807, 0.0
      %3813 = vadd.xlane.f32.xlu0 %v3812
      %v3814 = vpop.xlane.xlu0 %3813
      %v3815 = vsel %vm578, %v3808, 0.0
      %3816 = vadd.xlane.f32.xlu0 %v3815
      %v3817 = vpop.xlane.xlu0 %3816
      %v3818 = vsel %vm578, %v3809, 0.0
      %3819 = vadd.xlane.f32.xlu0 %v3818
      %v3820 = vpop.xlane.xlu0 %3819
      %v3821 = vmul.f32 %v3814, %v1568
      %v3822 = vmul.f32 %v3817, %v1568
      %v3823 = vmul.f32 %v3820, %v1568
      %v3824 = vsub.f32 %v3807, %v3821
      %v3825 = vsub.f32 %v3808, %v3822
      %v3826 = vsub.f32 %v3809, %v3823
      %v3827 = vmul.f32 %v3824, %v3824
      %v3828 = vmul.f32 %v3825, %v3825
      %v3829 = vmul.f32 %v3826, %v3826
      %v3830 = vsel %vm578, %v3827, 0.0
      %3831 = vadd.xlane.f32.xlu0 %v3830
      %v3832 = vpop.xlane.xlu0 %3831
      %v3833 = vsel %vm578, %v3828, 0.0
      %3834 = vadd.xlane.f32.xlu0 %v3833
      %v3835 = vpop.xlane.xlu0 %3834
      %v3836 = vsel %vm578, %v3829, 0.0
      %3837 = vadd.xlane.f32.xlu0 %v3836
      %v3838 = vpop.xlane.xlu0 %3837
      %v3839 = vmul.f32 %v3832, %v1568
      %v3840 = vmul.f32 %v3835, %v1568
      %v3841 = vmul.f32 %v3838, %v1568
      %v3842 = vadd.f32 %v3839, 1e-05
      %v3843 = vadd.f32 %v3840, 1e-05
      %v3844 = vadd.f32 %v3841, 1e-05
      %v3845 = vrsqrt.pop %v3842
      %v3846 = vrsqrt.pop %v3843
      %v3847 = vrsqrt.pop %v3844
      %v3848 = vmul.f32 %v3824, %v3845
      %v3849 = vmul.f32 %v3825, %v3846
      %v3850 = vmul.f32 %v3826, %v3847
      %v3852 = vlaneseq
      %v3853 = vshrl.u32 %v3852, 7
      %v3854 = vsub.s32 0, %v3853
      %v3855 = vrot.slane %v3810, %v3854
      %v3857 = vmul.f32 %v3848, %v3855
      %v3858 = vmul.f32 %v3849, %v3855
      %v3859 = vmul.f32 %v3850, %v3855
      %v3861 = vlaneseq
      %v3862 = vshrl.u32 %v3861, 7
      %v3863 = vsub.s32 0, %v3862
      %v3864 = vrot.slane %v3811, %v3863
      %v3866 = vadd.f32 %v3857, %v3864
      %v3867 = vadd.f32 %v3858, %v3864
      %v3868 = vadd.f32 %v3859, %v3864
      %3869 = vst.msk [vmem:[%s548] sm:$0xff] %vm578, %v3866
      %3870 = vst.msk [vmem:[%s548 + $0x8] sm:$0xff] %vm578, %v3867
      %3871 = vst.msk [vmem:[%s548 + $0x10] sm:$0xff] %vm578, %v3868
      %p3872 = scmp.lt.s32.totalorder %s28, 1
      %s3873 = scalar_select %p3872, %s28, 1
      %s3874 = smul.addr %s3873, 3
      %s3875 = smul.addr %s3874, 8
      %s3876 = scalar_lea.vmem %s17, %s3875
      // Predicated region
      $region89: #{csi2pointcloud_forward.5} parent=87 // pred_check
        %p3877 = pneg %p408
      $region90: #{csi2pointcloud_forward.5} parent=87 // pred_check_branch
        %3879 = sbr.rel (%p3877) target = $region92
      $region91: #{csi2pointcloud_forward.5} parent=87 // pred_region
        _
      $region92: #{csi2pointcloud_forward.5} parent=87 // pred_fallthru
        _
    $region88: #{csi2pointcloud_forward.5} parent=5 // pred_fallthru
      _
    %p3880 = scmp.le.s32.totalorder 2, %s23
    // Predicated region
    $region93: #{csi2pointcloud_forward.5} parent=5 // pred_check
      %p3881 = pneg %p3880
    $region94: #{csi2pointcloud_forward.5} parent=5 // pred_check_branch
      %3883 = sbr.rel (%p3881) target = $region96
    $region95: #{csi2pointcloud_forward.5} parent=5 // pred_region
      %s3884 = ssub.s32 %s23, 2
      // Predicated region
      $region97: #{csi2pointcloud_forward.5} parent=95 // pred_check
        %p3885 = pneg %p414
      $region98: #{csi2pointcloud_forward.5} parent=95 // pred_check_branch
        %3887 = sbr.rel (%p3885) target = $region100
      $region99: #{csi2pointcloud_forward.5} parent=95 // pred_region
        %p3888 = scmp.lt.s32.totalorder %s29, 1
        %s3889 = scalar_select %p3888, %s29, 1
        %s3890 = smul.addr %s3889, 3
        %s3891 = smul.addr %s3890, 8
        %s3892 = scalar_lea.vmem %s17, %s3891
      $region100: #{csi2pointcloud_forward.5} parent=95 // pred_fallthru
        _
    $region96: #{csi2pointcloud_forward.5} parent=5 // pred_fallthru
      _
  $region6: #{csi2pointcloud_forward.5} parent=0 // loop_footer
    %s27 = sadd.s32 1, %s23
  $region7: #{csi2pointcloud_forward.5} parent=0 // loop_footer_branch
    %22 = sbr.rel target = $region3
  $region8: #{csi2pointcloud_forward.5} parent=0 // loop_exit
    _

// kernel: csi2pointcloud_forward.6
$region0: #{csi2pointcloud_forward.6}
  #allocation0 [shape = 'u32[]', space=smem, size = 0x4, offset = 0x4, fixed_abs, tag = 'smem constant byte address 0x4 - core index']
  #allocation1 [shape = 'u32[144,128]{1,0:T(1,128)}', space=vmem, size = 0x12000, scoped, tag = 'internal scratch']
  %s0 = inlined_call_operand.vmem [shape: f32[2,16,32], index: 0, kind: input, shape index: {}]
  %s1 = inlined_call_operand.vmem [shape: f32[2,24,32], index: 1, kind: input, shape index: {}]
  %s2 = inlined_call_operand.vmem [shape: bf16[32,32], index: 2, kind: input, shape index: {}]
  %s3 = inlined_call_operand.vmem [shape: bf16[32,32], index: 3, kind: input, shape index: {}]
  %s4 = inlined_call_operand.vmem [shape: bf16[32,32], index: 4, kind: input, shape index: {}]
  %s5 = inlined_call_operand.vmem [shape: f32[1,32], index: 5, kind: input, shape index: {}]
  %s6 = inlined_call_operand.vmem [shape: f32[1,32], index: 6, kind: input, shape index: {}]
  %s7 = inlined_call_operand.vmem [shape: f32[1,32], index: 7, kind: input, shape index: {}]
  %s8 = inlined_call_operand.vmem [shape: bf16[32,32], index: 8, kind: input, shape index: {}]
  %s9 = inlined_call_operand.vmem [shape: f32[1,32], index: 9, kind: input, shape index: {}]
  %s10 = inlined_call_operand.vmem [shape: f32[1,32], index: 10, kind: input, shape index: {}]
  %s11 = inlined_call_operand.vmem [shape: f32[1,32], index: 11, kind: input, shape index: {}]
  %s12 = inlined_call_operand.vmem [shape: bf16[32,32], index: 12, kind: input, shape index: {}]
  %s13 = inlined_call_operand.vmem [shape: bf16[32,32], index: 13, kind: input, shape index: {}]
  %s14 = inlined_call_operand.vmem [shape: bf16[32,32], index: 14, kind: input, shape index: {}]
  %s15 = inlined_call_operand.vmem [shape: f32[1,32], index: 15, kind: input, shape index: {}]
  %s16 = inlined_call_operand.vmem [shape: f32[1,32], index: 16, kind: input, shape index: {}]
  %s17 = inlined_call_operand.vmem [shape: f32[1,32], index: 17, kind: input, shape index: {}]
  %s18 = inlined_call_operand.vmem [shape: bf16[32,32], index: 18, kind: input, shape index: {}]
  %s19 = inlined_call_operand.vmem [shape: f32[1,32], index: 19, kind: input, shape index: {}]
  %s20 = inlined_call_operand.vmem [shape: f32[1,32], index: 20, kind: input, shape index: {}]
  %s21 = inlined_call_operand.vmem [shape: f32[1,32], index: 21, kind: input, shape index: {}]
  %s22 = inlined_call_operand.vmem [shape: bf16[32,2048], index: 22, kind: input, shape index: {}]
  %s23 = inlined_call_operand.vmem [shape: f32[1,2048], index: 23, kind: input, shape index: {}]
  %s24 = inlined_call_operand.vmem [shape: bf16[2048,32], index: 24, kind: input, shape index: {}]
  %s25 = inlined_call_operand.vmem [shape: f32[1,32], index: 25, kind: input, shape index: {}]
  %s26 = inlined_call_operand.vmem [shape: f32[1,32], index: 26, kind: input, shape index: {}]
  %s27 = inlined_call_operand.vmem [shape: f32[1,32], index: 27, kind: input, shape index: {}]
  %s28 = inlined_call_operand.vmem [shape: f32[2,16,32], index: 28, kind: output, shape index: {}]
  %s29 = sld [smem:[#allocation0]]
  $region145: #{csi2pointcloud_forward.6} parent=0
    _
  %s31 = ssub.s32 1, %s29
  %s32 = scalar_select 0, %s31, %s29
  loop: start=0, step=1, limit=4
  $region2: #{csi2pointcloud_forward.6} parent=0 // loop_pre_header
    _
  $region3: #{csi2pointcloud_forward.6} parent=0 // loop_header
    %s34 = sphi 0, %s38
    %p35 = scmp.ge.s32.totalorder %s34, 4
    %s44 = sphi 0, %s46
    %s47 = sphi 0, %s44
    %s48 = sphi 0, %s47
    %s64 = sphi 0, %s48
    %s70 = sphi 0, %s72
    %s73 = sphi 0, %s70
    %s74 = sphi 0, %s73
    %s90 = sphi 0, %s74
    %s94 = sphi 0, %s94
    %s96 = sphi 0, %s94
    %s97 = sphi 0, %s96
    %s111 = sphi 0, %s97
    %s115 = sphi 0, %s115
    %s117 = sphi 0, %s115
    %s118 = sphi 0, %s117
    %s132 = sphi 0, %s118
    %s136 = sphi 0, %s136
    %s138 = sphi 0, %s136
    %s139 = sphi 0, %s138
    %s153 = sphi 0, %s139
    %s157 = sphi 0, %s157
    %s159 = sphi 0, %s157
    %s160 = sphi 0, %s159
    %s174 = sphi 0, %s160
    %s178 = sphi 0, %s178
    %s180 = sphi 0, %s178
    %s181 = sphi 0, %s180
    %s195 = sphi 0, %s181
    %s199 = sphi 0, %s199
    %s201 = sphi 0, %s199
    %s202 = sphi 0, %s201
    %s216 = sphi 0, %s202
    %s220 = sphi 0, %s220
    %s222 = sphi 0, %s220
    %s223 = sphi 0, %s222
    %s237 = sphi 0, %s223
    %s241 = sphi 0, %s241
    %s243 = sphi 0, %s241
    %s244 = sphi 0, %s243
    %s258 = sphi 0, %s244
    %s262 = sphi 0, %s262
    %s264 = sphi 0, %s262
    %s265 = sphi 0, %s264
    %s279 = sphi 0, %s265
    %s283 = sphi 0, %s283
    %s285 = sphi 0, %s283
    %s286 = sphi 0, %s285
    %s300 = sphi 0, %s286
    %s304 = sphi 0, %s304
    %s306 = sphi 0, %s304
    %s307 = sphi 0, %s306
    %s321 = sphi 0, %s307
    %s325 = sphi 0, %s325
    %s327 = sphi 0, %s325
    %s328 = sphi 0, %s327
    %s342 = sphi 0, %s328
    %s346 = sphi 0, %s346
    %s348 = sphi 0, %s346
    %s349 = sphi 0, %s348
    %s363 = sphi 0, %s349
    %s367 = sphi 0, %s367
    %s369 = sphi 0, %s367
    %s370 = sphi 0, %s369
    %s384 = sphi 0, %s370
    %s388 = sphi 0, %s388
    %s390 = sphi 0, %s388
    %s391 = sphi 0, %s390
    %s405 = sphi 0, %s391
    %s409 = sphi 0, %s409
    %s411 = sphi 0, %s409
    %s412 = sphi 0, %s411
    %s426 = sphi 0, %s412
    %s430 = sphi 0, %s430
    %s432 = sphi 0, %s430
    %s433 = sphi 0, %s432
    %s447 = sphi 0, %s433
    %s451 = sphi 0, %s451
    %s453 = sphi 0, %s451
    %s454 = sphi 0, %s453
    %s468 = sphi 0, %s454
    %s472 = sphi 0, %s472
    %s474 = sphi 0, %s472
    %s475 = sphi 0, %s474
    %s489 = sphi 0, %s475
    %s493 = sphi 0, %s493
    %s495 = sphi 0, %s493
    %s496 = sphi 0, %s495
    %s510 = sphi 0, %s496
    %s514 = sphi 0, %s514
    %s516 = sphi 0, %s514
    %s517 = sphi 0, %s516
    %s531 = sphi 0, %s517
    %s535 = sphi 0, %s535
    %s537 = sphi 0, %s535
    %s538 = sphi 0, %s537
    %s552 = sphi 0, %s538
    %s556 = sphi 0, %s556
    %s558 = sphi 0, %s556
    %s559 = sphi 0, %s558
    %s573 = sphi 0, %s559
    %s577 = sphi 0, %s577
    %s579 = sphi 0, %s577
    %s580 = sphi 0, %s579
    %s594 = sphi 0, %s580
    %s598 = sphi 0, %s598
    %s600 = sphi 0, %s598
    %s601 = sphi 0, %s600
    %s615 = sphi 0, %s601
    %s619 = sphi 0, %s619
    %s621 = sphi 0, %s619
    %s622 = sphi 0, %s621
    %s636 = sphi 0, %s622
    %s642 = sphi 0, %s644
    %s645 = sphi 0, %s642
    %s646 = sphi 0, %s645
    %s662 = sphi 0, %s646
  $region4: #{csi2pointcloud_forward.6} parent=0 // loop_header_branch
    %37 = sbr.rel (%p35) target = $region8
  $region5: #{csi2pointcloud_forward.6} parent=0 // loop_body
    %s39 = ssub.s32 %s34, 1
    %s40 = ssub.s32 %s34, 2
    %s41 = sadd.s32 %s34, 1
    %s42 = ssub.s32 %s34, %s41
    %p43 = scmp.eq.s32.totalorder %s42, 0
    %s45 = sadd.s32 %s44, 1
    %s46 = scalar_select %p43, %s44, %s45
    %p49 = pneg %p43
    %p50 = scmp.eq.s32.totalorder %s34, 1
    %p51 = por %p49, %p50
    %p52 = scmp.ne.s32.totalorder %s44, %s47
    %p53 = scmp.eq.s32.totalorder %s34, 0
    %p54 = por %p52, %p53
    %p55 = scmp.ne.s32.totalorder %s44, %s47
    %p56 = scmp.eq.s32.totalorder %s39, 1
    %p57 = por %p55, %p56
    %p58 = scmp.ne.s32.totalorder %s47, %s48
    %p59 = scmp.eq.s32.totalorder %s39, 0
    %p60 = por %p58, %p59
    %p61 = scmp.ne.s32.totalorder %s47, %s48
    %p62 = scmp.eq.s32.totalorder %s40, 1
    %p63 = por %p61, %p62
    %p65 = scmp.ne.s32.totalorder %s48, %s64
    %p66 = scmp.eq.s32.totalorder %s40, 0
    %p67 = por %p65, %p66
    %s68 = ssub.s32 %s34, %s41
    %p69 = scmp.eq.s32.totalorder %s68, 0
    %s71 = sadd.s32 %s70, 1
    %s72 = scalar_select %p69, %s70, %s71
    %p75 = pneg %p69
    %p76 = scmp.eq.s32.totalorder %s34, 1
    %p77 = por %p75, %p76
    %p78 = scmp.ne.s32.totalorder %s70, %s73
    %p79 = scmp.eq.s32.totalorder %s34, 0
    %p80 = por %p78, %p79
    %p81 = scmp.ne.s32.totalorder %s70, %s73
    %p82 = scmp.eq.s32.totalorder %s39, 1
    %p83 = por %p81, %p82
    %p84 = scmp.ne.s32.totalorder %s73, %s74
    %p85 = scmp.eq.s32.totalorder %s39, 0
    %p86 = por %p84, %p85
    %p87 = scmp.ne.s32.totalorder %s73, %s74
    %p88 = scmp.eq.s32.totalorder %s40, 1
    %p89 = por %p87, %p88
    %p91 = scmp.ne.s32.totalorder %s74, %s90
    %p92 = scmp.eq.s32.totalorder %s40, 0
    %p93 = por %p91, %p92
    %s95 = sadd.s32 %s94, 1
    %p98 = scmp.eq.s32.totalorder %s34, 1
    %p99 = scmp.ne.s32.totalorder %s94, %s96
    %p100 = scmp.eq.s32.totalorder %s34, 0
    %p101 = por %p99, %p100
    %p102 = scmp.ne.s32.totalorder %s94, %s96
    %p103 = scmp.eq.s32.totalorder %s39, 1
    %p104 = por %p102, %p103
    %p105 = scmp.ne.s32.totalorder %s96, %s97
    %p106 = scmp.eq.s32.totalorder %s39, 0
    %p107 = por %p105, %p106
    %p108 = scmp.ne.s32.totalorder %s96, %s97
    %p109 = scmp.eq.s32.totalorder %s40, 1
    %p110 = por %p108, %p109
    %p112 = scmp.ne.s32.totalorder %s97, %s111
    %p113 = scmp.eq.s32.totalorder %s40, 0
    %p114 = por %p112, %p113
    %s116 = sadd.s32 %s115, 1
    %p119 = scmp.eq.s32.totalorder %s34, 1
    %p120 = scmp.ne.s32.totalorder %s115, %s117
    %p121 = scmp.eq.s32.totalorder %s34, 0
    %p122 = por %p120, %p121
    %p123 = scmp.ne.s32.totalorder %s115, %s117
    %p124 = scmp.eq.s32.totalorder %s39, 1
    %p125 = por %p123, %p124
    %p126 = scmp.ne.s32.totalorder %s117, %s118
    %p127 = scmp.eq.s32.totalorder %s39, 0
    %p128 = por %p126, %p127
    %p129 = scmp.ne.s32.totalorder %s117, %s118
    %p130 = scmp.eq.s32.totalorder %s40, 1
    %p131 = por %p129, %p130
    %p133 = scmp.ne.s32.totalorder %s118, %s132
    %p134 = scmp.eq.s32.totalorder %s40, 0
    %p135 = por %p133, %p134
    %s137 = sadd.s32 %s136, 1
    %p140 = scmp.eq.s32.totalorder %s34, 1
    %p141 = scmp.ne.s32.totalorder %s136, %s138
    %p142 = scmp.eq.s32.totalorder %s34, 0
    %p143 = por %p141, %p142
    %p144 = scmp.ne.s32.totalorder %s136, %s138
    %p145 = scmp.eq.s32.totalorder %s39, 1
    %p146 = por %p144, %p145
    %p147 = scmp.ne.s32.totalorder %s138, %s139
    %p148 = scmp.eq.s32.totalorder %s39, 0
    %p149 = por %p147, %p148
    %p150 = scmp.ne.s32.totalorder %s138, %s139
    %p151 = scmp.eq.s32.totalorder %s40, 1
    %p152 = por %p150, %p151
    %p154 = scmp.ne.s32.totalorder %s139, %s153
    %p155 = scmp.eq.s32.totalorder %s40, 0
    %p156 = por %p154, %p155
    %s158 = sadd.s32 %s157, 1
    %p161 = scmp.eq.s32.totalorder %s34, 1
    %p162 = scmp.ne.s32.totalorder %s157, %s159
    %p163 = scmp.eq.s32.totalorder %s34, 0
    %p164 = por %p162, %p163
    %p165 = scmp.ne.s32.totalorder %s157, %s159
    %p166 = scmp.eq.s32.totalorder %s39, 1
    %p167 = por %p165, %p166
    %p168 = scmp.ne.s32.totalorder %s159, %s160
    %p169 = scmp.eq.s32.totalorder %s39, 0
    %p170 = por %p168, %p169
    %p171 = scmp.ne.s32.totalorder %s159, %s160
    %p172 = scmp.eq.s32.totalorder %s40, 1
    %p173 = por %p171, %p172
    %p175 = scmp.ne.s32.totalorder %s160, %s174
    %p176 = scmp.eq.s32.totalorder %s40, 0
    %p177 = por %p175, %p176
    %s179 = sadd.s32 %s178, 1
    %p182 = scmp.eq.s32.totalorder %s34, 1
    %p183 = scmp.ne.s32.totalorder %s178, %s180
    %p184 = scmp.eq.s32.totalorder %s34, 0
    %p185 = por %p183, %p184
    %p186 = scmp.ne.s32.totalorder %s178, %s180
    %p187 = scmp.eq.s32.totalorder %s39, 1
    %p188 = por %p186, %p187
    %p189 = scmp.ne.s32.totalorder %s180, %s181
    %p190 = scmp.eq.s32.totalorder %s39, 0
    %p191 = por %p189, %p190
    %p192 = scmp.ne.s32.totalorder %s180, %s181
    %p193 = scmp.eq.s32.totalorder %s40, 1
    %p194 = por %p192, %p193
    %p196 = scmp.ne.s32.totalorder %s181, %s195
    %p197 = scmp.eq.s32.totalorder %s40, 0
    %p198 = por %p196, %p197
    %s200 = sadd.s32 %s199, 1
    %p203 = scmp.eq.s32.totalorder %s34, 1
    %p204 = scmp.ne.s32.totalorder %s199, %s201
    %p205 = scmp.eq.s32.totalorder %s34, 0
    %p206 = por %p204, %p205
    %p207 = scmp.ne.s32.totalorder %s199, %s201
    %p208 = scmp.eq.s32.totalorder %s39, 1
    %p209 = por %p207, %p208
    %p210 = scmp.ne.s32.totalorder %s201, %s202
    %p211 = scmp.eq.s32.totalorder %s39, 0
    %p212 = por %p210, %p211
    %p213 = scmp.ne.s32.totalorder %s201, %s202
    %p214 = scmp.eq.s32.totalorder %s40, 1
    %p215 = por %p213, %p214
    %p217 = scmp.ne.s32.totalorder %s202, %s216
    %p218 = scmp.eq.s32.totalorder %s40, 0
    %p219 = por %p217, %p218
    %s221 = sadd.s32 %s220, 1
    %p224 = scmp.eq.s32.totalorder %s34, 1
    %p225 = scmp.ne.s32.totalorder %s220, %s222
    %p226 = scmp.eq.s32.totalorder %s34, 0
    %p227 = por %p225, %p226
    %p228 = scmp.ne.s32.totalorder %s220, %s222
    %p229 = scmp.eq.s32.totalorder %s39, 1
    %p230 = por %p228, %p229
    %p231 = scmp.ne.s32.totalorder %s222, %s223
    %p232 = scmp.eq.s32.totalorder %s39, 0
    %p233 = por %p231, %p232
    %p234 = scmp.ne.s32.totalorder %s222, %s223
    %p235 = scmp.eq.s32.totalorder %s40, 1
    %p236 = por %p234, %p235
    %p238 = scmp.ne.s32.totalorder %s223, %s237
    %p239 = scmp.eq.s32.totalorder %s40, 0
    %p240 = por %p238, %p239
    %s242 = sadd.s32 %s241, 1
    %p245 = scmp.eq.s32.totalorder %s34, 1
    %p246 = scmp.ne.s32.totalorder %s241, %s243
    %p247 = scmp.eq.s32.totalorder %s34, 0
    %p248 = por %p246, %p247
    %p249 = scmp.ne.s32.totalorder %s241, %s243
    %p250 = scmp.eq.s32.totalorder %s39, 1
    %p251 = por %p249, %p250
    %p252 = scmp.ne.s32.totalorder %s243, %s244
    %p253 = scmp.eq.s32.totalorder %s39, 0
    %p254 = por %p252, %p253
    %p255 = scmp.ne.s32.totalorder %s243, %s244
    %p256 = scmp.eq.s32.totalorder %s40, 1
    %p257 = por %p255, %p256
    %p259 = scmp.ne.s32.totalorder %s244, %s258
    %p260 = scmp.eq.s32.totalorder %s40, 0
    %p261 = por %p259, %p260
    %s263 = sadd.s32 %s262, 1
    %p266 = scmp.eq.s32.totalorder %s34, 1
    %p267 = scmp.ne.s32.totalorder %s262, %s264
    %p268 = scmp.eq.s32.totalorder %s34, 0
    %p269 = por %p267, %p268
    %p270 = scmp.ne.s32.totalorder %s262, %s264
    %p271 = scmp.eq.s32.totalorder %s39, 1
    %p272 = por %p270, %p271
    %p273 = scmp.ne.s32.totalorder %s264, %s265
    %p274 = scmp.eq.s32.totalorder %s39, 0
    %p275 = por %p273, %p274
    %p276 = scmp.ne.s32.totalorder %s264, %s265
    %p277 = scmp.eq.s32.totalorder %s40, 1
    %p278 = por %p276, %p277
    %p280 = scmp.ne.s32.totalorder %s265, %s279
    %p281 = scmp.eq.s32.totalorder %s40, 0
    %p282 = por %p280, %p281
    %s284 = sadd.s32 %s283, 1
    %p287 = scmp.eq.s32.totalorder %s34, 1
    %p288 = scmp.ne.s32.totalorder %s283, %s285
    %p289 = scmp.eq.s32.totalorder %s34, 0
    %p290 = por %p288, %p289
    %p291 = scmp.ne.s32.totalorder %s283, %s285
    %p292 = scmp.eq.s32.totalorder %s39, 1
    %p293 = por %p291, %p292
    %p294 = scmp.ne.s32.totalorder %s285, %s286
    %p295 = scmp.eq.s32.totalorder %s39, 0
    %p296 = por %p294, %p295
    %p297 = scmp.ne.s32.totalorder %s285, %s286
    %p298 = scmp.eq.s32.totalorder %s40, 1
    %p299 = por %p297, %p298
    %p301 = scmp.ne.s32.totalorder %s286, %s300
    %p302 = scmp.eq.s32.totalorder %s40, 0
    %p303 = por %p301, %p302
    %s305 = sadd.s32 %s304, 1
    %p308 = scmp.eq.s32.totalorder %s34, 1
    %p309 = scmp.ne.s32.totalorder %s304, %s306
    %p310 = scmp.eq.s32.totalorder %s34, 0
    %p311 = por %p309, %p310
    %p312 = scmp.ne.s32.totalorder %s304, %s306
    %p313 = scmp.eq.s32.totalorder %s39, 1
    %p314 = por %p312, %p313
    %p315 = scmp.ne.s32.totalorder %s306, %s307
    %p316 = scmp.eq.s32.totalorder %s39, 0
    %p317 = por %p315, %p316
    %p318 = scmp.ne.s32.totalorder %s306, %s307
    %p319 = scmp.eq.s32.totalorder %s40, 1
    %p320 = por %p318, %p319
    %p322 = scmp.ne.s32.totalorder %s307, %s321
    %p323 = scmp.eq.s32.totalorder %s40, 0
    %p324 = por %p322, %p323
    %s326 = sadd.s32 %s325, 1
    %p329 = scmp.eq.s32.totalorder %s34, 1
    %p330 = scmp.ne.s32.totalorder %s325, %s327
    %p331 = scmp.eq.s32.totalorder %s34, 0
    %p332 = por %p330, %p331
    %p333 = scmp.ne.s32.totalorder %s325, %s327
    %p334 = scmp.eq.s32.totalorder %s39, 1
    %p335 = por %p333, %p334
    %p336 = scmp.ne.s32.totalorder %s327, %s328
    %p337 = scmp.eq.s32.totalorder %s39, 0
    %p338 = por %p336, %p337
    %p339 = scmp.ne.s32.totalorder %s327, %s328
    %p340 = scmp.eq.s32.totalorder %s40, 1
    %p341 = por %p339, %p340
    %p343 = scmp.ne.s32.totalorder %s328, %s342
    %p344 = scmp.eq.s32.totalorder %s40, 0
    %p345 = por %p343, %p344
    %s347 = sadd.s32 %s346, 1
    %p350 = scmp.eq.s32.totalorder %s34, 1
    %p351 = scmp.ne.s32.totalorder %s346, %s348
    %p352 = scmp.eq.s32.totalorder %s34, 0
    %p353 = por %p351, %p352
    %p354 = scmp.ne.s32.totalorder %s346, %s348
    %p355 = scmp.eq.s32.totalorder %s39, 1
    %p356 = por %p354, %p355
    %p357 = scmp.ne.s32.totalorder %s348, %s349
    %p358 = scmp.eq.s32.totalorder %s39, 0
    %p359 = por %p357, %p358
    %p360 = scmp.ne.s32.totalorder %s348, %s349
    %p361 = scmp.eq.s32.totalorder %s40, 1
    %p362 = por %p360, %p361
    %p364 = scmp.ne.s32.totalorder %s349, %s363
    %p365 = scmp.eq.s32.totalorder %s40, 0
    %p366 = por %p364, %p365
    %s368 = sadd.s32 %s367, 1
    %p371 = scmp.eq.s32.totalorder %s34, 1
    %p372 = scmp.ne.s32.totalorder %s367, %s369
    %p373 = scmp.eq.s32.totalorder %s34, 0
    %p374 = por %p372, %p373
    %p375 = scmp.ne.s32.totalorder %s367, %s369
    %p376 = scmp.eq.s32.totalorder %s39, 1
    %p377 = por %p375, %p376
    %p378 = scmp.ne.s32.totalorder %s369, %s370
    %p379 = scmp.eq.s32.totalorder %s39, 0
    %p380 = por %p378, %p379
    %p381 = scmp.ne.s32.totalorder %s369, %s370
    %p382 = scmp.eq.s32.totalorder %s40, 1
    %p383 = por %p381, %p382
    %p385 = scmp.ne.s32.totalorder %s370, %s384
    %p386 = scmp.eq.s32.totalorder %s40, 0
    %p387 = por %p385, %p386
    %s389 = sadd.s32 %s388, 1
    %p392 = scmp.eq.s32.totalorder %s34, 1
    %p393 = scmp.ne.s32.totalorder %s388, %s390
    %p394 = scmp.eq.s32.totalorder %s34, 0
    %p395 = por %p393, %p394
    %p396 = scmp.ne.s32.totalorder %s388, %s390
    %p397 = scmp.eq.s32.totalorder %s39, 1
    %p398 = por %p396, %p397
    %p399 = scmp.ne.s32.totalorder %s390, %s391
    %p400 = scmp.eq.s32.totalorder %s39, 0
    %p401 = por %p399, %p400
    %p402 = scmp.ne.s32.totalorder %s390, %s391
    %p403 = scmp.eq.s32.totalorder %s40, 1
    %p404 = por %p402, %p403
    %p406 = scmp.ne.s32.totalorder %s391, %s405
    %p407 = scmp.eq.s32.totalorder %s40, 0
    %p408 = por %p406, %p407
    %s410 = sadd.s32 %s409, 1
    %p413 = scmp.eq.s32.totalorder %s34, 1
    %p414 = scmp.ne.s32.totalorder %s409, %s411
    %p415 = scmp.eq.s32.totalorder %s34, 0
    %p416 = por %p414, %p415
    %p417 = scmp.ne.s32.totalorder %s409, %s411
    %p418 = scmp.eq.s32.totalorder %s39, 1
    %p419 = por %p417, %p418
    %p420 = scmp.ne.s32.totalorder %s411, %s412
    %p421 = scmp.eq.s32.totalorder %s39, 0
    %p422 = por %p420, %p421
    %p423 = scmp.ne.s32.totalorder %s411, %s412
    %p424 = scmp.eq.s32.totalorder %s40, 1
    %p425 = por %p423, %p424
    %p427 = scmp.ne.s32.totalorder %s412, %s426
    %p428 = scmp.eq.s32.totalorder %s40, 0
    %p429 = por %p427, %p428
    %s431 = sadd.s32 %s430, 1
    %p434 = scmp.eq.s32.totalorder %s34, 1
    %p435 = scmp.ne.s32.totalorder %s430, %s432
    %p436 = scmp.eq.s32.totalorder %s34, 0
    %p437 = por %p435, %p436
    %p438 = scmp.ne.s32.totalorder %s430, %s432
    %p439 = scmp.eq.s32.totalorder %s39, 1
    %p440 = por %p438, %p439
    %p441 = scmp.ne.s32.totalorder %s432, %s433
    %p442 = scmp.eq.s32.totalorder %s39, 0
    %p443 = por %p441, %p442
    %p444 = scmp.ne.s32.totalorder %s432, %s433
    %p445 = scmp.eq.s32.totalorder %s40, 1
    %p446 = por %p444, %p445
    %p448 = scmp.ne.s32.totalorder %s433, %s447
    %p449 = scmp.eq.s32.totalorder %s40, 0
    %p450 = por %p448, %p449
    %s452 = sadd.s32 %s451, 1
    %p455 = scmp.eq.s32.totalorder %s34, 1
    %p456 = scmp.ne.s32.totalorder %s451, %s453
    %p457 = scmp.eq.s32.totalorder %s34, 0
    %p458 = por %p456, %p457
    %p459 = scmp.ne.s32.totalorder %s451, %s453
    %p460 = scmp.eq.s32.totalorder %s39, 1
    %p461 = por %p459, %p460
    %p462 = scmp.ne.s32.totalorder %s453, %s454
    %p463 = scmp.eq.s32.totalorder %s39, 0
    %p464 = por %p462, %p463
    %p465 = scmp.ne.s32.totalorder %s453, %s454
    %p466 = scmp.eq.s32.totalorder %s40, 1
    %p467 = por %p465, %p466
    %p469 = scmp.ne.s32.totalorder %s454, %s468
    %p470 = scmp.eq.s32.totalorder %s40, 0
    %p471 = por %p469, %p470
    %s473 = sadd.s32 %s472, 1
    %p476 = scmp.eq.s32.totalorder %s34, 1
    %p477 = scmp.ne.s32.totalorder %s472, %s474
    %p478 = scmp.eq.s32.totalorder %s34, 0
    %p479 = por %p477, %p478
    %p480 = scmp.ne.s32.totalorder %s472, %s474
    %p481 = scmp.eq.s32.totalorder %s39, 1
    %p482 = por %p480, %p481
    %p483 = scmp.ne.s32.totalorder %s474, %s475
    %p484 = scmp.eq.s32.totalorder %s39, 0
    %p485 = por %p483, %p484
    %p486 = scmp.ne.s32.totalorder %s474, %s475
    %p487 = scmp.eq.s32.totalorder %s40, 1
    %p488 = por %p486, %p487
    %p490 = scmp.ne.s32.totalorder %s475, %s489
    %p491 = scmp.eq.s32.totalorder %s40, 0
    %p492 = por %p490, %p491
    %s494 = sadd.s32 %s493, 1
    %p497 = scmp.eq.s32.totalorder %s34, 1
    %p498 = scmp.ne.s32.totalorder %s493, %s495
    %p499 = scmp.eq.s32.totalorder %s34, 0
    %p500 = por %p498, %p499
    %p501 = scmp.ne.s32.totalorder %s493, %s495
    %p502 = scmp.eq.s32.totalorder %s39, 1
    %p503 = por %p501, %p502
    %p504 = scmp.ne.s32.totalorder %s495, %s496
    %p505 = scmp.eq.s32.totalorder %s39, 0
    %p506 = por %p504, %p505
    %p507 = scmp.ne.s32.totalorder %s495, %s496
    %p508 = scmp.eq.s32.totalorder %s40, 1
    %p509 = por %p507, %p508
    %p511 = scmp.ne.s32.totalorder %s496, %s510
    %p512 = scmp.eq.s32.totalorder %s40, 0
    %p513 = por %p511, %p512
    %s515 = sadd.s32 %s514, 1
    %p518 = scmp.eq.s32.totalorder %s34, 1
    %p519 = scmp.ne.s32.totalorder %s514, %s516
    %p520 = scmp.eq.s32.totalorder %s34, 0
    %p521 = por %p519, %p520
    %p522 = scmp.ne.s32.totalorder %s514, %s516
    %p523 = scmp.eq.s32.totalorder %s39, 1
    %p524 = por %p522, %p523
    %p525 = scmp.ne.s32.totalorder %s516, %s517
    %p526 = scmp.eq.s32.totalorder %s39, 0
    %p527 = por %p525, %p526
    %p528 = scmp.ne.s32.totalorder %s516, %s517
    %p529 = scmp.eq.s32.totalorder %s40, 1
    %p530 = por %p528, %p529
    %p532 = scmp.ne.s32.totalorder %s517, %s531
    %p533 = scmp.eq.s32.totalorder %s40, 0
    %p534 = por %p532, %p533
    %s536 = sadd.s32 %s535, 1
    %p539 = scmp.eq.s32.totalorder %s34, 1
    %p540 = scmp.ne.s32.totalorder %s535, %s537
    %p541 = scmp.eq.s32.totalorder %s34, 0
    %p542 = por %p540, %p541
    %p543 = scmp.ne.s32.totalorder %s535, %s537
    %p544 = scmp.eq.s32.totalorder %s39, 1
    %p545 = por %p543, %p544
    %p546 = scmp.ne.s32.totalorder %s537, %s538
    %p547 = scmp.eq.s32.totalorder %s39, 0
    %p548 = por %p546, %p547
    %p549 = scmp.ne.s32.totalorder %s537, %s538
    %p550 = scmp.eq.s32.totalorder %s40, 1
    %p551 = por %p549, %p550
    %p553 = scmp.ne.s32.totalorder %s538, %s552
    %p554 = scmp.eq.s32.totalorder %s40, 0
    %p555 = por %p553, %p554
    %s557 = sadd.s32 %s556, 1
    %p560 = scmp.eq.s32.totalorder %s34, 1
    %p561 = scmp.ne.s32.totalorder %s556, %s558
    %p562 = scmp.eq.s32.totalorder %s34, 0
    %p563 = por %p561, %p562
    %p564 = scmp.ne.s32.totalorder %s556, %s558
    %p565 = scmp.eq.s32.totalorder %s39, 1
    %p566 = por %p564, %p565
    %p567 = scmp.ne.s32.totalorder %s558, %s559
    %p568 = scmp.eq.s32.totalorder %s39, 0
    %p569 = por %p567, %p568
    %p570 = scmp.ne.s32.totalorder %s558, %s559
    %p571 = scmp.eq.s32.totalorder %s40, 1
    %p572 = por %p570, %p571
    %p574 = scmp.ne.s32.totalorder %s559, %s573
    %p575 = scmp.eq.s32.totalorder %s40, 0
    %p576 = por %p574, %p575
    %s578 = sadd.s32 %s577, 1
    %p581 = scmp.eq.s32.totalorder %s34, 1
    %p582 = scmp.ne.s32.totalorder %s577, %s579
    %p583 = scmp.eq.s32.totalorder %s34, 0
    %p584 = por %p582, %p583
    %p585 = scmp.ne.s32.totalorder %s577, %s579
    %p586 = scmp.eq.s32.totalorder %s39, 1
    %p587 = por %p585, %p586
    %p588 = scmp.ne.s32.totalorder %s579, %s580
    %p589 = scmp.eq.s32.totalorder %s39, 0
    %p590 = por %p588, %p589
    %p591 = scmp.ne.s32.totalorder %s579, %s580
    %p592 = scmp.eq.s32.totalorder %s40, 1
    %p593 = por %p591, %p592
    %p595 = scmp.ne.s32.totalorder %s580, %s594
    %p596 = scmp.eq.s32.totalorder %s40, 0
    %p597 = por %p595, %p596
    %s599 = sadd.s32 %s598, 1
    %p602 = scmp.eq.s32.totalorder %s34, 1
    %p603 = scmp.ne.s32.totalorder %s598, %s600
    %p604 = scmp.eq.s32.totalorder %s34, 0
    %p605 = por %p603, %p604
    %p606 = scmp.ne.s32.totalorder %s598, %s600
    %p607 = scmp.eq.s32.totalorder %s39, 1
    %p608 = por %p606, %p607
    %p609 = scmp.ne.s32.totalorder %s600, %s601
    %p610 = scmp.eq.s32.totalorder %s39, 0
    %p611 = por %p609, %p610
    %p612 = scmp.ne.s32.totalorder %s600, %s601
    %p613 = scmp.eq.s32.totalorder %s40, 1
    %p614 = por %p612, %p613
    %p616 = scmp.ne.s32.totalorder %s601, %s615
    %p617 = scmp.eq.s32.totalorder %s40, 0
    %p618 = por %p616, %p617
    %s620 = sadd.s32 %s619, 1
    %p623 = scmp.eq.s32.totalorder %s34, 1
    %p624 = scmp.ne.s32.totalorder %s619, %s621
    %p625 = scmp.eq.s32.totalorder %s34, 0
    %p626 = por %p624, %p625
    %p627 = scmp.ne.s32.totalorder %s619, %s621
    %p628 = scmp.eq.s32.totalorder %s39, 1
    %p629 = por %p627, %p628
    %p630 = scmp.ne.s32.totalorder %s621, %s622
    %p631 = scmp.eq.s32.totalorder %s39, 0
    %p632 = por %p630, %p631
    %p633 = scmp.ne.s32.totalorder %s621, %s622
    %p634 = scmp.eq.s32.totalorder %s40, 1
    %p635 = por %p633, %p634
    %p637 = scmp.ne.s32.totalorder %s622, %s636
    %p638 = scmp.eq.s32.totalorder %s40, 0
    %p639 = por %p637, %p638
    %s640 = ssub.s32 %s34, %s41
    %p641 = scmp.eq.s32.totalorder %s640, 0
    %s643 = sadd.s32 %s642, 1
    %s644 = scalar_select %p641, %s642, %s643
    %p647 = pneg %p641
    %p648 = scmp.eq.s32.totalorder %s34, 1
    %p649 = por %p647, %p648
    %p650 = scmp.ne.s32.totalorder %s642, %s645
    %p651 = scmp.eq.s32.totalorder %s34, 0
    %p652 = por %p650, %p651
    %p653 = scmp.ne.s32.totalorder %s642, %s645
    %p654 = scmp.eq.s32.totalorder %s39, 1
    %p655 = por %p653, %p654
    %p656 = scmp.ne.s32.totalorder %s645, %s646
    %p657 = scmp.eq.s32.totalorder %s39, 0
    %p658 = por %p656, %p657
    %p659 = scmp.ne.s32.totalorder %s645, %s646
    %p660 = scmp.eq.s32.totalorder %s40, 1
    %p661 = por %p659, %p660
    %p663 = scmp.ne.s32.totalorder %s646, %s662
    %p664 = scmp.eq.s32.totalorder %s40, 0
    %p665 = por %p663, %p664
    %p666 = scmp.le.s32.totalorder 1, %s34
    %p667 = scmp.lt.s32.totalorder %s34, 3
    %p668 = pnand %p666, %p667
    %p669 = pneg %p668
    // Predicated region
    $region9: #{csi2pointcloud_forward.6} parent=5 // pred_check
      _
    $region10: #{csi2pointcloud_forward.6} parent=5 // pred_check_branch
      %671 = sbr.rel (%p668) target = $region12
    $region11: #{csi2pointcloud_forward.6} parent=5 // pred_region
      %s672 = ssub.s32 %s34, 1
      // Predicated region
      $region13: #{csi2pointcloud_forward.6} parent=11 // pred_check
        %p673 = pneg %p107
      $region14: #{csi2pointcloud_forward.6} parent=11 // pred_check_branch
        %675 = sbr.rel (%p673) target = $region16
      $region15: #{csi2pointcloud_forward.6} parent=11 // pred_region
        _
      $region16: #{csi2pointcloud_forward.6} parent=11 // pred_fallthru
        _
      // Predicated region
      $region17: #{csi2pointcloud_forward.6} parent=11 // pred_check
        %p676 = pneg %p128
      $region18: #{csi2pointcloud_forward.6} parent=11 // pred_check_branch
        %678 = sbr.rel (%p676) target = $region20
      $region19: #{csi2pointcloud_forward.6} parent=11 // pred_region
        _
      $region20: #{csi2pointcloud_forward.6} parent=11 // pred_fallthru
        _
      // Predicated region
      $region21: #{csi2pointcloud_forward.6} parent=11 // pred_check
        %p679 = pneg %p149
      $region22: #{csi2pointcloud_forward.6} parent=11 // pred_check_branch
        %681 = sbr.rel (%p679) target = $region24
      $region23: #{csi2pointcloud_forward.6} parent=11 // pred_region
        _
      $region24: #{csi2pointcloud_forward.6} parent=11 // pred_fallthru
        _
      // Predicated region
      $region25: #{csi2pointcloud_forward.6} parent=11 // pred_check
        %p682 = pneg %p170
      $region26: #{csi2pointcloud_forward.6} parent=11 // pred_check_branch
        %684 = sbr.rel (%p682) target = $region28
      $region27: #{csi2pointcloud_forward.6} parent=11 // pred_region
        _
      $region28: #{csi2pointcloud_forward.6} parent=11 // pred_fallthru
        _
      // Predicated region
      $region29: #{csi2pointcloud_forward.6} parent=11 // pred_check
        %p685 = pneg %p191
      $region30: #{csi2pointcloud_forward.6} parent=11 // pred_check_branch
        %687 = sbr.rel (%p685) target = $region32
      $region31: #{csi2pointcloud_forward.6} parent=11 // pred_region
        _
      $region32: #{csi2pointcloud_forward.6} parent=11 // pred_fallthru
        _
      // Predicated region
      $region33: #{csi2pointcloud_forward.6} parent=11 // pred_check
        %p688 = pneg %p212
      $region34: #{csi2pointcloud_forward.6} parent=11 // pred_check_branch
        %690 = sbr.rel (%p688) target = $region36
      $region35: #{csi2pointcloud_forward.6} parent=11 // pred_region
        _
      $region36: #{csi2pointcloud_forward.6} parent=11 // pred_fallthru
        _
      // Predicated region
      $region37: #{csi2pointcloud_forward.6} parent=11 // pred_check
        %p691 = pneg %p233
      $region38: #{csi2pointcloud_forward.6} parent=11 // pred_check_branch
        %693 = sbr.rel (%p691) target = $region40
      $region39: #{csi2pointcloud_forward.6} parent=11 // pred_region
        _
      $region40: #{csi2pointcloud_forward.6} parent=11 // pred_fallthru
        _
      // Predicated region
      $region41: #{csi2pointcloud_forward.6} parent=11 // pred_check
        %p694 = pneg %p254
      $region42: #{csi2pointcloud_forward.6} parent=11 // pred_check_branch
        %696 = sbr.rel (%p694) target = $region44
      $region43: #{csi2pointcloud_forward.6} parent=11 // pred_region
        _
      $region44: #{csi2pointcloud_forward.6} parent=11 // pred_fallthru
        _
      // Predicated region
      $region45: #{csi2pointcloud_forward.6} parent=11 // pred_check
        %p697 = pneg %p275
      $region46: #{csi2pointcloud_forward.6} parent=11 // pred_check_branch
        %699 = sbr.rel (%p697) target = $region48
      $region47: #{csi2pointcloud_forward.6} parent=11 // pred_region
        _
      $region48: #{csi2pointcloud_forward.6} parent=11 // pred_fallthru
        _
      // Predicated region
      $region49: #{csi2pointcloud_forward.6} parent=11 // pred_check
        %p700 = pneg %p296
      $region50: #{csi2pointcloud_forward.6} parent=11 // pred_check_branch
        %702 = sbr.rel (%p700) target = $region52
      $region51: #{csi2pointcloud_forward.6} parent=11 // pred_region
        _
      $region52: #{csi2pointcloud_forward.6} parent=11 // pred_fallthru
        _
      // Predicated region
      $region53: #{csi2pointcloud_forward.6} parent=11 // pred_check
        %p703 = pneg %p317
      $region54: #{csi2pointcloud_forward.6} parent=11 // pred_check_branch
        %705 = sbr.rel (%p703) target = $region56
      $region55: #{csi2pointcloud_forward.6} parent=11 // pred_region
        _
      $region56: #{csi2pointcloud_forward.6} parent=11 // pred_fallthru
        _
      // Predicated region
      $region57: #{csi2pointcloud_forward.6} parent=11 // pred_check
        %p706 = pneg %p338
      $region58: #{csi2pointcloud_forward.6} parent=11 // pred_check_branch
        %708 = sbr.rel (%p706) target = $region60
      $region59: #{csi2pointcloud_forward.6} parent=11 // pred_region
        _
      $region60: #{csi2pointcloud_forward.6} parent=11 // pred_fallthru
        _
      // Predicated region
      $region61: #{csi2pointcloud_forward.6} parent=11 // pred_check
        %p709 = pneg %p359
      $region62: #{csi2pointcloud_forward.6} parent=11 // pred_check_branch
        %711 = sbr.rel (%p709) target = $region64
      $region63: #{csi2pointcloud_forward.6} parent=11 // pred_region
        _
      $region64: #{csi2pointcloud_forward.6} parent=11 // pred_fallthru
        _
      // Predicated region
      $region65: #{csi2pointcloud_forward.6} parent=11 // pred_check
        %p712 = pneg %p380
      $region66: #{csi2pointcloud_forward.6} parent=11 // pred_check_branch
        %714 = sbr.rel (%p712) target = $region68
      $region67: #{csi2pointcloud_forward.6} parent=11 // pred_region
        _
      $region68: #{csi2pointcloud_forward.6} parent=11 // pred_fallthru
        _
      // Predicated region
      $region69: #{csi2pointcloud_forward.6} parent=11 // pred_check
        %p715 = pneg %p401
      $region70: #{csi2pointcloud_forward.6} parent=11 // pred_check_branch
        %717 = sbr.rel (%p715) target = $region72
      $region71: #{csi2pointcloud_forward.6} parent=11 // pred_region
        _
      $region72: #{csi2pointcloud_forward.6} parent=11 // pred_fallthru
        _
      // Predicated region
      $region73: #{csi2pointcloud_forward.6} parent=11 // pred_check
        %p718 = pneg %p422
      $region74: #{csi2pointcloud_forward.6} parent=11 // pred_check_branch
        %720 = sbr.rel (%p718) target = $region76
      $region75: #{csi2pointcloud_forward.6} parent=11 // pred_region
        _
      $region76: #{csi2pointcloud_forward.6} parent=11 // pred_fallthru
        _
      // Predicated region
      $region77: #{csi2pointcloud_forward.6} parent=11 // pred_check
        %p721 = pneg %p443
      $region78: #{csi2pointcloud_forward.6} parent=11 // pred_check_branch
        %723 = sbr.rel (%p721) target = $region80
      $region79: #{csi2pointcloud_forward.6} parent=11 // pred_region
        _
      $region80: #{csi2pointcloud_forward.6} parent=11 // pred_fallthru
        _
      // Predicated region
      $region81: #{csi2pointcloud_forward.6} parent=11 // pred_check
        %p724 = pneg %p464
      $region82: #{csi2pointcloud_forward.6} parent=11 // pred_check_branch
        %726 = sbr.rel (%p724) target = $region84
      $region83: #{csi2pointcloud_forward.6} parent=11 // pred_region
        _
      $region84: #{csi2pointcloud_forward.6} parent=11 // pred_fallthru
        _
      // Predicated region
      $region85: #{csi2pointcloud_forward.6} parent=11 // pred_check
        %p727 = pneg %p485
      $region86: #{csi2pointcloud_forward.6} parent=11 // pred_check_branch
        %729 = sbr.rel (%p727) target = $region88
      $region87: #{csi2pointcloud_forward.6} parent=11 // pred_region
        _
      $region88: #{csi2pointcloud_forward.6} parent=11 // pred_fallthru
        _
      // Predicated region
      $region89: #{csi2pointcloud_forward.6} parent=11 // pred_check
        %p730 = pneg %p506
      $region90: #{csi2pointcloud_forward.6} parent=11 // pred_check_branch
        %732 = sbr.rel (%p730) target = $region92
      $region91: #{csi2pointcloud_forward.6} parent=11 // pred_region
        _
      $region92: #{csi2pointcloud_forward.6} parent=11 // pred_fallthru
        _
      // Predicated region
      $region93: #{csi2pointcloud_forward.6} parent=11 // pred_check
        %p733 = pneg %p527
      $region94: #{csi2pointcloud_forward.6} parent=11 // pred_check_branch
        %735 = sbr.rel (%p733) target = $region96
      $region95: #{csi2pointcloud_forward.6} parent=11 // pred_region
        _
      $region96: #{csi2pointcloud_forward.6} parent=11 // pred_fallthru
        _
      // Predicated region
      $region97: #{csi2pointcloud_forward.6} parent=11 // pred_check
        %p736 = pneg %p548
      $region98: #{csi2pointcloud_forward.6} parent=11 // pred_check_branch
        %738 = sbr.rel (%p736) target = $region100
      $region99: #{csi2pointcloud_forward.6} parent=11 // pred_region
        _
      $region100: #{csi2pointcloud_forward.6} parent=11 // pred_fallthru
        _
      // Predicated region
      $region101: #{csi2pointcloud_forward.6} parent=11 // pred_check
        %p739 = pneg %p569
      $region102: #{csi2pointcloud_forward.6} parent=11 // pred_check_branch
        %741 = sbr.rel (%p739) target = $region104
      $region103: #{csi2pointcloud_forward.6} parent=11 // pred_region
        _
      $region104: #{csi2pointcloud_forward.6} parent=11 // pred_fallthru
        _
      // Predicated region
      $region105: #{csi2pointcloud_forward.6} parent=11 // pred_check
        %p742 = pneg %p590
      $region106: #{csi2pointcloud_forward.6} parent=11 // pred_check_branch
        %744 = sbr.rel (%p742) target = $region108
      $region107: #{csi2pointcloud_forward.6} parent=11 // pred_region
        _
      $region108: #{csi2pointcloud_forward.6} parent=11 // pred_fallthru
        _
      // Predicated region
      $region109: #{csi2pointcloud_forward.6} parent=11 // pred_check
        %p745 = pneg %p611
      $region110: #{csi2pointcloud_forward.6} parent=11 // pred_check_branch
        %747 = sbr.rel (%p745) target = $region112
      $region111: #{csi2pointcloud_forward.6} parent=11 // pred_region
        _
      $region112: #{csi2pointcloud_forward.6} parent=11 // pred_fallthru
        _
      // Predicated region
      $region113: #{csi2pointcloud_forward.6} parent=11 // pred_check
        %p748 = pneg %p632
      $region114: #{csi2pointcloud_forward.6} parent=11 // pred_check_branch
        %750 = sbr.rel (%p748) target = $region116
      $region115: #{csi2pointcloud_forward.6} parent=11 // pred_region
        _
      $region116: #{csi2pointcloud_forward.6} parent=11 // pred_fallthru
        _
    $region12: #{csi2pointcloud_forward.6} parent=5 // pred_fallthru
      _
    %p751 = scmp.lt.s32.totalorder %s34, 2
    // Predicated region
    $region117: #{csi2pointcloud_forward.6} parent=5 // pred_check
      %p752 = pneg %p751
    $region118: #{csi2pointcloud_forward.6} parent=5 // pred_check_branch
      %754 = sbr.rel (%p752) target = $region120
    $region119: #{csi2pointcloud_forward.6} parent=5 // pred_region
      // Predicated region
      $region121: #{csi2pointcloud_forward.6} parent=119 // pred_check
        %p755 = pneg %p54
      $region122: #{csi2pointcloud_forward.6} parent=119 // pred_check_branch
        %757 = sbr.rel (%p755) target = $region124
      $region123: #{csi2pointcloud_forward.6} parent=119 // pred_region
        %p758 = scmp.lt.s32.totalorder %s34, 1
        %s759 = scalar_select %p758, %s34, 1
        %s760 = smul.addr %s759, 2
        %s761 = smul.addr %s760, 8
        %s762 = scalar_lea.vmem %s0, %s761
      $region124: #{csi2pointcloud_forward.6} parent=119 // pred_fallthru
        _
      // Predicated region
      $region125: #{csi2pointcloud_forward.6} parent=119 // pred_check
        %p763 = pneg %p80
      $region126: #{csi2pointcloud_forward.6} parent=119 // pred_check_branch
        %765 = sbr.rel (%p763) target = $region128
      $region127: #{csi2pointcloud_forward.6} parent=119 // pred_region
        %p766 = scmp.lt.s32.totalorder %s34, 1
        %s767 = scalar_select %p766, %s34, 1
        %s768 = smul.addr %s767, 3
        %s769 = smul.addr %s768, 8
        %s770 = scalar_lea.vmem %s1, %s769
      $region128: #{csi2pointcloud_forward.6} parent=119 // pred_fallthru
        _
    $region120: #{csi2pointcloud_forward.6} parent=5 // pred_fallthru
      _
    %p771 = scmp.le.s32.totalorder 1, %s34
    %p772 = scmp.lt.s32.totalorder %s34, 3
    %p773 = pnand %p771, %p772
    %p774 = pneg %p773
    // Predicated region
    $region129: #{csi2pointcloud_forward.6} parent=5 // pred_check
      _
    $region130: #{csi2pointcloud_forward.6} parent=5 // pred_check_branch
      %776 = sbr.rel (%p773) target = $region132
    $region131: #{csi2pointcloud_forward.6} parent=5 // pred_region
      %s777 = ssub.s32 %s34, 1
      %p778 = scmp.lt.s32.totalorder %s39, 1
      %s779 = scalar_select %p778, %s39, 1
      %s780 = smul.addr %s779, 2
      %s781 = smul.addr %s780, 8
      %s782 = scalar_lea.vmem %s0, %s781
      %p783 = pneg %p60
      %p784 = pneg %p57
      %p785 = scmp.lt.s32.totalorder %s39, 1
      %s786 = scalar_select %p785, %s39, 1
      %s787 = smul.addr %s786, 3
      %s788 = smul.addr %s787, 8
      %s789 = scalar_lea.vmem %s1, %s788
      %p790 = pneg %p86
      %p791 = pneg %p83
      %p792 = pneg %p107
      %p793 = pneg %p104
      %p794 = pneg %p128
      %p795 = pneg %p125
      %p796 = pneg %p149
      %p797 = pneg %p146
      %p798 = pneg %p170
      %p799 = pneg %p167
      %p800 = pneg %p191
      %p801 = pneg %p188
      %p802 = pneg %p212
      %p803 = pneg %p209
      %p804 = pneg %p233
      %p805 = pneg %p230
      %p806 = pneg %p254
      %p807 = pneg %p251
      %p808 = pneg %p275
      %p809 = pneg %p272
      %p810 = pneg %p296
      %p811 = pneg %p293
      %p812 = pneg %p317
      %p813 = pneg %p314
      %p814 = pneg %p338
      %p815 = pneg %p335
      %p816 = pneg %p359
      %p817 = pneg %p356
      %p818 = pneg %p380
      %p819 = pneg %p377
      %p820 = pneg %p401
      %p821 = pneg %p398
      %p822 = pneg %p422
      %p823 = pneg %p419
      %p824 = pneg %p443
      %p825 = pneg %p440
      %p826 = pneg %p464
      %p827 = pneg %p461
      %p828 = pneg %p485
      %p829 = pneg %p482
      %p830 = pneg %p506
      %p831 = pneg %p503
      %p832 = pneg %p527
      %p833 = pneg %p524
      %p834 = pneg %p548
      %p835 = pneg %p545
      %p836 = pneg %p569
      %p837 = pneg %p566
      %p838 = pneg %p590
      %p839 = pneg %p587
      %p840 = pneg %p611
      %p841 = pneg %p608
      %p842 = pneg %p632
      %p843 = pneg %p629
      %p844 = pneg %p658
      %p845 = pneg %p655
      %p846 = scmp.lt.s32.totalorder %s39, 1
      %s847 = scalar_select %p846, %s39, 1
      %s848 = smul.addr %s847, 2
      %s849 = smul.addr %s848, 8
      %s850 = scalar_lea.vmem %s28, %s849
      %p851 = scmp.lt.s32.totalorder %s39, 1
      %s852 = scalar_select %p851, %s39, 1
      %s853 = smul.addr %s852, 2
      %s854 = smul.addr %s853, 8
      %s855 = scalar_lea.vmem %s0, %s854
      %p856 = scmp.lt.s32.totalorder %s39, 1
      %s857 = scalar_select %p856, %s39, 1
      %s858 = smul.addr %s857, 3
      %s859 = smul.addr %s858, 8
      %s860 = scalar_lea.vmem %s1, %s859
      %p861 = scmp.lt.s32.totalorder %s39, 1
      %s862 = scalar_select %p861, %s39, 1
      %s863 = smul.addr %s862, 2
      %s864 = smul.addr %s863, 8
      %s865 = scalar_lea.vmem %s28, %s864
      %v867 = vld [vmem:[%s855] sm:$0xff]
      %v868 = vld [vmem:[%s855 + $0x8] sm:$0xff]
      %v869 = vld [vmem:[%s860] sm:$0xff]
      %v870 = vld [vmem:[%s860 + $0x8] sm:$0xff]
      %v871 = vld [vmem:[%s860 + $0x10] sm:$0xff]
      %v872 = vld [vmem:[%s2] sm:$0xf]
      %v873 = vld [vmem:[%s2 + $0x4] sm:$0xf]
      %v874 = vld [vmem:[%s2 + $0x8] sm:$0xf]
      %v875 = vld [vmem:[%s2 + $0xc] sm:$0xf]
      %v876 = vpack.c.bf16 %v868, %v867
      %v877 = vld [vmem:[%s5] sm:$0x1]
      %v879 = vlaneseq
      %v880 = vshrl.u32 %v879, 7
      %v881 = vsub.s32 0, %v880
      %v882 = vrot.slane %v877, %v881
      %v888 = vunpack.c.l.b16 %v872
      %v889 = vunpack.c.l.b16 %v873
      %v890 = vunpack.c.l.b16 %v874
      %v891 = vunpack.c.l.b16 %v875
      %v892 = vpack.c.b16 %v889, %v888
      %v893 = vpack.c.b16 %v891, %v890
      %vm896 = vcmask 261120
      %v898 = vsel %vm896, %v876, 0
      %900 = vmatprep.subr.bf16.mxu0 0
      %901 = vmatpush1.bf16.msra.mxu0 0
      %902 = vmatprep.subr.bf16.mxu0 0
      %903 = vmatpush1.bf16.msra.mxu0 0
      %904 = vmatprep.subr.bf16.mxu0 0
      %905 = vmatpush1.bf16.msra.mxu0 0
      %906 = vmatprep.subr.bf16.mxu0 0
      %907 = vmatpush1.bf16.msra.mxu0 0
      %908 = vmatprep.subr.bf16.mxu0 0
      %909 = vmatpush1.bf16.msra.mxu0 0
      %910 = vmatprep.subr.bf16.mxu0 0
      %911 = vmatpush1.bf16.msra.mxu0 0
      %912 = vmatprep.subr.bf16.mxu0 0
      %913 = vmatpush1.bf16.msra.mxu0 %v893
      %914 = vmatprep.subr.bf16.mxu0 0
      %915 = vmatpush1.bf16.msra.mxu0 %v892
      %916 = vmatprep.subr.bf16.mxu0 0
      %917 = vmatpush2.bf16.msra.mxu0 0
      %918 = vmatprep.subr.bf16.mxu0 0
      %919 = vmatpush2.bf16.msra.mxu0 0
      %920 = vmatprep.subr.bf16.mxu0 0
      %921 = vmatpush2.bf16.msra.mxu0 0
      %922 = vmatprep.subr.bf16.mxu0 0
      %923 = vmatpush2.bf16.msra.mxu0 0
      %924 = vmatprep.subr.bf16.mxu0 0
      %925 = vmatpush2.bf16.msra.mxu0 0
      %926 = vmatprep.subr.bf16.mxu0 0
      %927 = vmatpush2.bf16.msra.mxu0 0
      %928 = vmatprep.subr.bf16.mxu0 0
      %929 = vmatpush2.bf16.msra.mxu0 0
      %930 = vmatprep.subr.bf16.mxu0 0
      %931 = vmatpush2.bf16.msra.mxu0 0
      %932 = vmatprep.mubr.bf16.mxu0 0
      %933 = vmatmul.mubr.bf16.gmra.mxu0 %v898
      %v934 = vpop.f32.mrf.mxu0
      %v935 = vadd.f32 %v882, %v934
      %v936 = vpop.f32.mrf.mxu0
      %v937 = vpop.f32.mrf.mxu0
      %v938 = vadd.f32 %v882, %v937
      %v939 = vpop.f32.mrf.mxu0
      %940 = vdwg.mxu0
      %v941 = vld [vmem:[%s3] sm:$0xf]
      %v942 = vld [vmem:[%s3 + $0x4] sm:$0xf]
      %v943 = vld [vmem:[%s3 + $0x8] sm:$0xf]
      %v944 = vld [vmem:[%s3 + $0xc] sm:$0xf]
      %v945 = vld [vmem:[%s6] sm:$0x1]
      %v947 = vlaneseq
      %v948 = vshrl.u32 %v947, 7
      %v949 = vsub.s32 0, %v948
      %v950 = vrot.slane %v945, %v949
      %v956 = vunpack.c.l.b16 %v941
      %v957 = vunpack.c.l.b16 %v942
      %v958 = vunpack.c.l.b16 %v943
      %v959 = vunpack.c.l.b16 %v944
      %v960 = vpack.c.b16 %v957, %v956
      %v961 = vpack.c.b16 %v959, %v958
      %964 = vmatprep.subr.bf16.mxu0 0
      %965 = vmatpush1.bf16.msra.mxu0 0
      %966 = vmatprep.subr.bf16.mxu0 0
      %967 = vmatpush1.bf16.msra.mxu0 0
      %968 = vmatprep.subr.bf16.mxu0 0
      %969 = vmatpush1.bf16.msra.mxu0 0
      %970 = vmatprep.subr.bf16.mxu0 0
      %971 = vmatpush1.bf16.msra.mxu0 0
      %972 = vmatprep.subr.bf16.mxu0 0
      %973 = vmatpush1.bf16.msra.mxu0 0
      %974 = vmatprep.subr.bf16.mxu0 0
      %975 = vmatpush1.bf16.msra.mxu0 0
      %976 = vmatprep.subr.bf16.mxu0 0
      %977 = vmatpush1.bf16.msra.mxu0 %v961
      %978 = vmatprep.subr.bf16.mxu0 0
      %979 = vmatpush1.bf16.msra.mxu0 %v960
      %980 = vmatprep.subr.bf16.mxu0 0
      %981 = vmatpush2.bf16.msra.mxu0 0
      %982 = vmatprep.subr.bf16.mxu0 0
      %983 = vmatpush2.bf16.msra.mxu0 0
      %984 = vmatprep.subr.bf16.mxu0 0
      %985 = vmatpush2.bf16.msra.mxu0 0
      %986 = vmatprep.subr.bf16.mxu0 0
      %987 = vmatpush2.bf16.msra.mxu0 0
      %988 = vmatprep.subr.bf16.mxu0 0
      %989 = vmatpush2.bf16.msra.mxu0 0
      %990 = vmatprep.subr.bf16.mxu0 0
      %991 = vmatpush2.bf16.msra.mxu0 0
      %992 = vmatprep.subr.bf16.mxu0 0
      %993 = vmatpush2.bf16.msra.mxu0 0
      %994 = vmatprep.subr.bf16.mxu0 0
      %995 = vmatpush2.bf16.msra.mxu0 0
      %996 = vmatprep.mubr.bf16.mxu0 0
      %997 = vmatmul.mubr.bf16.gmra.mxu0 %v898
      %v998 = vpop.f32.mrf.mxu0
      %v999 = vadd.f32 %v950, %v998
      %v1000 = vpop.f32.mrf.mxu0
      %v1001 = vpop.f32.mrf.mxu0
      %v1002 = vadd.f32 %v950, %v1001
      %v1003 = vpop.f32.mrf.mxu0
      %1004 = vdwg.mxu0
      %v1005 = vld [vmem:[%s4] sm:$0xf]
      %v1006 = vld [vmem:[%s4 + $0x4] sm:$0xf]
      %v1007 = vld [vmem:[%s4 + $0x8] sm:$0xf]
      %v1008 = vld [vmem:[%s4 + $0xc] sm:$0xf]
      %v1009 = vld [vmem:[%s7] sm:$0x1]
      %v1011 = vlaneseq
      %v1012 = vshrl.u32 %v1011, 7
      %v1013 = vsub.s32 0, %v1012
      %v1014 = vrot.slane %v1009, %v1013
      %v1020 = vunpack.c.l.b16 %v1005
      %v1021 = vunpack.c.l.b16 %v1006
      %v1022 = vunpack.c.l.b16 %v1007
      %v1023 = vunpack.c.l.b16 %v1008
      %v1024 = vpack.c.b16 %v1021, %v1020
      %v1025 = vpack.c.b16 %v1023, %v1022
      %1028 = vmatprep.subr.bf16.mxu0 0
      %1029 = vmatpush1.bf16.msra.mxu0 0
      %1030 = vmatprep.subr.bf16.mxu0 0
      %1031 = vmatpush1.bf16.msra.mxu0 0
      %1032 = vmatprep.subr.bf16.mxu0 0
      %1033 = vmatpush1.bf16.msra.mxu0 0
      %1034 = vmatprep.subr.bf16.mxu0 0
      %1035 = vmatpush1.bf16.msra.mxu0 0
      %1036 = vmatprep.subr.bf16.mxu0 0
      %1037 = vmatpush1.bf16.msra.mxu0 0
      %1038 = vmatprep.subr.bf16.mxu0 0
      %1039 = vmatpush1.bf16.msra.mxu0 0
      %1040 = vmatprep.subr.bf16.mxu0 0
      %1041 = vmatpush1.bf16.msra.mxu0 %v1025
      %1042 = vmatprep.subr.bf16.mxu0 0
      %1043 = vmatpush1.bf16.msra.mxu0 %v1024
      %1044 = vmatprep.subr.bf16.mxu0 0
      %1045 = vmatpush2.bf16.msra.mxu0 0
      %1046 = vmatprep.subr.bf16.mxu0 0
      %1047 = vmatpush2.bf16.msra.mxu0 0
      %1048 = vmatprep.subr.bf16.mxu0 0
      %1049 = vmatpush2.bf16.msra.mxu0 0
      %1050 = vmatprep.subr.bf16.mxu0 0
      %1051 = vmatpush2.bf16.msra.mxu0 0
      %1052 = vmatprep.subr.bf16.mxu0 0
      %1053 = vmatpush2.bf16.msra.mxu0 0
      %1054 = vmatprep.subr.bf16.mxu0 0
      %1055 = vmatpush2.bf16.msra.mxu0 0
      %1056 = vmatprep.subr.bf16.mxu0 0
      %1057 = vmatpush2.bf16.msra.mxu0 0
      %1058 = vmatprep.subr.bf16.mxu0 0
      %1059 = vmatpush2.bf16.msra.mxu0 0
      %1060 = vmatprep.mubr.bf16.mxu0 0
      %1061 = vmatmul.mubr.bf16.gmra.mxu0 %v898
      %v1062 = vpop.f32.mrf.mxu0
      %v1063 = vadd.f32 %v1014, %v1062
      %v1064 = vpop.f32.mrf.mxu0
      %v1065 = vpop.f32.mrf.mxu0
      %v1066 = vadd.f32 %v1014, %v1065
      %v1067 = vpop.f32.mrf.mxu0
      %1068 = vdwg.mxu0
      %v1069 = vlaneseq
      %v1070 = vand.u32 %v1069, 127
      %1071 = vxpose.xlu0.b32.start [1/16] %v999, 128
      %1072 = vxpose.xlu0.b32.cont [2/16] %v1002, 128
      %1073 = vxpose.xlu0.b32.cont [3/16] 0.0, 128
      %1074 = vxpose.xlu0.b32.cont [4/16] 0.0, 128
      %1075 = vxpose.xlu0.b32.cont [5/16] 0.0, 128
      %1076 = vxpose.xlu0.b32.cont [6/16] 0.0, 128
      %1077 = vxpose.xlu0.b32.cont [7/16] 0.0, 128
      %1078 = vxpose.xlu0.b32.cont [8/16] 0.0, 128
      %1079 = vxpose.xlu0.b32.cont [9/16] 0.0, 128
      %1080 = vxpose.xlu0.b32.cont [10/16] 0.0, 128
      %1081 = vxpose.xlu0.b32.cont [11/16] 0.0, 128
      %1082 = vxpose.xlu0.b32.cont [12/16] 0.0, 128
      %1083 = vxpose.xlu0.b32.cont [13/16] 0.0, 128
      %1084 = vxpose.xlu0.b32.cont [14/16] 0.0, 128
      %1085 = vxpose.xlu0.b32.cont [15/16] 0.0, 128
      %1086 = vxpose.xlu0.b32.end [16/16] 0.0, 128
      %v1087 = vpop.trf.xlu0
      %v1088 = vpop.trf.xlu0
      %v1089 = vpop.trf.xlu0
      %v1090 = vpop.trf.xlu0
      %v1091 = vpop.trf.xlu0
      %v1092 = vpop.trf.xlu0
      %v1093 = vpop.trf.xlu0
      %v1094 = vpop.trf.xlu0
      %v1095 = vpop.trf.xlu0
      %v1096 = vpop.trf.xlu0
      %v1097 = vpop.trf.xlu0
      %v1098 = vpop.trf.xlu0
      %v1099 = vpop.trf.xlu0
      %v1100 = vpop.trf.xlu0
      %v1101 = vpop.trf.xlu0
      %v1102 = vpop.trf.xlu0
      %v1103 = vpack.c.bf16 %v1088, %v1087
      %v1104 = vpack.c.bf16 %v1090, %v1089
      %vm1105 = vcmp.ge.s32.totalorder %v1070, 0
      %vm1106 = vcmp.lt.s32.totalorder %v1070, 8
      %vm1107 = vmand %vm1105, %vm1106
      %v1108 = vsel %vm1107, 1, 0
      %v1109 = vcvt.s32.f32 %v1108
      %v1110 = vmul.f32 %v935, %v1109
      %v1111 = vmul.f32 %v938, %v1109
      %v1112 = vpack.c.bf16 %v1111, %v1110
      %v1114 = vsel %vm896, %v1112, 0
      %1116 = vmatprep.subr.bf16.mxu0 0
      %1117 = vmatpush1.bf16.msra.mxu0 0
      %1118 = vmatprep.subr.bf16.mxu0 0
      %1119 = vmatpush1.bf16.msra.mxu0 0
      %1120 = vmatprep.subr.bf16.mxu0 0
      %1121 = vmatpush1.bf16.msra.mxu0 0
      %1122 = vmatprep.subr.bf16.mxu0 0
      %1123 = vmatpush1.bf16.msra.mxu0 0
      %1124 = vmatprep.subr.bf16.mxu0 0
      %1125 = vmatpush1.bf16.msra.mxu0 0
      %1126 = vmatprep.subr.bf16.mxu0 0
      %1127 = vmatpush1.bf16.msra.mxu0 0
      %1128 = vmatprep.subr.bf16.mxu0 0
      %1129 = vmatpush1.bf16.msra.mxu0 %v1104
      %1130 = vmatprep.subr.bf16.mxu0 0
      %1131 = vmatpush1.bf16.msra.mxu0 %v1103
      %1132 = vmatprep.subr.bf16.mxu0 0
      %1133 = vmatpush2.bf16.msra.mxu0 0
      %1134 = vmatprep.subr.bf16.mxu0 0
      %1135 = vmatpush2.bf16.msra.mxu0 0
      %1136 = vmatprep.subr.bf16.mxu0 0
      %1137 = vmatpush2.bf16.msra.mxu0 0
      %1138 = vmatprep.subr.bf16.mxu0 0
      %1139 = vmatpush2.bf16.msra.mxu0 0
      %1140 = vmatprep.subr.bf16.mxu0 0
      %1141 = vmatpush2.bf16.msra.mxu0 0
      %1142 = vmatprep.subr.bf16.mxu0 0
      %1143 = vmatpush2.bf16.msra.mxu0 0
      %1144 = vmatprep.subr.bf16.mxu0 0
      %1145 = vmatpush2.bf16.msra.mxu0 0
      %1146 = vmatprep.subr.bf16.mxu0 0
      %1147 = vmatpush2.bf16.msra.mxu0 0
      %1148 = vmatprep.mubr.bf16.mxu0 0
      %1149 = vmatmul.mubr.bf16.gmra.mxu0 %v1114
      %v1150 = vpop.f32.mrf.mxu0
      %v1151 = vadd.f32 0.0, %v1150
      %v1152 = vpop.f32.mrf.mxu0
      %v1153 = vpop.f32.mrf.mxu0
      %v1154 = vadd.f32 0.0, %v1153
      %v1155 = vpop.f32.mrf.mxu0
      %1156 = vdwg.mxu0
      %v1157 = vmul.f32 %v1151, 0.35355338
      %v1158 = vmul.f32 %v1154, 0.35355338
      %vm1159 = vcmask 130048
      %v1160 = vsel %vm1159, %v1157, -inf
      %1161 = vmax.xlane.f32.xlu0 %v1160
      %v1162 = vpop.xlane.xlu0 %1161
      %v1163 = vsel %vm1159, %v1158, -inf
      %1164 = vmax.xlane.f32.xlu0 %v1163
      %v1165 = vpop.xlane.xlu0 %1164
      %v1166 = vsub.f32 %v1157, %v1162
      %v1167 = vsub.f32 %v1158, %v1165
      %v1168 = vmul.f32 %v1166, 1.442695
      %v1169 = vpow.pop %v1168
      %v1170 = vmul.f32 %v1167, 1.442695
      %v1171 = vpow.pop %v1170
      %v1172 = vsel %vm1159, %v1169, 0.0
      %1173 = vadd.xlane.f32.xlu0 %v1172
      %v1174 = vpop.xlane.xlu0 %1173
      %v1175 = vsel %vm1159, %v1171, 0.0
      %1176 = vadd.xlane.f32.xlu0 %v1175
      %v1177 = vpop.xlane.xlu0 %1176
      %v1178 = vrcp.pop %v1174
      %v1179 = vrcp.pop %v1177
      %v1180 = vmul.f32 %v1169, %v1178
      %v1181 = vmul.f32 %v1171, %v1179
      %v1182 = vmul.f32 %v1063, %v1109
      %v1183 = vmul.f32 %v1066, %v1109
      %v1184 = vpack.c.bf16 %v1181, %v1180
      %v1185 = vpack.c.bf16 %v1183, %v1182
      %vm1186 = vcmp.ge.s32.totalorder %v1070, 8
      %vm1187 = vcmp.lt.s32.totalorder %v1070, 16
      %vm1188 = vmand %vm1186, %vm1187
      %v1189 = vsel %vm1188, 1, 0
      %v1190 = vcvt.s32.f32 %v1189
      %v1191 = vmul.f32 %v935, %v1190
      %v1192 = vmul.f32 %v938, %v1190
      %v1193 = vpack.c.bf16 %v1192, %v1191
      %v1195 = vsel %vm896, %v1193, 0
      %1197 = vmatprep.subr.bf16.mxu0 0
      %1198 = vmatpush1.bf16.msra.mxu0 0
      %1199 = vmatprep.subr.bf16.mxu0 0
      %1200 = vmatpush1.bf16.msra.mxu0 0
      %1201 = vmatprep.subr.bf16.mxu0 0
      %1202 = vmatpush1.bf16.msra.mxu0 0
      %1203 = vmatprep.subr.bf16.mxu0 0
      %1204 = vmatpush1.bf16.msra.mxu0 0
      %1205 = vmatprep.subr.bf16.mxu0 0
      %1206 = vmatpush1.bf16.msra.mxu0 0
      %1207 = vmatprep.subr.bf16.mxu0 0
      %1208 = vmatpush1.bf16.msra.mxu0 0
      %1209 = vmatprep.subr.bf16.mxu0 0
      %1210 = vmatpush1.bf16.msra.mxu0 %v1104
      %1211 = vmatprep.subr.bf16.mxu0 0
      %1212 = vmatpush1.bf16.msra.mxu0 %v1103
      %1213 = vmatprep.subr.bf16.mxu0 0
      %1214 = vmatpush2.bf16.msra.mxu0 0
      %1215 = vmatprep.subr.bf16.mxu0 0
      %1216 = vmatpush2.bf16.msra.mxu0 0
      %1217 = vmatprep.subr.bf16.mxu0 0
      %1218 = vmatpush2.bf16.msra.mxu0 0
      %1219 = vmatprep.subr.bf16.mxu0 0
      %1220 = vmatpush2.bf16.msra.mxu0 0
      %1221 = vmatprep.subr.bf16.mxu0 0
      %1222 = vmatpush2.bf16.msra.mxu0 0
      %1223 = vmatprep.subr.bf16.mxu0 0
      %1224 = vmatpush2.bf16.msra.mxu0 0
      %1225 = vmatprep.subr.bf16.mxu0 0
      %1226 = vmatpush2.bf16.msra.mxu0 0
      %1227 = vmatprep.subr.bf16.mxu0 0
      %1228 = vmatpush2.bf16.msra.mxu0 0
      %1229 = vmatprep.mubr.bf16.mxu0 0
      %1230 = vmatmul.mubr.bf16.gmra.mxu0 %v1195
      %v1231 = vpop.f32.mrf.mxu0
      %v1232 = vadd.f32 0.0, %v1231
      %v1233 = vpop.f32.mrf.mxu0
      %v1234 = vpop.f32.mrf.mxu0
      %v1235 = vadd.f32 0.0, %v1234
      %v1236 = vpop.f32.mrf.mxu0
      %1237 = vdwg.mxu0
      %v1238 = vmul.f32 %v1232, 0.35355338
      %v1239 = vmul.f32 %v1235, 0.35355338
      %v1240 = vsel %vm1159, %v1238, -inf
      %1241 = vmax.xlane.f32.xlu0 %v1240
      %v1242 = vpop.xlane.xlu0 %1241
      %v1243 = vsel %vm1159, %v1239, -inf
      %1244 = vmax.xlane.f32.xlu0 %v1243
      %v1245 = vpop.xlane.xlu0 %1244
      %v1246 = vsub.f32 %v1238, %v1242
      %v1247 = vsub.f32 %v1239, %v1245
      %v1248 = vmul.f32 %v1246, 1.442695
      %v1249 = vpow.pop %v1248
      %v1250 = vmul.f32 %v1247, 1.442695
      %v1251 = vpow.pop %v1250
      %v1252 = vsel %vm1159, %v1249, 0.0
      %1253 = vadd.xlane.f32.xlu0 %v1252
      %v1254 = vpop.xlane.xlu0 %1253
      %v1255 = vsel %vm1159, %v1251, 0.0
      %1256 = vadd.xlane.f32.xlu0 %v1255
      %v1257 = vpop.xlane.xlu0 %1256
      %v1258 = vrcp.pop %v1254
      %v1259 = vrcp.pop %v1257
      %v1260 = vmul.f32 %v1249, %v1258
      %v1261 = vmul.f32 %v1251, %v1259
      %v1262 = vmul.f32 %v1063, %v1190
      %v1263 = vmul.f32 %v1066, %v1190
      %v1264 = vpack.c.bf16 %v1261, %v1260
      %v1265 = vpack.c.bf16 %v1263, %v1262
      %v1267 = vsel %vm1159, %v1264, 0
      %1269 = vmatprep.subr.bf16.mxu0 0
      %1270 = vmatpush1.bf16.msra.mxu0 0
      %1271 = vmatprep.subr.bf16.mxu0 0
      %1272 = vmatpush1.bf16.msra.mxu0 0
      %1273 = vmatprep.subr.bf16.mxu0 0
      %1274 = vmatpush1.bf16.msra.mxu0 0
      %1275 = vmatprep.subr.bf16.mxu0 0
      %1276 = vmatpush1.bf16.msra.mxu0 0
      %1277 = vmatprep.subr.bf16.mxu0 0
      %1278 = vmatpush1.bf16.msra.mxu0 0
      %1279 = vmatprep.subr.bf16.mxu0 0
      %1280 = vmatpush1.bf16.msra.mxu0 0
      %1281 = vmatprep.subr.bf16.mxu0 0
      %1282 = vmatpush1.bf16.msra.mxu0 0
      %1283 = vmatprep.subr.bf16.mxu0 0
      %1284 = vmatpush1.bf16.msra.mxu0 %v1265
      %1285 = vmatprep.subr.bf16.mxu0 0
      %1286 = vmatpush2.bf16.msra.mxu0 0
      %1287 = vmatprep.subr.bf16.mxu0 0
      %1288 = vmatpush2.bf16.msra.mxu0 0
      %1289 = vmatprep.subr.bf16.mxu0 0
      %1290 = vmatpush2.bf16.msra.mxu0 0
      %1291 = vmatprep.subr.bf16.mxu0 0
      %1292 = vmatpush2.bf16.msra.mxu0 0
      %1293 = vmatprep.subr.bf16.mxu0 0
      %1294 = vmatpush2.bf16.msra.mxu0 0
      %1295 = vmatprep.subr.bf16.mxu0 0
      %1296 = vmatpush2.bf16.msra.mxu0 0
      %1297 = vmatprep.subr.bf16.mxu0 0
      %1298 = vmatpush2.bf16.msra.mxu0 0
      %1299 = vmatprep.subr.bf16.mxu0 0
      %1300 = vmatpush2.bf16.msra.mxu0 0
      %1301 = vmatprep.mubr.bf16.mxu0 0
      %1302 = vmatmul.mubr.bf16.gmra.mxu0 %v1267
      %v1303 = vpop.f32.mrf.mxu0
      %v1304 = vadd.f32 0.0, %v1303
      %v1305 = vpop.f32.mrf.mxu0
      %v1306 = vpop.f32.mrf.mxu0
      %v1307 = vadd.f32 0.0, %v1306
      %v1308 = vpop.f32.mrf.mxu0
      %1309 = vdwg.mxu0
      %v1311 = vsel %vm1159, %v1184, 0
      %1313 = vmatprep.subr.bf16.mxu0 0
      %1314 = vmatpush1.bf16.msra.mxu0 0
      %1315 = vmatprep.subr.bf16.mxu0 0
      %1316 = vmatpush1.bf16.msra.mxu0 0
      %1317 = vmatprep.subr.bf16.mxu0 0
      %1318 = vmatpush1.bf16.msra.mxu0 0
      %1319 = vmatprep.subr.bf16.mxu0 0
      %1320 = vmatpush1.bf16.msra.mxu0 0
      %1321 = vmatprep.subr.bf16.mxu0 0
      %1322 = vmatpush1.bf16.msra.mxu0 0
      %1323 = vmatprep.subr.bf16.mxu0 0
      %1324 = vmatpush1.bf16.msra.mxu0 0
      %1325 = vmatprep.subr.bf16.mxu0 0
      %1326 = vmatpush1.bf16.msra.mxu0 0
      %1327 = vmatprep.subr.bf16.mxu0 0
      %1328 = vmatpush1.bf16.msra.mxu0 %v1185
      %1329 = vmatprep.subr.bf16.mxu0 0
      %1330 = vmatpush2.bf16.msra.mxu0 0
      %1331 = vmatprep.subr.bf16.mxu0 0
      %1332 = vmatpush2.bf16.msra.mxu0 0
      %1333 = vmatprep.subr.bf16.mxu0 0
      %1334 = vmatpush2.bf16.msra.mxu0 0
      %1335 = vmatprep.subr.bf16.mxu0 0
      %1336 = vmatpush2.bf16.msra.mxu0 0
      %1337 = vmatprep.subr.bf16.mxu0 0
      %1338 = vmatpush2.bf16.msra.mxu0 0
      %1339 = vmatprep.subr.bf16.mxu0 0
      %1340 = vmatpush2.bf16.msra.mxu0 0
      %1341 = vmatprep.subr.bf16.mxu0 0
      %1342 = vmatpush2.bf16.msra.mxu0 0
      %1343 = vmatprep.subr.bf16.mxu0 0
      %1344 = vmatpush2.bf16.msra.mxu0 0
      %1345 = vmatprep.mubr.bf16.mxu0 0
      %1346 = vmatmul.mubr.bf16.gmra.mxu0 %v1311
      %v1347 = vpop.f32.mrf.mxu0
      %v1348 = vadd.f32 %v1304, %v1347
      %v1349 = vpop.f32.mrf.mxu0
      %v1350 = vpop.f32.mrf.mxu0
      %v1351 = vadd.f32 %v1307, %v1350
      %v1352 = vpop.f32.mrf.mxu0
      %1353 = vdwg.mxu0
      %vm1354 = vcmp.ge.s32.totalorder %v1070, 16
      %vm1355 = vcmp.lt.s32.totalorder %v1070, 24
      %vm1356 = vmand %vm1354, %vm1355
      %v1357 = vsel %vm1356, 1, 0
      %v1358 = vcvt.s32.f32 %v1357
      %v1359 = vmul.f32 %v935, %v1358
      %v1360 = vmul.f32 %v938, %v1358
      %v1361 = vpack.c.bf16 %v1360, %v1359
      %v1363 = vsel %vm896, %v1361, 0
      %1365 = vmatprep.subr.bf16.mxu0 0
      %1366 = vmatpush1.bf16.msra.mxu0 0
      %1367 = vmatprep.subr.bf16.mxu0 0
      %1368 = vmatpush1.bf16.msra.mxu0 0
      %1369 = vmatprep.subr.bf16.mxu0 0
      %1370 = vmatpush1.bf16.msra.mxu0 0
      %1371 = vmatprep.subr.bf16.mxu0 0
      %1372 = vmatpush1.bf16.msra.mxu0 0
      %1373 = vmatprep.subr.bf16.mxu0 0
      %1374 = vmatpush1.bf16.msra.mxu0 0
      %1375 = vmatprep.subr.bf16.mxu0 0
      %1376 = vmatpush1.bf16.msra.mxu0 0
      %1377 = vmatprep.subr.bf16.mxu0 0
      %1378 = vmatpush1.bf16.msra.mxu0 %v1104
      %1379 = vmatprep.subr.bf16.mxu0 0
      %1380 = vmatpush1.bf16.msra.mxu0 %v1103
      %1381 = vmatprep.subr.bf16.mxu0 0
      %1382 = vmatpush2.bf16.msra.mxu0 0
      %1383 = vmatprep.subr.bf16.mxu0 0
      %1384 = vmatpush2.bf16.msra.mxu0 0
      %1385 = vmatprep.subr.bf16.mxu0 0
      %1386 = vmatpush2.bf16.msra.mxu0 0
      %1387 = vmatprep.subr.bf16.mxu0 0
      %1388 = vmatpush2.bf16.msra.mxu0 0
      %1389 = vmatprep.subr.bf16.mxu0 0
      %1390 = vmatpush2.bf16.msra.mxu0 0
      %1391 = vmatprep.subr.bf16.mxu0 0
      %1392 = vmatpush2.bf16.msra.mxu0 0
      %1393 = vmatprep.subr.bf16.mxu0 0
      %1394 = vmatpush2.bf16.msra.mxu0 0
      %1395 = vmatprep.subr.bf16.mxu0 0
      %1396 = vmatpush2.bf16.msra.mxu0 0
      %1397 = vmatprep.mubr.bf16.mxu0 0
      %1398 = vmatmul.mubr.bf16.gmra.mxu0 %v1363
      %v1399 = vpop.f32.mrf.mxu0
      %v1400 = vadd.f32 0.0, %v1399
      %v1401 = vpop.f32.mrf.mxu0
      %v1402 = vpop.f32.mrf.mxu0
      %v1403 = vadd.f32 0.0, %v1402
      %v1404 = vpop.f32.mrf.mxu0
      %1405 = vdwg.mxu0
      %v1406 = vmul.f32 %v1400, 0.35355338
      %v1407 = vmul.f32 %v1403, 0.35355338
      %v1408 = vsel %vm1159, %v1406, -inf
      %1409 = vmax.xlane.f32.xlu0 %v1408
      %v1410 = vpop.xlane.xlu0 %1409
      %v1411 = vsel %vm1159, %v1407, -inf
      %1412 = vmax.xlane.f32.xlu0 %v1411
      %v1413 = vpop.xlane.xlu0 %1412
      %v1414 = vsub.f32 %v1406, %v1410
      %v1415 = vsub.f32 %v1407, %v1413
      %v1416 = vmul.f32 %v1414, 1.442695
      %v1417 = vpow.pop %v1416
      %v1418 = vmul.f32 %v1415, 1.442695
      %v1419 = vpow.pop %v1418
      %v1420 = vsel %vm1159, %v1417, 0.0
      %1421 = vadd.xlane.f32.xlu0 %v1420
      %v1422 = vpop.xlane.xlu0 %1421
      %v1423 = vsel %vm1159, %v1419, 0.0
      %1424 = vadd.xlane.f32.xlu0 %v1423
      %v1425 = vpop.xlane.xlu0 %1424
      %v1426 = vrcp.pop %v1422
      %v1427 = vrcp.pop %v1425
      %v1428 = vmul.f32 %v1417, %v1426
      %v1429 = vmul.f32 %v1419, %v1427
      %v1430 = vmul.f32 %v1063, %v1358
      %v1431 = vmul.f32 %v1066, %v1358
      %v1432 = vpack.c.bf16 %v1429, %v1428
      %v1433 = vpack.c.bf16 %v1431, %v1430
      %v1435 = vsel %vm1159, %v1432, 0
      %1437 = vmatprep.subr.bf16.mxu0 0
      %1438 = vmatpush1.bf16.msra.mxu0 0
      %1439 = vmatprep.subr.bf16.mxu0 0
      %1440 = vmatpush1.bf16.msra.mxu0 0
      %1441 = vmatprep.subr.bf16.mxu0 0
      %1442 = vmatpush1.bf16.msra.mxu0 0
      %1443 = vmatprep.subr.bf16.mxu0 0
      %1444 = vmatpush1.bf16.msra.mxu0 0
      %1445 = vmatprep.subr.bf16.mxu0 0
      %1446 = vmatpush1.bf16.msra.mxu0 0
      %1447 = vmatprep.subr.bf16.mxu0 0
      %1448 = vmatpush1.bf16.msra.mxu0 0
      %1449 = vmatprep.subr.bf16.mxu0 0
      %1450 = vmatpush1.bf16.msra.mxu0 0
      %1451 = vmatprep.subr.bf16.mxu0 0
      %1452 = vmatpush1.bf16.msra.mxu0 %v1433
      %1453 = vmatprep.subr.bf16.mxu0 0
      %1454 = vmatpush2.bf16.msra.mxu0 0
      %1455 = vmatprep.subr.bf16.mxu0 0
      %1456 = vmatpush2.bf16.msra.mxu0 0
      %1457 = vmatprep.subr.bf16.mxu0 0
      %1458 = vmatpush2.bf16.msra.mxu0 0
      %1459 = vmatprep.subr.bf16.mxu0 0
      %1460 = vmatpush2.bf16.msra.mxu0 0
      %1461 = vmatprep.subr.bf16.mxu0 0
      %1462 = vmatpush2.bf16.msra.mxu0 0
      %1463 = vmatprep.subr.bf16.mxu0 0
      %1464 = vmatpush2.bf16.msra.mxu0 0
      %1465 = vmatprep.subr.bf16.mxu0 0
      %1466 = vmatpush2.bf16.msra.mxu0 0
      %1467 = vmatprep.subr.bf16.mxu0 0
      %1468 = vmatpush2.bf16.msra.mxu0 0
      %1469 = vmatprep.mubr.bf16.mxu0 0
      %1470 = vmatmul.mubr.bf16.gmra.mxu0 %v1435
      %v1471 = vpop.f32.mrf.mxu0
      %v1472 = vadd.f32 0.0, %v1471
      %v1473 = vpop.f32.mrf.mxu0
      %v1474 = vpop.f32.mrf.mxu0
      %v1475 = vadd.f32 0.0, %v1474
      %v1476 = vpop.f32.mrf.mxu0
      %1477 = vdwg.mxu0
      %v1478 = vadd.f32 %v1348, %v1472
      %v1479 = vadd.f32 %v1351, %v1475
      %vm1480 = vcmp.ge.s32.totalorder %v1070, 24
      %vm1481 = vcmp.lt.s32.totalorder %v1070, 32
      %vm1482 = vmand %vm1480, %vm1481
      %v1483 = vsel %vm1482, 1, 0
      %v1484 = vcvt.s32.f32 %v1483
      %v1485 = vmul.f32 %v935, %v1484
      %v1486 = vmul.f32 %v938, %v1484
      %v1487 = vpack.c.bf16 %v1486, %v1485
      %v1489 = vsel %vm896, %v1487, 0
      %1491 = vmatprep.subr.bf16.mxu0 0
      %1492 = vmatpush1.bf16.msra.mxu0 0
      %1493 = vmatprep.subr.bf16.mxu0 0
      %1494 = vmatpush1.bf16.msra.mxu0 0
      %1495 = vmatprep.subr.bf16.mxu0 0
      %1496 = vmatpush1.bf16.msra.mxu0 0
      %1497 = vmatprep.subr.bf16.mxu0 0
      %1498 = vmatpush1.bf16.msra.mxu0 0
      %1499 = vmatprep.subr.bf16.mxu0 0
      %1500 = vmatpush1.bf16.msra.mxu0 0
      %1501 = vmatprep.subr.bf16.mxu0 0
      %1502 = vmatpush1.bf16.msra.mxu0 0
      %1503 = vmatprep.subr.bf16.mxu0 0
      %1504 = vmatpush1.bf16.msra.mxu0 %v1104
      %1505 = vmatprep.subr.bf16.mxu0 0
      %1506 = vmatpush1.bf16.msra.mxu0 %v1103
      %1507 = vmatprep.subr.bf16.mxu0 0
      %1508 = vmatpush2.bf16.msra.mxu0 0
      %1509 = vmatprep.subr.bf16.mxu0 0
      %1510 = vmatpush2.bf16.msra.mxu0 0
      %1511 = vmatprep.subr.bf16.mxu0 0
      %1512 = vmatpush2.bf16.msra.mxu0 0
      %1513 = vmatprep.subr.bf16.mxu0 0
      %1514 = vmatpush2.bf16.msra.mxu0 0
      %1515 = vmatprep.subr.bf16.mxu0 0
      %1516 = vmatpush2.bf16.msra.mxu0 0
      %1517 = vmatprep.subr.bf16.mxu0 0
      %1518 = vmatpush2.bf16.msra.mxu0 0
      %1519 = vmatprep.subr.bf16.mxu0 0
      %1520 = vmatpush2.bf16.msra.mxu0 0
      %1521 = vmatprep.subr.bf16.mxu0 0
      %1522 = vmatpush2.bf16.msra.mxu0 0
      %1523 = vmatprep.mubr.bf16.mxu0 0
      %1524 = vmatmul.mubr.bf16.gmra.mxu0 %v1489
      %v1525 = vpop.f32.mrf.mxu0
      %v1526 = vadd.f32 0.0, %v1525
      %v1527 = vpop.f32.mrf.mxu0
      %v1528 = vpop.f32.mrf.mxu0
      %v1529 = vadd.f32 0.0, %v1528
      %v1530 = vpop.f32.mrf.mxu0
      %1531 = vdwg.mxu0
      %v1532 = vmul.f32 %v1526, 0.35355338
      %v1533 = vmul.f32 %v1529, 0.35355338
      %v1534 = vsel %vm1159, %v1532, -inf
      %1535 = vmax.xlane.f32.xlu0 %v1534
      %v1536 = vpop.xlane.xlu0 %1535
      %v1537 = vsel %vm1159, %v1533, -inf
      %1538 = vmax.xlane.f32.xlu0 %v1537
      %v1539 = vpop.xlane.xlu0 %1538
      %v1540 = vsub.f32 %v1532, %v1536
      %v1541 = vsub.f32 %v1533, %v1539
      %v1542 = vmul.f32 %v1540, 1.442695
      %v1543 = vpow.pop %v1542
      %v1544 = vmul.f32 %v1541, 1.442695
      %v1545 = vpow.pop %v1544
      %v1546 = vsel %vm1159, %v1543, 0.0
      %1547 = vadd.xlane.f32.xlu0 %v1546
      %v1548 = vpop.xlane.xlu0 %1547
      %v1549 = vsel %vm1159, %v1545, 0.0
      %1550 = vadd.xlane.f32.xlu0 %v1549
      %v1551 = vpop.xlane.xlu0 %1550
      %v1552 = vrcp.pop %v1548
      %v1553 = vrcp.pop %v1551
      %v1554 = vmul.f32 %v1543, %v1552
      %v1555 = vmul.f32 %v1545, %v1553
      %v1556 = vmul.f32 %v1063, %v1484
      %v1557 = vmul.f32 %v1066, %v1484
      %v1558 = vpack.c.bf16 %v1555, %v1554
      %v1559 = vpack.c.bf16 %v1557, %v1556
      %v1561 = vsel %vm1159, %v1558, 0
      %1563 = vmatprep.subr.bf16.mxu0 0
      %1564 = vmatpush1.bf16.msra.mxu0 0
      %1565 = vmatprep.subr.bf16.mxu0 0
      %1566 = vmatpush1.bf16.msra.mxu0 0
      %1567 = vmatprep.subr.bf16.mxu0 0
      %1568 = vmatpush1.bf16.msra.mxu0 0
      %1569 = vmatprep.subr.bf16.mxu0 0
      %1570 = vmatpush1.bf16.msra.mxu0 0
      %1571 = vmatprep.subr.bf16.mxu0 0
      %1572 = vmatpush1.bf16.msra.mxu0 0
      %1573 = vmatprep.subr.bf16.mxu0 0
      %1574 = vmatpush1.bf16.msra.mxu0 0
      %1575 = vmatprep.subr.bf16.mxu0 0
      %1576 = vmatpush1.bf16.msra.mxu0 0
      %1577 = vmatprep.subr.bf16.mxu0 0
      %1578 = vmatpush1.bf16.msra.mxu0 %v1559
      %1579 = vmatprep.subr.bf16.mxu0 0
      %1580 = vmatpush2.bf16.msra.mxu0 0
      %1581 = vmatprep.subr.bf16.mxu0 0
      %1582 = vmatpush2.bf16.msra.mxu0 0
      %1583 = vmatprep.subr.bf16.mxu0 0
      %1584 = vmatpush2.bf16.msra.mxu0 0
      %1585 = vmatprep.subr.bf16.mxu0 0
      %1586 = vmatpush2.bf16.msra.mxu0 0
      %1587 = vmatprep.subr.bf16.mxu0 0
      %1588 = vmatpush2.bf16.msra.mxu0 0
      %1589 = vmatprep.subr.bf16.mxu0 0
      %1590 = vmatpush2.bf16.msra.mxu0 0
      %1591 = vmatprep.subr.bf16.mxu0 0
      %1592 = vmatpush2.bf16.msra.mxu0 0
      %1593 = vmatprep.subr.bf16.mxu0 0
      %1594 = vmatpush2.bf16.msra.mxu0 0
      %1595 = vmatprep.mubr.bf16.mxu0 0
      %1596 = vmatmul.mubr.bf16.gmra.mxu0 %v1561
      %v1597 = vpop.f32.mrf.mxu0
      %v1598 = vadd.f32 0.0, %v1597
      %v1599 = vpop.f32.mrf.mxu0
      %v1600 = vpop.f32.mrf.mxu0
      %v1601 = vadd.f32 0.0, %v1600
      %v1602 = vpop.f32.mrf.mxu0
      %1603 = vdwg.mxu0
      %v1604 = vadd.f32 %v1478, %v1598
      %v1605 = vadd.f32 %v1479, %v1601
      %v1606 = vld [vmem:[%s8] sm:$0xf]
      %v1607 = vld [vmem:[%s8 + $0x4] sm:$0xf]
      %v1608 = vld [vmem:[%s8 + $0x8] sm:$0xf]
      %v1609 = vld [vmem:[%s8 + $0xc] sm:$0xf]
      %v1610 = vpack.c.bf16 %v1605, %v1604
      %v1611 = vld [vmem:[%s9] sm:$0x1]
      %v1613 = vlaneseq
      %v1614 = vshrl.u32 %v1613, 7
      %v1615 = vsub.s32 0, %v1614
      %v1616 = vrot.slane %v1611, %v1615
      %v1622 = vunpack.c.l.b16 %v1606
      %v1623 = vunpack.c.l.b16 %v1607
      %v1624 = vunpack.c.l.b16 %v1608
      %v1625 = vunpack.c.l.b16 %v1609
      %v1626 = vpack.c.b16 %v1623, %v1622
      %v1627 = vpack.c.b16 %v1625, %v1624
      %v1631 = vsel %vm896, %v1610, 0
      %1633 = vmatprep.subr.bf16.mxu0 0
      %1634 = vmatpush1.bf16.msra.mxu0 0
      %1635 = vmatprep.subr.bf16.mxu0 0
      %1636 = vmatpush1.bf16.msra.mxu0 0
      %1637 = vmatprep.subr.bf16.mxu0 0
      %1638 = vmatpush1.bf16.msra.mxu0 0
      %1639 = vmatprep.subr.bf16.mxu0 0
      %1640 = vmatpush1.bf16.msra.mxu0 0
      %1641 = vmatprep.subr.bf16.mxu0 0
      %1642 = vmatpush1.bf16.msra.mxu0 0
      %1643 = vmatprep.subr.bf16.mxu0 0
      %1644 = vmatpush1.bf16.msra.mxu0 0
      %1645 = vmatprep.subr.bf16.mxu0 0
      %1646 = vmatpush1.bf16.msra.mxu0 %v1627
      %1647 = vmatprep.subr.bf16.mxu0 0
      %1648 = vmatpush1.bf16.msra.mxu0 %v1626
      %1649 = vmatprep.subr.bf16.mxu0 0
      %1650 = vmatpush2.bf16.msra.mxu0 0
      %1651 = vmatprep.subr.bf16.mxu0 0
      %1652 = vmatpush2.bf16.msra.mxu0 0
      %1653 = vmatprep.subr.bf16.mxu0 0
      %1654 = vmatpush2.bf16.msra.mxu0 0
      %1655 = vmatprep.subr.bf16.mxu0 0
      %1656 = vmatpush2.bf16.msra.mxu0 0
      %1657 = vmatprep.subr.bf16.mxu0 0
      %1658 = vmatpush2.bf16.msra.mxu0 0
      %1659 = vmatprep.subr.bf16.mxu0 0
      %1660 = vmatpush2.bf16.msra.mxu0 0
      %1661 = vmatprep.subr.bf16.mxu0 0
      %1662 = vmatpush2.bf16.msra.mxu0 0
      %1663 = vmatprep.subr.bf16.mxu0 0
      %1664 = vmatpush2.bf16.msra.mxu0 0
      %1665 = vmatprep.mubr.bf16.mxu0 0
      %1666 = vmatmul.mubr.bf16.gmra.mxu0 %v1631
      %v1667 = vpop.f32.mrf.mxu0
      %v1668 = vadd.f32 %v1616, %v1667
      %v1669 = vpop.f32.mrf.mxu0
      %v1670 = vpop.f32.mrf.mxu0
      %v1671 = vadd.f32 %v1616, %v1670
      %v1672 = vpop.f32.mrf.mxu0
      %1673 = vdwg.mxu0
      %v1674 = vadd.f32 %v867, %v1668
      %v1675 = vadd.f32 %v868, %v1671
      %v1676 = vld [vmem:[%s10] sm:$0x1]
      %v1677 = vld [vmem:[%s11] sm:$0x1]
      %v1678 = vsel %vm896, %v1674, 0.0
      %1679 = vadd.xlane.f32.xlu0 %v1678
      %v1680 = vpop.xlane.xlu0 %1679
      %v1681 = vsel %vm896, %v1675, 0.0
      %1682 = vadd.xlane.f32.xlu0 %v1681
      %v1683 = vpop.xlane.xlu0 %1682
      %v1684 = vrcp.pop 32.0
      %v1685 = vmul.f32 %v1680, %v1684
      %v1686 = vmul.f32 %v1683, %v1684
      %v1687 = vsub.f32 %v1674, %v1685
      %v1688 = vsub.f32 %v1675, %v1686
      %v1689 = vmul.f32 %v1687, %v1687
      %v1690 = vmul.f32 %v1688, %v1688
      %v1691 = vsel %vm896, %v1689, 0.0
      %1692 = vadd.xlane.f32.xlu0 %v1691
      %v1693 = vpop.xlane.xlu0 %1692
      %v1694 = vsel %vm896, %v1690, 0.0
      %1695 = vadd.xlane.f32.xlu0 %v1694
      %v1696 = vpop.xlane.xlu0 %1695
      %v1697 = vmul.f32 %v1693, %v1684
      %v1698 = vmul.f32 %v1696, %v1684
      %v1699 = vadd.f32 %v1697, 1e-05
      %v1700 = vadd.f32 %v1698, 1e-05
      %v1701 = vrsqrt.pop %v1699
      %v1702 = vrsqrt.pop %v1700
      %v1703 = vmul.f32 %v1687, %v1701
      %v1704 = vmul.f32 %v1688, %v1702
      %v1706 = vlaneseq
      %v1707 = vshrl.u32 %v1706, 7
      %v1708 = vsub.s32 0, %v1707
      %v1709 = vrot.slane %v1676, %v1708
      %v1711 = vmul.f32 %v1703, %v1709
      %v1712 = vmul.f32 %v1704, %v1709
      %v1714 = vlaneseq
      %v1715 = vshrl.u32 %v1714, 7
      %v1716 = vsub.s32 0, %v1715
      %v1717 = vrot.slane %v1677, %v1716
      %v1719 = vadd.f32 %v1711, %v1717
      %v1720 = vadd.f32 %v1712, %v1717
      %v1721 = vld [vmem:[%s12] sm:$0xf]
      %v1722 = vld [vmem:[%s12 + $0x4] sm:$0xf]
      %v1723 = vld [vmem:[%s12 + $0x8] sm:$0xf]
      %v1724 = vld [vmem:[%s12 + $0xc] sm:$0xf]
      %v1725 = vpack.c.bf16 %v1720, %v1719
      %v1726 = vld [vmem:[%s15] sm:$0x1]
      %v1728 = vlaneseq
      %v1729 = vshrl.u32 %v1728, 7
      %v1730 = vsub.s32 0, %v1729
      %v1731 = vrot.slane %v1726, %v1730
      %v1737 = vunpack.c.l.b16 %v1721
      %v1738 = vunpack.c.l.b16 %v1722
      %v1739 = vunpack.c.l.b16 %v1723
      %v1740 = vunpack.c.l.b16 %v1724
      %v1741 = vpack.c.b16 %v1738, %v1737
      %v1742 = vpack.c.b16 %v1740, %v1739
      %v1746 = vsel %vm896, %v1725, 0
      %1748 = vmatprep.subr.bf16.mxu0 0
      %1749 = vmatpush1.bf16.msra.mxu0 0
      %1750 = vmatprep.subr.bf16.mxu0 0
      %1751 = vmatpush1.bf16.msra.mxu0 0
      %1752 = vmatprep.subr.bf16.mxu0 0
      %1753 = vmatpush1.bf16.msra.mxu0 0
      %1754 = vmatprep.subr.bf16.mxu0 0
      %1755 = vmatpush1.bf16.msra.mxu0 0
      %1756 = vmatprep.subr.bf16.mxu0 0
      %1757 = vmatpush1.bf16.msra.mxu0 0
      %1758 = vmatprep.subr.bf16.mxu0 0
      %1759 = vmatpush1.bf16.msra.mxu0 0
      %1760 = vmatprep.subr.bf16.mxu0 0
      %1761 = vmatpush1.bf16.msra.mxu0 %v1742
      %1762 = vmatprep.subr.bf16.mxu0 0
      %1763 = vmatpush1.bf16.msra.mxu0 %v1741
      %1764 = vmatprep.subr.bf16.mxu0 0
      %1765 = vmatpush2.bf16.msra.mxu0 0
      %1766 = vmatprep.subr.bf16.mxu0 0
      %1767 = vmatpush2.bf16.msra.mxu0 0
      %1768 = vmatprep.subr.bf16.mxu0 0
      %1769 = vmatpush2.bf16.msra.mxu0 0
      %1770 = vmatprep.subr.bf16.mxu0 0
      %1771 = vmatpush2.bf16.msra.mxu0 0
      %1772 = vmatprep.subr.bf16.mxu0 0
      %1773 = vmatpush2.bf16.msra.mxu0 0
      %1774 = vmatprep.subr.bf16.mxu0 0
      %1775 = vmatpush2.bf16.msra.mxu0 0
      %1776 = vmatprep.subr.bf16.mxu0 0
      %1777 = vmatpush2.bf16.msra.mxu0 0
      %1778 = vmatprep.subr.bf16.mxu0 0
      %1779 = vmatpush2.bf16.msra.mxu0 0
      %1780 = vmatprep.mubr.bf16.mxu0 0
      %1781 = vmatmul.mubr.bf16.gmra.mxu0 %v1746
      %v1782 = vpop.f32.mrf.mxu0
      %v1783 = vadd.f32 %v1731, %v1782
      %v1784 = vpop.f32.mrf.mxu0
      %v1785 = vpop.f32.mrf.mxu0
      %v1786 = vadd.f32 %v1731, %v1785
      %v1787 = vpop.f32.mrf.mxu0
      %1788 = vdwg.mxu0
      %v1789 = vld [vmem:[%s13] sm:$0xf]
      %v1790 = vld [vmem:[%s13 + $0x4] sm:$0xf]
      %v1791 = vld [vmem:[%s13 + $0x8] sm:$0xf]
      %v1792 = vld [vmem:[%s13 + $0xc] sm:$0xf]
      %v1793 = vpack.c.bf16 %v870, %v869
      %v1794 = vpack.c.bf16 %v871, %v871
      %v1795 = vld [vmem:[%s16] sm:$0x1]
      %v1797 = vlaneseq
      %v1798 = vshrl.u32 %v1797, 7
      %v1799 = vsub.s32 0, %v1798
      %v1800 = vrot.slane %v1795, %v1799
      %v1806 = vunpack.c.l.b16 %v1789
      %v1807 = vunpack.c.l.b16 %v1790
      %v1808 = vunpack.c.l.b16 %v1791
      %v1809 = vunpack.c.l.b16 %v1792
      %v1810 = vpack.c.b16 %v1807, %v1806
      %v1811 = vpack.c.b16 %v1809, %v1808
      %v1815 = vsel %vm896, %v1793, 0
      %v1818 = vsel %vm896, %v1794, 0
      %1820 = vmatprep.subr.bf16.mxu0 0
      %1821 = vmatpush1.bf16.msra.mxu0 0
      %1822 = vmatprep.subr.bf16.mxu0 0
      %1823 = vmatpush1.bf16.msra.mxu0 0
      %1824 = vmatprep.subr.bf16.mxu0 0
      %1825 = vmatpush1.bf16.msra.mxu0 0
      %1826 = vmatprep.subr.bf16.mxu0 0
      %1827 = vmatpush1.bf16.msra.mxu0 0
      %1828 = vmatprep.subr.bf16.mxu0 0
      %1829 = vmatpush1.bf16.msra.mxu0 0
      %1830 = vmatprep.subr.bf16.mxu0 0
      %1831 = vmatpush1.bf16.msra.mxu0 0
      %1832 = vmatprep.subr.bf16.mxu0 0
      %1833 = vmatpush1.bf16.msra.mxu0 %v1811
      %1834 = vmatprep.subr.bf16.mxu0 0
      %1835 = vmatpush1.bf16.msra.mxu0 %v1810
      %1836 = vmatprep.subr.bf16.mxu0 0
      %1837 = vmatpush2.bf16.msra.mxu0 0
      %1838 = vmatprep.subr.bf16.mxu0 0
      %1839 = vmatpush2.bf16.msra.mxu0 0
      %1840 = vmatprep.subr.bf16.mxu0 0
      %1841 = vmatpush2.bf16.msra.mxu0 0
      %1842 = vmatprep.subr.bf16.mxu0 0
      %1843 = vmatpush2.bf16.msra.mxu0 0
      %1844 = vmatprep.subr.bf16.mxu0 0
      %1845 = vmatpush2.bf16.msra.mxu0 0
      %1846 = vmatprep.subr.bf16.mxu0 0
      %1847 = vmatpush2.bf16.msra.mxu0 0
      %1848 = vmatprep.subr.bf16.mxu0 0
      %1849 = vmatpush2.bf16.msra.mxu0 0
      %1850 = vmatprep.subr.bf16.mxu0 0
      %1851 = vmatpush2.bf16.msra.mxu0 0
      %1852 = vmatprep.mubr.bf16.mxu0 0
      %1853 = vmatmul.mubr.bf16.gmra.mxu0 %v1815
      %v1854 = vpop.f32.mrf.mxu0
      %v1855 = vadd.f32 %v1800, %v1854
      %v1856 = vpop.f32.mrf.mxu0
      %v1857 = vpop.f32.mrf.mxu0
      %v1858 = vadd.f32 %v1800, %v1857
      %v1859 = vpop.f32.mrf.mxu0
      %1860 = vmatprep.mubr.bf16.mxu0 0
      %1861 = vmatmul.mubr.bf16.gmra.mxu0 %v1818
      %v1862 = vpop.f32.mrf.mxu0
      %v1863 = vadd.f32 %v1800, %v1862
      %v1864 = vpop.f32.mrf.mxu0
      %v1865 = vpop.f32.mrf.mxu0
      %v1866 = vpop.f32.mrf.mxu0
      %1867 = vdwg.mxu0
      %v1868 = vld [vmem:[%s14] sm:$0xf]
      %v1869 = vld [vmem:[%s14 + $0x4] sm:$0xf]
      %v1870 = vld [vmem:[%s14 + $0x8] sm:$0xf]
      %v1871 = vld [vmem:[%s14 + $0xc] sm:$0xf]
      %v1872 = vld [vmem:[%s17] sm:$0x1]
      %v1874 = vlaneseq
      %v1875 = vshrl.u32 %v1874, 7
      %v1876 = vsub.s32 0, %v1875
      %v1877 = vrot.slane %v1872, %v1876
      %v1883 = vunpack.c.l.b16 %v1868
      %v1884 = vunpack.c.l.b16 %v1869
      %v1885 = vunpack.c.l.b16 %v1870
      %v1886 = vunpack.c.l.b16 %v1871
      %v1887 = vpack.c.b16 %v1884, %v1883
      %v1888 = vpack.c.b16 %v1886, %v1885
      %1891 = vmatprep.subr.bf16.mxu0 0
      %1892 = vmatpush1.bf16.msra.mxu0 0
      %1893 = vmatprep.subr.bf16.mxu0 0
      %1894 = vmatpush1.bf16.msra.mxu0 0
      %1895 = vmatprep.subr.bf16.mxu0 0
      %1896 = vmatpush1.bf16.msra.mxu0 0
      %1897 = vmatprep.subr.bf16.mxu0 0
      %1898 = vmatpush1.bf16.msra.mxu0 0
      %1899 = vmatprep.subr.bf16.mxu0 0
      %1900 = vmatpush1.bf16.msra.mxu0 0
      %1901 = vmatprep.subr.bf16.mxu0 0
      %1902 = vmatpush1.bf16.msra.mxu0 0
      %1903 = vmatprep.subr.bf16.mxu0 0
      %1904 = vmatpush1.bf16.msra.mxu0 %v1888
      %1905 = vmatprep.subr.bf16.mxu0 0
      %1906 = vmatpush1.bf16.msra.mxu0 %v1887
      %1907 = vmatprep.subr.bf16.mxu0 0
      %1908 = vmatpush2.bf16.msra.mxu0 0
      %1909 = vmatprep.subr.bf16.mxu0 0
      %1910 = vmatpush2.bf16.msra.mxu0 0
      %1911 = vmatprep.subr.bf16.mxu0 0
      %1912 = vmatpush2.bf16.msra.mxu0 0
      %1913 = vmatprep.subr.bf16.mxu0 0
      %1914 = vmatpush2.bf16.msra.mxu0 0
      %1915 = vmatprep.subr.bf16.mxu0 0
      %1916 = vmatpush2.bf16.msra.mxu0 0
      %1917 = vmatprep.subr.bf16.mxu0 0
      %1918 = vmatpush2.bf16.msra.mxu0 0
      %1919 = vmatprep.subr.bf16.mxu0 0
      %1920 = vmatpush2.bf16.msra.mxu0 0
      %1921 = vmatprep.subr.bf16.mxu0 0
      %1922 = vmatpush2.bf16.msra.mxu0 0
      %1923 = vmatprep.mubr.bf16.mxu0 0
      %1924 = vmatmul.mubr.bf16.gmra.mxu0 %v1815
      %v1925 = vpop.f32.mrf.mxu0
      %v1926 = vadd.f32 %v1877, %v1925
      %v1927 = vpop.f32.mrf.mxu0
      %v1928 = vpop.f32.mrf.mxu0
      %v1929 = vadd.f32 %v1877, %v1928
      %v1930 = vpop.f32.mrf.mxu0
      %1931 = vmatprep.mubr.bf16.mxu0 0
      %1932 = vmatmul.mubr.bf16.gmra.mxu0 %v1818
      %v1933 = vpop.f32.mrf.mxu0
      %v1934 = vadd.f32 %v1877, %v1933
      %v1935 = vpop.f32.mrf.mxu0
      %v1936 = vpop.f32.mrf.mxu0
      %v1937 = vpop.f32.mrf.mxu0
      %1938 = vdwg.mxu0
      %1939 = vxpose.xlu0.b32.start [1/16] %v1855, 128
      %1940 = vxpose.xlu0.b32.cont [2/16] %v1858, 128
      %1941 = vxpose.xlu0.b32.cont [3/16] %v1863, 128
      %1942 = vxpose.xlu0.b32.cont [4/16] 0.0, 128
      %1943 = vxpose.xlu0.b32.cont [5/16] 0.0, 128
      %1944 = vxpose.xlu0.b32.cont [6/16] 0.0, 128
      %1945 = vxpose.xlu0.b32.cont [7/16] 0.0, 128
      %1946 = vxpose.xlu0.b32.cont [8/16] 0.0, 128
      %1947 = vxpose.xlu0.b32.cont [9/16] 0.0, 128
      %1948 = vxpose.xlu0.b32.cont [10/16] 0.0, 128
      %1949 = vxpose.xlu0.b32.cont [11/16] 0.0, 128
      %1950 = vxpose.xlu0.b32.cont [12/16] 0.0, 128
      %1951 = vxpose.xlu0.b32.cont [13/16] 0.0, 128
      %1952 = vxpose.xlu0.b32.cont [14/16] 0.0, 128
      %1953 = vxpose.xlu0.b32.cont [15/16] 0.0, 128
      %1954 = vxpose.xlu0.b32.end [16/16] 0.0, 128
      %v1955 = vpop.trf.xlu0
      %v1956 = vpop.trf.xlu0
      %v1957 = vpop.trf.xlu0
      %v1958 = vpop.trf.xlu0
      %v1959 = vpop.trf.xlu0
      %v1960 = vpop.trf.xlu0
      %v1961 = vpop.trf.xlu0
      %v1962 = vpop.trf.xlu0
      %v1963 = vpop.trf.xlu0
      %v1964 = vpop.trf.xlu0
      %v1965 = vpop.trf.xlu0
      %v1966 = vpop.trf.xlu0
      %v1967 = vpop.trf.xlu0
      %v1968 = vpop.trf.xlu0
      %v1969 = vpop.trf.xlu0
      %v1970 = vpop.trf.xlu0
      %v1971 = vpack.c.bf16 %v1956, %v1955
      %v1972 = vpack.c.bf16 %v1958, %v1957
      %v1973 = vmul.f32 %v1783, %v1109
      %v1974 = vmul.f32 %v1786, %v1109
      %v1975 = vpack.c.bf16 %v1974, %v1973
      %v1977 = vsel %vm896, %v1975, 0
      %1979 = vmatprep.subr.bf16.mxu0 0
      %1980 = vmatpush1.bf16.msra.mxu0 0
      %1981 = vmatprep.subr.bf16.mxu0 0
      %1982 = vmatpush1.bf16.msra.mxu0 0
      %1983 = vmatprep.subr.bf16.mxu0 0
      %1984 = vmatpush1.bf16.msra.mxu0 0
      %1985 = vmatprep.subr.bf16.mxu0 0
      %1986 = vmatpush1.bf16.msra.mxu0 0
      %1987 = vmatprep.subr.bf16.mxu0 0
      %1988 = vmatpush1.bf16.msra.mxu0 0
      %1989 = vmatprep.subr.bf16.mxu0 0
      %1990 = vmatpush1.bf16.msra.mxu0 0
      %1991 = vmatprep.subr.bf16.mxu0 0
      %1992 = vmatpush1.bf16.msra.mxu0 %v1972
      %1993 = vmatprep.subr.bf16.mxu0 0
      %1994 = vmatpush1.bf16.msra.mxu0 %v1971
      %1995 = vmatprep.subr.bf16.mxu0 0
      %1996 = vmatpush2.bf16.msra.mxu0 0
      %1997 = vmatprep.subr.bf16.mxu0 0
      %1998 = vmatpush2.bf16.msra.mxu0 0
      %1999 = vmatprep.subr.bf16.mxu0 0
      %2000 = vmatpush2.bf16.msra.mxu0 0
      %2001 = vmatprep.subr.bf16.mxu0 0
      %2002 = vmatpush2.bf16.msra.mxu0 0
      %2003 = vmatprep.subr.bf16.mxu0 0
      %2004 = vmatpush2.bf16.msra.mxu0 0
      %2005 = vmatprep.subr.bf16.mxu0 0
      %2006 = vmatpush2.bf16.msra.mxu0 0
      %2007 = vmatprep.subr.bf16.mxu0 0
      %2008 = vmatpush2.bf16.msra.mxu0 0
      %2009 = vmatprep.subr.bf16.mxu0 0
      %2010 = vmatpush2.bf16.msra.mxu0 0
      %2011 = vmatprep.mubr.bf16.mxu0 0
      %2012 = vmatmul.mubr.bf16.gmra.mxu0 %v1977
      %v2013 = vpop.f32.mrf.mxu0
      %v2014 = vadd.f32 0.0, %v2013
      %v2015 = vpop.f32.mrf.mxu0
      %v2016 = vpop.f32.mrf.mxu0
      %v2017 = vadd.f32 0.0, %v2016
      %v2018 = vpop.f32.mrf.mxu0
      %2019 = vdwg.mxu0
      %v2020 = vmul.f32 %v2014, 0.35355338
      %v2021 = vmul.f32 %v2017, 0.35355338
      %vm2022 = vcmask 195584
      %v2023 = vsel %vm2022, %v2020, -inf
      %2024 = vmax.xlane.f32.xlu0 %v2023
      %v2025 = vpop.xlane.xlu0 %2024
      %v2026 = vsel %vm2022, %v2021, -inf
      %2027 = vmax.xlane.f32.xlu0 %v2026
      %v2028 = vpop.xlane.xlu0 %2027
      %v2029 = vsub.f32 %v2020, %v2025
      %v2030 = vsub.f32 %v2021, %v2028
      %v2031 = vmul.f32 %v2029, 1.442695
      %v2032 = vpow.pop %v2031
      %v2033 = vmul.f32 %v2030, 1.442695
      %v2034 = vpow.pop %v2033
      %v2035 = vsel %vm2022, %v2032, 0.0
      %2036 = vadd.xlane.f32.xlu0 %v2035
      %v2037 = vpop.xlane.xlu0 %2036
      %v2038 = vsel %vm2022, %v2034, 0.0
      %2039 = vadd.xlane.f32.xlu0 %v2038
      %v2040 = vpop.xlane.xlu0 %2039
      %v2041 = vrcp.pop %v2037
      %v2042 = vrcp.pop %v2040
      %v2043 = vmul.f32 %v2032, %v2041
      %v2044 = vmul.f32 %v2034, %v2042
      %v2045 = vmul.f32 %v1926, %v1109
      %v2046 = vmul.f32 %v1929, %v1109
      %v2047 = vmul.f32 %v1934, %v1109
      %v2048 = vpack.c.bf16 %v2044, %v2043
      %v2049 = vpack.c.bf16 %v2046, %v2045
      %v2050 = vpack.c.bf16 %v2047, %v2047
      %v2051 = vmul.f32 %v1783, %v1190
      %v2052 = vmul.f32 %v1786, %v1190
      %v2053 = vpack.c.bf16 %v2052, %v2051
      %v2055 = vsel %vm896, %v2053, 0
      %2057 = vmatprep.subr.bf16.mxu0 0
      %2058 = vmatpush1.bf16.msra.mxu0 0
      %2059 = vmatprep.subr.bf16.mxu0 0
      %2060 = vmatpush1.bf16.msra.mxu0 0
      %2061 = vmatprep.subr.bf16.mxu0 0
      %2062 = vmatpush1.bf16.msra.mxu0 0
      %2063 = vmatprep.subr.bf16.mxu0 0
      %2064 = vmatpush1.bf16.msra.mxu0 0
      %2065 = vmatprep.subr.bf16.mxu0 0
      %2066 = vmatpush1.bf16.msra.mxu0 0
      %2067 = vmatprep.subr.bf16.mxu0 0
      %2068 = vmatpush1.bf16.msra.mxu0 0
      %2069 = vmatprep.subr.bf16.mxu0 0
      %2070 = vmatpush1.bf16.msra.mxu0 %v1972
      %2071 = vmatprep.subr.bf16.mxu0 0
      %2072 = vmatpush1.bf16.msra.mxu0 %v1971
      %2073 = vmatprep.subr.bf16.mxu0 0
      %2074 = vmatpush2.bf16.msra.mxu0 0
      %2075 = vmatprep.subr.bf16.mxu0 0
      %2076 = vmatpush2.bf16.msra.mxu0 0
      %2077 = vmatprep.subr.bf16.mxu0 0
      %2078 = vmatpush2.bf16.msra.mxu0 0
      %2079 = vmatprep.subr.bf16.mxu0 0
      %2080 = vmatpush2.bf16.msra.mxu0 0
      %2081 = vmatprep.subr.bf16.mxu0 0
      %2082 = vmatpush2.bf16.msra.mxu0 0
      %2083 = vmatprep.subr.bf16.mxu0 0
      %2084 = vmatpush2.bf16.msra.mxu0 0
      %2085 = vmatprep.subr.bf16.mxu0 0
      %2086 = vmatpush2.bf16.msra.mxu0 0
      %2087 = vmatprep.subr.bf16.mxu0 0
      %2088 = vmatpush2.bf16.msra.mxu0 0
      %2089 = vmatprep.mubr.bf16.mxu0 0
      %2090 = vmatmul.mubr.bf16.gmra.mxu0 %v2055
      %v2091 = vpop.f32.mrf.mxu0
      %v2092 = vadd.f32 0.0, %v2091
      %v2093 = vpop.f32.mrf.mxu0
      %v2094 = vpop.f32.mrf.mxu0
      %v2095 = vadd.f32 0.0, %v2094
      %v2096 = vpop.f32.mrf.mxu0
      %2097 = vdwg.mxu0
      %v2098 = vmul.f32 %v2092, 0.35355338
      %v2099 = vmul.f32 %v2095, 0.35355338
      %v2100 = vsel %vm2022, %v2098, -inf
      %2101 = vmax.xlane.f32.xlu0 %v2100
      %v2102 = vpop.xlane.xlu0 %2101
      %v2103 = vsel %vm2022, %v2099, -inf
      %2104 = vmax.xlane.f32.xlu0 %v2103
      %v2105 = vpop.xlane.xlu0 %2104
      %v2106 = vsub.f32 %v2098, %v2102
      %v2107 = vsub.f32 %v2099, %v2105
      %v2108 = vmul.f32 %v2106, 1.442695
      %v2109 = vpow.pop %v2108
      %v2110 = vmul.f32 %v2107, 1.442695
      %v2111 = vpow.pop %v2110
      %v2112 = vsel %vm2022, %v2109, 0.0
      %2113 = vadd.xlane.f32.xlu0 %v2112
      %v2114 = vpop.xlane.xlu0 %2113
      %v2115 = vsel %vm2022, %v2111, 0.0
      %2116 = vadd.xlane.f32.xlu0 %v2115
      %v2117 = vpop.xlane.xlu0 %2116
      %v2118 = vrcp.pop %v2114
      %v2119 = vrcp.pop %v2117
      %v2120 = vmul.f32 %v2109, %v2118
      %v2121 = vmul.f32 %v2111, %v2119
      %v2122 = vmul.f32 %v1926, %v1190
      %v2123 = vmul.f32 %v1929, %v1190
      %v2124 = vmul.f32 %v1934, %v1190
      %v2125 = vpack.c.bf16 %v2121, %v2120
      %v2126 = vpack.c.bf16 %v2123, %v2122
      %v2127 = vpack.c.bf16 %v2124, %v2124
      %v2129 = vsel %vm2022, %v2125, 0
      %vm2131 = vcmask 1043456
      %v2133 = vsel %vm2131, %v2127, 0
      %2135 = vmatprep.subr.bf16.mxu0 0
      %2136 = vmatpush1.bf16.msra.mxu0 0
      %2137 = vmatprep.subr.bf16.mxu0 0
      %2138 = vmatpush1.bf16.msra.mxu0 0
      %2139 = vmatprep.subr.bf16.mxu0 0
      %2140 = vmatpush1.bf16.msra.mxu0 0
      %2141 = vmatprep.subr.bf16.mxu0 0
      %2142 = vmatpush1.bf16.msra.mxu0 0
      %2143 = vmatprep.subr.bf16.mxu0 0
      %2144 = vmatpush1.bf16.msra.mxu0 0
      %2145 = vmatprep.subr.bf16.mxu0 0
      %2146 = vmatpush1.bf16.msra.mxu0 0
      %2147 = vmatprep.subr.bf16.mxu0 0
      %2148 = vmatpush1.bf16.msra.mxu0 %v2133
      %2149 = vmatprep.subr.bf16.mxu0 0
      %2150 = vmatpush1.bf16.msra.mxu0 %v2126
      %2151 = vmatprep.subr.bf16.mxu0 0
      %2152 = vmatpush2.bf16.msra.mxu0 0
      %2153 = vmatprep.subr.bf16.mxu0 0
      %2154 = vmatpush2.bf16.msra.mxu0 0
      %2155 = vmatprep.subr.bf16.mxu0 0
      %2156 = vmatpush2.bf16.msra.mxu0 0
      %2157 = vmatprep.subr.bf16.mxu0 0
      %2158 = vmatpush2.bf16.msra.mxu0 0
      %2159 = vmatprep.subr.bf16.mxu0 0
      %2160 = vmatpush2.bf16.msra.mxu0 0
      %2161 = vmatprep.subr.bf16.mxu0 0
      %2162 = vmatpush2.bf16.msra.mxu0 0
      %2163 = vmatprep.subr.bf16.mxu0 0
      %2164 = vmatpush2.bf16.msra.mxu0 0
      %2165 = vmatprep.subr.bf16.mxu0 0
      %2166 = vmatpush2.bf16.msra.mxu0 0
      %2167 = vmatprep.mubr.bf16.mxu0 0
      %2168 = vmatmul.mubr.bf16.gmra.mxu0 %v2129
      %v2169 = vpop.f32.mrf.mxu0
      %v2170 = vadd.f32 0.0, %v2169
      %v2171 = vpop.f32.mrf.mxu0
      %v2172 = vpop.f32.mrf.mxu0
      %v2173 = vadd.f32 0.0, %v2172
      %v2174 = vpop.f32.mrf.mxu0
      %2175 = vdwg.mxu0
      %v2177 = vsel %vm2022, %v2048, 0
      %v2180 = vsel %vm2131, %v2050, 0
      %2182 = vmatprep.subr.bf16.mxu0 0
      %2183 = vmatpush1.bf16.msra.mxu0 0
      %2184 = vmatprep.subr.bf16.mxu0 0
      %2185 = vmatpush1.bf16.msra.mxu0 0
      %2186 = vmatprep.subr.bf16.mxu0 0
      %2187 = vmatpush1.bf16.msra.mxu0 0
      %2188 = vmatprep.subr.bf16.mxu0 0
      %2189 = vmatpush1.bf16.msra.mxu0 0
      %2190 = vmatprep.subr.bf16.mxu0 0
      %2191 = vmatpush1.bf16.msra.mxu0 0
      %2192 = vmatprep.subr.bf16.mxu0 0
      %2193 = vmatpush1.bf16.msra.mxu0 0
      %2194 = vmatprep.subr.bf16.mxu0 0
      %2195 = vmatpush1.bf16.msra.mxu0 %v2180
      %2196 = vmatprep.subr.bf16.mxu0 0
      %2197 = vmatpush1.bf16.msra.mxu0 %v2049
      %2198 = vmatprep.subr.bf16.mxu0 0
      %2199 = vmatpush2.bf16.msra.mxu0 0
      %2200 = vmatprep.subr.bf16.mxu0 0
      %2201 = vmatpush2.bf16.msra.mxu0 0
      %2202 = vmatprep.subr.bf16.mxu0 0
      %2203 = vmatpush2.bf16.msra.mxu0 0
      %2204 = vmatprep.subr.bf16.mxu0 0
      %2205 = vmatpush2.bf16.msra.mxu0 0
      %2206 = vmatprep.subr.bf16.mxu0 0
      %2207 = vmatpush2.bf16.msra.mxu0 0
      %2208 = vmatprep.subr.bf16.mxu0 0
      %2209 = vmatpush2.bf16.msra.mxu0 0
      %2210 = vmatprep.subr.bf16.mxu0 0
      %2211 = vmatpush2.bf16.msra.mxu0 0
      %2212 = vmatprep.subr.bf16.mxu0 0
      %2213 = vmatpush2.bf16.msra.mxu0 0
      %2214 = vmatprep.mubr.bf16.mxu0 0
      %2215 = vmatmul.mubr.bf16.gmra.mxu0 %v2177
      %v2216 = vpop.f32.mrf.mxu0
      %v2217 = vadd.f32 %v2170, %v2216
      %v2218 = vpop.f32.mrf.mxu0
      %v2219 = vpop.f32.mrf.mxu0
      %v2220 = vadd.f32 %v2173, %v2219
      %v2221 = vpop.f32.mrf.mxu0
      %2222 = vdwg.mxu0
      %v2223 = vmul.f32 %v1783, %v1358
      %v2224 = vmul.f32 %v1786, %v1358
      %v2225 = vpack.c.bf16 %v2224, %v2223
      %v2227 = vsel %vm896, %v2225, 0
      %2229 = vmatprep.subr.bf16.mxu0 0
      %2230 = vmatpush1.bf16.msra.mxu0 0
      %2231 = vmatprep.subr.bf16.mxu0 0
      %2232 = vmatpush1.bf16.msra.mxu0 0
      %2233 = vmatprep.subr.bf16.mxu0 0
      %2234 = vmatpush1.bf16.msra.mxu0 0
      %2235 = vmatprep.subr.bf16.mxu0 0
      %2236 = vmatpush1.bf16.msra.mxu0 0
      %2237 = vmatprep.subr.bf16.mxu0 0
      %2238 = vmatpush1.bf16.msra.mxu0 0
      %2239 = vmatprep.subr.bf16.mxu0 0
      %2240 = vmatpush1.bf16.msra.mxu0 0
      %2241 = vmatprep.subr.bf16.mxu0 0
      %2242 = vmatpush1.bf16.msra.mxu0 %v1972
      %2243 = vmatprep.subr.bf16.mxu0 0
      %2244 = vmatpush1.bf16.msra.mxu0 %v1971
      %2245 = vmatprep.subr.bf16.mxu0 0
      %2246 = vmatpush2.bf16.msra.mxu0 0
      %2247 = vmatprep.subr.bf16.mxu0 0
      %2248 = vmatpush2.bf16.msra.mxu0 0
      %2249 = vmatprep.subr.bf16.mxu0 0
      %2250 = vmatpush2.bf16.msra.mxu0 0
      %2251 = vmatprep.subr.bf16.mxu0 0
      %2252 = vmatpush2.bf16.msra.mxu0 0
      %2253 = vmatprep.subr.bf16.mxu0 0
      %2254 = vmatpush2.bf16.msra.mxu0 0
      %2255 = vmatprep.subr.bf16.mxu0 0
      %2256 = vmatpush2.bf16.msra.mxu0 0
      %2257 = vmatprep.subr.bf16.mxu0 0
      %2258 = vmatpush2.bf16.msra.mxu0 0
      %2259 = vmatprep.subr.bf16.mxu0 0
      %2260 = vmatpush2.bf16.msra.mxu0 0
      %2261 = vmatprep.mubr.bf16.mxu0 0
      %2262 = vmatmul.mubr.bf16.gmra.mxu0 %v2227
      %v2263 = vpop.f32.mrf.mxu0
      %v2264 = vadd.f32 0.0, %v2263
      %v2265 = vpop.f32.mrf.mxu0
      %v2266 = vpop.f32.mrf.mxu0
      %v2267 = vadd.f32 0.0, %v2266
      %v2268 = vpop.f32.mrf.mxu0
      %2269 = vdwg.mxu0
      %v2270 = vmul.f32 %v2264, 0.35355338
      %v2271 = vmul.f32 %v2267, 0.35355338
      %v2272 = vsel %vm2022, %v2270, -inf
      %2273 = vmax.xlane.f32.xlu0 %v2272
      %v2274 = vpop.xlane.xlu0 %2273
      %v2275 = vsel %vm2022, %v2271, -inf
      %2276 = vmax.xlane.f32.xlu0 %v2275
      %v2277 = vpop.xlane.xlu0 %2276
      %v2278 = vsub.f32 %v2270, %v2274
      %v2279 = vsub.f32 %v2271, %v2277
      %v2280 = vmul.f32 %v2278, 1.442695
      %v2281 = vpow.pop %v2280
      %v2282 = vmul.f32 %v2279, 1.442695
      %v2283 = vpow.pop %v2282
      %v2284 = vsel %vm2022, %v2281, 0.0
      %2285 = vadd.xlane.f32.xlu0 %v2284
      %v2286 = vpop.xlane.xlu0 %2285
      %v2287 = vsel %vm2022, %v2283, 0.0
      %2288 = vadd.xlane.f32.xlu0 %v2287
      %v2289 = vpop.xlane.xlu0 %2288
      %v2290 = vrcp.pop %v2286
      %v2291 = vrcp.pop %v2289
      %v2292 = vmul.f32 %v2281, %v2290
      %v2293 = vmul.f32 %v2283, %v2291
      %v2294 = vmul.f32 %v1926, %v1358
      %v2295 = vmul.f32 %v1929, %v1358
      %v2296 = vmul.f32 %v1934, %v1358
      %v2297 = vpack.c.bf16 %v2293, %v2292
      %v2298 = vpack.c.bf16 %v2295, %v2294
      %v2299 = vpack.c.bf16 %v2296, %v2296
      %v2301 = vsel %vm2022, %v2297, 0
      %v2304 = vsel %vm2131, %v2299, 0
      %2306 = vmatprep.subr.bf16.mxu0 0
      %2307 = vmatpush1.bf16.msra.mxu0 0
      %2308 = vmatprep.subr.bf16.mxu0 0
      %2309 = vmatpush1.bf16.msra.mxu0 0
      %2310 = vmatprep.subr.bf16.mxu0 0
      %2311 = vmatpush1.bf16.msra.mxu0 0
      %2312 = vmatprep.subr.bf16.mxu0 0
      %2313 = vmatpush1.bf16.msra.mxu0 0
      %2314 = vmatprep.subr.bf16.mxu0 0
      %2315 = vmatpush1.bf16.msra.mxu0 0
      %2316 = vmatprep.subr.bf16.mxu0 0
      %2317 = vmatpush1.bf16.msra.mxu0 0
      %2318 = vmatprep.subr.bf16.mxu0 0
      %2319 = vmatpush1.bf16.msra.mxu0 %v2304
      %2320 = vmatprep.subr.bf16.mxu0 0
      %2321 = vmatpush1.bf16.msra.mxu0 %v2298
      %2322 = vmatprep.subr.bf16.mxu0 0
      %2323 = vmatpush2.bf16.msra.mxu0 0
      %2324 = vmatprep.subr.bf16.mxu0 0
      %2325 = vmatpush2.bf16.msra.mxu0 0
      %2326 = vmatprep.subr.bf16.mxu0 0
      %2327 = vmatpush2.bf16.msra.mxu0 0
      %2328 = vmatprep.subr.bf16.mxu0 0
      %2329 = vmatpush2.bf16.msra.mxu0 0
      %2330 = vmatprep.subr.bf16.mxu0 0
      %2331 = vmatpush2.bf16.msra.mxu0 0
      %2332 = vmatprep.subr.bf16.mxu0 0
      %2333 = vmatpush2.bf16.msra.mxu0 0
      %2334 = vmatprep.subr.bf16.mxu0 0
      %2335 = vmatpush2.bf16.msra.mxu0 0
      %2336 = vmatprep.subr.bf16.mxu0 0
      %2337 = vmatpush2.bf16.msra.mxu0 0
      %2338 = vmatprep.mubr.bf16.mxu0 0
      %2339 = vmatmul.mubr.bf16.gmra.mxu0 %v2301
      %v2340 = vpop.f32.mrf.mxu0
      %v2341 = vadd.f32 0.0, %v2340
      %v2342 = vpop.f32.mrf.mxu0
      %v2343 = vpop.f32.mrf.mxu0
      %v2344 = vadd.f32 0.0, %v2343
      %v2345 = vpop.f32.mrf.mxu0
      %2346 = vdwg.mxu0
      %v2347 = vadd.f32 %v2217, %v2341
      %v2348 = vadd.f32 %v2220, %v2344
      %v2349 = vmul.f32 %v1783, %v1484
      %v2350 = vmul.f32 %v1786, %v1484
      %v2351 = vpack.c.bf16 %v2350, %v2349
      %v2353 = vsel %vm896, %v2351, 0
      %2355 = vmatprep.subr.bf16.mxu0 0
      %2356 = vmatpush1.bf16.msra.mxu0 0
      %2357 = vmatprep.subr.bf16.mxu0 0
      %2358 = vmatpush1.bf16.msra.mxu0 0
      %2359 = vmatprep.subr.bf16.mxu0 0
      %2360 = vmatpush1.bf16.msra.mxu0 0
      %2361 = vmatprep.subr.bf16.mxu0 0
      %2362 = vmatpush1.bf16.msra.mxu0 0
      %2363 = vmatprep.subr.bf16.mxu0 0
      %2364 = vmatpush1.bf16.msra.mxu0 0
      %2365 = vmatprep.subr.bf16.mxu0 0
      %2366 = vmatpush1.bf16.msra.mxu0 0
      %2367 = vmatprep.subr.bf16.mxu0 0
      %2368 = vmatpush1.bf16.msra.mxu0 %v1972
      %2369 = vmatprep.subr.bf16.mxu0 0
      %2370 = vmatpush1.bf16.msra.mxu0 %v1971
      %2371 = vmatprep.subr.bf16.mxu0 0
      %2372 = vmatpush2.bf16.msra.mxu0 0
      %2373 = vmatprep.subr.bf16.mxu0 0
      %2374 = vmatpush2.bf16.msra.mxu0 0
      %2375 = vmatprep.subr.bf16.mxu0 0
      %2376 = vmatpush2.bf16.msra.mxu0 0
      %2377 = vmatprep.subr.bf16.mxu0 0
      %2378 = vmatpush2.bf16.msra.mxu0 0
      %2379 = vmatprep.subr.bf16.mxu0 0
      %2380 = vmatpush2.bf16.msra.mxu0 0
      %2381 = vmatprep.subr.bf16.mxu0 0
      %2382 = vmatpush2.bf16.msra.mxu0 0
      %2383 = vmatprep.subr.bf16.mxu0 0
      %2384 = vmatpush2.bf16.msra.mxu0 0
      %2385 = vmatprep.subr.bf16.mxu0 0
      %2386 = vmatpush2.bf16.msra.mxu0 0
      %2387 = vmatprep.mubr.bf16.mxu0 0
      %2388 = vmatmul.mubr.bf16.gmra.mxu0 %v2353
      %v2389 = vpop.f32.mrf.mxu0
      %v2390 = vadd.f32 0.0, %v2389
      %v2391 = vpop.f32.mrf.mxu0
      %v2392 = vpop.f32.mrf.mxu0
      %v2393 = vadd.f32 0.0, %v2392
      %v2394 = vpop.f32.mrf.mxu0
      %2395 = vdwg.mxu0
      %v2396 = vmul.f32 %v2390, 0.35355338
      %v2397 = vmul.f32 %v2393, 0.35355338
      %v2398 = vsel %vm2022, %v2396, -inf
      %2399 = vmax.xlane.f32.xlu0 %v2398
      %v2400 = vpop.xlane.xlu0 %2399
      %v2401 = vsel %vm2022, %v2397, -inf
      %2402 = vmax.xlane.f32.xlu0 %v2401
      %v2403 = vpop.xlane.xlu0 %2402
      %v2404 = vsub.f32 %v2396, %v2400
      %v2405 = vsub.f32 %v2397, %v2403
      %v2406 = vmul.f32 %v2404, 1.442695
      %v2407 = vpow.pop %v2406
      %v2408 = vmul.f32 %v2405, 1.442695
      %v2409 = vpow.pop %v2408
      %v2410 = vsel %vm2022, %v2407, 0.0
      %2411 = vadd.xlane.f32.xlu0 %v2410
      %v2412 = vpop.xlane.xlu0 %2411
      %v2413 = vsel %vm2022, %v2409, 0.0
      %2414 = vadd.xlane.f32.xlu0 %v2413
      %v2415 = vpop.xlane.xlu0 %2414
      %v2416 = vrcp.pop %v2412
      %v2417 = vrcp.pop %v2415
      %v2418 = vmul.f32 %v2407, %v2416
      %v2419 = vmul.f32 %v2409, %v2417
      %v2420 = vmul.f32 %v1926, %v1484
      %v2421 = vmul.f32 %v1929, %v1484
      %v2422 = vmul.f32 %v1934, %v1484
      %v2423 = vpack.c.bf16 %v2419, %v2418
      %v2424 = vpack.c.bf16 %v2421, %v2420
      %v2425 = vpack.c.bf16 %v2422, %v2422
      %v2427 = vsel %vm2022, %v2423, 0
      %v2430 = vsel %vm2131, %v2425, 0
      %2432 = vmatprep.subr.bf16.mxu0 0
      %2433 = vmatpush1.bf16.msra.mxu0 0
      %2434 = vmatprep.subr.bf16.mxu0 0
      %2435 = vmatpush1.bf16.msra.mxu0 0
      %2436 = vmatprep.subr.bf16.mxu0 0
      %2437 = vmatpush1.bf16.msra.mxu0 0
      %2438 = vmatprep.subr.bf16.mxu0 0
      %2439 = vmatpush1.bf16.msra.mxu0 0
      %2440 = vmatprep.subr.bf16.mxu0 0
      %2441 = vmatpush1.bf16.msra.mxu0 0
      %2442 = vmatprep.subr.bf16.mxu0 0
      %2443 = vmatpush1.bf16.msra.mxu0 0
      %2444 = vmatprep.subr.bf16.mxu0 0
      %2445 = vmatpush1.bf16.msra.mxu0 %v2430
      %2446 = vmatprep.subr.bf16.mxu0 0
      %2447 = vmatpush1.bf16.msra.mxu0 %v2424
      %2448 = vmatprep.subr.bf16.mxu0 0
      %2449 = vmatpush2.bf16.msra.mxu0 0
      %2450 = vmatprep.subr.bf16.mxu0 0
      %2451 = vmatpush2.bf16.msra.mxu0 0
      %2452 = vmatprep.subr.bf16.mxu0 0
      %2453 = vmatpush2.bf16.msra.mxu0 0
      %2454 = vmatprep.subr.bf16.mxu0 0
      %2455 = vmatpush2.bf16.msra.mxu0 0
      %2456 = vmatprep.subr.bf16.mxu0 0
      %2457 = vmatpush2.bf16.msra.mxu0 0
      %2458 = vmatprep.subr.bf16.mxu0 0
      %2459 = vmatpush2.bf16.msra.mxu0 0
      %2460 = vmatprep.subr.bf16.mxu0 0
      %2461 = vmatpush2.bf16.msra.mxu0 0
      %2462 = vmatprep.subr.bf16.mxu0 0
      %2463 = vmatpush2.bf16.msra.mxu0 0
      %2464 = vmatprep.mubr.bf16.mxu0 0
      %2465 = vmatmul.mubr.bf16.gmra.mxu0 %v2427
      %v2466 = vpop.f32.mrf.mxu0
      %v2467 = vadd.f32 0.0, %v2466
      %v2468 = vpop.f32.mrf.mxu0
      %v2469 = vpop.f32.mrf.mxu0
      %v2470 = vadd.f32 0.0, %v2469
      %v2471 = vpop.f32.mrf.mxu0
      %2472 = vdwg.mxu0
      %v2473 = vadd.f32 %v2347, %v2467
      %v2474 = vadd.f32 %v2348, %v2470
      %v2475 = vld [vmem:[%s18] sm:$0xf]
      %v2476 = vld [vmem:[%s18 + $0x4] sm:$0xf]
      %v2477 = vld [vmem:[%s18 + $0x8] sm:$0xf]
      %v2478 = vld [vmem:[%s18 + $0xc] sm:$0xf]
      %v2479 = vpack.c.bf16 %v2474, %v2473
      %v2480 = vld [vmem:[%s19] sm:$0x1]
      %v2482 = vlaneseq
      %v2483 = vshrl.u32 %v2482, 7
      %v2484 = vsub.s32 0, %v2483
      %v2485 = vrot.slane %v2480, %v2484
      %v2491 = vunpack.c.l.b16 %v2475
      %v2492 = vunpack.c.l.b16 %v2476
      %v2493 = vunpack.c.l.b16 %v2477
      %v2494 = vunpack.c.l.b16 %v2478
      %v2495 = vpack.c.b16 %v2492, %v2491
      %v2496 = vpack.c.b16 %v2494, %v2493
      %v2500 = vsel %vm896, %v2479, 0
      %2502 = vmatprep.subr.bf16.mxu0 0
      %2503 = vmatpush1.bf16.msra.mxu0 0
      %2504 = vmatprep.subr.bf16.mxu0 0
      %2505 = vmatpush1.bf16.msra.mxu0 0
      %2506 = vmatprep.subr.bf16.mxu0 0
      %2507 = vmatpush1.bf16.msra.mxu0 0
      %2508 = vmatprep.subr.bf16.mxu0 0
      %2509 = vmatpush1.bf16.msra.mxu0 0
      %2510 = vmatprep.subr.bf16.mxu0 0
      %2511 = vmatpush1.bf16.msra.mxu0 0
      %2512 = vmatprep.subr.bf16.mxu0 0
      %2513 = vmatpush1.bf16.msra.mxu0 0
      %2514 = vmatprep.subr.bf16.mxu0 0
      %2515 = vmatpush1.bf16.msra.mxu0 %v2496
      %2516 = vmatprep.subr.bf16.mxu0 0
      %2517 = vmatpush1.bf16.msra.mxu0 %v2495
      %2518 = vmatprep.subr.bf16.mxu0 0
      %2519 = vmatpush2.bf16.msra.mxu0 0
      %2520 = vmatprep.subr.bf16.mxu0 0
      %2521 = vmatpush2.bf16.msra.mxu0 0
      %2522 = vmatprep.subr.bf16.mxu0 0
      %2523 = vmatpush2.bf16.msra.mxu0 0
      %2524 = vmatprep.subr.bf16.mxu0 0
      %2525 = vmatpush2.bf16.msra.mxu0 0
      %2526 = vmatprep.subr.bf16.mxu0 0
      %2527 = vmatpush2.bf16.msra.mxu0 0
      %2528 = vmatprep.subr.bf16.mxu0 0
      %2529 = vmatpush2.bf16.msra.mxu0 0
      %2530 = vmatprep.subr.bf16.mxu0 0
      %2531 = vmatpush2.bf16.msra.mxu0 0
      %2532 = vmatprep.subr.bf16.mxu0 0
      %2533 = vmatpush2.bf16.msra.mxu0 0
      %2534 = vmatprep.mubr.bf16.mxu0 0
      %2535 = vmatmul.mubr.bf16.gmra.mxu0 %v2500
      %v2536 = vpop.f32.mrf.mxu0
      %v2537 = vadd.f32 %v2485, %v2536
      %v2538 = vpop.f32.mrf.mxu0
      %v2539 = vpop.f32.mrf.mxu0
      %v2540 = vadd.f32 %v2485, %v2539
      %v2541 = vpop.f32.mrf.mxu0
      %2542 = vdwg.mxu0
      %v2543 = vadd.f32 %v1719, %v2537
      %v2544 = vadd.f32 %v1720, %v2540
      %v2545 = vld [vmem:[%s20] sm:$0x1]
      %v2546 = vld [vmem:[%s21] sm:$0x1]
      %v2547 = vsel %vm896, %v2543, 0.0
      %2548 = vadd.xlane.f32.xlu0 %v2547
      %v2549 = vpop.xlane.xlu0 %2548
      %v2550 = vsel %vm896, %v2544, 0.0
      %2551 = vadd.xlane.f32.xlu0 %v2550
      %v2552 = vpop.xlane.xlu0 %2551
      %v2553 = vmul.f32 %v2549, %v1684
      %v2554 = vmul.f32 %v2552, %v1684
      %v2555 = vsub.f32 %v2543, %v2553
      %v2556 = vsub.f32 %v2544, %v2554
      %v2557 = vmul.f32 %v2555, %v2555
      %v2558 = vmul.f32 %v2556, %v2556
      %v2559 = vsel %vm896, %v2557, 0.0
      %2560 = vadd.xlane.f32.xlu0 %v2559
      %v2561 = vpop.xlane.xlu0 %2560
      %v2562 = vsel %vm896, %v2558, 0.0
      %2563 = vadd.xlane.f32.xlu0 %v2562
      %v2564 = vpop.xlane.xlu0 %2563
      %v2565 = vmul.f32 %v2561, %v1684
      %v2566 = vmul.f32 %v2564, %v1684
      %v2567 = vadd.f32 %v2565, 1e-05
      %v2568 = vadd.f32 %v2566, 1e-05
      %v2569 = vrsqrt.pop %v2567
      %v2570 = vrsqrt.pop %v2568
      %v2571 = vmul.f32 %v2555, %v2569
      %v2572 = vmul.f32 %v2556, %v2570
      %v2574 = vlaneseq
      %v2575 = vshrl.u32 %v2574, 7
      %v2576 = vsub.s32 0, %v2575
      %v2577 = vrot.slane %v2545, %v2576
      %v2579 = vmul.f32 %v2571, %v2577
      %v2580 = vmul.f32 %v2572, %v2577
      %v2582 = vlaneseq
      %v2583 = vshrl.u32 %v2582, 7
      %v2584 = vsub.s32 0, %v2583
      %v2585 = vrot.slane %v2546, %v2584
      %v2587 = vadd.f32 %v2579, %v2585
      %v2588 = vadd.f32 %v2580, %v2585
      %v2589 = vld [vmem:[%s22] sm:$0xff]
      %v2590 = vld [vmem:[%s22 + $0x8] sm:$0xff]
      %v2591 = vld [vmem:[%s22 + $0x10] sm:$0xff]
      %v2592 = vld [vmem:[%s22 + $0x18] sm:$0xff]
      %v2593 = vld [vmem:[%s22 + $0x20] sm:$0xff]
      %v2594 = vld [vmem:[%s22 + $0x28] sm:$0xff]
      %v2595 = vld [vmem:[%s22 + $0x30] sm:$0xff]
      %v2596 = vld [vmem:[%s22 + $0x38] sm:$0xff]
      %v2597 = vld [vmem:[%s22 + $0x40] sm:$0xff]
      %v2598 = vld [vmem:[%s22 + $0x48] sm:$0xff]
      %v2599 = vld [vmem:[%s22 + $0x50] sm:$0xff]
      %v2600 = vld [vmem:[%s22 + $0x58] sm:$0xff]
      %v2601 = vld [vmem:[%s22 + $0x60] sm:$0xff]
      %v2602 = vld [vmem:[%s22 + $0x68] sm:$0xff]
      %v2603 = vld [vmem:[%s22 + $0x70] sm:$0xff]
      %v2604 = vld [vmem:[%s22 + $0x78] sm:$0xff]
      %v2605 = vld [vmem:[%s22 + $0x80] sm:$0xff]
      %v2606 = vld [vmem:[%s22 + $0x88] sm:$0xff]
      %v2607 = vld [vmem:[%s22 + $0x90] sm:$0xff]
      %v2608 = vld [vmem:[%s22 + $0x98] sm:$0xff]
      %v2609 = vld [vmem:[%s22 + $0xa0] sm:$0xff]
      %v2610 = vld [vmem:[%s22 + $0xa8] sm:$0xff]
      %v2611 = vld [vmem:[%s22 + $0xb0] sm:$0xff]
      %v2612 = vld [vmem:[%s22 + $0xb8] sm:$0xff]
      %v2613 = vld [vmem:[%s22 + $0xc0] sm:$0xff]
      %v2614 = vld [vmem:[%s22 + $0xc8] sm:$0xff]
      %v2615 = vld [vmem:[%s22 + $0xd0] sm:$0xff]
      %v2616 = vld [vmem:[%s22 + $0xd8] sm:$0xff]
      %v2617 = vld [vmem:[%s22 + $0xe0] sm:$0xff]
      %v2618 = vld [vmem:[%s22 + $0xe8] sm:$0xff]
      %v2619 = vld [vmem:[%s22 + $0xf0] sm:$0xff]
      %v2620 = vld [vmem:[%s22 + $0xf8] sm:$0xff]
      %v2621 = vpack.c.bf16 %v2588, %v2587
      %v2622 = vld [vmem:[%s23] sm:$0xff]
      %v2623 = vld [vmem:[%s23 + $0x8] sm:$0xff]
      %v2626 = vlaneseq
      %v2627 = vshrl.u32 %v2626, 7
      %v2628 = vsub.s32 0, %v2627
      %v2629 = vrot.slane %v2622, %v2628
      %v2630 = vlaneseq
      %v2631 = vshrl.u32 %v2630, 7
      %v2632 = vsub.s32 1, %v2631
      %v2633 = vrot.slane %v2622, %v2632
      %v2634 = vlaneseq
      %v2635 = vshrl.u32 %v2634, 7
      %v2636 = vsub.s32 2, %v2635
      %v2637 = vrot.slane %v2622, %v2636
      %v2638 = vlaneseq
      %v2639 = vshrl.u32 %v2638, 7
      %v2640 = vsub.s32 3, %v2639
      %v2641 = vrot.slane %v2622, %v2640
      %v2642 = vlaneseq
      %v2643 = vshrl.u32 %v2642, 7
      %v2644 = vsub.s32 4, %v2643
      %v2645 = vrot.slane %v2622, %v2644
      %v2646 = vlaneseq
      %v2647 = vshrl.u32 %v2646, 7
      %v2648 = vsub.s32 5, %v2647
      %v2649 = vrot.slane %v2622, %v2648
      %v2650 = vlaneseq
      %v2651 = vshrl.u32 %v2650, 7
      %v2652 = vsub.s32 6, %v2651
      %v2653 = vrot.slane %v2622, %v2652
      %v2654 = vlaneseq
      %v2655 = vshrl.u32 %v2654, 7
      %v2656 = vsub.s32 7, %v2655
      %v2657 = vrot.slane %v2622, %v2656
      %v2658 = vlaneseq
      %v2659 = vshrl.u32 %v2658, 7
      %v2660 = vsub.s32 0, %v2659
      %v2661 = vrot.slane %v2623, %v2660
      %v2662 = vlaneseq
      %v2663 = vshrl.u32 %v2662, 7
      %v2664 = vsub.s32 1, %v2663
      %v2665 = vrot.slane %v2623, %v2664
      %v2666 = vlaneseq
      %v2667 = vshrl.u32 %v2666, 7
      %v2668 = vsub.s32 2, %v2667
      %v2669 = vrot.slane %v2623, %v2668
      %v2670 = vlaneseq
      %v2671 = vshrl.u32 %v2670, 7
      %v2672 = vsub.s32 3, %v2671
      %v2673 = vrot.slane %v2623, %v2672
      %v2674 = vlaneseq
      %v2675 = vshrl.u32 %v2674, 7
      %v2676 = vsub.s32 4, %v2675
      %v2677 = vrot.slane %v2623, %v2676
      %v2678 = vlaneseq
      %v2679 = vshrl.u32 %v2678, 7
      %v2680 = vsub.s32 5, %v2679
      %v2681 = vrot.slane %v2623, %v2680
      %v2682 = vlaneseq
      %v2683 = vshrl.u32 %v2682, 7
      %v2684 = vsub.s32 6, %v2683
      %v2685 = vrot.slane %v2623, %v2684
      %v2686 = vlaneseq
      %v2687 = vshrl.u32 %v2686, 7
      %v2688 = vsub.s32 7, %v2687
      %v2689 = vrot.slane %v2623, %v2688
      %v2738 = vunpack.c.l.b16 %v2589
      %v2739 = vunpack.c.h.b16 %v2589
      %v2740 = vunpack.c.l.b16 %v2590
      %v2741 = vunpack.c.h.b16 %v2590
      %v2742 = vunpack.c.l.b16 %v2591
      %v2743 = vunpack.c.h.b16 %v2591
      %v2744 = vunpack.c.l.b16 %v2592
      %v2745 = vunpack.c.h.b16 %v2592
      %v2746 = vunpack.c.l.b16 %v2593
      %v2747 = vunpack.c.h.b16 %v2593
      %v2748 = vunpack.c.l.b16 %v2594
      %v2749 = vunpack.c.h.b16 %v2594
      %v2750 = vunpack.c.l.b16 %v2595
      %v2751 = vunpack.c.h.b16 %v2595
      %v2752 = vunpack.c.l.b16 %v2596
      %v2753 = vunpack.c.h.b16 %v2596
      %v2754 = vunpack.c.l.b16 %v2597
      %v2755 = vunpack.c.h.b16 %v2597
      %v2756 = vunpack.c.l.b16 %v2598
      %v2757 = vunpack.c.h.b16 %v2598
      %v2758 = vunpack.c.l.b16 %v2599
      %v2759 = vunpack.c.h.b16 %v2599
      %v2760 = vunpack.c.l.b16 %v2600
      %v2761 = vunpack.c.h.b16 %v2600
      %v2762 = vunpack.c.l.b16 %v2601
      %v2763 = vunpack.c.h.b16 %v2601
      %v2764 = vunpack.c.l.b16 %v2602
      %v2765 = vunpack.c.h.b16 %v2602
      %v2766 = vunpack.c.l.b16 %v2603
      %v2767 = vunpack.c.h.b16 %v2603
      %v2768 = vunpack.c.l.b16 %v2604
      %v2769 = vunpack.c.h.b16 %v2604
      %v2770 = vunpack.c.l.b16 %v2605
      %v2771 = vunpack.c.h.b16 %v2605
      %v2772 = vunpack.c.l.b16 %v2606
      %v2773 = vunpack.c.h.b16 %v2606
      %v2774 = vunpack.c.l.b16 %v2607
      %v2775 = vunpack.c.h.b16 %v2607
      %v2776 = vunpack.c.l.b16 %v2608
      %v2777 = vunpack.c.h.b16 %v2608
      %v2778 = vunpack.c.l.b16 %v2609
      %v2779 = vunpack.c.h.b16 %v2609
      %v2780 = vunpack.c.l.b16 %v2610
      %v2781 = vunpack.c.h.b16 %v2610
      %v2782 = vunpack.c.l.b16 %v2611
      %v2783 = vunpack.c.h.b16 %v2611
      %v2784 = vunpack.c.l.b16 %v2612
      %v2785 = vunpack.c.h.b16 %v2612
      %v2786 = vunpack.c.l.b16 %v2613
      %v2787 = vunpack.c.h.b16 %v2613
      %v2788 = vunpack.c.l.b16 %v2614
      %v2789 = vunpack.c.h.b16 %v2614
      %v2790 = vunpack.c.l.b16 %v2615
      %v2791 = vunpack.c.h.b16 %v2615
      %v2792 = vunpack.c.l.b16 %v2616
      %v2793 = vunpack.c.h.b16 %v2616
      %v2794 = vunpack.c.l.b16 %v2617
      %v2795 = vunpack.c.h.b16 %v2617
      %v2796 = vunpack.c.l.b16 %v2618
      %v2797 = vunpack.c.h.b16 %v2618
      %v2798 = vunpack.c.l.b16 %v2619
      %v2799 = vunpack.c.h.b16 %v2619
      %v2800 = vunpack.c.l.b16 %v2620
      %v2801 = vunpack.c.h.b16 %v2620
      %v2802 = vpack.c.b16 %v2754, %v2738
      %v2803 = vpack.c.b16 %v2755, %v2739
      %v2804 = vpack.c.b16 %v2756, %v2740
      %v2805 = vpack.c.b16 %v2757, %v2741
      %v2806 = vpack.c.b16 %v2758, %v2742
      %v2807 = vpack.c.b16 %v2759, %v2743
      %v2808 = vpack.c.b16 %v2760, %v2744
      %v2809 = vpack.c.b16 %v2761, %v2745
      %v2810 = vpack.c.b16 %v2762, %v2746
      %v2811 = vpack.c.b16 %v2763, %v2747
      %v2812 = vpack.c.b16 %v2764, %v2748
      %v2813 = vpack.c.b16 %v2765, %v2749
      %v2814 = vpack.c.b16 %v2766, %v2750
      %v2815 = vpack.c.b16 %v2767, %v2751
      %v2816 = vpack.c.b16 %v2768, %v2752
      %v2817 = vpack.c.b16 %v2769, %v2753
      %v2818 = vpack.c.b16 %v2786, %v2770
      %v2819 = vpack.c.b16 %v2787, %v2771
      %v2820 = vpack.c.b16 %v2788, %v2772
      %v2821 = vpack.c.b16 %v2789, %v2773
      %v2822 = vpack.c.b16 %v2790, %v2774
      %v2823 = vpack.c.b16 %v2791, %v2775
      %v2824 = vpack.c.b16 %v2792, %v2776
      %v2825 = vpack.c.b16 %v2793, %v2777
      %v2826 = vpack.c.b16 %v2794, %v2778
      %v2827 = vpack.c.b16 %v2795, %v2779
      %v2828 = vpack.c.b16 %v2796, %v2780
      %v2829 = vpack.c.b16 %v2797, %v2781
      %v2830 = vpack.c.b16 %v2798, %v2782
      %v2831 = vpack.c.b16 %v2799, %v2783
      %v2832 = vpack.c.b16 %v2800, %v2784
      %v2833 = vpack.c.b16 %v2801, %v2785
      %v2867 = vsel %vm896, %v2621, 0
      %2869 = vmatprep.subr.bf16.mxu0 0
      %2870 = vmatpush1.bf16.msra.mxu0 0
      %2871 = vmatprep.subr.bf16.mxu0 0
      %2872 = vmatpush1.bf16.msra.mxu0 0
      %2873 = vmatprep.subr.bf16.mxu0 0
      %2874 = vmatpush1.bf16.msra.mxu0 0
      %2875 = vmatprep.subr.bf16.mxu0 0
      %2876 = vmatpush1.bf16.msra.mxu0 0
      %2877 = vmatprep.subr.bf16.mxu0 0
      %2878 = vmatpush1.bf16.msra.mxu0 0
      %2879 = vmatprep.subr.bf16.mxu0 0
      %2880 = vmatpush1.bf16.msra.mxu0 0
      %2881 = vmatprep.subr.bf16.mxu0 %v2819
      %2882 = vmatpush1.bf16.msra.mxu0 %v2818
      %2883 = vmatprep.subr.bf16.mxu0 %v2803
      %2884 = vmatpush1.bf16.msra.mxu0 %v2802
      %2885 = vmatprep.subr.bf16.mxu0 0
      %2886 = vmatpush2.bf16.msra.mxu0 0
      %2887 = vmatprep.subr.bf16.mxu0 0
      %2888 = vmatpush2.bf16.msra.mxu0 0
      %2889 = vmatprep.subr.bf16.mxu0 0
      %2890 = vmatpush2.bf16.msra.mxu0 0
      %2891 = vmatprep.subr.bf16.mxu0 0
      %2892 = vmatpush2.bf16.msra.mxu0 0
      %2893 = vmatprep.subr.bf16.mxu0 0
      %2894 = vmatpush2.bf16.msra.mxu0 0
      %2895 = vmatprep.subr.bf16.mxu0 0
      %2896 = vmatpush2.bf16.msra.mxu0 0
      %2897 = vmatprep.subr.bf16.mxu0 0
      %2898 = vmatpush2.bf16.msra.mxu0 0
      %2899 = vmatprep.subr.bf16.mxu0 0
      %2900 = vmatpush2.bf16.msra.mxu0 0
      %2901 = vmatprep.mubr.bf16.mxu0 0
      %2902 = vmatmul.mubr.bf16.gmra.mxu0 %v2867
      %v2903 = vpop.f32.mrf.mxu0
      %v2904 = vadd.f32 %v2629, %v2903
      %v2905 = vpop.f32.mrf.mxu0
      %v2906 = vadd.f32 %v2633, %v2905
      %v2907 = vpop.f32.mrf.mxu0
      %v2908 = vadd.f32 %v2629, %v2907
      %v2909 = vpop.f32.mrf.mxu0
      %v2910 = vadd.f32 %v2633, %v2909
      %2911 = vdwg.mxu0
      %2912 = vmatprep.subr.bf16.mxu0 0
      %2913 = vmatpush1.bf16.msra.mxu0 0
      %2914 = vmatprep.subr.bf16.mxu0 0
      %2915 = vmatpush1.bf16.msra.mxu0 0
      %2916 = vmatprep.subr.bf16.mxu0 0
      %2917 = vmatpush1.bf16.msra.mxu0 0
      %2918 = vmatprep.subr.bf16.mxu0 0
      %2919 = vmatpush1.bf16.msra.mxu0 0
      %2920 = vmatprep.subr.bf16.mxu0 0
      %2921 = vmatpush1.bf16.msra.mxu0 0
      %2922 = vmatprep.subr.bf16.mxu0 0
      %2923 = vmatpush1.bf16.msra.mxu0 0
      %2924 = vmatprep.subr.bf16.mxu0 %v2821
      %2925 = vmatpush1.bf16.msra.mxu0 %v2820
      %2926 = vmatprep.subr.bf16.mxu0 %v2805
      %2927 = vmatpush1.bf16.msra.mxu0 %v2804
      %2928 = vmatprep.subr.bf16.mxu0 0
      %2929 = vmatpush2.bf16.msra.mxu0 0
      %2930 = vmatprep.subr.bf16.mxu0 0
      %2931 = vmatpush2.bf16.msra.mxu0 0
      %2932 = vmatprep.subr.bf16.mxu0 0
      %2933 = vmatpush2.bf16.msra.mxu0 0
      %2934 = vmatprep.subr.bf16.mxu0 0
      %2935 = vmatpush2.bf16.msra.mxu0 0
      %2936 = vmatprep.subr.bf16.mxu0 0
      %2937 = vmatpush2.bf16.msra.mxu0 0
      %2938 = vmatprep.subr.bf16.mxu0 0
      %2939 = vmatpush2.bf16.msra.mxu0 0
      %2940 = vmatprep.subr.bf16.mxu0 0
      %2941 = vmatpush2.bf16.msra.mxu0 0
      %2942 = vmatprep.subr.bf16.mxu0 0
      %2943 = vmatpush2.bf16.msra.mxu0 0
      %2944 = vmatprep.mubr.bf16.mxu0 0
      %2945 = vmatmul.mubr.bf16.gmra.mxu0 %v2867
      %v2946 = vpop.f32.mrf.mxu0
      %v2947 = vadd.f32 %v2637, %v2946
      %v2948 = vpop.f32.mrf.mxu0
      %v2949 = vadd.f32 %v2641, %v2948
      %v2950 = vpop.f32.mrf.mxu0
      %v2951 = vadd.f32 %v2637, %v2950
      %v2952 = vpop.f32.mrf.mxu0
      %v2953 = vadd.f32 %v2641, %v2952
      %2954 = vdwg.mxu0
      %2955 = vmatprep.subr.bf16.mxu0 0
      %2956 = vmatpush1.bf16.msra.mxu0 0
      %2957 = vmatprep.subr.bf16.mxu0 0
      %2958 = vmatpush1.bf16.msra.mxu0 0
      %2959 = vmatprep.subr.bf16.mxu0 0
      %2960 = vmatpush1.bf16.msra.mxu0 0
      %2961 = vmatprep.subr.bf16.mxu0 0
      %2962 = vmatpush1.bf16.msra.mxu0 0
      %2963 = vmatprep.subr.bf16.mxu0 0
      %2964 = vmatpush1.bf16.msra.mxu0 0
      %2965 = vmatprep.subr.bf16.mxu0 0
      %2966 = vmatpush1.bf16.msra.mxu0 0
      %2967 = vmatprep.subr.bf16.mxu0 %v2823
      %2968 = vmatpush1.bf16.msra.mxu0 %v2822
      %2969 = vmatprep.subr.bf16.mxu0 %v2807
      %2970 = vmatpush1.bf16.msra.mxu0 %v2806
      %2971 = vmatprep.subr.bf16.mxu0 0
      %2972 = vmatpush2.bf16.msra.mxu0 0
      %2973 = vmatprep.subr.bf16.mxu0 0
      %2974 = vmatpush2.bf16.msra.mxu0 0
      %2975 = vmatprep.subr.bf16.mxu0 0
      %2976 = vmatpush2.bf16.msra.mxu0 0
      %2977 = vmatprep.subr.bf16.mxu0 0
      %2978 = vmatpush2.bf16.msra.mxu0 0
      %2979 = vmatprep.subr.bf16.mxu0 0
      %2980 = vmatpush2.bf16.msra.mxu0 0
      %2981 = vmatprep.subr.bf16.mxu0 0
      %2982 = vmatpush2.bf16.msra.mxu0 0
      %2983 = vmatprep.subr.bf16.mxu0 0
      %2984 = vmatpush2.bf16.msra.mxu0 0
      %2985 = vmatprep.subr.bf16.mxu0 0
      %2986 = vmatpush2.bf16.msra.mxu0 0
      %2987 = vmatprep.mubr.bf16.mxu0 0
      %2988 = vmatmul.mubr.bf16.gmra.mxu0 %v2867
      %v2989 = vpop.f32.mrf.mxu0
      %v2990 = vadd.f32 %v2645, %v2989
      %v2991 = vpop.f32.mrf.mxu0
      %v2992 = vadd.f32 %v2649, %v2991
      %v2993 = vpop.f32.mrf.mxu0
      %v2994 = vadd.f32 %v2645, %v2993
      %v2995 = vpop.f32.mrf.mxu0
      %v2996 = vadd.f32 %v2649, %v2995
      %2997 = vdwg.mxu0
      %2998 = vmatprep.subr.bf16.mxu0 0
      %2999 = vmatpush1.bf16.msra.mxu0 0
      %3000 = vmatprep.subr.bf16.mxu0 0
      %3001 = vmatpush1.bf16.msra.mxu0 0
      %3002 = vmatprep.subr.bf16.mxu0 0
      %3003 = vmatpush1.bf16.msra.mxu0 0
      %3004 = vmatprep.subr.bf16.mxu0 0
      %3005 = vmatpush1.bf16.msra.mxu0 0
      %3006 = vmatprep.subr.bf16.mxu0 0
      %3007 = vmatpush1.bf16.msra.mxu0 0
      %3008 = vmatprep.subr.bf16.mxu0 0
      %3009 = vmatpush1.bf16.msra.mxu0 0
      %3010 = vmatprep.subr.bf16.mxu0 %v2825
      %3011 = vmatpush1.bf16.msra.mxu0 %v2824
      %3012 = vmatprep.subr.bf16.mxu0 %v2809
      %3013 = vmatpush1.bf16.msra.mxu0 %v2808
      %3014 = vmatprep.subr.bf16.mxu0 0
      %3015 = vmatpush2.bf16.msra.mxu0 0
      %3016 = vmatprep.subr.bf16.mxu0 0
      %3017 = vmatpush2.bf16.msra.mxu0 0
      %3018 = vmatprep.subr.bf16.mxu0 0
      %3019 = vmatpush2.bf16.msra.mxu0 0
      %3020 = vmatprep.subr.bf16.mxu0 0
      %3021 = vmatpush2.bf16.msra.mxu0 0
      %3022 = vmatprep.subr.bf16.mxu0 0
      %3023 = vmatpush2.bf16.msra.mxu0 0
      %3024 = vmatprep.subr.bf16.mxu0 0
      %3025 = vmatpush2.bf16.msra.mxu0 0
      %3026 = vmatprep.subr.bf16.mxu0 0
      %3027 = vmatpush2.bf16.msra.mxu0 0
      %3028 = vmatprep.subr.bf16.mxu0 0
      %3029 = vmatpush2.bf16.msra.mxu0 0
      %3030 = vmatprep.mubr.bf16.mxu0 0
      %3031 = vmatmul.mubr.bf16.gmra.mxu0 %v2867
      %v3032 = vpop.f32.mrf.mxu0
      %v3033 = vadd.f32 %v2653, %v3032
      %v3034 = vpop.f32.mrf.mxu0
      %v3035 = vadd.f32 %v2657, %v3034
      %v3036 = vpop.f32.mrf.mxu0
      %v3037 = vadd.f32 %v2653, %v3036
      %v3038 = vpop.f32.mrf.mxu0
      %v3039 = vadd.f32 %v2657, %v3038
      %3040 = vdwg.mxu0
      %3041 = vmatprep.subr.bf16.mxu0 0
      %3042 = vmatpush1.bf16.msra.mxu0 0
      %3043 = vmatprep.subr.bf16.mxu0 0
      %3044 = vmatpush1.bf16.msra.mxu0 0
      %3045 = vmatprep.subr.bf16.mxu0 0
      %3046 = vmatpush1.bf16.msra.mxu0 0
      %3047 = vmatprep.subr.bf16.mxu0 0
      %3048 = vmatpush1.bf16.msra.mxu0 0
      %3049 = vmatprep.subr.bf16.mxu0 0
      %3050 = vmatpush1.bf16.msra.mxu0 0
      %3051 = vmatprep.subr.bf16.mxu0 0
      %3052 = vmatpush1.bf16.msra.mxu0 0
      %3053 = vmatprep.subr.bf16.mxu0 %v2827
      %3054 = vmatpush1.bf16.msra.mxu0 %v2826
      %3055 = vmatprep.subr.bf16.mxu0 %v2811
      %3056 = vmatpush1.bf16.msra.mxu0 %v2810
      %3057 = vmatprep.subr.bf16.mxu0 0
      %3058 = vmatpush2.bf16.msra.mxu0 0
      %3059 = vmatprep.subr.bf16.mxu0 0
      %3060 = vmatpush2.bf16.msra.mxu0 0
      %3061 = vmatprep.subr.bf16.mxu0 0
      %3062 = vmatpush2.bf16.msra.mxu0 0
      %3063 = vmatprep.subr.bf16.mxu0 0
      %3064 = vmatpush2.bf16.msra.mxu0 0
      %3065 = vmatprep.subr.bf16.mxu0 0
      %3066 = vmatpush2.bf16.msra.mxu0 0
      %3067 = vmatprep.subr.bf16.mxu0 0
      %3068 = vmatpush2.bf16.msra.mxu0 0
      %3069 = vmatprep.subr.bf16.mxu0 0
      %3070 = vmatpush2.bf16.msra.mxu0 0
      %3071 = vmatprep.subr.bf16.mxu0 0
      %3072 = vmatpush2.bf16.msra.mxu0 0
      %3073 = vmatprep.mubr.bf16.mxu0 0
      %3074 = vmatmul.mubr.bf16.gmra.mxu0 %v2867
      %v3075 = vpop.f32.mrf.mxu0
      %v3076 = vadd.f32 %v2661, %v3075
      %v3077 = vpop.f32.mrf.mxu0
      %v3078 = vadd.f32 %v2665, %v3077
      %v3079 = vpop.f32.mrf.mxu0
      %v3080 = vadd.f32 %v2661, %v3079
      %v3081 = vpop.f32.mrf.mxu0
      %v3082 = vadd.f32 %v2665, %v3081
      %3083 = vdwg.mxu0
      %3084 = vmatprep.subr.bf16.mxu0 0
      %3085 = vmatpush1.bf16.msra.mxu0 0
      %3086 = vmatprep.subr.bf16.mxu0 0
      %3087 = vmatpush1.bf16.msra.mxu0 0
      %3088 = vmatprep.subr.bf16.mxu0 0
      %3089 = vmatpush1.bf16.msra.mxu0 0
      %3090 = vmatprep.subr.bf16.mxu0 0
      %3091 = vmatpush1.bf16.msra.mxu0 0
      %3092 = vmatprep.subr.bf16.mxu0 0
      %3093 = vmatpush1.bf16.msra.mxu0 0
      %3094 = vmatprep.subr.bf16.mxu0 0
      %3095 = vmatpush1.bf16.msra.mxu0 0
      %3096 = vmatprep.subr.bf16.mxu0 %v2829
      %3097 = vmatpush1.bf16.msra.mxu0 %v2828
      %3098 = vmatprep.subr.bf16.mxu0 %v2813
      %3099 = vmatpush1.bf16.msra.mxu0 %v2812
      %3100 = vmatprep.subr.bf16.mxu0 0
      %3101 = vmatpush2.bf16.msra.mxu0 0
      %3102 = vmatprep.subr.bf16.mxu0 0
      %3103 = vmatpush2.bf16.msra.mxu0 0
      %3104 = vmatprep.subr.bf16.mxu0 0
      %3105 = vmatpush2.bf16.msra.mxu0 0
      %3106 = vmatprep.subr.bf16.mxu0 0
      %3107 = vmatpush2.bf16.msra.mxu0 0
      %3108 = vmatprep.subr.bf16.mxu0 0
      %3109 = vmatpush2.bf16.msra.mxu0 0
      %3110 = vmatprep.subr.bf16.mxu0 0
      %3111 = vmatpush2.bf16.msra.mxu0 0
      %3112 = vmatprep.subr.bf16.mxu0 0
      %3113 = vmatpush2.bf16.msra.mxu0 0
      %3114 = vmatprep.subr.bf16.mxu0 0
      %3115 = vmatpush2.bf16.msra.mxu0 0
      %3116 = vmatprep.mubr.bf16.mxu0 0
      %3117 = vmatmul.mubr.bf16.gmra.mxu0 %v2867
      %v3118 = vpop.f32.mrf.mxu0
      %v3119 = vadd.f32 %v2669, %v3118
      %v3120 = vpop.f32.mrf.mxu0
      %v3121 = vadd.f32 %v2673, %v3120
      %v3122 = vpop.f32.mrf.mxu0
      %v3123 = vadd.f32 %v2669, %v3122
      %v3124 = vpop.f32.mrf.mxu0
      %v3125 = vadd.f32 %v2673, %v3124
      %3126 = vdwg.mxu0
      %3127 = vmatprep.subr.bf16.mxu0 0
      %3128 = vmatpush1.bf16.msra.mxu0 0
      %3129 = vmatprep.subr.bf16.mxu0 0
      %3130 = vmatpush1.bf16.msra.mxu0 0
      %3131 = vmatprep.subr.bf16.mxu0 0
      %3132 = vmatpush1.bf16.msra.mxu0 0
      %3133 = vmatprep.subr.bf16.mxu0 0
      %3134 = vmatpush1.bf16.msra.mxu0 0
      %3135 = vmatprep.subr.bf16.mxu0 0
      %3136 = vmatpush1.bf16.msra.mxu0 0
      %3137 = vmatprep.subr.bf16.mxu0 0
      %3138 = vmatpush1.bf16.msra.mxu0 0
      %3139 = vmatprep.subr.bf16.mxu0 %v2831
      %3140 = vmatpush1.bf16.msra.mxu0 %v2830
      %3141 = vmatprep.subr.bf16.mxu0 %v2815
      %3142 = vmatpush1.bf16.msra.mxu0 %v2814
      %3143 = vmatprep.subr.bf16.mxu0 0
      %3144 = vmatpush2.bf16.msra.mxu0 0
      %3145 = vmatprep.subr.bf16.mxu0 0
      %3146 = vmatpush2.bf16.msra.mxu0 0
      %3147 = vmatprep.subr.bf16.mxu0 0
      %3148 = vmatpush2.bf16.msra.mxu0 0
      %3149 = vmatprep.subr.bf16.mxu0 0
      %3150 = vmatpush2.bf16.msra.mxu0 0
      %3151 = vmatprep.subr.bf16.mxu0 0
      %3152 = vmatpush2.bf16.msra.mxu0 0
      %3153 = vmatprep.subr.bf16.mxu0 0
      %3154 = vmatpush2.bf16.msra.mxu0 0
      %3155 = vmatprep.subr.bf16.mxu0 0
      %3156 = vmatpush2.bf16.msra.mxu0 0
      %3157 = vmatprep.subr.bf16.mxu0 0
      %3158 = vmatpush2.bf16.msra.mxu0 0
      %3159 = vmatprep.mubr.bf16.mxu0 0
      %3160 = vmatmul.mubr.bf16.gmra.mxu0 %v2867
      %v3161 = vpop.f32.mrf.mxu0
      %v3162 = vadd.f32 %v2677, %v3161
      %v3163 = vpop.f32.mrf.mxu0
      %v3164 = vadd.f32 %v2681, %v3163
      %v3165 = vpop.f32.mrf.mxu0
      %v3166 = vadd.f32 %v2677, %v3165
      %v3167 = vpop.f32.mrf.mxu0
      %v3168 = vadd.f32 %v2681, %v3167
      %3169 = vdwg.mxu0
      %3170 = vmatprep.subr.bf16.mxu0 0
      %3171 = vmatpush1.bf16.msra.mxu0 0
      %3172 = vmatprep.subr.bf16.mxu0 0
      %3173 = vmatpush1.bf16.msra.mxu0 0
      %3174 = vmatprep.subr.bf16.mxu0 0
      %3175 = vmatpush1.bf16.msra.mxu0 0
      %3176 = vmatprep.subr.bf16.mxu0 0
      %3177 = vmatpush1.bf16.msra.mxu0 0
      %3178 = vmatprep.subr.bf16.mxu0 0
      %3179 = vmatpush1.bf16.msra.mxu0 0
      %3180 = vmatprep.subr.bf16.mxu0 0
      %3181 = vmatpush1.bf16.msra.mxu0 0
      %3182 = vmatprep.subr.bf16.mxu0 %v2833
      %3183 = vmatpush1.bf16.msra.mxu0 %v2832
      %3184 = vmatprep.subr.bf16.mxu0 %v2817
      %3185 = vmatpush1.bf16.msra.mxu0 %v2816
      %3186 = vmatprep.subr.bf16.mxu0 0
      %3187 = vmatpush2.bf16.msra.mxu0 0
      %3188 = vmatprep.subr.bf16.mxu0 0
      %3189 = vmatpush2.bf16.msra.mxu0 0
      %3190 = vmatprep.subr.bf16.mxu0 0
      %3191 = vmatpush2.bf16.msra.mxu0 0
      %3192 = vmatprep.subr.bf16.mxu0 0
      %3193 = vmatpush2.bf16.msra.mxu0 0
      %3194 = vmatprep.subr.bf16.mxu0 0
      %3195 = vmatpush2.bf16.msra.mxu0 0
      %3196 = vmatprep.subr.bf16.mxu0 0
      %3197 = vmatpush2.bf16.msra.mxu0 0
      %3198 = vmatprep.subr.bf16.mxu0 0
      %3199 = vmatpush2.bf16.msra.mxu0 0
      %3200 = vmatprep.subr.bf16.mxu0 0
      %3201 = vmatpush2.bf16.msra.mxu0 0
      %3202 = vmatprep.mubr.bf16.mxu0 0
      %3203 = vmatmul.mubr.bf16.gmra.mxu0 %v2867
      %v3204 = vpop.f32.mrf.mxu0
      %v3205 = vadd.f32 %v2685, %v3204
      %v3206 = vpop.f32.mrf.mxu0
      %v3207 = vadd.f32 %v2689, %v3206
      %v3208 = vpop.f32.mrf.mxu0
      %v3209 = vadd.f32 %v2685, %v3208
      %v3210 = vpop.f32.mrf.mxu0
      %v3211 = vadd.f32 %v2689, %v3210
      %3212 = vdwg.mxu0
      %v3213 = vmax.f32 %v2904, 0.0
      %v3214 = vmax.f32 %v2906, 0.0
      %v3215 = vmax.f32 %v2947, 0.0
      %v3216 = vmax.f32 %v2949, 0.0
      %v3217 = vmax.f32 %v2990, 0.0
      %v3218 = vmax.f32 %v2992, 0.0
      %v3219 = vmax.f32 %v3033, 0.0
      %v3220 = vmax.f32 %v3035, 0.0
      %v3221 = vmax.f32 %v3076, 0.0
      %v3222 = vmax.f32 %v3078, 0.0
      %v3223 = vmax.f32 %v3119, 0.0
      %v3224 = vmax.f32 %v3121, 0.0
      %v3225 = vmax.f32 %v3162, 0.0
      %v3226 = vmax.f32 %v3164, 0.0
      %v3227 = vmax.f32 %v3205, 0.0
      %v3228 = vmax.f32 %v3207, 0.0
      %v3229 = vmax.f32 %v2908, 0.0
      %v3230 = vmax.f32 %v2910, 0.0
      %v3231 = vmax.f32 %v2951, 0.0
      %v3232 = vmax.f32 %v2953, 0.0
      %v3233 = vmax.f32 %v2994, 0.0
      %v3234 = vmax.f32 %v2996, 0.0
      %v3235 = vmax.f32 %v3037, 0.0
      %v3236 = vmax.f32 %v3039, 0.0
      %v3237 = vmax.f32 %v3080, 0.0
      %v3238 = vmax.f32 %v3082, 0.0
      %v3239 = vmax.f32 %v3123, 0.0
      %v3240 = vmax.f32 %v3125, 0.0
      %v3241 = vmax.f32 %v3166, 0.0
      %v3242 = vmax.f32 %v3168, 0.0
      %v3243 = vmax.f32 %v3209, 0.0
      %v3244 = vmax.f32 %v3211, 0.0
      %v3245 = vld [vmem:[%s24] sm:$0xf]
      %v3246 = vld [vmem:[%s24 + $0x4] sm:$0xf]
      %v3247 = vld [vmem:[%s24 + $0x8] sm:$0xf]
      %v3248 = vld [vmem:[%s24 + $0xc] sm:$0xf]
      %v3249 = vld [vmem:[%s24 + $0x10] sm:$0xf]
      %v3250 = vld [vmem:[%s24 + $0x14] sm:$0xf]
      %v3251 = vld [vmem:[%s24 + $0x18] sm:$0xf]
      %v3252 = vld [vmem:[%s24 + $0x1c] sm:$0xf]
      %v3253 = vld [vmem:[%s24 + $0x20] sm:$0xf]
      %v3254 = vld [vmem:[%s24 + $0x24] sm:$0xf]
      %v3255 = vld [vmem:[%s24 + $0x28] sm:$0xf]
      %v3256 = vld [vmem:[%s24 + $0x2c] sm:$0xf]
      %v3257 = vld [vmem:[%s24 + $0x30] sm:$0xf]
      %v3258 = vld [vmem:[%s24 + $0x34] sm:$0xf]
      %v3259 = vld [vmem:[%s24 + $0x38] sm:$0xf]
      %v3260 = vld [vmem:[%s24 + $0x3c] sm:$0xf]
      %v3261 = vld [vmem:[%s24 + $0x40] sm:$0xf]
      %v3262 = vld [vmem:[%s24 + $0x44] sm:$0xf]
      %v3263 = vld [vmem:[%s24 + $0x48] sm:$0xf]
      %v3264 = vld [vmem:[%s24 + $0x4c] sm:$0xf]
      %v3265 = vld [vmem:[%s24 + $0x50] sm:$0xf]
      %v3266 = vld [vmem:[%s24 + $0x54] sm:$0xf]
      %v3267 = vld [vmem:[%s24 + $0x58] sm:$0xf]
      %v3268 = vld [vmem:[%s24 + $0x5c] sm:$0xf]
      %v3269 = vld [vmem:[%s24 + $0x60] sm:$0xf]
      %v3270 = vld [vmem:[%s24 + $0x64] sm:$0xf]
      %v3271 = vld [vmem:[%s24 + $0x68] sm:$0xf]
      %v3272 = vld [vmem:[%s24 + $0x6c] sm:$0xf]
      %v3273 = vld [vmem:[%s24 + $0x70] sm:$0xf]
      %v3274 = vld [vmem:[%s24 + $0x74] sm:$0xf]
      %v3275 = vld [vmem:[%s24 + $0x78] sm:$0xf]
      %v3276 = vld [vmem:[%s24 + $0x7c] sm:$0xf]
      %v3277 = vld [vmem:[%s24 + $0x80] sm:$0xf]
      %v3278 = vld [vmem:[%s24 + $0x84] sm:$0xf]
      %v3279 = vld [vmem:[%s24 + $0x88] sm:$0xf]
      %v3280 = vld [vmem:[%s24 + $0x8c] sm:$0xf]
      %v3281 = vld [vmem:[%s24 + $0x90] sm:$0xf]
      %v3282 = vld [vmem:[%s24 + $0x94] sm:$0xf]
      %v3283 = vld [vmem:[%s24 + $0x98] sm:$0xf]
      %v3284 = vld [vmem:[%s24 + $0x9c] sm:$0xf]
      %v3285 = vld [vmem:[%s24 + $0xa0] sm:$0xf]
      %v3286 = vld [vmem:[%s24 + $0xa4] sm:$0xf]
      %v3287 = vld [vmem:[%s24 + $0xa8] sm:$0xf]
      %v3288 = vld [vmem:[%s24 + $0xac] sm:$0xf]
      %v3289 = vld [vmem:[%s24 + $0xb0] sm:$0xf]
      %v3290 = vld [vmem:[%s24 + $0xb4] sm:$0xf]
      %v3291 = vld [vmem:[%s24 + $0xb8] sm:$0xf]
      %v3292 = vld [vmem:[%s24 + $0xbc] sm:$0xf]
      %v3293 = vld [vmem:[%s24 + $0xc0] sm:$0xf]
      %v3294 = vld [vmem:[%s24 + $0xc4] sm:$0xf]
      %v3295 = vld [vmem:[%s24 + $0xc8] sm:$0xf]
      %v3296 = vld [vmem:[%s24 + $0xcc] sm:$0xf]
      %v3297 = vld [vmem:[%s24 + $0xd0] sm:$0xf]
      %v3298 = vld [vmem:[%s24 + $0xd4] sm:$0xf]
      %v3299 = vld [vmem:[%s24 + $0xd8] sm:$0xf]
      %v3300 = vld [vmem:[%s24 + $0xdc] sm:$0xf]
      %v3301 = vld [vmem:[%s24 + $0xe0] sm:$0xf]
      %v3302 = vld [vmem:[%s24 + $0xe4] sm:$0xf]
      %v3303 = vld [vmem:[%s24 + $0xe8] sm:$0xf]
      %v3304 = vld [vmem:[%s24 + $0xec] sm:$0xf]
      %v3305 = vld [vmem:[%s24 + $0xf0] sm:$0xf]
      %v3306 = vld [vmem:[%s24 + $0xf4] sm:$0xf]
      %v3307 = vld [vmem:[%s24 + $0xf8] sm:$0xf]
      %v3308 = vld [vmem:[%s24 + $0xfc] sm:$0xf]
      %v3309 = vld [vmem:[%s24 + $0x100] sm:$0xf]
      %v3310 = vld [vmem:[%s24 + $0x104] sm:$0xf]
      %v3311 = vld [vmem:[%s24 + $0x108] sm:$0xf]
      %v3312 = vld [vmem:[%s24 + $0x10c] sm:$0xf]
      %v3313 = vld [vmem:[%s24 + $0x110] sm:$0xf]
      %v3314 = vld [vmem:[%s24 + $0x114] sm:$0xf]
      %v3315 = vld [vmem:[%s24 + $0x118] sm:$0xf]
      %v3316 = vld [vmem:[%s24 + $0x11c] sm:$0xf]
      %v3317 = vld [vmem:[%s24 + $0x120] sm:$0xf]
      %v3318 = vld [vmem:[%s24 + $0x124] sm:$0xf]
      %v3319 = vld [vmem:[%s24 + $0x128] sm:$0xf]
      %v3320 = vld [vmem:[%s24 + $0x12c] sm:$0xf]
      %v3321 = vld [vmem:[%s24 + $0x130] sm:$0xf]
      %v3322 = vld [vmem:[%s24 + $0x134] sm:$0xf]
      %v3323 = vld [vmem:[%s24 + $0x138] sm:$0xf]
      %v3324 = vld [vmem:[%s24 + $0x13c] sm:$0xf]
      %v3325 = vld [vmem:[%s24 + $0x140] sm:$0xf]
      %v3326 = vld [vmem:[%s24 + $0x144] sm:$0xf]
      %v3327 = vld [vmem:[%s24 + $0x148] sm:$0xf]
      %v3328 = vld [vmem:[%s24 + $0x14c] sm:$0xf]
      %v3329 = vld [vmem:[%s24 + $0x150] sm:$0xf]
      %v3330 = vld [vmem:[%s24 + $0x154] sm:$0xf]
      %v3331 = vld [vmem:[%s24 + $0x158] sm:$0xf]
      %v3332 = vld [vmem:[%s24 + $0x15c] sm:$0xf]
      %v3333 = vld [vmem:[%s24 + $0x160] sm:$0xf]
      %v3334 = vld [vmem:[%s24 + $0x164] sm:$0xf]
      %v3335 = vld [vmem:[%s24 + $0x168] sm:$0xf]
      %v3336 = vld [vmem:[%s24 + $0x16c] sm:$0xf]
      %v3337 = vld [vmem:[%s24 + $0x170] sm:$0xf]
      %v3338 = vld [vmem:[%s24 + $0x174] sm:$0xf]
      %v3339 = vld [vmem:[%s24 + $0x178] sm:$0xf]
      %v3340 = vld [vmem:[%s24 + $0x17c] sm:$0xf]
      %v3341 = vld [vmem:[%s24 + $0x180] sm:$0xf]
      %v3342 = vld [vmem:[%s24 + $0x184] sm:$0xf]
      %v3343 = vld [vmem:[%s24 + $0x188] sm:$0xf]
      %v3344 = vld [vmem:[%s24 + $0x18c] sm:$0xf]
      %v3345 = vld [vmem:[%s24 + $0x190] sm:$0xf]
      %v3346 = vld [vmem:[%s24 + $0x194] sm:$0xf]
      %v3347 = vld [vmem:[%s24 + $0x198] sm:$0xf]
      %v3348 = vld [vmem:[%s24 + $0x19c] sm:$0xf]
      %v3349 = vld [vmem:[%s24 + $0x1a0] sm:$0xf]
      %v3350 = vld [vmem:[%s24 + $0x1a4] sm:$0xf]
      %v3351 = vld [vmem:[%s24 + $0x1a8] sm:$0xf]
      %v3352 = vld [vmem:[%s24 + $0x1ac] sm:$0xf]
      %v3353 = vld [vmem:[%s24 + $0x1b0] sm:$0xf]
      %v3354 = vld [vmem:[%s24 + $0x1b4] sm:$0xf]
      %v3355 = vld [vmem:[%s24 + $0x1b8] sm:$0xf]
      %v3356 = vld [vmem:[%s24 + $0x1bc] sm:$0xf]
      %v3357 = vld [vmem:[%s24 + $0x1c0] sm:$0xf]
      %v3358 = vld [vmem:[%s24 + $0x1c4] sm:$0xf]
      %v3359 = vld [vmem:[%s24 + $0x1c8] sm:$0xf]
      %v3360 = vld [vmem:[%s24 + $0x1cc] sm:$0xf]
      %v3361 = vld [vmem:[%s24 + $0x1d0] sm:$0xf]
      %v3362 = vld [vmem:[%s24 + $0x1d4] sm:$0xf]
      %v3363 = vld [vmem:[%s24 + $0x1d8] sm:$0xf]
      %v3364 = vld [vmem:[%s24 + $0x1dc] sm:$0xf]
      %v3365 = vld [vmem:[%s24 + $0x1e0] sm:$0xf]
      %v3366 = vld [vmem:[%s24 + $0x1e4] sm:$0xf]
      %v3367 = vld [vmem:[%s24 + $0x1e8] sm:$0xf]
      %v3368 = vld [vmem:[%s24 + $0x1ec] sm:$0xf]
      %v3369 = vld [vmem:[%s24 + $0x1f0] sm:$0xf]
      %v3370 = vld [vmem:[%s24 + $0x1f4] sm:$0xf]
      %v3371 = vld [vmem:[%s24 + $0x1f8] sm:$0xf]
      %v3372 = vld [vmem:[%s24 + $0x1fc] sm:$0xf]
      %v3373 = vld [vmem:[%s24 + $0x200] sm:$0xf]
      %v3374 = vld [vmem:[%s24 + $0x204] sm:$0xf]
      %v3375 = vld [vmem:[%s24 + $0x208] sm:$0xf]
      %v3376 = vld [vmem:[%s24 + $0x20c] sm:$0xf]
      %v3377 = vld [vmem:[%s24 + $0x210] sm:$0xf]
      %v3378 = vld [vmem:[%s24 + $0x214] sm:$0xf]
      %v3379 = vld [vmem:[%s24 + $0x218] sm:$0xf]
      %v3380 = vld [vmem:[%s24 + $0x21c] sm:$0xf]
      %v3381 = vld [vmem:[%s24 + $0x220] sm:$0xf]
      %v3382 = vld [vmem:[%s24 + $0x224] sm:$0xf]
      %v3383 = vld [vmem:[%s24 + $0x228] sm:$0xf]
      %v3384 = vld [vmem:[%s24 + $0x22c] sm:$0xf]
      %v3385 = vld [vmem:[%s24 + $0x230] sm:$0xf]
      %v3386 = vld [vmem:[%s24 + $0x234] sm:$0xf]
      %v3387 = vld [vmem:[%s24 + $0x238] sm:$0xf]
      %v3388 = vld [vmem:[%s24 + $0x23c] sm:$0xf]
      %v3389 = vld [vmem:[%s24 + $0x240] sm:$0xf]
      %v3390 = vld [vmem:[%s24 + $0x244] sm:$0xf]
      %v3391 = vld [vmem:[%s24 + $0x248] sm:$0xf]
      %v3392 = vld [vmem:[%s24 + $0x24c] sm:$0xf]
      %v3393 = vld [vmem:[%s24 + $0x250] sm:$0xf]
      %v3394 = vld [vmem:[%s24 + $0x254] sm:$0xf]
      %v3395 = vld [vmem:[%s24 + $0x258] sm:$0xf]
      %v3396 = vld [vmem:[%s24 + $0x25c] sm:$0xf]
      %v3397 = vld [vmem:[%s24 + $0x260] sm:$0xf]
      %v3398 = vld [vmem:[%s24 + $0x264] sm:$0xf]
      %v3399 = vld [vmem:[%s24 + $0x268] sm:$0xf]
      %v3400 = vld [vmem:[%s24 + $0x26c] sm:$0xf]
      %v3401 = vld [vmem:[%s24 + $0x270] sm:$0xf]
      %v3402 = vld [vmem:[%s24 + $0x274] sm:$0xf]
      %v3403 = vld [vmem:[%s24 + $0x278] sm:$0xf]
      %v3404 = vld [vmem:[%s24 + $0x27c] sm:$0xf]
      %v3405 = vld [vmem:[%s24 + $0x280] sm:$0xf]
      %v3406 = vld [vmem:[%s24 + $0x284] sm:$0xf]
      %v3407 = vld [vmem:[%s24 + $0x288] sm:$0xf]
      %v3408 = vld [vmem:[%s24 + $0x28c] sm:$0xf]
      %v3409 = vld [vmem:[%s24 + $0x290] sm:$0xf]
      %v3410 = vld [vmem:[%s24 + $0x294] sm:$0xf]
      %v3411 = vld [vmem:[%s24 + $0x298] sm:$0xf]
      %v3412 = vld [vmem:[%s24 + $0x29c] sm:$0xf]
      %v3413 = vld [vmem:[%s24 + $0x2a0] sm:$0xf]
      %v3414 = vld [vmem:[%s24 + $0x2a4] sm:$0xf]
      %v3415 = vld [vmem:[%s24 + $0x2a8] sm:$0xf]
      %v3416 = vld [vmem:[%s24 + $0x2ac] sm:$0xf]
      %v3417 = vld [vmem:[%s24 + $0x2b0] sm:$0xf]
      %v3418 = vld [vmem:[%s24 + $0x2b4] sm:$0xf]
      %v3419 = vld [vmem:[%s24 + $0x2b8] sm:$0xf]
      %v3420 = vld [vmem:[%s24 + $0x2bc] sm:$0xf]
      %v3421 = vld [vmem:[%s24 + $0x2c0] sm:$0xf]
      %v3422 = vld [vmem:[%s24 + $0x2c4] sm:$0xf]
      %v3423 = vld [vmem:[%s24 + $0x2c8] sm:$0xf]
      %v3424 = vld [vmem:[%s24 + $0x2cc] sm:$0xf]
      %v3425 = vld [vmem:[%s24 + $0x2d0] sm:$0xf]
      %v3426 = vld [vmem:[%s24 + $0x2d4] sm:$0xf]
      %v3427 = vld [vmem:[%s24 + $0x2d8] sm:$0xf]
      %v3428 = vld [vmem:[%s24 + $0x2dc] sm:$0xf]
      %v3429 = vld [vmem:[%s24 + $0x2e0] sm:$0xf]
      %v3430 = vld [vmem:[%s24 + $0x2e4] sm:$0xf]
      %v3431 = vld [vmem:[%s24 + $0x2e8] sm:$0xf]
      %v3432 = vld [vmem:[%s24 + $0x2ec] sm:$0xf]
      %v3433 = vld [vmem:[%s24 + $0x2f0] sm:$0xf]
      %v3434 = vld [vmem:[%s24 + $0x2f4] sm:$0xf]
      %v3435 = vld [vmem:[%s24 + $0x2f8] sm:$0xf]
      %v3436 = vld [vmem:[%s24 + $0x2fc] sm:$0xf]
      %v3437 = vld [vmem:[%s24 + $0x300] sm:$0xf]
      %v3438 = vld [vmem:[%s24 + $0x304] sm:$0xf]
      %v3439 = vld [vmem:[%s24 + $0x308] sm:$0xf]
      %v3440 = vld [vmem:[%s24 + $0x30c] sm:$0xf]
      %v3441 = vld [vmem:[%s24 + $0x310] sm:$0xf]
      %v3442 = vld [vmem:[%s24 + $0x314] sm:$0xf]
      %v3443 = vld [vmem:[%s24 + $0x318] sm:$0xf]
      %v3444 = vld [vmem:[%s24 + $0x31c] sm:$0xf]
      %v3445 = vld [vmem:[%s24 + $0x320] sm:$0xf]
      %v3446 = vld [vmem:[%s24 + $0x324] sm:$0xf]
      %v3447 = vld [vmem:[%s24 + $0x328] sm:$0xf]
      %v3448 = vld [vmem:[%s24 + $0x32c] sm:$0xf]
      %v3449 = vld [vmem:[%s24 + $0x330] sm:$0xf]
      %v3450 = vld [vmem:[%s24 + $0x334] sm:$0xf]
      %v3451 = vld [vmem:[%s24 + $0x338] sm:$0xf]
      %v3452 = vld [vmem:[%s24 + $0x33c] sm:$0xf]
      %v3453 = vld [vmem:[%s24 + $0x340] sm:$0xf]
      %v3454 = vld [vmem:[%s24 + $0x344] sm:$0xf]
      %v3455 = vld [vmem:[%s24 + $0x348] sm:$0xf]
      %v3456 = vld [vmem:[%s24 + $0x34c] sm:$0xf]
      %v3457 = vld [vmem:[%s24 + $0x350] sm:$0xf]
      %v3458 = vld [vmem:[%s24 + $0x354] sm:$0xf]
      %v3459 = vld [vmem:[%s24 + $0x358] sm:$0xf]
      %v3460 = vld [vmem:[%s24 + $0x35c] sm:$0xf]
      %v3461 = vld [vmem:[%s24 + $0x360] sm:$0xf]
      %v3462 = vld [vmem:[%s24 + $0x364] sm:$0xf]
      %v3463 = vld [vmem:[%s24 + $0x368] sm:$0xf]
      %v3464 = vld [vmem:[%s24 + $0x36c] sm:$0xf]
      %v3465 = vld [vmem:[%s24 + $0x370] sm:$0xf]
      %v3466 = vld [vmem:[%s24 + $0x374] sm:$0xf]
      %v3467 = vld [vmem:[%s24 + $0x378] sm:$0xf]
      %v3468 = vld [vmem:[%s24 + $0x37c] sm:$0xf]
      %v3469 = vld [vmem:[%s24 + $0x380] sm:$0xf]
      %v3470 = vld [vmem:[%s24 + $0x384] sm:$0xf]
      %v3471 = vld [vmem:[%s24 + $0x388] sm:$0xf]
      %v3472 = vld [vmem:[%s24 + $0x38c] sm:$0xf]
      %v3473 = vld [vmem:[%s24 + $0x390] sm:$0xf]
      %v3474 = vld [vmem:[%s24 + $0x394] sm:$0xf]
      %v3475 = vld [vmem:[%s24 + $0x398] sm:$0xf]
      %v3476 = vld [vmem:[%s24 + $0x39c] sm:$0xf]
      %v3477 = vld [vmem:[%s24 + $0x3a0] sm:$0xf]
      %v3478 = vld [vmem:[%s24 + $0x3a4] sm:$0xf]
      %v3479 = vld [vmem:[%s24 + $0x3a8] sm:$0xf]
      %v3480 = vld [vmem:[%s24 + $0x3ac] sm:$0xf]
      %v3481 = vld [vmem:[%s24 + $0x3b0] sm:$0xf]
      %v3482 = vld [vmem:[%s24 + $0x3b4] sm:$0xf]
      %v3483 = vld [vmem:[%s24 + $0x3b8] sm:$0xf]
      %v3484 = vld [vmem:[%s24 + $0x3bc] sm:$0xf]
      %v3485 = vld [vmem:[%s24 + $0x3c0] sm:$0xf]
      %v3486 = vld [vmem:[%s24 + $0x3c4] sm:$0xf]
      %v3487 = vld [vmem:[%s24 + $0x3c8] sm:$0xf]
      %v3488 = vld [vmem:[%s24 + $0x3cc] sm:$0xf]
      %v3489 = vld [vmem:[%s24 + $0x3d0] sm:$0xf]
      %v3490 = vld [vmem:[%s24 + $0x3d4] sm:$0xf]
      %v3491 = vld [vmem:[%s24 + $0x3d8] sm:$0xf]
      %v3492 = vld [vmem:[%s24 + $0x3dc] sm:$0xf]
      %v3493 = vld [vmem:[%s24 + $0x3e0] sm:$0xf]
      %v3494 = vld [vmem:[%s24 + $0x3e4] sm:$0xf]
      %v3495 = vld [vmem:[%s24 + $0x3e8] sm:$0xf]
      %v3496 = vld [vmem:[%s24 + $0x3ec] sm:$0xf]
      %v3497 = vld [vmem:[%s24 + $0x3f0] sm:$0xf]
      %v3498 = vld [vmem:[%s24 + $0x3f4] sm:$0xf]
      %v3499 = vld [vmem:[%s24 + $0x3f8] sm:$0xf]
      %v3500 = vld [vmem:[%s24 + $0x3fc] sm:$0xf]
      %v3501 = vpack.c.bf16 %v3229, %v3213
      %v3502 = vpack.c.bf16 %v3230, %v3214
      %v3503 = vpack.c.bf16 %v3231, %v3215
      %v3504 = vpack.c.bf16 %v3232, %v3216
      %v3505 = vpack.c.bf16 %v3233, %v3217
      %v3506 = vpack.c.bf16 %v3234, %v3218
      %v3507 = vpack.c.bf16 %v3235, %v3219
      %v3508 = vpack.c.bf16 %v3236, %v3220
      %v3509 = vpack.c.bf16 %v3237, %v3221
      %v3510 = vpack.c.bf16 %v3238, %v3222
      %v3511 = vpack.c.bf16 %v3239, %v3223
      %v3512 = vpack.c.bf16 %v3240, %v3224
      %v3513 = vpack.c.bf16 %v3241, %v3225
      %v3514 = vpack.c.bf16 %v3242, %v3226
      %v3515 = vpack.c.bf16 %v3243, %v3227
      %v3516 = vpack.c.bf16 %v3244, %v3228
      %v3773 = vunpack.c.l.b16 %v3245
      %v3774 = vunpack.c.l.b16 %v3246
      %v3775 = vunpack.c.l.b16 %v3247
      %v3776 = vunpack.c.l.b16 %v3248
      %v3777 = vunpack.c.l.b16 %v3249
      %v3778 = vunpack.c.l.b16 %v3250
      %v3779 = vunpack.c.l.b16 %v3251
      %v3780 = vunpack.c.l.b16 %v3252
      %v3781 = vunpack.c.l.b16 %v3253
      %v3782 = vunpack.c.l.b16 %v3254
      %v3783 = vunpack.c.l.b16 %v3255
      %v3784 = vunpack.c.l.b16 %v3256
      %v3785 = vunpack.c.l.b16 %v3257
      %v3786 = vunpack.c.l.b16 %v3258
      %v3787 = vunpack.c.l.b16 %v3259
      %v3788 = vunpack.c.l.b16 %v3260
      %v3789 = vunpack.c.l.b16 %v3261
      %v3790 = vunpack.c.l.b16 %v3262
      %v3791 = vunpack.c.l.b16 %v3263
      %v3792 = vunpack.c.l.b16 %v3264
      %v3793 = vunpack.c.l.b16 %v3265
      %v3794 = vunpack.c.l.b16 %v3266
      %v3795 = vunpack.c.l.b16 %v3267
      %v3796 = vunpack.c.l.b16 %v3268
      %v3797 = vunpack.c.l.b16 %v3269
      %v3798 = vunpack.c.l.b16 %v3270
      %v3799 = vunpack.c.l.b16 %v3271
      %v3800 = vunpack.c.l.b16 %v3272
      %v3801 = vunpack.c.l.b16 %v3273
      %v3802 = vunpack.c.l.b16 %v3274
      %v3803 = vunpack.c.l.b16 %v3275
      %v3804 = vunpack.c.l.b16 %v3276
      %v3805 = vunpack.c.l.b16 %v3277
      %v3806 = vunpack.c.l.b16 %v3278
      %v3807 = vunpack.c.l.b16 %v3279
      %v3808 = vunpack.c.l.b16 %v3280
      %v3809 = vunpack.c.l.b16 %v3281
      %v3810 = vunpack.c.l.b16 %v3282
      %v3811 = vunpack.c.l.b16 %v3283
      %v3812 = vunpack.c.l.b16 %v3284
      %v3813 = vunpack.c.l.b16 %v3285
      %v3814 = vunpack.c.l.b16 %v3286
      %v3815 = vunpack.c.l.b16 %v3287
      %v3816 = vunpack.c.l.b16 %v3288
      %v3817 = vunpack.c.l.b16 %v3289
      %v3818 = vunpack.c.l.b16 %v3290
      %v3819 = vunpack.c.l.b16 %v3291
      %v3820 = vunpack.c.l.b16 %v3292
      %v3821 = vunpack.c.l.b16 %v3293
      %v3822 = vunpack.c.l.b16 %v3294
      %v3823 = vunpack.c.l.b16 %v3295
      %v3824 = vunpack.c.l.b16 %v3296
      %v3825 = vunpack.c.l.b16 %v3297
      %v3826 = vunpack.c.l.b16 %v3298
      %v3827 = vunpack.c.l.b16 %v3299
      %v3828 = vunpack.c.l.b16 %v3300
      %v3829 = vunpack.c.l.b16 %v3301
      %v3830 = vunpack.c.l.b16 %v3302
      %v3831 = vunpack.c.l.b16 %v3303
      %v3832 = vunpack.c.l.b16 %v3304
      %v3833 = vunpack.c.l.b16 %v3305
      %v3834 = vunpack.c.l.b16 %v3306
      %v3835 = vunpack.c.l.b16 %v3307
      %v3836 = vunpack.c.l.b16 %v3308
      %v3837 = vunpack.c.l.b16 %v3309
      %v3838 = vunpack.c.l.b16 %v3310
      %v3839 = vunpack.c.l.b16 %v3311
      %v3840 = vunpack.c.l.b16 %v3312
      %v3841 = vunpack.c.l.b16 %v3313
      %v3842 = vunpack.c.l.b16 %v3314
      %v3843 = vunpack.c.l.b16 %v3315
      %v3844 = vunpack.c.l.b16 %v3316
      %v3845 = vunpack.c.l.b16 %v3317
      %v3846 = vunpack.c.l.b16 %v3318
      %v3847 = vunpack.c.l.b16 %v3319
      %v3848 = vunpack.c.l.b16 %v3320
      %v3849 = vunpack.c.l.b16 %v3321
      %v3850 = vunpack.c.l.b16 %v3322
      %v3851 = vunpack.c.l.b16 %v3323
      %v3852 = vunpack.c.l.b16 %v3324
      %v3853 = vunpack.c.l.b16 %v3325
      %v3854 = vunpack.c.l.b16 %v3326
      %v3855 = vunpack.c.l.b16 %v3327
      %v3856 = vunpack.c.l.b16 %v3328
      %v3857 = vunpack.c.l.b16 %v3329
      %v3858 = vunpack.c.l.b16 %v3330
      %v3859 = vunpack.c.l.b16 %v3331
      %v3860 = vunpack.c.l.b16 %v3332
      %v3861 = vunpack.c.l.b16 %v3333
      %v3862 = vunpack.c.l.b16 %v3334
      %v3863 = vunpack.c.l.b16 %v3335
      %v3864 = vunpack.c.l.b16 %v3336
      %v3865 = vunpack.c.l.b16 %v3337
      %v3866 = vunpack.c.l.b16 %v3338
      %v3867 = vunpack.c.l.b16 %v3339
      %v3868 = vunpack.c.l.b16 %v3340
      %v3869 = vunpack.c.l.b16 %v3341
      %v3870 = vunpack.c.l.b16 %v3342
      %v3871 = vunpack.c.l.b16 %v3343
      %v3872 = vunpack.c.l.b16 %v3344
      %v3873 = vunpack.c.l.b16 %v3345
      %v3874 = vunpack.c.l.b16 %v3346
      %v3875 = vunpack.c.l.b16 %v3347
      %v3876 = vunpack.c.l.b16 %v3348
      %v3877 = vunpack.c.l.b16 %v3349
      %v3878 = vunpack.c.l.b16 %v3350
      %v3879 = vunpack.c.l.b16 %v3351
      %v3880 = vunpack.c.l.b16 %v3352
      %v3881 = vunpack.c.l.b16 %v3353
      %v3882 = vunpack.c.l.b16 %v3354
      %v3883 = vunpack.c.l.b16 %v3355
      %v3884 = vunpack.c.l.b16 %v3356
      %v3885 = vunpack.c.l.b16 %v3357
      %v3886 = vunpack.c.l.b16 %v3358
      %v3887 = vunpack.c.l.b16 %v3359
      %v3888 = vunpack.c.l.b16 %v3360
      %v3889 = vunpack.c.l.b16 %v3361
      %v3890 = vunpack.c.l.b16 %v3362
      %v3891 = vunpack.c.l.b16 %v3363
      %v3892 = vunpack.c.l.b16 %v3364
      %v3893 = vunpack.c.l.b16 %v3365
      %v3894 = vunpack.c.l.b16 %v3366
      %v3895 = vunpack.c.l.b16 %v3367
      %v3896 = vunpack.c.l.b16 %v3368
      %v3897 = vunpack.c.l.b16 %v3369
      %v3898 = vunpack.c.l.b16 %v3370
      %v3899 = vunpack.c.l.b16 %v3371
      %v3900 = vunpack.c.l.b16 %v3372
      %v3901 = vunpack.c.l.b16 %v3373
      %v3902 = vunpack.c.l.b16 %v3374
      %v3903 = vunpack.c.l.b16 %v3375
      %v3904 = vunpack.c.l.b16 %v3376
      %v3905 = vunpack.c.l.b16 %v3377
      %v3906 = vunpack.c.l.b16 %v3378
      %v3907 = vunpack.c.l.b16 %v3379
      %v3908 = vunpack.c.l.b16 %v3380
      %v3909 = vunpack.c.l.b16 %v3381
      %v3910 = vunpack.c.l.b16 %v3382
      %v3911 = vunpack.c.l.b16 %v3383
      %v3912 = vunpack.c.l.b16 %v3384
      %v3913 = vunpack.c.l.b16 %v3385
      %v3914 = vunpack.c.l.b16 %v3386
      %v3915 = vunpack.c.l.b16 %v3387
      %v3916 = vunpack.c.l.b16 %v3388
      %v3917 = vunpack.c.l.b16 %v3389
      %v3918 = vunpack.c.l.b16 %v3390
      %v3919 = vunpack.c.l.b16 %v3391
      %v3920 = vunpack.c.l.b16 %v3392
      %v3921 = vunpack.c.l.b16 %v3393
      %v3922 = vunpack.c.l.b16 %v3394
      %v3923 = vunpack.c.l.b16 %v3395
      %v3924 = vunpack.c.l.b16 %v3396
      %v3925 = vunpack.c.l.b16 %v3397
      %v3926 = vunpack.c.l.b16 %v3398
      %v3927 = vunpack.c.l.b16 %v3399
      %v3928 = vunpack.c.l.b16 %v3400
      %v3929 = vunpack.c.l.b16 %v3401
      %v3930 = vunpack.c.l.b16 %v3402
      %v3931 = vunpack.c.l.b16 %v3403
      %v3932 = vunpack.c.l.b16 %v3404
      %v3933 = vunpack.c.l.b16 %v3405
      %v3934 = vunpack.c.l.b16 %v3406
      %v3935 = vunpack.c.l.b16 %v3407
      %v3936 = vunpack.c.l.b16 %v3408
      %v3937 = vunpack.c.l.b16 %v3409
      %v3938 = vunpack.c.l.b16 %v3410
      %v3939 = vunpack.c.l.b16 %v3411
      %v3940 = vunpack.c.l.b16 %v3412
      %v3941 = vunpack.c.l.b16 %v3413
      %v3942 = vunpack.c.l.b16 %v3414
      %v3943 = vunpack.c.l.b16 %v3415
      %v3944 = vunpack.c.l.b16 %v3416
      %v3945 = vunpack.c.l.b16 %v3417
      %v3946 = vunpack.c.l.b16 %v3418
      %v3947 = vunpack.c.l.b16 %v3419
      %v3948 = vunpack.c.l.b16 %v3420
      %v3949 = vunpack.c.l.b16 %v3421
      %v3950 = vunpack.c.l.b16 %v3422
      %v3951 = vunpack.c.l.b16 %v3423
      %v3952 = vunpack.c.l.b16 %v3424
      %v3953 = vunpack.c.l.b16 %v3425
      %v3954 = vunpack.c.l.b16 %v3426
      %v3955 = vunpack.c.l.b16 %v3427
      %v3956 = vunpack.c.l.b16 %v3428
      %v3957 = vunpack.c.l.b16 %v3429
      %v3958 = vunpack.c.l.b16 %v3430
      %v3959 = vunpack.c.l.b16 %v3431
      %v3960 = vunpack.c.l.b16 %v3432
      %v3961 = vunpack.c.l.b16 %v3433
      %v3962 = vunpack.c.l.b16 %v3434
      %v3963 = vunpack.c.l.b16 %v3435
      %v3964 = vunpack.c.l.b16 %v3436
      %v3965 = vunpack.c.l.b16 %v3437
      %v3966 = vunpack.c.l.b16 %v3438
      %v3967 = vunpack.c.l.b16 %v3439
      %v3968 = vunpack.c.l.b16 %v3440
      %v3969 = vunpack.c.l.b16 %v3441
      %v3970 = vunpack.c.l.b16 %v3442
      %v3971 = vunpack.c.l.b16 %v3443
      %v3972 = vunpack.c.l.b16 %v3444
      %v3973 = vunpack.c.l.b16 %v3445
      %v3974 = vunpack.c.l.b16 %v3446
      %v3975 = vunpack.c.l.b16 %v3447
      %v3976 = vunpack.c.l.b16 %v3448
      %v3977 = vunpack.c.l.b16 %v3449
      %v3978 = vunpack.c.l.b16 %v3450
      %v3979 = vunpack.c.l.b16 %v3451
      %v3980 = vunpack.c.l.b16 %v3452
      %v3981 = vunpack.c.l.b16 %v3453
      %v3982 = vunpack.c.l.b16 %v3454
      %v3983 = vunpack.c.l.b16 %v3455
      %v3984 = vunpack.c.l.b16 %v3456
      %v3985 = vunpack.c.l.b16 %v3457
      %v3986 = vunpack.c.l.b16 %v3458
      %v3987 = vunpack.c.l.b16 %v3459
      %v3988 = vunpack.c.l.b16 %v3460
      %v3989 = vunpack.c.l.b16 %v3461
      %v3990 = vunpack.c.l.b16 %v3462
      %v3991 = vunpack.c.l.b16 %v3463
      %v3992 = vunpack.c.l.b16 %v3464
      %v3993 = vunpack.c.l.b16 %v3465
      %v3994 = vunpack.c.l.b16 %v3466
      %v3995 = vunpack.c.l.b16 %v3467
      %v3996 = vunpack.c.l.b16 %v3468
      %v3997 = vunpack.c.l.b16 %v3469
      %v3998 = vunpack.c.l.b16 %v3470
      %v3999 = vunpack.c.l.b16 %v3471
      %v4000 = vunpack.c.l.b16 %v3472
      %v4001 = vunpack.c.l.b16 %v3473
      %v4002 = vunpack.c.l.b16 %v3474
      %v4003 = vunpack.c.l.b16 %v3475
      %v4004 = vunpack.c.l.b16 %v3476
      %v4005 = vunpack.c.l.b16 %v3477
      %v4006 = vunpack.c.l.b16 %v3478
      %v4007 = vunpack.c.l.b16 %v3479
      %v4008 = vunpack.c.l.b16 %v3480
      %v4009 = vunpack.c.l.b16 %v3481
      %v4010 = vunpack.c.l.b16 %v3482
      %v4011 = vunpack.c.l.b16 %v3483
      %v4012 = vunpack.c.l.b16 %v3484
      %v4013 = vunpack.c.l.b16 %v3485
      %v4014 = vunpack.c.l.b16 %v3486
      %v4015 = vunpack.c.l.b16 %v3487
      %v4016 = vunpack.c.l.b16 %v3488
      %v4017 = vunpack.c.l.b16 %v3489
      %v4018 = vunpack.c.l.b16 %v3490
      %v4019 = vunpack.c.l.b16 %v3491
      %v4020 = vunpack.c.l.b16 %v3492
      %v4021 = vunpack.c.l.b16 %v3493
      %v4022 = vunpack.c.l.b16 %v3494
      %v4023 = vunpack.c.l.b16 %v3495
      %v4024 = vunpack.c.l.b16 %v3496
      %v4025 = vunpack.c.l.b16 %v3497
      %v4026 = vunpack.c.l.b16 %v3498
      %v4027 = vunpack.c.l.b16 %v3499
      %v4028 = vunpack.c.l.b16 %v3500
      %v4029 = vpack.c.b16 %v3774, %v3773
      %v4030 = vpack.c.b16 %v3776, %v3775
      %v4031 = vpack.c.b16 %v3778, %v3777
      %v4032 = vpack.c.b16 %v3780, %v3779
      %v4033 = vpack.c.b16 %v3782, %v3781
      %v4034 = vpack.c.b16 %v3784, %v3783
      %v4035 = vpack.c.b16 %v3786, %v3785
      %v4036 = vpack.c.b16 %v3788, %v3787
      %v4037 = vpack.c.b16 %v3790, %v3789
      %v4038 = vpack.c.b16 %v3792, %v3791
      %v4039 = vpack.c.b16 %v3794, %v3793
      %v4040 = vpack.c.b16 %v3796, %v3795
      %v4041 = vpack.c.b16 %v3798, %v3797
      %v4042 = vpack.c.b16 %v3800, %v3799
      %v4043 = vpack.c.b16 %v3802, %v3801
      %v4044 = vpack.c.b16 %v3804, %v3803
      %v4045 = vpack.c.b16 %v3806, %v3805
      %v4046 = vpack.c.b16 %v3808, %v3807
      %v4047 = vpack.c.b16 %v3810, %v3809
      %v4048 = vpack.c.b16 %v3812, %v3811
      %v4049 = vpack.c.b16 %v3814, %v3813
      %v4050 = vpack.c.b16 %v3816, %v3815
      %v4051 = vpack.c.b16 %v3818, %v3817
      %v4052 = vpack.c.b16 %v3820, %v3819
      %v4053 = vpack.c.b16 %v3822, %v3821
      %v4054 = vpack.c.b16 %v3824, %v3823
      %v4055 = vpack.c.b16 %v3826, %v3825
      %v4056 = vpack.c.b16 %v3828, %v3827
      %v4057 = vpack.c.b16 %v3830, %v3829
      %v4058 = vpack.c.b16 %v3832, %v3831
      %v4059 = vpack.c.b16 %v3834, %v3833
      %v4060 = vpack.c.b16 %v3836, %v3835
      %v4061 = vpack.c.b16 %v3838, %v3837
      %v4062 = vpack.c.b16 %v3840, %v3839
      %v4063 = vpack.c.b16 %v3842, %v3841
      %v4064 = vpack.c.b16 %v3844, %v3843
      %v4065 = vpack.c.b16 %v3846, %v3845
      %v4066 = vpack.c.b16 %v3848, %v3847
      %v4067 = vpack.c.b16 %v3850, %v3849
      %v4068 = vpack.c.b16 %v3852, %v3851
      %v4069 = vpack.c.b16 %v3854, %v3853
      %v4070 = vpack.c.b16 %v3856, %v3855
      %v4071 = vpack.c.b16 %v3858, %v3857
      %v4072 = vpack.c.b16 %v3860, %v3859
      %v4073 = vpack.c.b16 %v3862, %v3861
      %v4074 = vpack.c.b16 %v3864, %v3863
      %v4075 = vpack.c.b16 %v3866, %v3865
      %v4076 = vpack.c.b16 %v3868, %v3867
      %v4077 = vpack.c.b16 %v3870, %v3869
      %v4078 = vpack.c.b16 %v3872, %v3871
      %v4079 = vpack.c.b16 %v3874, %v3873
      %v4080 = vpack.c.b16 %v3876, %v3875
      %v4081 = vpack.c.b16 %v3878, %v3877
      %v4082 = vpack.c.b16 %v3880, %v3879
      %v4083 = vpack.c.b16 %v3882, %v3881
      %v4084 = vpack.c.b16 %v3884, %v3883
      %v4085 = vpack.c.b16 %v3886, %v3885
      %v4086 = vpack.c.b16 %v3888, %v3887
      %v4087 = vpack.c.b16 %v3890, %v3889
      %v4088 = vpack.c.b16 %v3892, %v3891
      %v4089 = vpack.c.b16 %v3894, %v3893
      %v4090 = vpack.c.b16 %v3896, %v3895
      %v4091 = vpack.c.b16 %v3898, %v3897
      %v4092 = vpack.c.b16 %v3900, %v3899
      %v4093 = vpack.c.b16 %v3902, %v3901
      %v4094 = vpack.c.b16 %v3904, %v3903
      %v4095 = vpack.c.b16 %v3906, %v3905
      %v4096 = vpack.c.b16 %v3908, %v3907
      %v4097 = vpack.c.b16 %v3910, %v3909
      %v4098 = vpack.c.b16 %v3912, %v3911
      %v4099 = vpack.c.b16 %v3914, %v3913
      %v4100 = vpack.c.b16 %v3916, %v3915
      %v4101 = vpack.c.b16 %v3918, %v3917
      %v4102 = vpack.c.b16 %v3920, %v3919
      %v4103 = vpack.c.b16 %v3922, %v3921
      %v4104 = vpack.c.b16 %v3924, %v3923
      %v4105 = vpack.c.b16 %v3926, %v3925
      %v4106 = vpack.c.b16 %v3928, %v3927
      %v4107 = vpack.c.b16 %v3930, %v3929
      %v4108 = vpack.c.b16 %v3932, %v3931
      %v4109 = vpack.c.b16 %v3934, %v3933
      %v4110 = vpack.c.b16 %v3936, %v3935
      %v4111 = vpack.c.b16 %v3938, %v3937
      %v4112 = vpack.c.b16 %v3940, %v3939
      %v4113 = vpack.c.b16 %v3942, %v3941
      %v4114 = vpack.c.b16 %v3944, %v3943
      %v4115 = vpack.c.b16 %v3946, %v3945
      %v4116 = vpack.c.b16 %v3948, %v3947
      %v4117 = vpack.c.b16 %v3950, %v3949
      %v4118 = vpack.c.b16 %v3952, %v3951
      %v4119 = vpack.c.b16 %v3954, %v3953
      %v4120 = vpack.c.b16 %v3956, %v3955
      %v4121 = vpack.c.b16 %v3958, %v3957
      %v4122 = vpack.c.b16 %v3960, %v3959
      %v4123 = vpack.c.b16 %v3962, %v3961
      %v4124 = vpack.c.b16 %v3964, %v3963
      %v4125 = vpack.c.b16 %v3966, %v3965
      %v4126 = vpack.c.b16 %v3968, %v3967
      %v4127 = vpack.c.b16 %v3970, %v3969
      %v4128 = vpack.c.b16 %v3972, %v3971
      %v4129 = vpack.c.b16 %v3974, %v3973
      %v4130 = vpack.c.b16 %v3976, %v3975
      %v4131 = vpack.c.b16 %v3978, %v3977
      %v4132 = vpack.c.b16 %v3980, %v3979
      %v4133 = vpack.c.b16 %v3982, %v3981
      %v4134 = vpack.c.b16 %v3984, %v3983
      %v4135 = vpack.c.b16 %v3986, %v3985
      %v4136 = vpack.c.b16 %v3988, %v3987
      %v4137 = vpack.c.b16 %v3990, %v3989
      %v4138 = vpack.c.b16 %v3992, %v3991
      %v4139 = vpack.c.b16 %v3994, %v3993
      %v4140 = vpack.c.b16 %v3996, %v3995
      %v4141 = vpack.c.b16 %v3998, %v3997
      %v4142 = vpack.c.b16 %v4000, %v3999
      %v4143 = vpack.c.b16 %v4002, %v4001
      %v4144 = vpack.c.b16 %v4004, %v4003
      %v4145 = vpack.c.b16 %v4006, %v4005
      %v4146 = vpack.c.b16 %v4008, %v4007
      %v4147 = vpack.c.b16 %v4010, %v4009
      %v4148 = vpack.c.b16 %v4012, %v4011
      %v4149 = vpack.c.b16 %v4014, %v4013
      %v4150 = vpack.c.b16 %v4016, %v4015
      %v4151 = vpack.c.b16 %v4018, %v4017
      %v4152 = vpack.c.b16 %v4020, %v4019
      %v4153 = vpack.c.b16 %v4022, %v4021
      %v4154 = vpack.c.b16 %v4024, %v4023
      %v4155 = vpack.c.b16 %v4026, %v4025
      %v4156 = vpack.c.b16 %v4028, %v4027
      %4285 = vmatprep.subr.bf16.mxu0 0
      %4286 = vmatpush1.bf16.msra.mxu0 %v4036
      %4287 = vmatprep.subr.bf16.mxu0 0
      %4288 = vmatpush1.bf16.msra.mxu0 %v4035
      %4289 = vmatprep.subr.bf16.mxu0 0
      %4290 = vmatpush1.bf16.msra.mxu0 %v4034
      %4291 = vmatprep.subr.bf16.mxu0 0
      %4292 = vmatpush1.bf16.msra.mxu0 %v4033
      %4293 = vmatprep.subr.bf16.mxu0 0
      %4294 = vmatpush1.bf16.msra.mxu0 %v4032
      %4295 = vmatprep.subr.bf16.mxu0 0
      %4296 = vmatpush1.bf16.msra.mxu0 %v4031
      %4297 = vmatprep.subr.bf16.mxu0 0
      %4298 = vmatpush1.bf16.msra.mxu0 %v4030
      %4299 = vmatprep.subr.bf16.mxu0 0
      %4300 = vmatpush1.bf16.msra.mxu0 %v4029
      %4301 = vmatprep.subr.bf16.mxu0 0
      %4302 = vmatpush2.bf16.msra.mxu0 %v4044
      %4303 = vmatprep.subr.bf16.mxu0 0
      %4304 = vmatpush2.bf16.msra.mxu0 %v4043
      %4305 = vmatprep.subr.bf16.mxu0 0
      %4306 = vmatpush2.bf16.msra.mxu0 %v4042
      %4307 = vmatprep.subr.bf16.mxu0 0
      %4308 = vmatpush2.bf16.msra.mxu0 %v4041
      %4309 = vmatprep.subr.bf16.mxu0 0
      %4310 = vmatpush2.bf16.msra.mxu0 %v4040
      %4311 = vmatprep.subr.bf16.mxu0 0
      %4312 = vmatpush2.bf16.msra.mxu0 %v4039
      %4313 = vmatprep.subr.bf16.mxu0 0
      %4314 = vmatpush2.bf16.msra.mxu0 %v4038
      %4315 = vmatprep.subr.bf16.mxu0 0
      %4316 = vmatpush2.bf16.msra.mxu0 %v4037
      %4317 = vmatprep.mubr.bf16.mxu0 %v3502
      %4318 = vmatmul.mubr.bf16.gmra.mxu0 %v3501
      %v4319 = vpop.f32.mrf.mxu0
      %v4320 = vadd.f32 0.0, %v4319
      %v4321 = vpop.f32.mrf.mxu0
      %v4322 = vpop.f32.mrf.mxu0
      %v4323 = vadd.f32 0.0, %v4322
      %v4324 = vpop.f32.mrf.mxu0
      %4325 = vdwg.mxu0
      %4326 = vmatprep.subr.bf16.mxu0 0
      %4327 = vmatpush1.bf16.msra.mxu0 %v4052
      %4328 = vmatprep.subr.bf16.mxu0 0
      %4329 = vmatpush1.bf16.msra.mxu0 %v4051
      %4330 = vmatprep.subr.bf16.mxu0 0
      %4331 = vmatpush1.bf16.msra.mxu0 %v4050
      %4332 = vmatprep.subr.bf16.mxu0 0
      %4333 = vmatpush1.bf16.msra.mxu0 %v4049
      %4334 = vmatprep.subr.bf16.mxu0 0
      %4335 = vmatpush1.bf16.msra.mxu0 %v4048
      %4336 = vmatprep.subr.bf16.mxu0 0
      %4337 = vmatpush1.bf16.msra.mxu0 %v4047
      %4338 = vmatprep.subr.bf16.mxu0 0
      %4339 = vmatpush1.bf16.msra.mxu0 %v4046
      %4340 = vmatprep.subr.bf16.mxu0 0
      %4341 = vmatpush1.bf16.msra.mxu0 %v4045
      %4342 = vmatprep.subr.bf16.mxu0 0
      %4343 = vmatpush2.bf16.msra.mxu0 %v4060
      %4344 = vmatprep.subr.bf16.mxu0 0
      %4345 = vmatpush2.bf16.msra.mxu0 %v4059
      %4346 = vmatprep.subr.bf16.mxu0 0
      %4347 = vmatpush2.bf16.msra.mxu0 %v4058
      %4348 = vmatprep.subr.bf16.mxu0 0
      %4349 = vmatpush2.bf16.msra.mxu0 %v4057
      %4350 = vmatprep.subr.bf16.mxu0 0
      %4351 = vmatpush2.bf16.msra.mxu0 %v4056
      %4352 = vmatprep.subr.bf16.mxu0 0
      %4353 = vmatpush2.bf16.msra.mxu0 %v4055
      %4354 = vmatprep.subr.bf16.mxu0 0
      %4355 = vmatpush2.bf16.msra.mxu0 %v4054
      %4356 = vmatprep.subr.bf16.mxu0 0
      %4357 = vmatpush2.bf16.msra.mxu0 %v4053
      %4358 = vmatprep.mubr.bf16.mxu0 %v3504
      %4359 = vmatmul.mubr.bf16.gmra.mxu0 %v3503
      %v4360 = vpop.f32.mrf.mxu0
      %v4361 = vadd.f32 %v4320, %v4360
      %v4362 = vpop.f32.mrf.mxu0
      %v4363 = vpop.f32.mrf.mxu0
      %v4364 = vadd.f32 %v4323, %v4363
      %v4365 = vpop.f32.mrf.mxu0
      %4366 = vdwg.mxu0
      %4367 = vmatprep.subr.bf16.mxu0 0
      %4368 = vmatpush1.bf16.msra.mxu0 %v4068
      %4369 = vmatprep.subr.bf16.mxu0 0
      %4370 = vmatpush1.bf16.msra.mxu0 %v4067
      %4371 = vmatprep.subr.bf16.mxu0 0
      %4372 = vmatpush1.bf16.msra.mxu0 %v4066
      %4373 = vmatprep.subr.bf16.mxu0 0
      %4374 = vmatpush1.bf16.msra.mxu0 %v4065
      %4375 = vmatprep.subr.bf16.mxu0 0
      %4376 = vmatpush1.bf16.msra.mxu0 %v4064
      %4377 = vmatprep.subr.bf16.mxu0 0
      %4378 = vmatpush1.bf16.msra.mxu0 %v4063
      %4379 = vmatprep.subr.bf16.mxu0 0
      %4380 = vmatpush1.bf16.msra.mxu0 %v4062
      %4381 = vmatprep.subr.bf16.mxu0 0
      %4382 = vmatpush1.bf16.msra.mxu0 %v4061
      %4383 = vmatprep.subr.bf16.mxu0 0
      %4384 = vmatpush2.bf16.msra.mxu0 %v4076
      %4385 = vmatprep.subr.bf16.mxu0 0
      %4386 = vmatpush2.bf16.msra.mxu0 %v4075
      %4387 = vmatprep.subr.bf16.mxu0 0
      %4388 = vmatpush2.bf16.msra.mxu0 %v4074
      %4389 = vmatprep.subr.bf16.mxu0 0
      %4390 = vmatpush2.bf16.msra.mxu0 %v4073
      %4391 = vmatprep.subr.bf16.mxu0 0
      %4392 = vmatpush2.bf16.msra.mxu0 %v4072
      %4393 = vmatprep.subr.bf16.mxu0 0
      %4394 = vmatpush2.bf16.msra.mxu0 %v4071
      %4395 = vmatprep.subr.bf16.mxu0 0
      %4396 = vmatpush2.bf16.msra.mxu0 %v4070
      %4397 = vmatprep.subr.bf16.mxu0 0
      %4398 = vmatpush2.bf16.msra.mxu0 %v4069
      %4399 = vmatprep.mubr.bf16.mxu0 %v3506
      %4400 = vmatmul.mubr.bf16.gmra.mxu0 %v3505
      %v4401 = vpop.f32.mrf.mxu0
      %v4402 = vadd.f32 %v4361, %v4401
      %v4403 = vpop.f32.mrf.mxu0
      %v4404 = vpop.f32.mrf.mxu0
      %v4405 = vadd.f32 %v4364, %v4404
      %v4406 = vpop.f32.mrf.mxu0
      %4407 = vdwg.mxu0
      %4408 = vmatprep.subr.bf16.mxu0 0
      %4409 = vmatpush1.bf16.msra.mxu0 %v4084
      %4410 = vmatprep.subr.bf16.mxu0 0
      %4411 = vmatpush1.bf16.msra.mxu0 %v4083
      %4412 = vmatprep.subr.bf16.mxu0 0
      %4413 = vmatpush1.bf16.msra.mxu0 %v4082
      %4414 = vmatprep.subr.bf16.mxu0 0
      %4415 = vmatpush1.bf16.msra.mxu0 %v4081
      %4416 = vmatprep.subr.bf16.mxu0 0
      %4417 = vmatpush1.bf16.msra.mxu0 %v4080
      %4418 = vmatprep.subr.bf16.mxu0 0
      %4419 = vmatpush1.bf16.msra.mxu0 %v4079
      %4420 = vmatprep.subr.bf16.mxu0 0
      %4421 = vmatpush1.bf16.msra.mxu0 %v4078
      %4422 = vmatprep.subr.bf16.mxu0 0
      %4423 = vmatpush1.bf16.msra.mxu0 %v4077
      %4424 = vmatprep.subr.bf16.mxu0 0
      %4425 = vmatpush2.bf16.msra.mxu0 %v4092
      %4426 = vmatprep.subr.bf16.mxu0 0
      %4427 = vmatpush2.bf16.msra.mxu0 %v4091
      %4428 = vmatprep.subr.bf16.mxu0 0
      %4429 = vmatpush2.bf16.msra.mxu0 %v4090
      %4430 = vmatprep.subr.bf16.mxu0 0
      %4431 = vmatpush2.bf16.msra.mxu0 %v4089
      %4432 = vmatprep.subr.bf16.mxu0 0
      %4433 = vmatpush2.bf16.msra.mxu0 %v4088
      %4434 = vmatprep.subr.bf16.mxu0 0
      %4435 = vmatpush2.bf16.msra.mxu0 %v4087
      %4436 = vmatprep.subr.bf16.mxu0 0
      %4437 = vmatpush2.bf16.msra.mxu0 %v4086
      %4438 = vmatprep.subr.bf16.mxu0 0
      %4439 = vmatpush2.bf16.msra.mxu0 %v4085
      %4440 = vmatprep.mubr.bf16.mxu0 %v3508
      %4441 = vmatmul.mubr.bf16.gmra.mxu0 %v3507
      %v4442 = vpop.f32.mrf.mxu0
      %v4443 = vadd.f32 %v4402, %v4442
      %v4444 = vpop.f32.mrf.mxu0
      %v4445 = vpop.f32.mrf.mxu0
      %v4446 = vadd.f32 %v4405, %v4445
      %v4447 = vpop.f32.mrf.mxu0
      %4448 = vdwg.mxu0
      %4449 = vmatprep.subr.bf16.mxu0 0
      %4450 = vmatpush1.bf16.msra.mxu0 %v4100
      %4451 = vmatprep.subr.bf16.mxu0 0
      %4452 = vmatpush1.bf16.msra.mxu0 %v4099
      %4453 = vmatprep.subr.bf16.mxu0 0
      %4454 = vmatpush1.bf16.msra.mxu0 %v4098
      %4455 = vmatprep.subr.bf16.mxu0 0
      %4456 = vmatpush1.bf16.msra.mxu0 %v4097
      %4457 = vmatprep.subr.bf16.mxu0 0
      %4458 = vmatpush1.bf16.msra.mxu0 %v4096
      %4459 = vmatprep.subr.bf16.mxu0 0
      %4460 = vmatpush1.bf16.msra.mxu0 %v4095
      %4461 = vmatprep.subr.bf16.mxu0 0
      %4462 = vmatpush1.bf16.msra.mxu0 %v4094
      %4463 = vmatprep.subr.bf16.mxu0 0
      %4464 = vmatpush1.bf16.msra.mxu0 %v4093
      %4465 = vmatprep.subr.bf16.mxu0 0
      %4466 = vmatpush2.bf16.msra.mxu0 %v4108
      %4467 = vmatprep.subr.bf16.mxu0 0
      %4468 = vmatpush2.bf16.msra.mxu0 %v4107
      %4469 = vmatprep.subr.bf16.mxu0 0
      %4470 = vmatpush2.bf16.msra.mxu0 %v4106
      %4471 = vmatprep.subr.bf16.mxu0 0
      %4472 = vmatpush2.bf16.msra.mxu0 %v4105
      %4473 = vmatprep.subr.bf16.mxu0 0
      %4474 = vmatpush2.bf16.msra.mxu0 %v4104
      %4475 = vmatprep.subr.bf16.mxu0 0
      %4476 = vmatpush2.bf16.msra.mxu0 %v4103
      %4477 = vmatprep.subr.bf16.mxu0 0
      %4478 = vmatpush2.bf16.msra.mxu0 %v4102
      %4479 = vmatprep.subr.bf16.mxu0 0
      %4480 = vmatpush2.bf16.msra.mxu0 %v4101
      %4481 = vmatprep.mubr.bf16.mxu0 %v3510
      %4482 = vmatmul.mubr.bf16.gmra.mxu0 %v3509
      %v4483 = vpop.f32.mrf.mxu0
      %v4484 = vadd.f32 %v4443, %v4483
      %v4485 = vpop.f32.mrf.mxu0
      %v4486 = vpop.f32.mrf.mxu0
      %v4487 = vadd.f32 %v4446, %v4486
      %v4488 = vpop.f32.mrf.mxu0
      %4489 = vdwg.mxu0
      %4490 = vmatprep.subr.bf16.mxu0 0
      %4491 = vmatpush1.bf16.msra.mxu0 %v4116
      %4492 = vmatprep.subr.bf16.mxu0 0
      %4493 = vmatpush1.bf16.msra.mxu0 %v4115
      %4494 = vmatprep.subr.bf16.mxu0 0
      %4495 = vmatpush1.bf16.msra.mxu0 %v4114
      %4496 = vmatprep.subr.bf16.mxu0 0
      %4497 = vmatpush1.bf16.msra.mxu0 %v4113
      %4498 = vmatprep.subr.bf16.mxu0 0
      %4499 = vmatpush1.bf16.msra.mxu0 %v4112
      %4500 = vmatprep.subr.bf16.mxu0 0
      %4501 = vmatpush1.bf16.msra.mxu0 %v4111
      %4502 = vmatprep.subr.bf16.mxu0 0
      %4503 = vmatpush1.bf16.msra.mxu0 %v4110
      %4504 = vmatprep.subr.bf16.mxu0 0
      %4505 = vmatpush1.bf16.msra.mxu0 %v4109
      %4506 = vmatprep.subr.bf16.mxu0 0
      %4507 = vmatpush2.bf16.msra.mxu0 %v4124
      %4508 = vmatprep.subr.bf16.mxu0 0
      %4509 = vmatpush2.bf16.msra.mxu0 %v4123
      %4510 = vmatprep.subr.bf16.mxu0 0
      %4511 = vmatpush2.bf16.msra.mxu0 %v4122
      %4512 = vmatprep.subr.bf16.mxu0 0
      %4513 = vmatpush2.bf16.msra.mxu0 %v4121
      %4514 = vmatprep.subr.bf16.mxu0 0
      %4515 = vmatpush2.bf16.msra.mxu0 %v4120
      %4516 = vmatprep.subr.bf16.mxu0 0
      %4517 = vmatpush2.bf16.msra.mxu0 %v4119
      %4518 = vmatprep.subr.bf16.mxu0 0
      %4519 = vmatpush2.bf16.msra.mxu0 %v4118
      %4520 = vmatprep.subr.bf16.mxu0 0
      %4521 = vmatpush2.bf16.msra.mxu0 %v4117
      %4522 = vmatprep.mubr.bf16.mxu0 %v3512
      %4523 = vmatmul.mubr.bf16.gmra.mxu0 %v3511
      %v4524 = vpop.f32.mrf.mxu0
      %v4525 = vadd.f32 %v4484, %v4524
      %v4526 = vpop.f32.mrf.mxu0
      %v4527 = vpop.f32.mrf.mxu0
      %v4528 = vadd.f32 %v4487, %v4527
      %v4529 = vpop.f32.mrf.mxu0
      %4530 = vdwg.mxu0
      %4531 = vmatprep.subr.bf16.mxu0 0
      %4532 = vmatpush1.bf16.msra.mxu0 %v4132
      %4533 = vmatprep.subr.bf16.mxu0 0
      %4534 = vmatpush1.bf16.msra.mxu0 %v4131
      %4535 = vmatprep.subr.bf16.mxu0 0
      %4536 = vmatpush1.bf16.msra.mxu0 %v4130
      %4537 = vmatprep.subr.bf16.mxu0 0
      %4538 = vmatpush1.bf16.msra.mxu0 %v4129
      %4539 = vmatprep.subr.bf16.mxu0 0
      %4540 = vmatpush1.bf16.msra.mxu0 %v4128
      %4541 = vmatprep.subr.bf16.mxu0 0
      %4542 = vmatpush1.bf16.msra.mxu0 %v4127
      %4543 = vmatprep.subr.bf16.mxu0 0
      %4544 = vmatpush1.bf16.msra.mxu0 %v4126
      %4545 = vmatprep.subr.bf16.mxu0 0
      %4546 = vmatpush1.bf16.msra.mxu0 %v4125
      %4547 = vmatprep.subr.bf16.mxu0 0
      %4548 = vmatpush2.bf16.msra.mxu0 %v4140
      %4549 = vmatprep.subr.bf16.mxu0 0
      %4550 = vmatpush2.bf16.msra.mxu0 %v4139
      %4551 = vmatprep.subr.bf16.mxu0 0
      %4552 = vmatpush2.bf16.msra.mxu0 %v4138
      %4553 = vmatprep.subr.bf16.mxu0 0
      %4554 = vmatpush2.bf16.msra.mxu0 %v4137
      %4555 = vmatprep.subr.bf16.mxu0 0
      %4556 = vmatpush2.bf16.msra.mxu0 %v4136
      %4557 = vmatprep.subr.bf16.mxu0 0
      %4558 = vmatpush2.bf16.msra.mxu0 %v4135
      %4559 = vmatprep.subr.bf16.mxu0 0
      %4560 = vmatpush2.bf16.msra.mxu0 %v4134
      %4561 = vmatprep.subr.bf16.mxu0 0
      %4562 = vmatpush2.bf16.msra.mxu0 %v4133
      %4563 = vmatprep.mubr.bf16.mxu0 %v3514
      %4564 = vmatmul.mubr.bf16.gmra.mxu0 %v3513
      %v4565 = vpop.f32.mrf.mxu0
      %v4566 = vadd.f32 %v4525, %v4565
      %v4567 = vpop.f32.mrf.mxu0
      %v4568 = vpop.f32.mrf.mxu0
      %v4569 = vadd.f32 %v4528, %v4568
      %v4570 = vpop.f32.mrf.mxu0
      %4571 = vdwg.mxu0
      %4572 = vmatprep.subr.bf16.mxu0 0
      %4573 = vmatpush1.bf16.msra.mxu0 %v4148
      %4574 = vmatprep.subr.bf16.mxu0 0
      %4575 = vmatpush1.bf16.msra.mxu0 %v4147
      %4576 = vmatprep.subr.bf16.mxu0 0
      %4577 = vmatpush1.bf16.msra.mxu0 %v4146
      %4578 = vmatprep.subr.bf16.mxu0 0
      %4579 = vmatpush1.bf16.msra.mxu0 %v4145
      %4580 = vmatprep.subr.bf16.mxu0 0
      %4581 = vmatpush1.bf16.msra.mxu0 %v4144
      %4582 = vmatprep.subr.bf16.mxu0 0
      %4583 = vmatpush1.bf16.msra.mxu0 %v4143
      %4584 = vmatprep.subr.bf16.mxu0 0
      %4585 = vmatpush1.bf16.msra.mxu0 %v4142
      %4586 = vmatprep.subr.bf16.mxu0 0
      %4587 = vmatpush1.bf16.msra.mxu0 %v4141
      %4588 = vmatprep.subr.bf16.mxu0 0
      %4589 = vmatpush2.bf16.msra.mxu0 %v4156
      %4590 = vmatprep.subr.bf16.mxu0 0
      %4591 = vmatpush2.bf16.msra.mxu0 %v4155
      %4592 = vmatprep.subr.bf16.mxu0 0
      %4593 = vmatpush2.bf16.msra.mxu0 %v4154
      %4594 = vmatprep.subr.bf16.mxu0 0
      %4595 = vmatpush2.bf16.msra.mxu0 %v4153
      %4596 = vmatprep.subr.bf16.mxu0 0
      %4597 = vmatpush2.bf16.msra.mxu0 %v4152
      %4598 = vmatprep.subr.bf16.mxu0 0
      %4599 = vmatpush2.bf16.msra.mxu0 %v4151
      %4600 = vmatprep.subr.bf16.mxu0 0
      %4601 = vmatpush2.bf16.msra.mxu0 %v4150
      %4602 = vmatprep.subr.bf16.mxu0 0
      %4603 = vmatpush2.bf16.msra.mxu0 %v4149
      %4604 = vmatprep.mubr.bf16.mxu0 %v3516
      %4605 = vmatmul.mubr.bf16.gmra.mxu0 %v3515
      %v4606 = vpop.f32.mrf.mxu0
      %v4607 = vadd.f32 %v4566, %v4606
      %v4608 = vpop.f32.mrf.mxu0
      %v4609 = vpop.f32.mrf.mxu0
      %v4610 = vadd.f32 %v4569, %v4609
      %v4611 = vpop.f32.mrf.mxu0
      %4612 = vdwg.mxu0
      %v4613 = vadd.f32 %v2587, %v4607
      %v4614 = vadd.f32 %v2588, %v4610
      %v4615 = vld [vmem:[%s25] sm:$0x1]
      %v4617 = vlaneseq
      %v4618 = vshrl.u32 %v4617, 7
      %v4619 = vsub.s32 0, %v4618
      %v4620 = vrot.slane %v4615, %v4619
      %v4622 = vadd.f32 %v4613, %v4620
      %v4623 = vadd.f32 %v4614, %v4620
      %v4624 = vld [vmem:[%s26] sm:$0x1]
      %v4625 = vld [vmem:[%s27] sm:$0x1]
      %v4626 = vsel %vm896, %v4622, 0.0
      %4627 = vadd.xlane.f32.xlu0 %v4626
      %v4628 = vpop.xlane.xlu0 %4627
      %v4629 = vsel %vm896, %v4623, 0.0
      %4630 = vadd.xlane.f32.xlu0 %v4629
      %v4631 = vpop.xlane.xlu0 %4630
      %v4632 = vmul.f32 %v4628, %v1684
      %v4633 = vmul.f32 %v4631, %v1684
      %v4634 = vsub.f32 %v4622, %v4632
      %v4635 = vsub.f32 %v4623, %v4633
      %v4636 = vmul.f32 %v4634, %v4634
      %v4637 = vmul.f32 %v4635, %v4635
      %v4638 = vsel %vm896, %v4636, 0.0
      %4639 = vadd.xlane.f32.xlu0 %v4638
      %v4640 = vpop.xlane.xlu0 %4639
      %v4641 = vsel %vm896, %v4637, 0.0
      %4642 = vadd.xlane.f32.xlu0 %v4641
      %v4643 = vpop.xlane.xlu0 %4642
      %v4644 = vmul.f32 %v4640, %v1684
      %v4645 = vmul.f32 %v4643, %v1684
      %v4646 = vadd.f32 %v4644, 1e-05
      %v4647 = vadd.f32 %v4645, 1e-05
      %v4648 = vrsqrt.pop %v4646
      %v4649 = vrsqrt.pop %v4647
      %v4650 = vmul.f32 %v4634, %v4648
      %v4651 = vmul.f32 %v4635, %v4649
      %v4653 = vlaneseq
      %v4654 = vshrl.u32 %v4653, 7
      %v4655 = vsub.s32 0, %v4654
      %v4656 = vrot.slane %v4624, %v4655
      %v4658 = vmul.f32 %v4650, %v4656
      %v4659 = vmul.f32 %v4651, %v4656
      %v4661 = vlaneseq
      %v4662 = vshrl.u32 %v4661, 7
      %v4663 = vsub.s32 0, %v4662
      %v4664 = vrot.slane %v4625, %v4663
      %v4666 = vadd.f32 %v4658, %v4664
      %v4667 = vadd.f32 %v4659, %v4664
      %4668 = vst.msk [vmem:[%s865] sm:$0xff] %vm896, %v4666
      %4669 = vst.msk [vmem:[%s865 + $0x8] sm:$0xff] %vm896, %v4667
      %p4670 = scmp.lt.s32.totalorder %s39, 1
      %s4671 = scalar_select %p4670, %s39, 1
      %s4672 = smul.addr %s4671, 2
      %s4673 = smul.addr %s4672, 8
      %s4674 = scalar_lea.vmem %s28, %s4673
      // Predicated region
      $region133: #{csi2pointcloud_forward.6} parent=131 // pred_check
        %p4675 = pneg %p655
      $region134: #{csi2pointcloud_forward.6} parent=131 // pred_check_branch
        %4677 = sbr.rel (%p4675) target = $region136
      $region135: #{csi2pointcloud_forward.6} parent=131 // pred_region
        _
      $region136: #{csi2pointcloud_forward.6} parent=131 // pred_fallthru
        _
    $region132: #{csi2pointcloud_forward.6} parent=5 // pred_fallthru
      _
    %p4678 = scmp.le.s32.totalorder 2, %s34
    // Predicated region
    $region137: #{csi2pointcloud_forward.6} parent=5 // pred_check
      %p4679 = pneg %p4678
    $region138: #{csi2pointcloud_forward.6} parent=5 // pred_check_branch
      %4681 = sbr.rel (%p4679) target = $region140
    $region139: #{csi2pointcloud_forward.6} parent=5 // pred_region
      %s4682 = ssub.s32 %s34, 2
      // Predicated region
      $region141: #{csi2pointcloud_forward.6} parent=139 // pred_check
        %p4683 = pneg %p661
      $region142: #{csi2pointcloud_forward.6} parent=139 // pred_check_branch
        %4685 = sbr.rel (%p4683) target = $region144
      $region143: #{csi2pointcloud_forward.6} parent=139 // pred_region
        %p4686 = scmp.lt.s32.totalorder %s40, 1
        %s4687 = scalar_select %p4686, %s40, 1
        %s4688 = smul.addr %s4687, 2
        %s4689 = smul.addr %s4688, 8
        %s4690 = scalar_lea.vmem %s28, %s4689
      $region144: #{csi2pointcloud_forward.6} parent=139 // pred_fallthru
        _
    $region140: #{csi2pointcloud_forward.6} parent=5 // pred_fallthru
      _
  $region6: #{csi2pointcloud_forward.6} parent=0 // loop_footer
    %s38 = sadd.s32 1, %s34
  $region7: #{csi2pointcloud_forward.6} parent=0 // loop_footer_branch
    %33 = sbr.rel target = $region3
  $region8: #{csi2pointcloud_forward.6} parent=0 // loop_exit
    _

</llo_original>
